<compile_context>
chip_gen: v7x
topology: tpu7x:2x2x1
jax: 0.10.0
libtpu: 0.0.40
codegen_flags: <defaults>
</compile_context>

<pallas_src>
import functools

import jax
import jax.numpy as jnp
from jax.experimental import pallas as pl
from jax.experimental.pallas import tpu as pltpu

# ----------------------------------------------------------------------------- #
# Static configuration (never traced)
# ----------------------------------------------------------------------------- #
BN_EPS = 1e-3
CPAD = 128          # channel lane padding
STEM_KPAD = 32      # stem im2col K (3*3*3 = 27) padded
NUM_CLASSES = 7
STEM_OUT = 16
HEAD_OUT = 64
VMEM_LIMIT = 32 * 1024 * 1024
# Block configs (static):
#   block 1: 16 -> 16, expand 1, k3 s1, se csq=4, id_skip
#   block 2: 16 -> 24, expand 4, k3 s2, se csq=4
#   block 3: 24 -> 24, expand 4, k3 s1, se csq=6, id_skip


def _swish(x):
    return x * jax.nn.sigmoid(x)


# ----------------------------------------------------------------------------- #
# In-kernel building blocks (called during tracing of the kernel bodies)
# ----------------------------------------------------------------------------- #
def _dw3x3_s1(y_hwc, w_taps, bias, pad_ref, H, W):
    """Depthwise 3x3 stride-1 SAME conv + BN bias + swish via a haloed VMEM slab.

    y_hwc:   (H, W, C) f32 post-swish activation (the conv's zero-padded input).
    w_taps:  (9, 1, C) f32 depthwise weights (BN scale folded in).
    bias:    (1, C) f32 BN bias.
    pad_ref: VMEM scratch (H+2, Wp, C) f32, Wp >= W+9 and a multiple of 8.
             Data lives at rows 1..H, cols 8..8+W-1 (sublane-aligned store).
             Only the halo ring that the taps actually read is zeroed each step.
    """
    C = y_hwc.shape[-1]
    Wp = pad_ref.shape[1]
    zrow = jnp.zeros((1, Wp, C), jnp.float32)
    zcol = jnp.zeros((H, 1, C), jnp.float32)
    pad_ref[0:1, :, :] = zrow                   # top halo row
    pad_ref[H + 1:H + 2, :, :] = zrow           # bottom halo row
    pad_ref[1:H + 1, 7:8, :] = zcol             # left halo column (only col read)
    pad_ref[1:H + 1, 8 + W:9 + W, :] = zcol     # right halo column
    pad_ref[1:H + 1, 8:8 + W, :] = y_hwc        # aligned interior store
    acc = None
    for dj in range(3):                         # one slab read per column tap
        colslab = pad_ref[:, 7 + dj:7 + dj + W, :]
        for di in range(3):                     # row shifts: outer-dim slices (free)
            tap = colslab[di:di + H, :, :] * w_taps[3 * di + dj:3 * di + dj + 1]
            acc = tap if acc is None else acc + tap
    return _swish(acc + bias.reshape(1, 1, C))


def _se_gate(yd_flat, inv_hw, rw_ref, rb_ref, ew_ref, eb_ref):
    """Squeeze-excite gate from the (HW, C) post-swish depthwise activation."""
    pooled = jnp.sum(yd_flat, axis=0, keepdims=True) * inv_hw          # (1, C) f32
    z = jnp.dot(pooled.astype(jnp.bfloat16), rw_ref[...],
                preferred_element_type=jnp.float32) + rb_ref[...]
    z = _swish(z)
    z = jnp.dot(z.astype(jnp.bfloat16), ew_ref[...],
                preferred_element_type=jnp.float32) + eb_ref[...]
    return jax.nn.sigmoid(z)                                           # (1, C) f32


def _se_project(yd_flat, gate, w_ref, b_ref, residual=None):
    """SE gate (bf16) * activation, project 1x1 + folded-BN bias (+ residual)."""
    xg = yd_flat.astype(jnp.bfloat16) * gate.astype(jnp.bfloat16)
    y = jnp.dot(xg, w_ref[...], preferred_element_type=jnp.float32) + b_ref[...]
    if residual is not None:
        y = y + residual
    return y


# ----------------------------------------------------------------------------- #
# Kernel A: stem + MBConv-1 + MBConv-2 expand (one sample per grid step)
# ----------------------------------------------------------------------------- #
def _front_kernel(patch_ref, stem_w_ref, stem_b_ref,
                  dw1_w_ref, dw1_b_ref,
                  se1_rw_ref, se1_rb_ref, se1_ew_ref, se1_eb_ref,
                  proj1_w_ref, proj1_b_ref,
                  exp2_w_ref, exp2_b_ref,
                  e_ref, pad_ref, *, H, W):
    HW = H * W
    # stem 3x3 s2 conv (im2col matmul) + folded BN + swish
    y0 = _swish(jnp.dot(patch_ref[...], stem_w_ref[...],
                        preferred_element_type=jnp.float32) + stem_b_ref[...])
    # MBConv-1 (expand_ratio == 1): depthwise 3x3 s1 + BN + swish
    yd = _dw3x3_s1(y0.reshape(H, W, CPAD), dw1_w_ref[...], dw1_b_ref[...],
                   pad_ref, H, W).reshape(HW, CPAD)
    # inline SE + project + folded BN + residual (in == out, stride 1)
    g = _se_gate(yd, 1.0 / HW, se1_rw_ref, se1_rb_ref, se1_ew_ref, se1_eb_ref)
    y1 = _se_project(yd, g, proj1_w_ref, proj1_b_ref, residual=y0)
    # MBConv-2 expand 1x1 + folded BN + swish (kept fused; bf16 out for phase split)
    e = _swish(jnp.dot(y1.astype(jnp.bfloat16), exp2_w_ref[...],
                       preferred_element_type=jnp.float32) + exp2_b_ref[...])
    e_ref[...] = e.astype(e_ref.dtype)


# ----------------------------------------------------------------------------- #
# Kernel B: MBConv-2 DW/SE/project + MBConv-3 + head + GAP + FC
# ----------------------------------------------------------------------------- #
def _back_kernel(xp_ref,
                 dw2_w_ref, dw2_b_ref, se2_rw_ref, se2_rb_ref, se2_ew_ref,
                 se2_eb_ref, proj2_w_ref, proj2_b_ref,
                 exp3_w_ref, exp3_b_ref,
                 dw3_w_ref, dw3_b_ref, se3_rw_ref, se3_rb_ref, se3_ew_ref,
                 se3_eb_ref, proj3_w_ref, proj3_b_ref,
                 head_w_ref, head_b_ref, fc_w_ref, fc_b_ref,
                 out_ref, pad_ref, *, PH, OH, OW):
    HW = OH * OW
    # MBConv-2 depthwise 3x3 s2 on the phase-split input (contiguous static taps)
    w2 = dw2_w_ref[...]
    acc = None
    for di in range(3):
        for dj in range(3):
            p = (di % 2) * 2 + (dj % 2)
            r0 = p * PH + di // 2
            c0 = dj // 2
            tap = (xp_ref[r0:r0 + OH, c0:c0 + OW, :].astype(jnp.float32)
                   * w2[3 * di + dj:3 * di + dj + 1])
            acc = tap if acc is None else acc + tap
    yd2 = _swish(acc + dw2_b_ref[...].reshape(1, 1, CPAD)).reshape(HW, CPAD)
    g2 = _se_gate(yd2, 1.0 / HW, se2_rw_ref, se2_rb_ref, se2_ew_ref, se2_eb_ref)
    y2 = _se_project(yd2, g2, proj2_w_ref, proj2_b_ref)          # no residual (s=2)

    # MBConv-3: expand + BN + swish, depthwise s1, SE, project + BN + residual
    e3 = _swish(jnp.dot(y2.astype(jnp.bfloat16), exp3_w_ref[...],
                        preferred_element_type=jnp.float32) + exp3_b_ref[...])
    yd3 = _dw3x3_s1(e3.reshape(OH, OW, CPAD), dw3_w_ref[...], dw3_b_ref[...],
                    pad_ref, OH, OW).reshape(HW, CPAD)
    g3 = _se_gate(yd3, 1.0 / HW, se3_rw_ref, se3_rb_ref, se3_ew_ref, se3_eb_ref)
    y3 = _se_project(yd3, g3, proj3_w_ref, proj3_b_ref, residual=y2)

    # head 1x1 + BN + swish + global-avg-pool + (dropout = identity) + FC
    h = _swish(jnp.dot(y3.astype(jnp.bfloat16), head_w_ref[...],
                       preferred_element_type=jnp.float32) + head_b_ref[...])
    pooled = jnp.sum(h, axis=0, keepdims=True) * (1.0 / HW)
    out_ref[...] = (jnp.dot(pooled.astype(jnp.bfloat16), fc_w_ref[...],
                            preferred_element_type=jnp.float32) + fc_b_ref[...])


# ----------------------------------------------------------------------------- #
# pallas_call wrappers
# ----------------------------------------------------------------------------- #
def _rep(arr):
    nd = arr.ndim
    return pl.BlockSpec(arr.shape, lambda n: (0,) * nd)


def _halo_width(w):
    return -(-(w + 9) // 8) * 8          # >= w + 9, multiple of 8 sublanes


def front_pass(patches, p, *, H, W):
    N, HW, K = patches.shape
    weights = [p['stem_w'], p['stem_b'], p['dw1_w'], p['dw1_b'],
               p['se1_rw'], p['se1_rb'], p['se1_ew'], p['se1_eb'],
               p['proj1_w'], p['proj1_b'], p['exp2_w'], p['exp2_b']]
    return pl.pallas_call(
        functools.partial(_front_kernel, H=H, W=W),
        grid=(N,),
        in_specs=[pl.BlockSpec((None, HW, K), lambda n: (n, 0, 0))]
                 + [_rep(w) for w in weights],
        out_specs=pl.BlockSpec((None, HW, CPAD), lambda n: (n, 0, 0)),
        out_shape=jax.ShapeDtypeStruct((N, HW, CPAD), jnp.bfloat16),
        scratch_shapes=[pltpu.VMEM((H + 2, _halo_width(W), CPAD), jnp.float32)],
        compiler_params=pltpu.CompilerParams(
            dimension_semantics=("parallel",), vmem_limit_bytes=VMEM_LIMIT),
    )(patches, *weights)


def back_pass(xp, p, *, PH, OH, OW):
    N = xp.shape[0]
    weights = [p['dw2_w'], p['dw2_b'], p['se2_rw'], p['se2_rb'], p['se2_ew'],
               p['se2_eb'], p['proj2_w'], p['proj2_b'],
               p['exp3_w'], p['exp3_b'],
               p['dw3_w'], p['dw3_b'], p['se3_rw'], p['se3_rb'], p['se3_ew'],
               p['se3_eb'], p['proj3_w'], p['proj3_b'],
               p['head_w'], p['head_b'], p['fc_w'], p['fc_b']]
    return pl.pallas_call(
        functools.partial(_back_kernel, PH=PH, OH=OH, OW=OW),
        grid=(N,),
        in_specs=[pl.BlockSpec((None,) + xp.shape[1:], lambda n: (n, 0, 0, 0))]
                 + [_rep(w) for w in weights],
        out_specs=pl.BlockSpec((None, 1, CPAD), lambda n: (n, 0, 0)),
        out_shape=jax.ShapeDtypeStruct((N, 1, CPAD), jnp.float32),
        scratch_shapes=[pltpu.VMEM((OH + 2, _halo_width(OW), CPAD), jnp.float32)],
        compiler_params=pltpu.CompilerParams(
            dimension_semantics=("parallel",), vmem_limit_bytes=VMEM_LIMIT),
    )(xp, *weights)


# ----------------------------------------------------------------------------- #
# Plain-JAX layout plumbing (no compute): stem im2col, stride-2 phase split
# ----------------------------------------------------------------------------- #
def _same_pad(h, w, k, s):
    oh = -(-h // s)
    ow = -(-w // s)
    ph = max((oh - 1) * s + k - h, 0)
    pw = max((ow - 1) * s + k - w, 0)
    return (ph // 2, ph - ph // 2), (pw // 2, pw - pw // 2), oh, ow


def stem_patches(x_nhwc):
    # TODO(synk): stem im2col stays host-side; duplication of the tiny 3-channel
    # input is negligible at these sizes.
    N, H, W, C = x_nhwc.shape
    (pt, pb), (pleft, pright), oh, ow = _same_pad(H, W, 3, 2)
    xp = jnp.pad(x_nhwc, ((0, 0), (pt, pb), (pleft, pright), (0, 0)))
    cols = [xp[:, i:i + 2 * oh:2, j:j + 2 * ow:2, :]
            for i in range(3) for j in range(3)]
    patches = jnp.concatenate(cols, axis=-1).reshape(N, oh * ow, 9 * C)
    patches = jnp.pad(patches, ((0, 0), (0, 0), (0, STEM_KPAD - 9 * C)))
    return patches.astype(jnp.bfloat16), oh, ow


def phase_split(e_nhwc):
    # Zero-pad (SAME, k=3 s=2 -> pads are post-swish zeros) + space-to-depth so the
    # stride-2 depthwise taps are contiguous static slices; width padded to 8 lanes.
    N, H, W, C = e_nhwc.shape
    (pt, pb), (pleft, pright), oh, ow = _same_pad(H, W, 3, 2)
    assert pt == 0 and pleft == 0          # holds for even H, W with k=3, s=2
    Hp = -(-(H + pb) // 2) * 2
    Wp = -(-(W + pright) // 2) * 2
    xp = jnp.pad(e_nhwc, ((0, 0), (0, Hp - H), (0, Wp - W), (0, 0)))
    PH, PW = Hp // 2, Wp // 2
    xr = jnp.transpose(xp.reshape(N, PH, 2, PW, 2, C), (0, 2, 4, 1, 3, 5))
    xr = xr.reshape(N, 4 * PH, PW, C)
    PWp = -(-PW // 8) * 8
    xr = jnp.pad(xr, ((0, 0), (0, 0), (0, PWp - PW), (0, 0)))
    return xr, PH, oh, ow


# ----------------------------------------------------------------------------- #
# Synthetic parameters (deterministic; BN folded, channels zero-padded to 128)
# ----------------------------------------------------------------------------- #
def _pad1(a, n):
    return jnp.pad(a, (0, n - a.shape[0]))


def _pad2(a, r, c):
    return jnp.pad(a, ((0, r - a.shape[0]), (0, c - a.shape[1])))


def _bn_fold(key, c):
    k1, k2, k3, k4 = jax.random.split(key, 4)
    gamma = jax.random.uniform(k1, (c,), minval=0.5, maxval=1.5)
    beta = jax.random.normal(k2, (c,)) * 0.1
    mean = jax.random.normal(k3, (c,)) * 0.1
    var = jax.random.uniform(k4, (c,), minval=0.5, maxval=1.5)
    scale = gamma / jnp.sqrt(var + BN_EPS)
    bias = beta - mean * scale
    return scale, bias


def make_params(key):
    keys = iter(jax.random.split(key, 64))
    nk = lambda: next(keys)  # noqa: E731

    def conv_bn(cin, cout, kpad=CPAD):
        w = jax.random.normal(nk(), (cin, cout)) * 0.1
        scale, bias = _bn_fold(nk(), cout)
        wf = w * scale[None, :]
        return (_pad2(wf, kpad, CPAD).astype(jnp.bfloat16),
                _pad1(bias, CPAD).reshape(1, CPAD).astype(jnp.float32))

    def dw_bn(c):
        w = jax.random.normal(nk(), (9, c)) * 0.1
        scale, bias = _bn_fold(nk(), c)
        wf = jnp.pad(w * scale[None, :], ((0, 0), (0, CPAD - c)))
        return (wf.reshape(9, 1, CPAD).astype(jnp.float32),
                _pad1(bias, CPAD).reshape(1, CPAD).astype(jnp.float32))

    def se(oup, csq):
        rw = jax.random.normal(nk(), (oup, csq)) * 0.1
        rb = jax.random.normal(nk(), (csq,)) * 0.1
        ew = jax.random.normal(nk(), (csq, oup)) * 0.1
        eb = jax.random.normal(nk(), (oup,)) * 0.1
        return (_pad2(rw, CPAD, CPAD).astype(jnp.bfloat16),
                _pad1(rb, CPAD).reshape(1, CPAD).astype(jnp.float32),
                _pad2(ew, CPAD, CPAD).astype(jnp.bfloat16),
                _pad1(eb, CPAD).reshape(1, CPAD).astype(jnp.float32))

    p = {}
    # stem: 3x3 s2, 3 -> 16; im2col K = 27 (row-major (i, j, c)) padded to 32
    stem = jax.random.normal(nk(), (27, STEM_OUT)) * 0.1
    s_scale, s_bias = _bn_fold(nk(), STEM_OUT)
    p['stem_w'] = _pad2(stem * s_scale[None, :], STEM_KPAD, CPAD).astype(jnp.bfloat16)
    p['stem_b'] = _pad1(s_bias, CPAD).reshape(1, CPAD).astype(jnp.float32)

    # block 1: 16 -> 16, expand 1, k3 s1, se csq 4
    p['dw1_w'], p['dw1_b'] = dw_bn(16)
    p['se1_rw'], p['se1_rb'], p['se1_ew'], p['se1_eb'] = se(16, 4)
    p['proj1_w'], p['proj1_b'] = conv_bn(16, 16)

    # block 2: 16 -> 24, expand 4 (oup 64), k3 s2, se csq 4
    p['exp2_w'], p['exp2_b'] = conv_bn(16, 64)
    p['dw2_w'], p['dw2_b'] = dw_bn(64)
    p['se2_rw'], p['se2_rb'], p['se2_ew'], p['se2_eb'] = se(64, 4)
    p['proj2_w'], p['proj2_b'] = conv_bn(64, 24)

    # block 3: 24 -> 24, expand 4 (oup 96), k3 s1, se csq 6
    p['exp3_w'], p['exp3_b'] = conv_bn(24, 96)
    p['dw3_w'], p['dw3_b'] = dw_bn(96)
    p['se3_rw'], p['se3_rb'], p['se3_ew'], p['se3_eb'] = se(96, 6)
    p['proj3_w'], p['proj3_b'] = conv_bn(96, 24)

    # head 24 -> 64 + BN, FC 64 -> 7
    p['head_w'], p['head_b'] = conv_bn(24, HEAD_OUT)
    fcw = jax.random.normal(nk(), (HEAD_OUT, NUM_CLASSES)) * 0.1
    fcb = jax.random.normal(nk(), (NUM_CLASSES,)) * 0.1
    p['fc_w'] = _pad2(fcw, CPAD, CPAD).astype(jnp.bfloat16)
    p['fc_b'] = _pad1(fcb, CPAD).reshape(1, CPAD).astype(jnp.float32)
    return p


# ----------------------------------------------------------------------------- #
# Forward pass
# ----------------------------------------------------------------------------- #
@jax.jit
def efficientnet_forward(x_nchw, params):
    x = jnp.transpose(x_nchw, (0, 2, 3, 1)).astype(jnp.float32)       # NCHW -> NHWC
    patches, oh, ow = stem_patches(x)                                  # (N, 256, 32)
    e = front_pass(patches, params, H=oh, W=ow)                        # (N, 256, 128)
    e = e.reshape(-1, oh, ow, CPAD)
    xp, PH, oh2, ow2 = phase_split(e)                                  # (N, 36, 16, 128)
    logits = back_pass(xp, params, PH=PH, OH=oh2, OW=ow2)              # (N, 1, 128)
    return logits[:, 0, :NUM_CLASSES]


if __name__ == "__main__":
    key = jax.random.PRNGKey(0)
    k_in, k_param = jax.random.split(key)
    x = jax.random.normal(k_in, (2, 3, 32, 32), dtype=jnp.float32)     # NCHW like PyTorch
    params = make_params(k_param)

    logits = efficientnet_forward(x, params)
    jax.block_until_ready(logits)
    assert logits.shape == (2, NUM_CLASSES) and logits.dtype == jnp.float32
    assert bool(jnp.all(jnp.isfinite(logits)))
    print("KERNEL_OK")
</pallas_src>

<mosaic_0001>
module attributes {stable_mosaic.version = 11 : i64} {
  func.func @_front_kernel(%arg0: i32, %arg1: memref<1x256x32xbf16, #tpu.memory_space<vmem>>, %arg2: memref<32x128xbf16, #tpu.memory_space<vmem>>, %arg3: memref<1x128xf32, #tpu.memory_space<vmem>>, %arg4: memref<9x1x128xf32, #tpu.memory_space<vmem>>, %arg5: memref<1x128xf32, #tpu.memory_space<vmem>>, %arg6: memref<128x128xbf16, #tpu.memory_space<vmem>>, %arg7: memref<1x128xf32, #tpu.memory_space<vmem>>, %arg8: memref<128x128xbf16, #tpu.memory_space<vmem>>, %arg9: memref<1x128xf32, #tpu.memory_space<vmem>>, %arg10: memref<128x128xbf16, #tpu.memory_space<vmem>>, %arg11: memref<1x128xf32, #tpu.memory_space<vmem>>, %arg12: memref<128x128xbf16, #tpu.memory_space<vmem>>, %arg13: memref<1x128xf32, #tpu.memory_space<vmem>>, %arg14: memref<1x256x128xbf16, #tpu.memory_space<vmem>>, %arg15: memref<18x32x128xf32, #tpu.memory_space<vmem>>) attributes {dimension_semantics = [#tpu.dimension_semantics<parallel>], iteration_bounds = array<i64: 2>, scalar_prefetch = 0 : i64, scratch_operands = 1 : i64, tpu.core_type = #tpu.core_type<tc>, window_params = [{transform_indices = @transform_0, window_bounds = array<i64: 1, 256, 32>}, {pipeline_mode = #tpu.pipeline_mode<synchronous>, transform_indices = @transform_1, window_bounds = array<i64: 32, 128>}, {pipeline_mode = #tpu.pipeline_mode<synchronous>, transform_indices = @transform_2, window_bounds = array<i64: 1, 128>}, {pipeline_mode = #tpu.pipeline_mode<synchronous>, transform_indices = @transform_3, window_bounds = array<i64: 9, 1, 128>}, {pipeline_mode = #tpu.pipeline_mode<synchronous>, transform_indices = @transform_4, window_bounds = array<i64: 1, 128>}, {pipeline_mode = #tpu.pipeline_mode<synchronous>, transform_indices = @transform_5, window_bounds = array<i64: 128, 128>}, {pipeline_mode = #tpu.pipeline_mode<synchronous>, transform_indices = @transform_6, window_bounds = array<i64: 1, 128>}, {pipeline_mode = #tpu.pipeline_mode<synchronous>, transform_indices = @transform_7, window_bounds = array<i64: 128, 128>}, {pipeline_mode = #tpu.pipeline_mode<synchronous>, transform_indices = @transform_8, window_bounds = array<i64: 1, 128>}, {pipeline_mode = #tpu.pipeline_mode<synchronous>, transform_indices = @transform_9, window_bounds = array<i64: 128, 128>}, {pipeline_mode = #tpu.pipeline_mode<synchronous>, transform_indices = @transform_10, window_bounds = array<i64: 1, 128>}, {pipeline_mode = #tpu.pipeline_mode<synchronous>, transform_indices = @transform_11, window_bounds = array<i64: 128, 128>}, {pipeline_mode = #tpu.pipeline_mode<synchronous>, transform_indices = @transform_12, window_bounds = array<i64: 1, 128>}, {transform_indices = @transform_13, window_bounds = array<i64: 1, 256, 128>}]} {
    %c0 = arith.constant 0 : index
    %c0_0 = arith.constant 0 : index
    %c0_1 = arith.constant 0 : index
    %0 = vector.load %arg1[%c0, %c0_0, %c0_1] : memref<1x256x32xbf16, #tpu.memory_space<vmem>>, vector<1x256x32xbf16>
    %1 = vector.shape_cast %0 : vector<1x256x32xbf16> to vector<256x32xbf16>
    %c0_2 = arith.constant 0 : index
    %c0_3 = arith.constant 0 : index
    %2 = vector.load %arg2[%c0_2, %c0_3] : memref<32x128xbf16, #tpu.memory_space<vmem>>, vector<32x128xbf16>
    %cst = arith.constant dense<0.000000e+00> : vector<256x128xf32>
    %3 = tpu.matmul %1, %2, %cst {dimension_numbers = #tpu.dot_dimension_numbers<[1], [0], [0], [1], [0, 0, 1, 1], [], []>} : vector<256x32xbf16>, vector<32x128xbf16>, vector<256x128xf32> -> vector<256x128xf32>
    %c0_4 = arith.constant 0 : index
    %c0_5 = arith.constant 0 : index
    %4 = vector.load %arg3[%c0_4, %c0_5] : memref<1x128xf32, #tpu.memory_space<vmem>>, vector<1x128xf32>
    %5 = vector.broadcast %4 : vector<1x128xf32> to vector<256x128xf32>
    %6 = arith.addf %3, %5 : vector<256x128xf32>
    %7 = arith.negf %6 : vector<256x128xf32>
    %8 = math.exp %7 : vector<256x128xf32>
    %cst_6 = arith.constant 1.000000e+00 : f32
    %9 = vector.broadcast %cst_6 : f32 to vector<256x128xf32>
    %10 = arith.addf %9, %8 : vector<256x128xf32>
    %11 = arith.divf %9, %10 : vector<256x128xf32>
    %12 = arith.mulf %6, %11 : vector<256x128xf32>
    %13 = vector.shape_cast %12 : vector<256x128xf32> to vector<16x16x128xf32>
    %c0_7 = arith.constant 0 : index
    %c0_8 = arith.constant 0 : index
    %c0_9 = arith.constant 0 : index
    %14 = vector.load %arg4[%c0_7, %c0_8, %c0_9] : memref<9x1x128xf32, #tpu.memory_space<vmem>>, vector<9x1x128xf32>
    %c0_10 = arith.constant 0 : index
    %c0_11 = arith.constant 0 : index
    %15 = vector.load %arg5[%c0_10, %c0_11] : memref<1x128xf32, #tpu.memory_space<vmem>>, vector<1x128xf32>
    %cst_12 = arith.constant 0.000000e+00 : f32
    %16 = vector.broadcast %cst_12 : f32 to vector<1x32x128xf32>
    %cst_13 = arith.constant 0.000000e+00 : f32
    %17 = vector.broadcast %cst_13 : f32 to vector<16x1x128xf32>
    %c0_14 = arith.constant 0 : index
    %c0_15 = arith.constant 0 : index
    %c0_16 = arith.constant 0 : index
    %18 = vector.load %arg15[%c0_14, %c0_15, %c0_16] : memref<18x32x128xf32, #tpu.memory_space<vmem>>, vector<1x32x128xf32>
    tpu.vector_store %arg15[%c0_14, %c0_15, %c0_16], %16 {strides = array<i32>} : memref<18x32x128xf32, #tpu.memory_space<vmem>>, vector<1x32x128xf32>,
    %c17 = arith.constant 17 : index
    %c0_17 = arith.constant 0 : index
    %c0_18 = arith.constant 0 : index
    %19 = vector.load %arg15[%c17, %c0_17, %c0_18] : memref<18x32x128xf32, #tpu.memory_space<vmem>>, vector<1x32x128xf32>
    tpu.vector_store %arg15[%c17, %c0_17, %c0_18], %16 {strides = array<i32>} : memref<18x32x128xf32, #tpu.memory_space<vmem>>, vector<1x32x128xf32>,
    %c1 = arith.constant 1 : index
    %c7 = arith.constant 7 : index
    %c0_19 = arith.constant 0 : index
    %20 = vector.load %arg15[%c1, %c7, %c0_19] : memref<18x32x128xf32, #tpu.memory_space<vmem>>, vector<16x1x128xf32>
    tpu.vector_store %arg15[%c1, %c7, %c0_19], %17 {strides = array<i32>} : memref<18x32x128xf32, #tpu.memory_space<vmem>>, vector<16x1x128xf32>,
    %c1_20 = arith.constant 1 : index
    %c24 = arith.constant 24 : index
    %c0_21 = arith.constant 0 : index
    %21 = vector.load %arg15[%c1_20, %c24, %c0_21] : memref<18x32x128xf32, #tpu.memory_space<vmem>>, vector<16x1x128xf32>
    tpu.vector_store %arg15[%c1_20, %c24, %c0_21], %17 {strides = array<i32>} : memref<18x32x128xf32, #tpu.memory_space<vmem>>, vector<16x1x128xf32>,
    %c1_22 = arith.constant 1 : index
    %c8 = arith.constant 8 : index
    %c0_23 = arith.constant 0 : index
    %22 = vector.load %arg15[%c1_22, %c8, %c0_23] : memref<18x32x128xf32, #tpu.memory_space<vmem>>, vector<16x16x128xf32>
    tpu.vector_store %arg15[%c1_22, %c8, %c0_23], %13 {strides = array<i32>} : memref<18x32x128xf32, #tpu.memory_space<vmem>>, vector<16x16x128xf32>,
    %c0_24 = arith.constant 0 : index
    %c7_25 = arith.constant 7 : index
    %c0_26 = arith.constant 0 : index
    %23 = vector.load %arg15[%c0_24, %c7_25, %c0_26] : memref<18x32x128xf32, #tpu.memory_space<vmem>>, vector<18x16x128xf32>
    %24 = vector.extract_strided_slice %23 {offsets = [0, 0, 0], sizes = [16, 16, 128], strides = [1, 1, 1]} : vector<18x16x128xf32> to vector<16x16x128xf32>
    %25 = vector.extract_strided_slice %14 {offsets = [0, 0, 0], sizes = [1, 1, 128], strides = [1, 1, 1]} : vector<9x1x128xf32> to vector<1x1x128xf32>
    %26 = vector.broadcast %25 : vector<1x1x128xf32> to vector<16x16x128xf32>
    %27 = arith.mulf %24, %26 : vector<16x16x128xf32>
    %28 = vector.extract_strided_slice %23 {offsets = [1, 0, 0], sizes = [16, 16, 128], strides = [1, 1, 1]} : vector<18x16x128xf32> to vector<16x16x128xf32>
    %29 = vector.extract_strided_slice %14 {offsets = [3, 0, 0], sizes = [1, 1, 128], strides = [1, 1, 1]} : vector<9x1x128xf32> to vector<1x1x128xf32>
    %30 = vector.broadcast %29 : vector<1x1x128xf32> to vector<16x16x128xf32>
    %31 = arith.mulf %28, %30 : vector<16x16x128xf32>
    %32 = arith.addf %27, %31 : vector<16x16x128xf32>
    %33 = vector.extract_strided_slice %23 {offsets = [2, 0, 0], sizes = [16, 16, 128], strides = [1, 1, 1]} : vector<18x16x128xf32> to vector<16x16x128xf32>
    %34 = vector.extract_strided_slice %14 {offsets = [6, 0, 0], sizes = [1, 1, 128], strides = [1, 1, 1]} : vector<9x1x128xf32> to vector<1x1x128xf32>
    %35 = vector.broadcast %34 : vector<1x1x128xf32> to vector<16x16x128xf32>
    %36 = arith.mulf %33, %35 : vector<16x16x128xf32>
    %37 = arith.addf %32, %36 : vector<16x16x128xf32>
    %c0_27 = arith.constant 0 : index
    %c8_28 = arith.constant 8 : index
    %c0_29 = arith.constant 0 : index
    %38 = vector.load %arg15[%c0_27, %c8_28, %c0_29] : memref<18x32x128xf32, #tpu.memory_space<vmem>>, vector<18x16x128xf32>
    %39 = vector.extract_strided_slice %38 {offsets = [0, 0, 0], sizes = [16, 16, 128], strides = [1, 1, 1]} : vector<18x16x128xf32> to vector<16x16x128xf32>
    %40 = vector.extract_strided_slice %14 {offsets = [1, 0, 0], sizes = [1, 1, 128], strides = [1, 1, 1]} : vector<9x1x128xf32> to vector<1x1x128xf32>
    %41 = vector.broadcast %40 : vector<1x1x128xf32> to vector<16x16x128xf32>
    %42 = arith.mulf %39, %41 : vector<16x16x128xf32>
    %43 = arith.addf %37, %42 : vector<16x16x128xf32>
    %44 = vector.extract_strided_slice %38 {offsets = [1, 0, 0], sizes = [16, 16, 128], strides = [1, 1, 1]} : vector<18x16x128xf32> to vector<16x16x128xf32>
    %45 = vector.extract_strided_slice %14 {offsets = [4, 0, 0], sizes = [1, 1, 128], strides = [1, 1, 1]} : vector<9x1x128xf32> to vector<1x1x128xf32>
    %46 = vector.broadcast %45 : vector<1x1x128xf32> to vector<16x16x128xf32>
    %47 = arith.mulf %44, %46 : vector<16x16x128xf32>
    %48 = arith.addf %43, %47 : vector<16x16x128xf32>
    %49 = vector.extract_strided_slice %38 {offsets = [2, 0, 0], sizes = [16, 16, 128], strides = [1, 1, 1]} : vector<18x16x128xf32> to vector<16x16x128xf32>
    %50 = vector.extract_strided_slice %14 {offsets = [7, 0, 0], sizes = [1, 1, 128], strides = [1, 1, 1]} : vector<9x1x128xf32> to vector<1x1x128xf32>
    %51 = vector.broadcast %50 : vector<1x1x128xf32> to vector<16x16x128xf32>
    %52 = arith.mulf %49, %51 : vector<16x16x128xf32>
    %53 = arith.addf %48, %52 : vector<16x16x128xf32>
    %c0_30 = arith.constant 0 : index
    %c9 = arith.constant 9 : index
    %c0_31 = arith.constant 0 : index
    %54 = vector.load %arg15[%c0_30, %c9, %c0_31] : memref<18x32x128xf32, #tpu.memory_space<vmem>>, vector<18x16x128xf32>
    %55 = vector.extract_strided_slice %54 {offsets = [0, 0, 0], sizes = [16, 16, 128], strides = [1, 1, 1]} : vector<18x16x128xf32> to vector<16x16x128xf32>
    %56 = vector.extract_strided_slice %14 {offsets = [2, 0, 0], sizes = [1, 1, 128], strides = [1, 1, 1]} : vector<9x1x128xf32> to vector<1x1x128xf32>
    %57 = vector.broadcast %56 : vector<1x1x128xf32> to vector<16x16x128xf32>
    %58 = arith.mulf %55, %57 : vector<16x16x128xf32>
    %59 = arith.addf %53, %58 : vector<16x16x128xf32>
    %60 = vector.extract_strided_slice %54 {offsets = [1, 0, 0], sizes = [16, 16, 128], strides = [1, 1, 1]} : vector<18x16x128xf32> to vector<16x16x128xf32>
    %61 = vector.extract_strided_slice %14 {offsets = [5, 0, 0], sizes = [1, 1, 128], strides = [1, 1, 1]} : vector<9x1x128xf32> to vector<1x1x128xf32>
    %62 = vector.broadcast %61 : vector<1x1x128xf32> to vector<16x16x128xf32>
    %63 = arith.mulf %60, %62 : vector<16x16x128xf32>
    %64 = arith.addf %59, %63 : vector<16x16x128xf32>
    %65 = vector.extract_strided_slice %54 {offsets = [2, 0, 0], sizes = [16, 16, 128], strides = [1, 1, 1]} : vector<18x16x128xf32> to vector<16x16x128xf32>
    %66 = vector.extract_strided_slice %14 {offsets = [8, 0, 0], sizes = [1, 1, 128], strides = [1, 1, 1]} : vector<9x1x128xf32> to vector<1x1x128xf32>
    %67 = vector.broadcast %66 : vector<1x1x128xf32> to vector<16x16x128xf32>
    %68 = arith.mulf %65, %67 : vector<16x16x128xf32>
    %69 = arith.addf %64, %68 : vector<16x16x128xf32>
    %70 = vector.shape_cast %15 : vector<1x128xf32> to vector<1x1x128xf32>
    %71 = vector.broadcast %70 : vector<1x1x128xf32> to vector<16x16x128xf32>
    %72 = arith.addf %69, %71 : vector<16x16x128xf32>
    %73 = arith.negf %72 : vector<16x16x128xf32>
    %74 = math.exp %73 : vector<16x16x128xf32>
    %cst_32 = arith.constant 1.000000e+00 : f32
    %75 = vector.broadcast %cst_32 : f32 to vector<16x16x128xf32>
    %76 = arith.addf %75, %74 : vector<16x16x128xf32>
    %77 = arith.divf %75, %76 : vector<16x16x128xf32>
    %78 = arith.mulf %72, %77 : vector<16x16x128xf32>
    %79 = vector.shape_cast %78 : vector<16x16x128xf32> to vector<256x128xf32>
    %cst_33 = arith.constant dense<0.000000e+00> : vector<128xf32>
    %80 = vector.multi_reduction <add>, %79, %cst_33 [0] : vector<256x128xf32> to vector<128xf32>
    %81 = vector.shape_cast %80 : vector<128xf32> to vector<1x128xf32>
    %cst_34 = arith.constant 3.906250e-03 : f32
    %82 = vector.broadcast %cst_34 : f32 to vector<1x128xf32>
    %83 = arith.mulf %81, %82 : vector<1x128xf32>
    %84 = arith.truncf %83 : vector<1x128xf32> to vector<1x128xbf16>
    %c0_35 = arith.constant 0 : index
    %c0_36 = arith.constant 0 : index
    %85 = vector.load %arg6[%c0_35, %c0_36] : memref<128x128xbf16, #tpu.memory_space<vmem>>, vector<128x128xbf16>
    %cst_37 = arith.constant dense<0.000000e+00> : vector<1x128xf32>
    %86 = tpu.matmul %84, %85, %cst_37 {dimension_numbers = #tpu.dot_dimension_numbers<[1], [0], [0], [1], [0, 0, 1, 1], [], []>} : vector<1x128xbf16>, vector<128x128xbf16>, vector<1x128xf32> -> vector<1x128xf32>
    %c0_38 = arith.constant 0 : index
    %c0_39 = arith.constant 0 : index
    %87 = vector.load %arg7[%c0_38, %c0_39] : memref<1x128xf32, #tpu.memory_space<vmem>>, vector<1x128xf32>
    %88 = arith.addf %86, %87 : vector<1x128xf32>
    %89 = arith.negf %88 : vector<1x128xf32>
    %90 = math.exp %89 : vector<1x128xf32>
    %cst_40 = arith.constant 1.000000e+00 : f32
    %91 = vector.broadcast %cst_40 : f32 to vector<1x128xf32>
    %92 = arith.addf %91, %90 : vector<1x128xf32>
    %93 = arith.divf %91, %92 : vector<1x128xf32>
    %94 = arith.mulf %88, %93 : vector<1x128xf32>
    %95 = arith.truncf %94 : vector<1x128xf32> to vector<1x128xbf16>
    %c0_41 = arith.constant 0 : index
    %c0_42 = arith.constant 0 : index
    %96 = vector.load %arg8[%c0_41, %c0_42] : memref<128x128xbf16, #tpu.memory_space<vmem>>, vector<128x128xbf16>
    %cst_43 = arith.constant dense<0.000000e+00> : vector<1x128xf32>
    %97 = tpu.matmul %95, %96, %cst_43 {dimension_numbers = #tpu.dot_dimension_numbers<[1], [0], [0], [1], [0, 0, 1, 1], [], []>} : vector<1x128xbf16>, vector<128x128xbf16>, vector<1x128xf32> -> vector<1x128xf32>
    %c0_44 = arith.constant 0 : index
    %c0_45 = arith.constant 0 : index
    %98 = vector.load %arg9[%c0_44, %c0_45] : memref<1x128xf32, #tpu.memory_space<vmem>>, vector<1x128xf32>
    %99 = arith.addf %97, %98 : vector<1x128xf32>
    %100 = arith.negf %99 : vector<1x128xf32>
    %101 = math.exp %100 : vector<1x128xf32>
    %cst_46 = arith.constant 1.000000e+00 : f32
    %102 = vector.broadcast %cst_46 : f32 to vector<1x128xf32>
    %103 = arith.addf %102, %101 : vector<1x128xf32>
    %104 = arith.divf %102, %103 : vector<1x128xf32>
    %105 = arith.truncf %79 : vector<256x128xf32> to vector<256x128xbf16>
    %106 = arith.truncf %104 : vector<1x128xf32> to vector<1x128xbf16>
    %107 = vector.broadcast %106 : vector<1x128xbf16> to vector<256x128xbf16>
    %108 = arith.mulf %105, %107 : vector<256x128xbf16>
    %c0_47 = arith.constant 0 : index
    %c0_48 = arith.constant 0 : index
    %109 = vector.load %arg10[%c0_47, %c0_48] : memref<128x128xbf16, #tpu.memory_space<vmem>>, vector<128x128xbf16>
    %cst_49 = arith.constant dense<0.000000e+00> : vector<256x128xf32>
    %110 = tpu.matmul %108, %109, %cst_49 {dimension_numbers = #tpu.dot_dimension_numbers<[1], [0], [0], [1], [0, 0, 1, 1], [], []>} : vector<256x128xbf16>, vector<128x128xbf16>, vector<256x128xf32> -> vector<256x128xf32>
    %c0_50 = arith.constant 0 : index
    %c0_51 = arith.constant 0 : index
    %111 = vector.load %arg11[%c0_50, %c0_51] : memref<1x128xf32, #tpu.memory_space<vmem>>, vector<1x128xf32>
    %112 = vector.broadcast %111 : vector<1x128xf32> to vector<256x128xf32>
    %113 = arith.addf %110, %112 : vector<256x128xf32>
    %114 = arith.addf %113, %12 : vector<256x128xf32>
    %115 = arith.truncf %114 : vector<256x128xf32> to vector<256x128xbf16>
    %c0_52 = arith.constant 0 : index
    %c0_53 = arith.constant 0 : index
    %116 = vector.load %arg12[%c0_52, %c0_53] : memref<128x128xbf16, #tpu.memory_space<vmem>>, vector<128x128xbf16>
    %cst_54 = arith.constant dense<0.000000e+00> : vector<256x128xf32>
    %117 = tpu.matmul %115, %116, %cst_54 {dimension_numbers = #tpu.dot_dimension_numbers<[1], [0], [0], [1], [0, 0, 1, 1], [], []>} : vector<256x128xbf16>, vector<128x128xbf16>, vector<256x128xf32> -> vector<256x128xf32>
    %c0_55 = arith.constant 0 : index
    %c0_56 = arith.constant 0 : index
    %118 = vector.load %arg13[%c0_55, %c0_56] : memref<1x128xf32, #tpu.memory_space<vmem>>, vector<1x128xf32>
    %119 = vector.broadcast %118 : vector<1x128xf32> to vector<256x128xf32>
    %120 = arith.addf %117, %119 : vector<256x128xf32>
    %121 = arith.negf %120 : vector<256x128xf32>
    %122 = math.exp %121 : vector<256x128xf32>
    %cst_57 = arith.constant 1.000000e+00 : f32
    %123 = vector.broadcast %cst_57 : f32 to vector<256x128xf32>
    %124 = arith.addf %123, %122 : vector<256x128xf32>
    %125 = arith.divf %123, %124 : vector<256x128xf32>
    %126 = arith.mulf %120, %125 : vector<256x128xf32>
    %127 = arith.truncf %126 : vector<256x128xf32> to vector<256x128xbf16>
    %c0_58 = arith.constant 0 : index
    %c0_59 = arith.constant 0 : index
    %c0_60 = arith.constant 0 : index
    %128 = vector.load %arg14[%c0_58, %c0_59, %c0_60] : memref<1x256x128xbf16, #tpu.memory_space<vmem>>, vector<1x256x128xbf16>
    %129 = vector.shape_cast %128 : vector<1x256x128xbf16> to vector<256x128xbf16>
    %130 = vector.shape_cast %127 : vector<256x128xbf16> to vector<1x256x128xbf16>
    tpu.vector_store %arg14[%c0_58, %c0_59, %c0_60], %130 {strides = array<i32>} : memref<1x256x128xbf16, #tpu.memory_space<vmem>>, vector<1x256x128xbf16>,
    return
  }
  func.func @transform_0(%arg0: i32) -> (i32, i32, i32) {
    %c0_i32 = arith.constant 0 : i32
    %c0_i32_0 = arith.constant 0 : i32
    %c0_i32_1 = arith.constant 0 : i32
    return %arg0, %c0_i32, %c0_i32_0 : i32, i32, i32
  }
  func.func @transform_1(%arg0: i32) -> (i32, i32) {
    %c0_i32 = arith.constant 0 : i32
    %c0_i32_0 = arith.constant 0 : i32
    %c0_i32_1 = arith.constant 0 : i32
    return %c0_i32, %c0_i32_0 : i32, i32
  }
  func.func @transform_2(%arg0: i32) -> (i32, i32) {
    %c0_i32 = arith.constant 0 : i32
    %c0_i32_0 = arith.constant 0 : i32
    %c0_i32_1 = arith.constant 0 : i32
    return %c0_i32, %c0_i32_0 : i32, i32
  }
  func.func @transform_3(%arg0: i32) -> (i32, i32, i32) {
    %c0_i32 = arith.constant 0 : i32
    %c0_i32_0 = arith.constant 0 : i32
    %c0_i32_1 = arith.constant 0 : i32
    %c0_i32_2 = arith.constant 0 : i32
    return %c0_i32, %c0_i32_0, %c0_i32_1 : i32, i32, i32
  }
  func.func @transform_4(%arg0: i32) -> (i32, i32) {
    %c0_i32 = arith.constant 0 : i32
    %c0_i32_0 = arith.constant 0 : i32
    %c0_i32_1 = arith.constant 0 : i32
    return %c0_i32, %c0_i32_0 : i32, i32
  }
  func.func @transform_5(%arg0: i32) -> (i32, i32) {
    %c0_i32 = arith.constant 0 : i32
    %c0_i32_0 = arith.constant 0 : i32
    %c0_i32_1 = arith.constant 0 : i32
    return %c0_i32, %c0_i32_0 : i32, i32
  }
  func.func @transform_6(%arg0: i32) -> (i32, i32) {
    %c0_i32 = arith.constant 0 : i32
    %c0_i32_0 = arith.constant 0 : i32
    %c0_i32_1 = arith.constant 0 : i32
    return %c0_i32, %c0_i32_0 : i32, i32
  }
  func.func @transform_7(%arg0: i32) -> (i32, i32) {
    %c0_i32 = arith.constant 0 : i32
    %c0_i32_0 = arith.constant 0 : i32
    %c0_i32_1 = arith.constant 0 : i32
    return %c0_i32, %c0_i32_0 : i32, i32
  }
  func.func @transform_8(%arg0: i32) -> (i32, i32) {
    %c0_i32 = arith.constant 0 : i32
    %c0_i32_0 = arith.constant 0 : i32
    %c0_i32_1 = arith.constant 0 : i32
    return %c0_i32, %c0_i32_0 : i32, i32
  }
  func.func @transform_9(%arg0: i32) -> (i32, i32) {
    %c0_i32 = arith.constant 0 : i32
    %c0_i32_0 = arith.constant 0 : i32
    %c0_i32_1 = arith.constant 0 : i32
    return %c0_i32, %c0_i32_0 : i32, i32
  }
  func.func @transform_10(%arg0: i32) -> (i32, i32) {
    %c0_i32 = arith.constant 0 : i32
    %c0_i32_0 = arith.constant 0 : i32
    %c0_i32_1 = arith.constant 0 : i32
    return %c0_i32, %c0_i32_0 : i32, i32
  }
  func.func @transform_11(%arg0: i32) -> (i32, i32) {
    %c0_i32 = arith.constant 0 : i32
    %c0_i32_0 = arith.constant 0 : i32
    %c0_i32_1 = arith.constant 0 : i32
    return %c0_i32, %c0_i32_0 : i32, i32
  }
  func.func @transform_12(%arg0: i32) -> (i32, i32) {
    %c0_i32 = arith.constant 0 : i32
    %c0_i32_0 = arith.constant 0 : i32
    %c0_i32_1 = arith.constant 0 : i32
    return %c0_i32, %c0_i32_0 : i32, i32
  }
  func.func @transform_13(%arg0: i32) -> (i32, i32, i32) {
    %c0_i32 = arith.constant 0 : i32
    %c0_i32_0 = arith.constant 0 : i32
    %c0_i32_1 = arith.constant 0 : i32
    return %arg0, %c0_i32, %c0_i32_0 : i32, i32, i32
  }
}

module attributes {stable_mosaic.version = 11 : i64} {
  func.func @_back_kernel(%arg0: i32, %arg1: memref<1x36x16x128xbf16, #tpu.memory_space<vmem>>, %arg2: memref<9x1x128xf32, #tpu.memory_space<vmem>>, %arg3: memref<1x128xf32, #tpu.memory_space<vmem>>, %arg4: memref<128x128xbf16, #tpu.memory_space<vmem>>, %arg5: memref<1x128xf32, #tpu.memory_space<vmem>>, %arg6: memref<128x128xbf16, #tpu.memory_space<vmem>>, %arg7: memref<1x128xf32, #tpu.memory_space<vmem>>, %arg8: memref<128x128xbf16, #tpu.memory_space<vmem>>, %arg9: memref<1x128xf32, #tpu.memory_space<vmem>>, %arg10: memref<128x128xbf16, #tpu.memory_space<vmem>>, %arg11: memref<1x128xf32, #tpu.memory_space<vmem>>, %arg12: memref<9x1x128xf32, #tpu.memory_space<vmem>>, %arg13: memref<1x128xf32, #tpu.memory_space<vmem>>, %arg14: memref<128x128xbf16, #tpu.memory_space<vmem>>, %arg15: memref<1x128xf32, #tpu.memory_space<vmem>>, %arg16: memref<128x128xbf16, #tpu.memory_space<vmem>>, %arg17: memref<1x128xf32, #tpu.memory_space<vmem>>, %arg18: memref<128x128xbf16, #tpu.memory_space<vmem>>, %arg19: memref<1x128xf32, #tpu.memory_space<vmem>>, %arg20: memref<128x128xbf16, #tpu.memory_space<vmem>>, %arg21: memref<1x128xf32, #tpu.memory_space<vmem>>, %arg22: memref<128x128xbf16, #tpu.memory_space<vmem>>, %arg23: memref<1x128xf32, #tpu.memory_space<vmem>>, %arg24: memref<1x1x128xf32, #tpu.memory_space<vmem>>, %arg25: memref<10x24x128xf32, #tpu.memory_space<vmem>>) attributes {dimension_semantics = [#tpu.dimension_semantics<parallel>], iteration_bounds = array<i64: 2>, scalar_prefetch = 0 : i64, scratch_operands = 1 : i64, tpu.core_type = #tpu.core_type<tc>, window_params = [{transform_indices = @transform_0, window_bounds = array<i64: 1, 36, 16, 128>}, {pipeline_mode = #tpu.pipeline_mode<synchronous>, transform_indices = @transform_1, window_bounds = array<i64: 9, 1, 128>}, {pipeline_mode = #tpu.pipeline_mode<synchronous>, transform_indices = @transform_2, window_bounds = array<i64: 1, 128>}, {pipeline_mode = #tpu.pipeline_mode<synchronous>, transform_indices = @transform_3, window_bounds = array<i64: 128, 128>}, {pipeline_mode = #tpu.pipeline_mode<synchronous>, transform_indices = @transform_4, window_bounds = array<i64: 1, 128>}, {pipeline_mode = #tpu.pipeline_mode<synchronous>, transform_indices = @transform_5, window_bounds = array<i64: 128, 128>}, {pipeline_mode = #tpu.pipeline_mode<synchronous>, transform_indices = @transform_6, window_bounds = array<i64: 1, 128>}, {pipeline_mode = #tpu.pipeline_mode<synchronous>, transform_indices = @transform_7, window_bounds = array<i64: 128, 128>}, {pipeline_mode = #tpu.pipeline_mode<synchronous>, transform_indices = @transform_8, window_bounds = array<i64: 1, 128>}, {pipeline_mode = #tpu.pipeline_mode<synchronous>, transform_indices = @transform_9, window_bounds = array<i64: 128, 128>}, {pipeline_mode = #tpu.pipeline_mode<synchronous>, transform_indices = @transform_10, window_bounds = array<i64: 1, 128>}, {pipeline_mode = #tpu.pipeline_mode<synchronous>, transform_indices = @transform_11, window_bounds = array<i64: 9, 1, 128>}, {pipeline_mode = #tpu.pipeline_mode<synchronous>, transform_indices = @transform_12, window_bounds = array<i64: 1, 128>}, {pipeline_mode = #tpu.pipeline_mode<synchronous>, transform_indices = @transform_13, window_bounds = array<i64: 128, 128>}, {pipeline_mode = #tpu.pipeline_mode<synchronous>, transform_indices = @transform_14, window_bounds = array<i64: 1, 128>}, {pipeline_mode = #tpu.pipeline_mode<synchronous>, transform_indices = @transform_15, window_bounds = array<i64: 128, 128>}, {pipeline_mode = #tpu.pipeline_mode<synchronous>, transform_indices = @transform_16, window_bounds = array<i64: 1, 128>}, {pipeline_mode = #tpu.pipeline_mode<synchronous>, transform_indices = @transform_17, window_bounds = array<i64: 128, 128>}, {pipeline_mode = #tpu.pipeline_mode<synchronous>, transform_indices = @transform_18, window_bounds = array<i64: 1, 128>}, {pipeline_mode = #tpu.pipeline_mode<synchronous>, transform_indices = @transform_19, window_bounds = array<i64: 128, 128>}, {pipeline_mode = #tpu.pipeline_mode<synchronous>, transform_indices = @transform_20, window_bounds = array<i64: 1, 128>}, {pipeline_mode = #tpu.pipeline_mode<synchronous>, transform_indices = @transform_21, window_bounds = array<i64: 128, 128>}, {pipeline_mode = #tpu.pipeline_mode<synchronous>, transform_indices = @transform_22, window_bounds = array<i64: 1, 128>}, {transform_indices = @transform_23, window_bounds = array<i64: 1, 1, 128>}]} {
    %c0 = arith.constant 0 : index
    %c0_0 = arith.constant 0 : index
    %c0_1 = arith.constant 0 : index
    %0 = vector.load %arg2[%c0, %c0_0, %c0_1] : memref<9x1x128xf32, #tpu.memory_space<vmem>>, vector<9x1x128xf32>
    %c0_2 = arith.constant 0 : index
    %c0_3 = arith.constant 0 : index
    %c0_4 = arith.constant 0 : index
    %c0_5 = arith.constant 0 : index
    %1 = vector.load %arg1[%c0_2, %c0_3, %c0_4, %c0_5] : memref<1x36x16x128xbf16, #tpu.memory_space<vmem>>, vector<1x8x8x128xbf16>
    %2 = vector.shape_cast %1 : vector<1x8x8x128xbf16> to vector<8x8x128xbf16>
    %3 = arith.extf %2 : vector<8x8x128xbf16> to vector<8x8x128xf32>
    %4 = vector.extract_strided_slice %0 {offsets = [0, 0, 0], sizes = [1, 1, 128], strides = [1, 1, 1]} : vector<9x1x128xf32> to vector<1x1x128xf32>
    %5 = vector.broadcast %4 : vector<1x1x128xf32> to vector<8x8x128xf32>
    %6 = arith.mulf %3, %5 : vector<8x8x128xf32>
    %c0_6 = arith.constant 0 : index
    %c9 = arith.constant 9 : index
    %c0_7 = arith.constant 0 : index
    %c0_8 = arith.constant 0 : index
    %7 = vector.load %arg1[%c0_6, %c9, %c0_7, %c0_8] : memref<1x36x16x128xbf16, #tpu.memory_space<vmem>>, vector<1x8x8x128xbf16>
    %8 = vector.shape_cast %7 : vector<1x8x8x128xbf16> to vector<8x8x128xbf16>
    %9 = arith.extf %8 : vector<8x8x128xbf16> to vector<8x8x128xf32>
    %10 = vector.extract_strided_slice %0 {offsets = [1, 0, 0], sizes = [1, 1, 128], strides = [1, 1, 1]} : vector<9x1x128xf32> to vector<1x1x128xf32>
    %11 = vector.broadcast %10 : vector<1x1x128xf32> to vector<8x8x128xf32>
    %12 = arith.mulf %9, %11 : vector<8x8x128xf32>
    %13 = arith.addf %6, %12 : vector<8x8x128xf32>
    %c0_9 = arith.constant 0 : index
    %c0_10 = arith.constant 0 : index
    %c1 = arith.constant 1 : index
    %c0_11 = arith.constant 0 : index
    %14 = vector.load %arg1[%c0_9, %c0_10, %c1, %c0_11] : memref<1x36x16x128xbf16, #tpu.memory_space<vmem>>, vector<1x8x8x128xbf16>
    %15 = vector.shape_cast %14 : vector<1x8x8x128xbf16> to vector<8x8x128xbf16>
    %16 = arith.extf %15 : vector<8x8x128xbf16> to vector<8x8x128xf32>
    %17 = vector.extract_strided_slice %0 {offsets = [2, 0, 0], sizes = [1, 1, 128], strides = [1, 1, 1]} : vector<9x1x128xf32> to vector<1x1x128xf32>
    %18 = vector.broadcast %17 : vector<1x1x128xf32> to vector<8x8x128xf32>
    %19 = arith.mulf %16, %18 : vector<8x8x128xf32>
    %20 = arith.addf %13, %19 : vector<8x8x128xf32>
    %c0_12 = arith.constant 0 : index
    %c18 = arith.constant 18 : index
    %c0_13 = arith.constant 0 : index
    %c0_14 = arith.constant 0 : index
    %21 = vector.load %arg1[%c0_12, %c18, %c0_13, %c0_14] : memref<1x36x16x128xbf16, #tpu.memory_space<vmem>>, vector<1x8x8x128xbf16>
    %22 = vector.shape_cast %21 : vector<1x8x8x128xbf16> to vector<8x8x128xbf16>
    %23 = arith.extf %22 : vector<8x8x128xbf16> to vector<8x8x128xf32>
    %24 = vector.extract_strided_slice %0 {offsets = [3, 0, 0], sizes = [1, 1, 128], strides = [1, 1, 1]} : vector<9x1x128xf32> to vector<1x1x128xf32>
    %25 = vector.broadcast %24 : vector<1x1x128xf32> to vector<8x8x128xf32>
    %26 = arith.mulf %23, %25 : vector<8x8x128xf32>
    %27 = arith.addf %20, %26 : vector<8x8x128xf32>
    %c0_15 = arith.constant 0 : index
    %c27 = arith.constant 27 : index
    %c0_16 = arith.constant 0 : index
    %c0_17 = arith.constant 0 : index
    %28 = vector.load %arg1[%c0_15, %c27, %c0_16, %c0_17] : memref<1x36x16x128xbf16, #tpu.memory_space<vmem>>, vector<1x8x8x128xbf16>
    %29 = vector.shape_cast %28 : vector<1x8x8x128xbf16> to vector<8x8x128xbf16>
    %30 = arith.extf %29 : vector<8x8x128xbf16> to vector<8x8x128xf32>
    %31 = vector.extract_strided_slice %0 {offsets = [4, 0, 0], sizes = [1, 1, 128], strides = [1, 1, 1]} : vector<9x1x128xf32> to vector<1x1x128xf32>
    %32 = vector.broadcast %31 : vector<1x1x128xf32> to vector<8x8x128xf32>
    %33 = arith.mulf %30, %32 : vector<8x8x128xf32>
    %34 = arith.addf %27, %33 : vector<8x8x128xf32>
    %c0_18 = arith.constant 0 : index
    %c18_19 = arith.constant 18 : index
    %c1_20 = arith.constant 1 : index
    %c0_21 = arith.constant 0 : index
    %35 = vector.load %arg1[%c0_18, %c18_19, %c1_20, %c0_21] : memref<1x36x16x128xbf16, #tpu.memory_space<vmem>>, vector<1x8x8x128xbf16>
    %36 = vector.shape_cast %35 : vector<1x8x8x128xbf16> to vector<8x8x128xbf16>
    %37 = arith.extf %36 : vector<8x8x128xbf16> to vector<8x8x128xf32>
    %38 = vector.extract_strided_slice %0 {offsets = [5, 0, 0], sizes = [1, 1, 128], strides = [1, 1, 1]} : vector<9x1x128xf32> to vector<1x1x128xf32>
    %39 = vector.broadcast %38 : vector<1x1x128xf32> to vector<8x8x128xf32>
    %40 = arith.mulf %37, %39 : vector<8x8x128xf32>
    %41 = arith.addf %34, %40 : vector<8x8x128xf32>
    %c0_22 = arith.constant 0 : index
    %c1_23 = arith.constant 1 : index
    %c0_24 = arith.constant 0 : index
    %c0_25 = arith.constant 0 : index
    %42 = vector.load %arg1[%c0_22, %c1_23, %c0_24, %c0_25] : memref<1x36x16x128xbf16, #tpu.memory_space<vmem>>, vector<1x8x8x128xbf16>
    %43 = vector.shape_cast %42 : vector<1x8x8x128xbf16> to vector<8x8x128xbf16>
    %44 = arith.extf %43 : vector<8x8x128xbf16> to vector<8x8x128xf32>
    %45 = vector.extract_strided_slice %0 {offsets = [6, 0, 0], sizes = [1, 1, 128], strides = [1, 1, 1]} : vector<9x1x128xf32> to vector<1x1x128xf32>
    %46 = vector.broadcast %45 : vector<1x1x128xf32> to vector<8x8x128xf32>
    %47 = arith.mulf %44, %46 : vector<8x8x128xf32>
    %48 = arith.addf %41, %47 : vector<8x8x128xf32>
    %c0_26 = arith.constant 0 : index
    %c10 = arith.constant 10 : index
    %c0_27 = arith.constant 0 : index
    %c0_28 = arith.constant 0 : index
    %49 = vector.load %arg1[%c0_26, %c10, %c0_27, %c0_28] : memref<1x36x16x128xbf16, #tpu.memory_space<vmem>>, vector<1x8x8x128xbf16>
    %50 = vector.shape_cast %49 : vector<1x8x8x128xbf16> to vector<8x8x128xbf16>
    %51 = arith.extf %50 : vector<8x8x128xbf16> to vector<8x8x128xf32>
    %52 = vector.extract_strided_slice %0 {offsets = [7, 0, 0], sizes = [1, 1, 128], strides = [1, 1, 1]} : vector<9x1x128xf32> to vector<1x1x128xf32>
    %53 = vector.broadcast %52 : vector<1x1x128xf32> to vector<8x8x128xf32>
    %54 = arith.mulf %51, %53 : vector<8x8x128xf32>
    %55 = arith.addf %48, %54 : vector<8x8x128xf32>
    %c0_29 = arith.constant 0 : index
    %c1_30 = arith.constant 1 : index
    %c1_31 = arith.constant 1 : index
    %c0_32 = arith.constant 0 : index
    %56 = vector.load %arg1[%c0_29, %c1_30, %c1_31, %c0_32] : memref<1x36x16x128xbf16, #tpu.memory_space<vmem>>, vector<1x8x8x128xbf16>
    %57 = vector.shape_cast %56 : vector<1x8x8x128xbf16> to vector<8x8x128xbf16>
    %58 = arith.extf %57 : vector<8x8x128xbf16> to vector<8x8x128xf32>
    %59 = vector.extract_strided_slice %0 {offsets = [8, 0, 0], sizes = [1, 1, 128], strides = [1, 1, 1]} : vector<9x1x128xf32> to vector<1x1x128xf32>
    %60 = vector.broadcast %59 : vector<1x1x128xf32> to vector<8x8x128xf32>
    %61 = arith.mulf %58, %60 : vector<8x8x128xf32>
    %62 = arith.addf %55, %61 : vector<8x8x128xf32>
    %c0_33 = arith.constant 0 : index
    %c0_34 = arith.constant 0 : index
    %63 = vector.load %arg3[%c0_33, %c0_34] : memref<1x128xf32, #tpu.memory_space<vmem>>, vector<1x128xf32>
    %64 = vector.shape_cast %63 : vector<1x128xf32> to vector<1x1x128xf32>
    %65 = vector.broadcast %64 : vector<1x1x128xf32> to vector<8x8x128xf32>
    %66 = arith.addf %62, %65 : vector<8x8x128xf32>
    %67 = arith.negf %66 : vector<8x8x128xf32>
    %68 = math.exp %67 : vector<8x8x128xf32>
    %cst = arith.constant 1.000000e+00 : f32
    %69 = vector.broadcast %cst : f32 to vector<8x8x128xf32>
    %70 = arith.addf %69, %68 : vector<8x8x128xf32>
    %71 = arith.divf %69, %70 : vector<8x8x128xf32>
    %72 = arith.mulf %66, %71 : vector<8x8x128xf32>
    %73 = vector.shape_cast %72 : vector<8x8x128xf32> to vector<64x128xf32>
    %cst_35 = arith.constant dense<0.000000e+00> : vector<128xf32>
    %74 = vector.multi_reduction <add>, %73, %cst_35 [0] : vector<64x128xf32> to vector<128xf32>
    %75 = vector.shape_cast %74 : vector<128xf32> to vector<1x128xf32>
    %cst_36 = arith.constant 1.562500e-02 : f32
    %76 = vector.broadcast %cst_36 : f32 to vector<1x128xf32>
    %77 = arith.mulf %75, %76 : vector<1x128xf32>
    %78 = arith.truncf %77 : vector<1x128xf32> to vector<1x128xbf16>
    %c0_37 = arith.constant 0 : index
    %c0_38 = arith.constant 0 : index
    %79 = vector.load %arg4[%c0_37, %c0_38] : memref<128x128xbf16, #tpu.memory_space<vmem>>, vector<128x128xbf16>
    %cst_39 = arith.constant dense<0.000000e+00> : vector<1x128xf32>
    %80 = tpu.matmul %78, %79, %cst_39 {dimension_numbers = #tpu.dot_dimension_numbers<[1], [0], [0], [1], [0, 0, 1, 1], [], []>} : vector<1x128xbf16>, vector<128x128xbf16>, vector<1x128xf32> -> vector<1x128xf32>
    %c0_40 = arith.constant 0 : index
    %c0_41 = arith.constant 0 : index
    %81 = vector.load %arg5[%c0_40, %c0_41] : memref<1x128xf32, #tpu.memory_space<vmem>>, vector<1x128xf32>
    %82 = arith.addf %80, %81 : vector<1x128xf32>
    %83 = arith.negf %82 : vector<1x128xf32>
    %84 = math.exp %83 : vector<1x128xf32>
    %cst_42 = arith.constant 1.000000e+00 : f32
    %85 = vector.broadcast %cst_42 : f32 to vector<1x128xf32>
    %86 = arith.addf %85, %84 : vector<1x128xf32>
    %87 = arith.divf %85, %86 : vector<1x128xf32>
    %88 = arith.mulf %82, %87 : vector<1x128xf32>
    %89 = arith.truncf %88 : vector<1x128xf32> to vector<1x128xbf16>
    %c0_43 = arith.constant 0 : index
    %c0_44 = arith.constant 0 : index
    %90 = vector.load %arg6[%c0_43, %c0_44] : memref<128x128xbf16, #tpu.memory_space<vmem>>, vector<128x128xbf16>
    %cst_45 = arith.constant dense<0.000000e+00> : vector<1x128xf32>
    %91 = tpu.matmul %89, %90, %cst_45 {dimension_numbers = #tpu.dot_dimension_numbers<[1], [0], [0], [1], [0, 0, 1, 1], [], []>} : vector<1x128xbf16>, vector<128x128xbf16>, vector<1x128xf32> -> vector<1x128xf32>
    %c0_46 = arith.constant 0 : index
    %c0_47 = arith.constant 0 : index
    %92 = vector.load %arg7[%c0_46, %c0_47] : memref<1x128xf32, #tpu.memory_space<vmem>>, vector<1x128xf32>
    %93 = arith.addf %91, %92 : vector<1x128xf32>
    %94 = arith.negf %93 : vector<1x128xf32>
    %95 = math.exp %94 : vector<1x128xf32>
    %cst_48 = arith.constant 1.000000e+00 : f32
    %96 = vector.broadcast %cst_48 : f32 to vector<1x128xf32>
    %97 = arith.addf %96, %95 : vector<1x128xf32>
    %98 = arith.divf %96, %97 : vector<1x128xf32>
    %99 = arith.truncf %73 : vector<64x128xf32> to vector<64x128xbf16>
    %100 = arith.truncf %98 : vector<1x128xf32> to vector<1x128xbf16>
    %101 = vector.broadcast %100 : vector<1x128xbf16> to vector<64x128xbf16>
    %102 = arith.mulf %99, %101 : vector<64x128xbf16>
    %c0_49 = arith.constant 0 : index
    %c0_50 = arith.constant 0 : index
    %103 = vector.load %arg8[%c0_49, %c0_50] : memref<128x128xbf16, #tpu.memory_space<vmem>>, vector<128x128xbf16>
    %cst_51 = arith.constant dense<0.000000e+00> : vector<64x128xf32>
    %104 = tpu.matmul %102, %103, %cst_51 {dimension_numbers = #tpu.dot_dimension_numbers<[1], [0], [0], [1], [0, 0, 1, 1], [], []>} : vector<64x128xbf16>, vector<128x128xbf16>, vector<64x128xf32> -> vector<64x128xf32>
    %c0_52 = arith.constant 0 : index
    %c0_53 = arith.constant 0 : index
    %105 = vector.load %arg9[%c0_52, %c0_53] : memref<1x128xf32, #tpu.memory_space<vmem>>, vector<1x128xf32>
    %106 = vector.broadcast %105 : vector<1x128xf32> to vector<64x128xf32>
    %107 = arith.addf %104, %106 : vector<64x128xf32>
    %108 = arith.truncf %107 : vector<64x128xf32> to vector<64x128xbf16>
    %c0_54 = arith.constant 0 : index
    %c0_55 = arith.constant 0 : index
    %109 = vector.load %arg10[%c0_54, %c0_55] : memref<128x128xbf16, #tpu.memory_space<vmem>>, vector<128x128xbf16>
    %cst_56 = arith.constant dense<0.000000e+00> : vector<64x128xf32>
    %110 = tpu.matmul %108, %109, %cst_56 {dimension_numbers = #tpu.dot_dimension_numbers<[1], [0], [0], [1], [0, 0, 1, 1], [], []>} : vector<64x128xbf16>, vector<128x128xbf16>, vector<64x128xf32> -> vector<64x128xf32>
    %c0_57 = arith.constant 0 : index
    %c0_58 = arith.constant 0 : index
    %111 = vector.load %arg11[%c0_57, %c0_58] : memref<1x128xf32, #tpu.memory_space<vmem>>, vector<1x128xf32>
    %112 = vector.broadcast %111 : vector<1x128xf32> to vector<64x128xf32>
    %113 = arith.addf %110, %112 : vector<64x128xf32>
    %114 = arith.negf %113 : vector<64x128xf32>
    %115 = math.exp %114 : vector<64x128xf32>
    %cst_59 = arith.constant 1.000000e+00 : f32
    %116 = vector.broadcast %cst_59 : f32 to vector<64x128xf32>
    %117 = arith.addf %116, %115 : vector<64x128xf32>
    %118 = arith.divf %116, %117 : vector<64x128xf32>
    %119 = arith.mulf %113, %118 : vector<64x128xf32>
    %120 = vector.shape_cast %119 : vector<64x128xf32> to vector<8x8x128xf32>
    %c0_60 = arith.constant 0 : index
    %c0_61 = arith.constant 0 : index
    %c0_62 = arith.constant 0 : index
    %121 = vector.load %arg12[%c0_60, %c0_61, %c0_62] : memref<9x1x128xf32, #tpu.memory_space<vmem>>, vector<9x1x128xf32>
    %c0_63 = arith.constant 0 : index
    %c0_64 = arith.constant 0 : index
    %122 = vector.load %arg13[%c0_63, %c0_64] : memref<1x128xf32, #tpu.memory_space<vmem>>, vector<1x128xf32>
    %cst_65 = arith.constant 0.000000e+00 : f32
    %123 = vector.broadcast %cst_65 : f32 to vector<1x24x128xf32>
    %cst_66 = arith.constant 0.000000e+00 : f32
    %124 = vector.broadcast %cst_66 : f32 to vector<8x1x128xf32>
    %c0_67 = arith.constant 0 : index
    %c0_68 = arith.constant 0 : index
    %c0_69 = arith.constant 0 : index
    %125 = vector.load %arg25[%c0_67, %c0_68, %c0_69] : memref<10x24x128xf32, #tpu.memory_space<vmem>>, vector<1x24x128xf32>
    tpu.vector_store %arg25[%c0_67, %c0_68, %c0_69], %123 {strides = array<i32>} : memref<10x24x128xf32, #tpu.memory_space<vmem>>, vector<1x24x128xf32>,
    %c9_70 = arith.constant 9 : index
    %c0_71 = arith.constant 0 : index
    %c0_72 = arith.constant 0 : index
    %126 = vector.load %arg25[%c9_70, %c0_71, %c0_72] : memref<10x24x128xf32, #tpu.memory_space<vmem>>, vector<1x24x128xf32>
    tpu.vector_store %arg25[%c9_70, %c0_71, %c0_72], %123 {strides = array<i32>} : memref<10x24x128xf32, #tpu.memory_space<vmem>>, vector<1x24x128xf32>,
    %c1_73 = arith.constant 1 : index
    %c7 = arith.constant 7 : index
    %c0_74 = arith.constant 0 : index
    %127 = vector.load %arg25[%c1_73, %c7, %c0_74] : memref<10x24x128xf32, #tpu.memory_space<vmem>>, vector<8x1x128xf32>
    tpu.vector_store %arg25[%c1_73, %c7, %c0_74], %124 {strides = array<i32>} : memref<10x24x128xf32, #tpu.memory_space<vmem>>, vector<8x1x128xf32>,
    %c1_75 = arith.constant 1 : index
    %c16 = arith.constant 16 : index
    %c0_76 = arith.constant 0 : index
    %128 = vector.load %arg25[%c1_75, %c16, %c0_76] : memref<10x24x128xf32, #tpu.memory_space<vmem>>, vector<8x1x128xf32>
    tpu.vector_store %arg25[%c1_75, %c16, %c0_76], %124 {strides = array<i32>} : memref<10x24x128xf32, #tpu.memory_space<vmem>>, vector<8x1x128xf32>,
    %c1_77 = arith.constant 1 : index
    %c8 = arith.constant 8 : index
    %c0_78 = arith.constant 0 : index
    %129 = vector.load %arg25[%c1_77, %c8, %c0_78] : memref<10x24x128xf32, #tpu.memory_space<vmem>>, vector<8x8x128xf32>
    tpu.vector_store %arg25[%c1_77, %c8, %c0_78], %120 {strides = array<i32>} : memref<10x24x128xf32, #tpu.memory_space<vmem>>, vector<8x8x128xf32>,
    %c0_79 = arith.constant 0 : index
    %c7_80 = arith.constant 7 : index
    %c0_81 = arith.constant 0 : index
    %130 = vector.load %arg25[%c0_79, %c7_80, %c0_81] : memref<10x24x128xf32, #tpu.memory_space<vmem>>, vector<10x8x128xf32>
    %131 = vector.extract_strided_slice %130 {offsets = [0, 0, 0], sizes = [8, 8, 128], strides = [1, 1, 1]} : vector<10x8x128xf32> to vector<8x8x128xf32>
    %132 = vector.extract_strided_slice %121 {offsets = [0, 0, 0], sizes = [1, 1, 128], strides = [1, 1, 1]} : vector<9x1x128xf32> to vector<1x1x128xf32>
    %133 = vector.broadcast %132 : vector<1x1x128xf32> to vector<8x8x128xf32>
    %134 = arith.mulf %131, %133 : vector<8x8x128xf32>
    %135 = vector.extract_strided_slice %130 {offsets = [1, 0, 0], sizes = [8, 8, 128], strides = [1, 1, 1]} : vector<10x8x128xf32> to vector<8x8x128xf32>
    %136 = vector.extract_strided_slice %121 {offsets = [3, 0, 0], sizes = [1, 1, 128], strides = [1, 1, 1]} : vector<9x1x128xf32> to vector<1x1x128xf32>
    %137 = vector.broadcast %136 : vector<1x1x128xf32> to vector<8x8x128xf32>
    %138 = arith.mulf %135, %137 : vector<8x8x128xf32>
    %139 = arith.addf %134, %138 : vector<8x8x128xf32>
    %140 = vector.extract_strided_slice %130 {offsets = [2, 0, 0], sizes = [8, 8, 128], strides = [1, 1, 1]} : vector<10x8x128xf32> to vector<8x8x128xf32>
    %141 = vector.extract_strided_slice %121 {offsets = [6, 0, 0], sizes = [1, 1, 128], strides = [1, 1, 1]} : vector<9x1x128xf32> to vector<1x1x128xf32>
    %142 = vector.broadcast %141 : vector<1x1x128xf32> to vector<8x8x128xf32>
    %143 = arith.mulf %140, %142 : vector<8x8x128xf32>
    %144 = arith.addf %139, %143 : vector<8x8x128xf32>
    %c0_82 = arith.constant 0 : index
    %c8_83 = arith.constant 8 : index
    %c0_84 = arith.constant 0 : index
    %145 = vector.load %arg25[%c0_82, %c8_83, %c0_84] : memref<10x24x128xf32, #tpu.memory_space<vmem>>, vector<10x8x128xf32>
    %146 = vector.extract_strided_slice %145 {offsets = [0, 0, 0], sizes = [8, 8, 128], strides = [1, 1, 1]} : vector<10x8x128xf32> to vector<8x8x128xf32>
    %147 = vector.extract_strided_slice %121 {offsets = [1, 0, 0], sizes = [1, 1, 128], strides = [1, 1, 1]} : vector<9x1x128xf32> to vector<1x1x128xf32>
    %148 = vector.broadcast %147 : vector<1x1x128xf32> to vector<8x8x128xf32>
    %149 = arith.mulf %146, %148 : vector<8x8x128xf32>
    %150 = arith.addf %144, %149 : vector<8x8x128xf32>
    %151 = vector.extract_strided_slice %145 {offsets = [1, 0, 0], sizes = [8, 8, 128], strides = [1, 1, 1]} : vector<10x8x128xf32> to vector<8x8x128xf32>
    %152 = vector.extract_strided_slice %121 {offsets = [4, 0, 0], sizes = [1, 1, 128], strides = [1, 1, 1]} : vector<9x1x128xf32> to vector<1x1x128xf32>
    %153 = vector.broadcast %152 : vector<1x1x128xf32> to vector<8x8x128xf32>
    %154 = arith.mulf %151, %153 : vector<8x8x128xf32>
    %155 = arith.addf %150, %154 : vector<8x8x128xf32>
    %156 = vector.extract_strided_slice %145 {offsets = [2, 0, 0], sizes = [8, 8, 128], strides = [1, 1, 1]} : vector<10x8x128xf32> to vector<8x8x128xf32>
    %157 = vector.extract_strided_slice %121 {offsets = [7, 0, 0], sizes = [1, 1, 128], strides = [1, 1, 1]} : vector<9x1x128xf32> to vector<1x1x128xf32>
    %158 = vector.broadcast %157 : vector<1x1x128xf32> to vector<8x8x128xf32>
    %159 = arith.mulf %156, %158 : vector<8x8x128xf32>
    %160 = arith.addf %155, %159 : vector<8x8x128xf32>
    %c0_85 = arith.constant 0 : index
    %c9_86 = arith.constant 9 : index
    %c0_87 = arith.constant 0 : index
    %161 = vector.load %arg25[%c0_85, %c9_86, %c0_87] : memref<10x24x128xf32, #tpu.memory_space<vmem>>, vector<10x8x128xf32>
    %162 = vector.extract_strided_slice %161 {offsets = [0, 0, 0], sizes = [8, 8, 128], strides = [1, 1, 1]} : vector<10x8x128xf32> to vector<8x8x128xf32>
    %163 = vector.extract_strided_slice %121 {offsets = [2, 0, 0], sizes = [1, 1, 128], strides = [1, 1, 1]} : vector<9x1x128xf32> to vector<1x1x128xf32>
    %164 = vector.broadcast %163 : vector<1x1x128xf32> to vector<8x8x128xf32>
    %165 = arith.mulf %162, %164 : vector<8x8x128xf32>
    %166 = arith.addf %160, %165 : vector<8x8x128xf32>
    %167 = vector.extract_strided_slice %161 {offsets = [1, 0, 0], sizes = [8, 8, 128], strides = [1, 1, 1]} : vector<10x8x128xf32> to vector<8x8x128xf32>
    %168 = vector.extract_strided_slice %121 {offsets = [5, 0, 0], sizes = [1, 1, 128], strides = [1, 1, 1]} : vector<9x1x128xf32> to vector<1x1x128xf32>
    %169 = vector.broadcast %168 : vector<1x1x128xf32> to vector<8x8x128xf32>
    %170 = arith.mulf %167, %169 : vector<8x8x128xf32>
    %171 = arith.addf %166, %170 : vector<8x8x128xf32>
    %172 = vector.extract_strided_slice %161 {offsets = [2, 0, 0], sizes = [8, 8, 128], strides = [1, 1, 1]} : vector<10x8x128xf32> to vector<8x8x128xf32>
    %173 = vector.extract_strided_slice %121 {offsets = [8, 0, 0], sizes = [1, 1, 128], strides = [1, 1, 1]} : vector<9x1x128xf32> to vector<1x1x128xf32>
    %174 = vector.broadcast %173 : vector<1x1x128xf32> to vector<8x8x128xf32>
    %175 = arith.mulf %172, %174 : vector<8x8x128xf32>
    %176 = arith.addf %171, %175 : vector<8x8x128xf32>
    %177 = vector.shape_cast %122 : vector<1x128xf32> to vector<1x1x128xf32>
    %178 = vector.broadcast %177 : vector<1x1x128xf32> to vector<8x8x128xf32>
    %179 = arith.addf %176, %178 : vector<8x8x128xf32>
    %180 = arith.negf %179 : vector<8x8x128xf32>
    %181 = math.exp %180 : vector<8x8x128xf32>
    %cst_88 = arith.constant 1.000000e+00 : f32
    %182 = vector.broadcast %cst_88 : f32 to vector<8x8x128xf32>
    %183 = arith.addf %182, %181 : vector<8x8x128xf32>
    %184 = arith.divf %182, %183 : vector<8x8x128xf32>
    %185 = arith.mulf %179, %184 : vector<8x8x128xf32>
    %186 = vector.shape_cast %185 : vector<8x8x128xf32> to vector<64x128xf32>
    %cst_89 = arith.constant dense<0.000000e+00> : vector<128xf32>
    %187 = vector.multi_reduction <add>, %186, %cst_89 [0] : vector<64x128xf32> to vector<128xf32>
    %188 = vector.shape_cast %187 : vector<128xf32> to vector<1x128xf32>
    %cst_90 = arith.constant 1.562500e-02 : f32
    %189 = vector.broadcast %cst_90 : f32 to vector<1x128xf32>
    %190 = arith.mulf %188, %189 : vector<1x128xf32>
    %191 = arith.truncf %190 : vector<1x128xf32> to vector<1x128xbf16>
    %c0_91 = arith.constant 0 : index
    %c0_92 = arith.constant 0 : index
    %192 = vector.load %arg14[%c0_91, %c0_92] : memref<128x128xbf16, #tpu.memory_space<vmem>>, vector<128x128xbf16>
    %cst_93 = arith.constant dense<0.000000e+00> : vector<1x128xf32>
    %193 = tpu.matmul %191, %192, %cst_93 {dimension_numbers = #tpu.dot_dimension_numbers<[1], [0], [0], [1], [0, 0, 1, 1], [], []>} : vector<1x128xbf16>, vector<128x128xbf16>, vector<1x128xf32> -> vector<1x128xf32>
    %c0_94 = arith.constant 0 : index
    %c0_95 = arith.constant 0 : index
    %194 = vector.load %arg15[%c0_94, %c0_95] : memref<1x128xf32, #tpu.memory_space<vmem>>, vector<1x128xf32>
    %195 = arith.addf %193, %194 : vector<1x128xf32>
    %196 = arith.negf %195 : vector<1x128xf32>
    %197 = math.exp %196 : vector<1x128xf32>
    %cst_96 = arith.constant 1.000000e+00 : f32
    %198 = vector.broadcast %cst_96 : f32 to vector<1x128xf32>
    %199 = arith.addf %198, %197 : vector<1x128xf32>
    %200 = arith.divf %198, %199 : vector<1x128xf32>
    %201 = arith.mulf %195, %200 : vector<1x128xf32>
    %202 = arith.truncf %201 : vector<1x128xf32> to vector<1x128xbf16>
    %c0_97 = arith.constant 0 : index
    %c0_98 = arith.constant 0 : index
    %203 = vector.load %arg16[%c0_97, %c0_98] : memref<128x128xbf16, #tpu.memory_space<vmem>>, vector<128x128xbf16>
    %cst_99 = arith.constant dense<0.000000e+00> : vector<1x128xf32>
    %204 = tpu.matmul %202, %203, %cst_99 {dimension_numbers = #tpu.dot_dimension_numbers<[1], [0], [0], [1], [0, 0, 1, 1], [], []>} : vector<1x128xbf16>, vector<128x128xbf16>, vector<1x128xf32> -> vector<1x128xf32>
    %c0_100 = arith.constant 0 : index
    %c0_101 = arith.constant 0 : index
    %205 = vector.load %arg17[%c0_100, %c0_101] : memref<1x128xf32, #tpu.memory_space<vmem>>, vector<1x128xf32>
    %206 = arith.addf %204, %205 : vector<1x128xf32>
    %207 = arith.negf %206 : vector<1x128xf32>
    %208 = math.exp %207 : vector<1x128xf32>
    %cst_102 = arith.constant 1.000000e+00 : f32
    %209 = vector.broadcast %cst_102 : f32 to vector<1x128xf32>
    %210 = arith.addf %209, %208 : vector<1x128xf32>
    %211 = arith.divf %209, %210 : vector<1x128xf32>
    %212 = arith.truncf %186 : vector<64x128xf32> to vector<64x128xbf16>
    %213 = arith.truncf %211 : vector<1x128xf32> to vector<1x128xbf16>
    %214 = vector.broadcast %213 : vector<1x128xbf16> to vector<64x128xbf16>
    %215 = arith.mulf %212, %214 : vector<64x128xbf16>
    %c0_103 = arith.constant 0 : index
    %c0_104 = arith.constant 0 : index
    %216 = vector.load %arg18[%c0_103, %c0_104] : memref<128x128xbf16, #tpu.memory_space<vmem>>, vector<128x128xbf16>
    %cst_105 = arith.constant dense<0.000000e+00> : vector<64x128xf32>
    %217 = tpu.matmul %215, %216, %cst_105 {dimension_numbers = #tpu.dot_dimension_numbers<[1], [0], [0], [1], [0, 0, 1, 1], [], []>} : vector<64x128xbf16>, vector<128x128xbf16>, vector<64x128xf32> -> vector<64x128xf32>
    %c0_106 = arith.constant 0 : index
    %c0_107 = arith.constant 0 : index
    %218 = vector.load %arg19[%c0_106, %c0_107] : memref<1x128xf32, #tpu.memory_space<vmem>>, vector<1x128xf32>
    %219 = vector.broadcast %218 : vector<1x128xf32> to vector<64x128xf32>
    %220 = arith.addf %217, %219 : vector<64x128xf32>
    %221 = arith.addf %220, %107 : vector<64x128xf32>
    %222 = arith.truncf %221 : vector<64x128xf32> to vector<64x128xbf16>
    %c0_108 = arith.constant 0 : index
    %c0_109 = arith.constant 0 : index
    %223 = vector.load %arg20[%c0_108, %c0_109] : memref<128x128xbf16, #tpu.memory_space<vmem>>, vector<128x128xbf16>
    %cst_110 = arith.constant dense<0.000000e+00> : vector<64x128xf32>
    %224 = tpu.matmul %222, %223, %cst_110 {dimension_numbers = #tpu.dot_dimension_numbers<[1], [0], [0], [1], [0, 0, 1, 1], [], []>} : vector<64x128xbf16>, vector<128x128xbf16>, vector<64x128xf32> -> vector<64x128xf32>
    %c0_111 = arith.constant 0 : index
    %c0_112 = arith.constant 0 : index
    %225 = vector.load %arg21[%c0_111, %c0_112] : memref<1x128xf32, #tpu.memory_space<vmem>>, vector<1x128xf32>
    %226 = vector.broadcast %225 : vector<1x128xf32> to vector<64x128xf32>
    %227 = arith.addf %224, %226 : vector<64x128xf32>
    %228 = arith.negf %227 : vector<64x128xf32>
    %229 = math.exp %228 : vector<64x128xf32>
    %cst_113 = arith.constant 1.000000e+00 : f32
    %230 = vector.broadcast %cst_113 : f32 to vector<64x128xf32>
    %231 = arith.addf %230, %229 : vector<64x128xf32>
    %232 = arith.divf %230, %231 : vector<64x128xf32>
    %233 = arith.mulf %227, %232 : vector<64x128xf32>
    %cst_114 = arith.constant dense<0.000000e+00> : vector<128xf32>
    %234 = vector.multi_reduction <add>, %233, %cst_114 [0] : vector<64x128xf32> to vector<128xf32>
    %235 = vector.shape_cast %234 : vector<128xf32> to vector<1x128xf32>
    %cst_115 = arith.constant 1.562500e-02 : f32
    %236 = vector.broadcast %cst_115 : f32 to vector<1x128xf32>
    %237 = arith.mulf %235, %236 : vector<1x128xf32>
    %238 = arith.truncf %237 : vector<1x128xf32> to vector<1x128xbf16>
    %c0_116 = arith.constant 0 : index
    %c0_117 = arith.constant 0 : index
    %239 = vector.load %arg22[%c0_116, %c0_117] : memref<128x128xbf16, #tpu.memory_space<vmem>>, vector<128x128xbf16>
    %cst_118 = arith.constant dense<0.000000e+00> : vector<1x128xf32>
    %240 = tpu.matmul %238, %239, %cst_118 {dimension_numbers = #tpu.dot_dimension_numbers<[1], [0], [0], [1], [0, 0, 1, 1], [], []>} : vector<1x128xbf16>, vector<128x128xbf16>, vector<1x128xf32> -> vector<1x128xf32>
    %c0_119 = arith.constant 0 : index
    %c0_120 = arith.constant 0 : index
    %241 = vector.load %arg23[%c0_119, %c0_120] : memref<1x128xf32, #tpu.memory_space<vmem>>, vector<1x128xf32>
    %242 = arith.addf %240, %241 : vector<1x128xf32>
    %c0_121 = arith.constant 0 : index
    %c0_122 = arith.constant 0 : index
    %c0_123 = arith.constant 0 : index
    %243 = vector.load %arg24[%c0_121, %c0_122, %c0_123] : memref<1x1x128xf32, #tpu.memory_space<vmem>>, vector<1x1x128xf32>
    %244 = vector.shape_cast %243 : vector<1x1x128xf32> to vector<1x128xf32>
    %245 = vector.shape_cast %242 : vector<1x128xf32> to vector<1x1x128xf32>
    tpu.vector_store %arg24[%c0_121, %c0_122, %c0_123], %245 {strides = array<i32>} : memref<1x1x128xf32, #tpu.memory_space<vmem>>, vector<1x1x128xf32>,
    return
  }
  func.func @transform_0(%arg0: i32) -> (i32, i32, i32, i32) {
    %c0_i32 = arith.constant 0 : i32
    %c0_i32_0 = arith.constant 0 : i32
    %c0_i32_1 = arith.constant 0 : i32
    %c0_i32_2 = arith.constant 0 : i32
    return %arg0, %c0_i32, %c0_i32_0, %c0_i32_1 : i32, i32, i32, i32
  }
  func.func @transform_1(%arg0: i32) -> (i32, i32, i32) {
    %c0_i32 = arith.constant 0 : i32
    %c0_i32_0 = arith.constant 0 : i32
    %c0_i32_1 = arith.constant 0 : i32
    %c0_i32_2 = arith.constant 0 : i32
    return %c0_i32, %c0_i32_0, %c0_i32_1 : i32, i32, i32
  }
  func.func @transform_2(%arg0: i32) -> (i32, i32) {
    %c0_i32 = arith.constant 0 : i32
    %c0_i32_0 = arith.constant 0 : i32
    %c0_i32_1 = arith.constant 0 : i32
    return %c0_i32, %c0_i32_0 : i32, i32
  }
  func.func @transform_3(%arg0: i32) -> (i32, i32) {
    %c0_i32 = arith.constant 0 : i32
    %c0_i32_0 = arith.constant 0 : i32
    %c0_i32_1 = arith.constant 0 : i32
    return %c0_i32, %c0_i32_0 : i32, i32
  }
  func.func @transform_4(%arg0: i32) -> (i32, i32) {
    %c0_i32 = arith.constant 0 : i32
    %c0_i32_0 = arith.constant 0 : i32
    %c0_i32_1 = arith.constant 0 : i32
    return %c0_i32, %c0_i32_0 : i32, i32
  }
  func.func @transform_5(%arg0: i32) -> (i32, i32) {
    %c0_i32 = arith.constant 0 : i32
    %c0_i32_0 = arith.constant 0 : i32
    %c0_i32_1 = arith.constant 0 : i32
    return %c0_i32, %c0_i32_0 : i32, i32
  }
  func.func @transform_6(%arg0: i32) -> (i32, i32) {
    %c0_i32 = arith.constant 0 : i32
    %c0_i32_0 = arith.constant 0 : i32
    %c0_i32_1 = arith.constant 0 : i32
    return %c0_i32, %c0_i32_0 : i32, i32
  }
  func.func @transform_7(%arg0: i32) -> (i32, i32) {
    %c0_i32 = arith.constant 0 : i32
    %c0_i32_0 = arith.constant 0 : i32
    %c0_i32_1 = arith.constant 0 : i32
    return %c0_i32, %c0_i32_0 : i32, i32
  }
  func.func @transform_8(%arg0: i32) -> (i32, i32) {
    %c0_i32 = arith.constant 0 : i32
    %c0_i32_0 = arith.constant 0 : i32
    %c0_i32_1 = arith.constant 0 : i32
    return %c0_i32, %c0_i32_0 : i32, i32
  }
  func.func @transform_9(%arg0: i32) -> (i32, i32) {
    %c0_i32 = arith.constant 0 : i32
    %c0_i32_0 = arith.constant 0 : i32
    %c0_i32_1 = arith.constant 0 : i32
    return %c0_i32, %c0_i32_0 : i32, i32
  }
  func.func @transform_10(%arg0: i32) -> (i32, i32) {
    %c0_i32 = arith.constant 0 : i32
    %c0_i32_0 = arith.constant 0 : i32
    %c0_i32_1 = arith.constant 0 : i32
    return %c0_i32, %c0_i32_0 : i32, i32
  }
  func.func @transform_11(%arg0: i32) -> (i32, i32, i32) {
    %c0_i32 = arith.constant 0 : i32
    %c0_i32_0 = arith.constant 0 : i32
    %c0_i32_1 = arith.constant 0 : i32
    %c0_i32_2 = arith.constant 0 : i32
    return %c0_i32, %c0_i32_0, %c0_i32_1 : i32, i32, i32
  }
  func.func @transform_12(%arg0: i32) -> (i32, i32) {
    %c0_i32 = arith.constant 0 : i32
    %c0_i32_0 = arith.constant 0 : i32
    %c0_i32_1 = arith.constant 0 : i32
    return %c0_i32, %c0_i32_0 : i32, i32
  }
  func.func @transform_13(%arg0: i32) -> (i32, i32) {
    %c0_i32 = arith.constant 0 : i32
    %c0_i32_0 = arith.constant 0 : i32
    %c0_i32_1 = arith.constant 0 : i32
    return %c0_i32, %c0_i32_0 : i32, i32
  }
  func.func @transform_14(%arg0: i32) -> (i32, i32) {
    %c0_i32 = arith.constant 0 : i32
    %c0_i32_0 = arith.constant 0 : i32
    %c0_i32_1 = arith.constant 0 : i32
    return %c0_i32, %c0_i32_0 : i32, i32
  }
  func.func @transform_15(%arg0: i32) -> (i32, i32) {
    %c0_i32 = arith.constant 0 : i32
    %c0_i32_0 = arith.constant 0 : i32
    %c0_i32_1 = arith.constant 0 : i32
    return %c0_i32, %c0_i32_0 : i32, i32
  }
  func.func @transform_16(%arg0: i32) -> (i32, i32) {
    %c0_i32 = arith.constant 0 : i32
    %c0_i32_0 = arith.constant 0 : i32
    %c0_i32_1 = arith.constant 0 : i32
    return %c0_i32, %c0_i32_0 : i32, i32
  }
  func.func @transform_17(%arg0: i32) -> (i32, i32) {
    %c0_i32 = arith.constant 0 : i32
    %c0_i32_0 = arith.constant 0 : i32
    %c0_i32_1 = arith.constant 0 : i32
    return %c0_i32, %c0_i32_0 : i32, i32
  }
  func.func @transform_18(%arg0: i32) -> (i32, i32) {
    %c0_i32 = arith.constant 0 : i32
    %c0_i32_0 = arith.constant 0 : i32
    %c0_i32_1 = arith.constant 0 : i32
    return %c0_i32, %c0_i32_0 : i32, i32
  }
  func.func @transform_19(%arg0: i32) -> (i32, i32) {
    %c0_i32 = arith.constant 0 : i32
    %c0_i32_0 = arith.constant 0 : i32
    %c0_i32_1 = arith.constant 0 : i32
    return %c0_i32, %c0_i32_0 : i32, i32
  }
  func.func @transform_20(%arg0: i32) -> (i32, i32) {
    %c0_i32 = arith.constant 0 : i32
    %c0_i32_0 = arith.constant 0 : i32
    %c0_i32_1 = arith.constant 0 : i32
    return %c0_i32, %c0_i32_0 : i32, i32
  }
  func.func @transform_21(%arg0: i32) -> (i32, i32) {
    %c0_i32 = arith.constant 0 : i32
    %c0_i32_0 = arith.constant 0 : i32
    %c0_i32_1 = arith.constant 0 : i32
    return %c0_i32, %c0_i32_0 : i32, i32
  }
  func.func @transform_22(%arg0: i32) -> (i32, i32) {
    %c0_i32 = arith.constant 0 : i32
    %c0_i32_0 = arith.constant 0 : i32
    %c0_i32_1 = arith.constant 0 : i32
    return %c0_i32, %c0_i32_0 : i32, i32
  }
  func.func @transform_23(%arg0: i32) -> (i32, i32, i32) {
    %c0_i32 = arith.constant 0 : i32
    %c0_i32_0 = arith.constant 0 : i32
    %c0_i32_1 = arith.constant 0 : i32
    return %arg0, %c0_i32, %c0_i32_0 : i32, i32, i32
  }
}

</mosaic_0001>

<llo_original>
// kernel: efficientnet_forward.2
$region0: #{efficientnet_forward.2}
  #allocation0 [shape = 'u32[]', space=smem, size = 0x4, offset = 0x4, fixed_abs, tag = 'smem constant byte address 0x4 - core index']
  #allocation1 [shape = 'u32[144,128]{1,0:T(1,128)}', space=vmem, size = 0x12000, scoped, tag = 'internal scratch']
  #allocation2 [shape = 'f32[18,32,128]{2,1,0:T(8,128)}', space=vmem, size = 0x48000, scoped, tag = 'scratch operand']
  %s0 = inlined_call_operand.vmem [shape: bf16[2,256,32], index: 0, kind: input, shape index: {}]
  %s1 = inlined_call_operand.vmem [shape: bf16[32,128], index: 1, kind: input, shape index: {}]
  %s2 = inlined_call_operand.vmem [shape: f32[1,128], index: 2, kind: input, shape index: {}]
  %s3 = inlined_call_operand.vmem [shape: f32[9,1,128], index: 3, kind: input, shape index: {}]
  %s4 = inlined_call_operand.vmem [shape: f32[1,128], index: 4, kind: input, shape index: {}]
  %s5 = inlined_call_operand.vmem [shape: bf16[128,128], index: 5, kind: input, shape index: {}]
  %s6 = inlined_call_operand.vmem [shape: f32[1,128], index: 6, kind: input, shape index: {}]
  %s7 = inlined_call_operand.vmem [shape: bf16[128,128], index: 7, kind: input, shape index: {}]
  %s8 = inlined_call_operand.vmem [shape: f32[1,128], index: 8, kind: input, shape index: {}]
  %s9 = inlined_call_operand.vmem [shape: bf16[128,128], index: 9, kind: input, shape index: {}]
  %s10 = inlined_call_operand.vmem [shape: f32[1,128], index: 10, kind: input, shape index: {}]
  %s11 = inlined_call_operand.vmem [shape: bf16[128,128], index: 11, kind: input, shape index: {}]
  %s12 = inlined_call_operand.vmem [shape: f32[1,128], index: 12, kind: input, shape index: {}]
  %s13 = inlined_call_operand.vmem [shape: bf16[2,256,128], index: 13, kind: output, shape index: {}]
  %s14 = sld [smem:[#allocation0]]
  $region85: #{efficientnet_forward.2} parent=0
    _
  %s16 = ssub.s32 1, %s14
  %s17 = scalar_select 0, %s16, %s14
  loop: start=0, step=1, limit=4
  $region2: #{efficientnet_forward.2} parent=0 // loop_pre_header
    _
  $region3: #{efficientnet_forward.2} parent=0 // loop_header
    %s19 = sphi 0, %s23
    %p20 = scmp.ge.s32.totalorder %s19, 4
    %s29 = sphi 0, %s31
    %s32 = sphi 0, %s29
    %s33 = sphi 0, %s32
    %s49 = sphi 0, %s33
    %s53 = sphi 0, %s53
    %s55 = sphi 0, %s53
    %s56 = sphi 0, %s55
    %s70 = sphi 0, %s56
    %s74 = sphi 0, %s74
    %s76 = sphi 0, %s74
    %s77 = sphi 0, %s76
    %s91 = sphi 0, %s77
    %s95 = sphi 0, %s95
    %s97 = sphi 0, %s95
    %s98 = sphi 0, %s97
    %s112 = sphi 0, %s98
    %s116 = sphi 0, %s116
    %s118 = sphi 0, %s116
    %s119 = sphi 0, %s118
    %s133 = sphi 0, %s119
    %s137 = sphi 0, %s137
    %s139 = sphi 0, %s137
    %s140 = sphi 0, %s139
    %s154 = sphi 0, %s140
    %s158 = sphi 0, %s158
    %s160 = sphi 0, %s158
    %s161 = sphi 0, %s160
    %s175 = sphi 0, %s161
    %s179 = sphi 0, %s179
    %s181 = sphi 0, %s179
    %s182 = sphi 0, %s181
    %s196 = sphi 0, %s182
    %s200 = sphi 0, %s200
    %s202 = sphi 0, %s200
    %s203 = sphi 0, %s202
    %s217 = sphi 0, %s203
    %s221 = sphi 0, %s221
    %s223 = sphi 0, %s221
    %s224 = sphi 0, %s223
    %s238 = sphi 0, %s224
    %s242 = sphi 0, %s242
    %s244 = sphi 0, %s242
    %s245 = sphi 0, %s244
    %s259 = sphi 0, %s245
    %s263 = sphi 0, %s263
    %s265 = sphi 0, %s263
    %s266 = sphi 0, %s265
    %s280 = sphi 0, %s266
    %s284 = sphi 0, %s284
    %s286 = sphi 0, %s284
    %s287 = sphi 0, %s286
    %s301 = sphi 0, %s287
    %s307 = sphi 0, %s309
    %s310 = sphi 0, %s307
    %s311 = sphi 0, %s310
    %s327 = sphi 0, %s311
  $region4: #{efficientnet_forward.2} parent=0 // loop_header_branch
    %22 = sbr.rel (%p20) target = $region8
  $region5: #{efficientnet_forward.2} parent=0 // loop_body
    %s24 = ssub.s32 %s19, 1
    %s25 = ssub.s32 %s19, 2
    %s26 = sadd.s32 %s19, 1
    %s27 = ssub.s32 %s19, %s26
    %p28 = scmp.eq.s32.totalorder %s27, 0
    %s30 = sadd.s32 %s29, 1
    %s31 = scalar_select %p28, %s29, %s30
    %p34 = pneg %p28
    %p35 = scmp.eq.s32.totalorder %s19, 1
    %p36 = por %p34, %p35
    %p37 = scmp.ne.s32.totalorder %s29, %s32
    %p38 = scmp.eq.s32.totalorder %s19, 0
    %p39 = por %p37, %p38
    %p40 = scmp.ne.s32.totalorder %s29, %s32
    %p41 = scmp.eq.s32.totalorder %s24, 1
    %p42 = por %p40, %p41
    %p43 = scmp.ne.s32.totalorder %s32, %s33
    %p44 = scmp.eq.s32.totalorder %s24, 0
    %p45 = por %p43, %p44
    %p46 = scmp.ne.s32.totalorder %s32, %s33
    %p47 = scmp.eq.s32.totalorder %s25, 1
    %p48 = por %p46, %p47
    %p50 = scmp.ne.s32.totalorder %s33, %s49
    %p51 = scmp.eq.s32.totalorder %s25, 0
    %p52 = por %p50, %p51
    %s54 = sadd.s32 %s53, 1
    %p57 = scmp.eq.s32.totalorder %s19, 1
    %p58 = scmp.ne.s32.totalorder %s53, %s55
    %p59 = scmp.eq.s32.totalorder %s19, 0
    %p60 = por %p58, %p59
    %p61 = scmp.ne.s32.totalorder %s53, %s55
    %p62 = scmp.eq.s32.totalorder %s24, 1
    %p63 = por %p61, %p62
    %p64 = scmp.ne.s32.totalorder %s55, %s56
    %p65 = scmp.eq.s32.totalorder %s24, 0
    %p66 = por %p64, %p65
    %p67 = scmp.ne.s32.totalorder %s55, %s56
    %p68 = scmp.eq.s32.totalorder %s25, 1
    %p69 = por %p67, %p68
    %p71 = scmp.ne.s32.totalorder %s56, %s70
    %p72 = scmp.eq.s32.totalorder %s25, 0
    %p73 = por %p71, %p72
    %s75 = sadd.s32 %s74, 1
    %p78 = scmp.eq.s32.totalorder %s19, 1
    %p79 = scmp.ne.s32.totalorder %s74, %s76
    %p80 = scmp.eq.s32.totalorder %s19, 0
    %p81 = por %p79, %p80
    %p82 = scmp.ne.s32.totalorder %s74, %s76
    %p83 = scmp.eq.s32.totalorder %s24, 1
    %p84 = por %p82, %p83
    %p85 = scmp.ne.s32.totalorder %s76, %s77
    %p86 = scmp.eq.s32.totalorder %s24, 0
    %p87 = por %p85, %p86
    %p88 = scmp.ne.s32.totalorder %s76, %s77
    %p89 = scmp.eq.s32.totalorder %s25, 1
    %p90 = por %p88, %p89
    %p92 = scmp.ne.s32.totalorder %s77, %s91
    %p93 = scmp.eq.s32.totalorder %s25, 0
    %p94 = por %p92, %p93
    %s96 = sadd.s32 %s95, 1
    %p99 = scmp.eq.s32.totalorder %s19, 1
    %p100 = scmp.ne.s32.totalorder %s95, %s97
    %p101 = scmp.eq.s32.totalorder %s19, 0
    %p102 = por %p100, %p101
    %p103 = scmp.ne.s32.totalorder %s95, %s97
    %p104 = scmp.eq.s32.totalorder %s24, 1
    %p105 = por %p103, %p104
    %p106 = scmp.ne.s32.totalorder %s97, %s98
    %p107 = scmp.eq.s32.totalorder %s24, 0
    %p108 = por %p106, %p107
    %p109 = scmp.ne.s32.totalorder %s97, %s98
    %p110 = scmp.eq.s32.totalorder %s25, 1
    %p111 = por %p109, %p110
    %p113 = scmp.ne.s32.totalorder %s98, %s112
    %p114 = scmp.eq.s32.totalorder %s25, 0
    %p115 = por %p113, %p114
    %s117 = sadd.s32 %s116, 1
    %p120 = scmp.eq.s32.totalorder %s19, 1
    %p121 = scmp.ne.s32.totalorder %s116, %s118
    %p122 = scmp.eq.s32.totalorder %s19, 0
    %p123 = por %p121, %p122
    %p124 = scmp.ne.s32.totalorder %s116, %s118
    %p125 = scmp.eq.s32.totalorder %s24, 1
    %p126 = por %p124, %p125
    %p127 = scmp.ne.s32.totalorder %s118, %s119
    %p128 = scmp.eq.s32.totalorder %s24, 0
    %p129 = por %p127, %p128
    %p130 = scmp.ne.s32.totalorder %s118, %s119
    %p131 = scmp.eq.s32.totalorder %s25, 1
    %p132 = por %p130, %p131
    %p134 = scmp.ne.s32.totalorder %s119, %s133
    %p135 = scmp.eq.s32.totalorder %s25, 0
    %p136 = por %p134, %p135
    %s138 = sadd.s32 %s137, 1
    %p141 = scmp.eq.s32.totalorder %s19, 1
    %p142 = scmp.ne.s32.totalorder %s137, %s139
    %p143 = scmp.eq.s32.totalorder %s19, 0
    %p144 = por %p142, %p143
    %p145 = scmp.ne.s32.totalorder %s137, %s139
    %p146 = scmp.eq.s32.totalorder %s24, 1
    %p147 = por %p145, %p146
    %p148 = scmp.ne.s32.totalorder %s139, %s140
    %p149 = scmp.eq.s32.totalorder %s24, 0
    %p150 = por %p148, %p149
    %p151 = scmp.ne.s32.totalorder %s139, %s140
    %p152 = scmp.eq.s32.totalorder %s25, 1
    %p153 = por %p151, %p152
    %p155 = scmp.ne.s32.totalorder %s140, %s154
    %p156 = scmp.eq.s32.totalorder %s25, 0
    %p157 = por %p155, %p156
    %s159 = sadd.s32 %s158, 1
    %p162 = scmp.eq.s32.totalorder %s19, 1
    %p163 = scmp.ne.s32.totalorder %s158, %s160
    %p164 = scmp.eq.s32.totalorder %s19, 0
    %p165 = por %p163, %p164
    %p166 = scmp.ne.s32.totalorder %s158, %s160
    %p167 = scmp.eq.s32.totalorder %s24, 1
    %p168 = por %p166, %p167
    %p169 = scmp.ne.s32.totalorder %s160, %s161
    %p170 = scmp.eq.s32.totalorder %s24, 0
    %p171 = por %p169, %p170
    %p172 = scmp.ne.s32.totalorder %s160, %s161
    %p173 = scmp.eq.s32.totalorder %s25, 1
    %p174 = por %p172, %p173
    %p176 = scmp.ne.s32.totalorder %s161, %s175
    %p177 = scmp.eq.s32.totalorder %s25, 0
    %p178 = por %p176, %p177
    %s180 = sadd.s32 %s179, 1
    %p183 = scmp.eq.s32.totalorder %s19, 1
    %p184 = scmp.ne.s32.totalorder %s179, %s181
    %p185 = scmp.eq.s32.totalorder %s19, 0
    %p186 = por %p184, %p185
    %p187 = scmp.ne.s32.totalorder %s179, %s181
    %p188 = scmp.eq.s32.totalorder %s24, 1
    %p189 = por %p187, %p188
    %p190 = scmp.ne.s32.totalorder %s181, %s182
    %p191 = scmp.eq.s32.totalorder %s24, 0
    %p192 = por %p190, %p191
    %p193 = scmp.ne.s32.totalorder %s181, %s182
    %p194 = scmp.eq.s32.totalorder %s25, 1
    %p195 = por %p193, %p194
    %p197 = scmp.ne.s32.totalorder %s182, %s196
    %p198 = scmp.eq.s32.totalorder %s25, 0
    %p199 = por %p197, %p198
    %s201 = sadd.s32 %s200, 1
    %p204 = scmp.eq.s32.totalorder %s19, 1
    %p205 = scmp.ne.s32.totalorder %s200, %s202
    %p206 = scmp.eq.s32.totalorder %s19, 0
    %p207 = por %p205, %p206
    %p208 = scmp.ne.s32.totalorder %s200, %s202
    %p209 = scmp.eq.s32.totalorder %s24, 1
    %p210 = por %p208, %p209
    %p211 = scmp.ne.s32.totalorder %s202, %s203
    %p212 = scmp.eq.s32.totalorder %s24, 0
    %p213 = por %p211, %p212
    %p214 = scmp.ne.s32.totalorder %s202, %s203
    %p215 = scmp.eq.s32.totalorder %s25, 1
    %p216 = por %p214, %p215
    %p218 = scmp.ne.s32.totalorder %s203, %s217
    %p219 = scmp.eq.s32.totalorder %s25, 0
    %p220 = por %p218, %p219
    %s222 = sadd.s32 %s221, 1
    %p225 = scmp.eq.s32.totalorder %s19, 1
    %p226 = scmp.ne.s32.totalorder %s221, %s223
    %p227 = scmp.eq.s32.totalorder %s19, 0
    %p228 = por %p226, %p227
    %p229 = scmp.ne.s32.totalorder %s221, %s223
    %p230 = scmp.eq.s32.totalorder %s24, 1
    %p231 = por %p229, %p230
    %p232 = scmp.ne.s32.totalorder %s223, %s224
    %p233 = scmp.eq.s32.totalorder %s24, 0
    %p234 = por %p232, %p233
    %p235 = scmp.ne.s32.totalorder %s223, %s224
    %p236 = scmp.eq.s32.totalorder %s25, 1
    %p237 = por %p235, %p236
    %p239 = scmp.ne.s32.totalorder %s224, %s238
    %p240 = scmp.eq.s32.totalorder %s25, 0
    %p241 = por %p239, %p240
    %s243 = sadd.s32 %s242, 1
    %p246 = scmp.eq.s32.totalorder %s19, 1
    %p247 = scmp.ne.s32.totalorder %s242, %s244
    %p248 = scmp.eq.s32.totalorder %s19, 0
    %p249 = por %p247, %p248
    %p250 = scmp.ne.s32.totalorder %s242, %s244
    %p251 = scmp.eq.s32.totalorder %s24, 1
    %p252 = por %p250, %p251
    %p253 = scmp.ne.s32.totalorder %s244, %s245
    %p254 = scmp.eq.s32.totalorder %s24, 0
    %p255 = por %p253, %p254
    %p256 = scmp.ne.s32.totalorder %s244, %s245
    %p257 = scmp.eq.s32.totalorder %s25, 1
    %p258 = por %p256, %p257
    %p260 = scmp.ne.s32.totalorder %s245, %s259
    %p261 = scmp.eq.s32.totalorder %s25, 0
    %p262 = por %p260, %p261
    %s264 = sadd.s32 %s263, 1
    %p267 = scmp.eq.s32.totalorder %s19, 1
    %p268 = scmp.ne.s32.totalorder %s263, %s265
    %p269 = scmp.eq.s32.totalorder %s19, 0
    %p270 = por %p268, %p269
    %p271 = scmp.ne.s32.totalorder %s263, %s265
    %p272 = scmp.eq.s32.totalorder %s24, 1
    %p273 = por %p271, %p272
    %p274 = scmp.ne.s32.totalorder %s265, %s266
    %p275 = scmp.eq.s32.totalorder %s24, 0
    %p276 = por %p274, %p275
    %p277 = scmp.ne.s32.totalorder %s265, %s266
    %p278 = scmp.eq.s32.totalorder %s25, 1
    %p279 = por %p277, %p278
    %p281 = scmp.ne.s32.totalorder %s266, %s280
    %p282 = scmp.eq.s32.totalorder %s25, 0
    %p283 = por %p281, %p282
    %s285 = sadd.s32 %s284, 1
    %p288 = scmp.eq.s32.totalorder %s19, 1
    %p289 = scmp.ne.s32.totalorder %s284, %s286
    %p290 = scmp.eq.s32.totalorder %s19, 0
    %p291 = por %p289, %p290
    %p292 = scmp.ne.s32.totalorder %s284, %s286
    %p293 = scmp.eq.s32.totalorder %s24, 1
    %p294 = por %p292, %p293
    %p295 = scmp.ne.s32.totalorder %s286, %s287
    %p296 = scmp.eq.s32.totalorder %s24, 0
    %p297 = por %p295, %p296
    %p298 = scmp.ne.s32.totalorder %s286, %s287
    %p299 = scmp.eq.s32.totalorder %s25, 1
    %p300 = por %p298, %p299
    %p302 = scmp.ne.s32.totalorder %s287, %s301
    %p303 = scmp.eq.s32.totalorder %s25, 0
    %p304 = por %p302, %p303
    %s305 = ssub.s32 %s19, %s26
    %p306 = scmp.eq.s32.totalorder %s305, 0
    %s308 = sadd.s32 %s307, 1
    %s309 = scalar_select %p306, %s307, %s308
    %p312 = pneg %p306
    %p313 = scmp.eq.s32.totalorder %s19, 1
    %p314 = por %p312, %p313
    %p315 = scmp.ne.s32.totalorder %s307, %s310
    %p316 = scmp.eq.s32.totalorder %s19, 0
    %p317 = por %p315, %p316
    %p318 = scmp.ne.s32.totalorder %s307, %s310
    %p319 = scmp.eq.s32.totalorder %s24, 1
    %p320 = por %p318, %p319
    %p321 = scmp.ne.s32.totalorder %s310, %s311
    %p322 = scmp.eq.s32.totalorder %s24, 0
    %p323 = por %p321, %p322
    %p324 = scmp.ne.s32.totalorder %s310, %s311
    %p325 = scmp.eq.s32.totalorder %s25, 1
    %p326 = por %p324, %p325
    %p328 = scmp.ne.s32.totalorder %s311, %s327
    %p329 = scmp.eq.s32.totalorder %s25, 0
    %p330 = por %p328, %p329
    %p331 = scmp.le.s32.totalorder 1, %s19
    %p332 = scmp.lt.s32.totalorder %s19, 3
    %p333 = pnand %p331, %p332
    %p334 = pneg %p333
    // Predicated region
    $region9: #{efficientnet_forward.2} parent=5 // pred_check
      _
    $region10: #{efficientnet_forward.2} parent=5 // pred_check_branch
      %336 = sbr.rel (%p333) target = $region12
    $region11: #{efficientnet_forward.2} parent=5 // pred_region
      %s337 = ssub.s32 %s19, 1
      // Predicated region
      $region13: #{efficientnet_forward.2} parent=11 // pred_check
        %p338 = pneg %p66
      $region14: #{efficientnet_forward.2} parent=11 // pred_check_branch
        %340 = sbr.rel (%p338) target = $region16
      $region15: #{efficientnet_forward.2} parent=11 // pred_region
        _
      $region16: #{efficientnet_forward.2} parent=11 // pred_fallthru
        _
      // Predicated region
      $region17: #{efficientnet_forward.2} parent=11 // pred_check
        %p341 = pneg %p87
      $region18: #{efficientnet_forward.2} parent=11 // pred_check_branch
        %343 = sbr.rel (%p341) target = $region20
      $region19: #{efficientnet_forward.2} parent=11 // pred_region
        _
      $region20: #{efficientnet_forward.2} parent=11 // pred_fallthru
        _
      // Predicated region
      $region21: #{efficientnet_forward.2} parent=11 // pred_check
        %p344 = pneg %p108
      $region22: #{efficientnet_forward.2} parent=11 // pred_check_branch
        %346 = sbr.rel (%p344) target = $region24
      $region23: #{efficientnet_forward.2} parent=11 // pred_region
        _
      $region24: #{efficientnet_forward.2} parent=11 // pred_fallthru
        _
      // Predicated region
      $region25: #{efficientnet_forward.2} parent=11 // pred_check
        %p347 = pneg %p129
      $region26: #{efficientnet_forward.2} parent=11 // pred_check_branch
        %349 = sbr.rel (%p347) target = $region28
      $region27: #{efficientnet_forward.2} parent=11 // pred_region
        _
      $region28: #{efficientnet_forward.2} parent=11 // pred_fallthru
        _
      // Predicated region
      $region29: #{efficientnet_forward.2} parent=11 // pred_check
        %p350 = pneg %p150
      $region30: #{efficientnet_forward.2} parent=11 // pred_check_branch
        %352 = sbr.rel (%p350) target = $region32
      $region31: #{efficientnet_forward.2} parent=11 // pred_region
        _
      $region32: #{efficientnet_forward.2} parent=11 // pred_fallthru
        _
      // Predicated region
      $region33: #{efficientnet_forward.2} parent=11 // pred_check
        %p353 = pneg %p171
      $region34: #{efficientnet_forward.2} parent=11 // pred_check_branch
        %355 = sbr.rel (%p353) target = $region36
      $region35: #{efficientnet_forward.2} parent=11 // pred_region
        _
      $region36: #{efficientnet_forward.2} parent=11 // pred_fallthru
        _
      // Predicated region
      $region37: #{efficientnet_forward.2} parent=11 // pred_check
        %p356 = pneg %p192
      $region38: #{efficientnet_forward.2} parent=11 // pred_check_branch
        %358 = sbr.rel (%p356) target = $region40
      $region39: #{efficientnet_forward.2} parent=11 // pred_region
        _
      $region40: #{efficientnet_forward.2} parent=11 // pred_fallthru
        _
      // Predicated region
      $region41: #{efficientnet_forward.2} parent=11 // pred_check
        %p359 = pneg %p213
      $region42: #{efficientnet_forward.2} parent=11 // pred_check_branch
        %361 = sbr.rel (%p359) target = $region44
      $region43: #{efficientnet_forward.2} parent=11 // pred_region
        _
      $region44: #{efficientnet_forward.2} parent=11 // pred_fallthru
        _
      // Predicated region
      $region45: #{efficientnet_forward.2} parent=11 // pred_check
        %p362 = pneg %p234
      $region46: #{efficientnet_forward.2} parent=11 // pred_check_branch
        %364 = sbr.rel (%p362) target = $region48
      $region47: #{efficientnet_forward.2} parent=11 // pred_region
        _
      $region48: #{efficientnet_forward.2} parent=11 // pred_fallthru
        _
      // Predicated region
      $region49: #{efficientnet_forward.2} parent=11 // pred_check
        %p365 = pneg %p255
      $region50: #{efficientnet_forward.2} parent=11 // pred_check_branch
        %367 = sbr.rel (%p365) target = $region52
      $region51: #{efficientnet_forward.2} parent=11 // pred_region
        _
      $region52: #{efficientnet_forward.2} parent=11 // pred_fallthru
        _
      // Predicated region
      $region53: #{efficientnet_forward.2} parent=11 // pred_check
        %p368 = pneg %p276
      $region54: #{efficientnet_forward.2} parent=11 // pred_check_branch
        %370 = sbr.rel (%p368) target = $region56
      $region55: #{efficientnet_forward.2} parent=11 // pred_region
        _
      $region56: #{efficientnet_forward.2} parent=11 // pred_fallthru
        _
      // Predicated region
      $region57: #{efficientnet_forward.2} parent=11 // pred_check
        %p371 = pneg %p297
      $region58: #{efficientnet_forward.2} parent=11 // pred_check_branch
        %373 = sbr.rel (%p371) target = $region60
      $region59: #{efficientnet_forward.2} parent=11 // pred_region
        _
      $region60: #{efficientnet_forward.2} parent=11 // pred_fallthru
        _
    $region12: #{efficientnet_forward.2} parent=5 // pred_fallthru
      _
    %p374 = scmp.lt.s32.totalorder %s19, 2
    // Predicated region
    $region61: #{efficientnet_forward.2} parent=5 // pred_check
      %p375 = pneg %p374
    $region62: #{efficientnet_forward.2} parent=5 // pred_check_branch
      %377 = sbr.rel (%p375) target = $region64
    $region63: #{efficientnet_forward.2} parent=5 // pred_region
      // Predicated region
      $region65: #{efficientnet_forward.2} parent=63 // pred_check
        %p378 = pneg %p39
      $region66: #{efficientnet_forward.2} parent=63 // pred_check_branch
        %380 = sbr.rel (%p378) target = $region68
      $region67: #{efficientnet_forward.2} parent=63 // pred_region
        %p381 = scmp.lt.s32.totalorder %s19, 1
        %s382 = scalar_select %p381, %s19, 1
        %s383 = smul.addr %s382, 32
        %s384 = smul.addr %s383, 4
        %s385 = scalar_lea.vmem %s0, %s384
      $region68: #{efficientnet_forward.2} parent=63 // pred_fallthru
        _
    $region64: #{efficientnet_forward.2} parent=5 // pred_fallthru
      _
    %p386 = scmp.le.s32.totalorder 1, %s19
    %p387 = scmp.lt.s32.totalorder %s19, 3
    %p388 = pnand %p386, %p387
    %p389 = pneg %p388
    // Predicated region
    $region69: #{efficientnet_forward.2} parent=5 // pred_check
      _
    $region70: #{efficientnet_forward.2} parent=5 // pred_check_branch
      %391 = sbr.rel (%p388) target = $region72
    $region71: #{efficientnet_forward.2} parent=5 // pred_region
      %s392 = ssub.s32 %s19, 1
      %p393 = scmp.lt.s32.totalorder %s24, 1
      %s394 = scalar_select %p393, %s24, 1
      %s395 = smul.addr %s394, 32
      %s396 = smul.addr %s395, 4
      %s397 = scalar_lea.vmem %s0, %s396
      %p398 = pneg %p45
      %p399 = pneg %p42
      %p400 = pneg %p66
      %p401 = pneg %p63
      %p402 = pneg %p87
      %p403 = pneg %p84
      %p404 = pneg %p108
      %p405 = pneg %p105
      %p406 = pneg %p129
      %p407 = pneg %p126
      %p408 = pneg %p150
      %p409 = pneg %p147
      %p410 = pneg %p171
      %p411 = pneg %p168
      %p412 = pneg %p192
      %p413 = pneg %p189
      %p414 = pneg %p213
      %p415 = pneg %p210
      %p416 = pneg %p234
      %p417 = pneg %p231
      %p418 = pneg %p255
      %p419 = pneg %p252
      %p420 = pneg %p276
      %p421 = pneg %p273
      %p422 = pneg %p297
      %p423 = pneg %p294
      %p424 = pneg %p323
      %p425 = pneg %p320
      %p426 = scmp.lt.s32.totalorder %s24, 1
      %s427 = scalar_select %p426, %s24, 1
      %s428 = smul.addr %s427, 32
      %s429 = smul.addr %s428, 4
      %s430 = scalar_lea.vmem %s13, %s429
      %p431 = scmp.lt.s32.totalorder %s24, 1
      %s432 = scalar_select %p431, %s24, 1
      %s433 = smul.addr %s432, 32
      %s434 = smul.addr %s433, 4
      %s435 = scalar_lea.vmem %s0, %s434
      %p436 = scmp.lt.s32.totalorder %s24, 1
      %s437 = scalar_select %p436, %s24, 1
      %s438 = smul.addr %s437, 32
      %s439 = smul.addr %s438, 4
      %s440 = scalar_lea.vmem %s13, %s439
      %v442 = vld [vmem:[%s435] sm:$0xf]
      %v443 = vld [vmem:[%s435 + $0x4] sm:$0xf]
      %v444 = vld [vmem:[%s435 + $0x8] sm:$0xf]
      %v445 = vld [vmem:[%s435 + $0xc] sm:$0xf]
      %v446 = vld [vmem:[%s435 + $0x10] sm:$0xf]
      %v447 = vld [vmem:[%s435 + $0x14] sm:$0xf]
      %v448 = vld [vmem:[%s435 + $0x18] sm:$0xf]
      %v449 = vld [vmem:[%s435 + $0x1c] sm:$0xf]
      %v450 = vld [vmem:[%s435 + $0x20] sm:$0xf]
      %v451 = vld [vmem:[%s435 + $0x24] sm:$0xf]
      %v452 = vld [vmem:[%s435 + $0x28] sm:$0xf]
      %v453 = vld [vmem:[%s435 + $0x2c] sm:$0xf]
      %v454 = vld [vmem:[%s435 + $0x30] sm:$0xf]
      %v455 = vld [vmem:[%s435 + $0x34] sm:$0xf]
      %v456 = vld [vmem:[%s435 + $0x38] sm:$0xf]
      %v457 = vld [vmem:[%s435 + $0x3c] sm:$0xf]
      %v458 = vld [vmem:[%s435 + $0x40] sm:$0xf]
      %v459 = vld [vmem:[%s435 + $0x44] sm:$0xf]
      %v460 = vld [vmem:[%s435 + $0x48] sm:$0xf]
      %v461 = vld [vmem:[%s435 + $0x4c] sm:$0xf]
      %v462 = vld [vmem:[%s435 + $0x50] sm:$0xf]
      %v463 = vld [vmem:[%s435 + $0x54] sm:$0xf]
      %v464 = vld [vmem:[%s435 + $0x58] sm:$0xf]
      %v465 = vld [vmem:[%s435 + $0x5c] sm:$0xf]
      %v466 = vld [vmem:[%s435 + $0x60] sm:$0xf]
      %v467 = vld [vmem:[%s435 + $0x64] sm:$0xf]
      %v468 = vld [vmem:[%s435 + $0x68] sm:$0xf]
      %v469 = vld [vmem:[%s435 + $0x6c] sm:$0xf]
      %v470 = vld [vmem:[%s435 + $0x70] sm:$0xf]
      %v471 = vld [vmem:[%s435 + $0x74] sm:$0xf]
      %v472 = vld [vmem:[%s435 + $0x78] sm:$0xf]
      %v473 = vld [vmem:[%s435 + $0x7c] sm:$0xf]
      %v474 = vld [vmem:[%s1] sm:$0xf]
      %v475 = vld [vmem:[%s1 + $0x4] sm:$0xf]
      %v476 = vld [vmem:[%s1 + $0x8] sm:$0xf]
      %v477 = vld [vmem:[%s1 + $0xc] sm:$0xf]
      %v478 = vld [vmem:[%s2] sm:$0x1]
      %v480 = vlaneseq
      %v481 = vshrl.u32 %v480, 7
      %v482 = vsub.s32 0, %v481
      %v483 = vrot.slane %v478, %v482
      %v517 = vunpack.c.l.b16 %v442
      %v518 = vunpack.c.l.b16 %v443
      %v519 = vunpack.c.l.b16 %v444
      %v520 = vunpack.c.l.b16 %v445
      %v521 = vunpack.c.l.b16 %v446
      %v522 = vunpack.c.l.b16 %v447
      %v523 = vunpack.c.l.b16 %v448
      %v524 = vunpack.c.l.b16 %v449
      %v525 = vunpack.c.l.b16 %v450
      %v526 = vunpack.c.l.b16 %v451
      %v527 = vunpack.c.l.b16 %v452
      %v528 = vunpack.c.l.b16 %v453
      %v529 = vunpack.c.l.b16 %v454
      %v530 = vunpack.c.l.b16 %v455
      %v531 = vunpack.c.l.b16 %v456
      %v532 = vunpack.c.l.b16 %v457
      %v533 = vunpack.c.l.b16 %v458
      %v534 = vunpack.c.l.b16 %v459
      %v535 = vunpack.c.l.b16 %v460
      %v536 = vunpack.c.l.b16 %v461
      %v537 = vunpack.c.l.b16 %v462
      %v538 = vunpack.c.l.b16 %v463
      %v539 = vunpack.c.l.b16 %v464
      %v540 = vunpack.c.l.b16 %v465
      %v541 = vunpack.c.l.b16 %v466
      %v542 = vunpack.c.l.b16 %v467
      %v543 = vunpack.c.l.b16 %v468
      %v544 = vunpack.c.l.b16 %v469
      %v545 = vunpack.c.l.b16 %v470
      %v546 = vunpack.c.l.b16 %v471
      %v547 = vunpack.c.l.b16 %v472
      %v548 = vunpack.c.l.b16 %v473
      %v549 = vpack.c.b16 %v518, %v517
      %v550 = vpack.c.b16 %v520, %v519
      %v551 = vpack.c.b16 %v522, %v521
      %v552 = vpack.c.b16 %v524, %v523
      %v553 = vpack.c.b16 %v526, %v525
      %v554 = vpack.c.b16 %v528, %v527
      %v555 = vpack.c.b16 %v530, %v529
      %v556 = vpack.c.b16 %v532, %v531
      %v557 = vpack.c.b16 %v534, %v533
      %v558 = vpack.c.b16 %v536, %v535
      %v559 = vpack.c.b16 %v538, %v537
      %v560 = vpack.c.b16 %v540, %v539
      %v561 = vpack.c.b16 %v542, %v541
      %v562 = vpack.c.b16 %v544, %v543
      %v563 = vpack.c.b16 %v546, %v545
      %v564 = vpack.c.b16 %v548, %v547
      %v569 = vunpack.c.l.b16 %v474
      %v570 = vunpack.c.l.b16 %v475
      %v571 = vunpack.c.l.b16 %v476
      %v572 = vunpack.c.l.b16 %v477
      %v573 = vpack.c.b16 %v570, %v569
      %v574 = vpack.c.b16 %v572, %v571
      %vm577 = vcmask 261120
      %v579 = vsel %vm577, %v549, 0
      %v582 = vsel %vm577, %v550, 0
      %v585 = vsel %vm577, %v551, 0
      %v588 = vsel %vm577, %v552, 0
      %v591 = vsel %vm577, %v553, 0
      %v594 = vsel %vm577, %v554, 0
      %v597 = vsel %vm577, %v555, 0
      %v600 = vsel %vm577, %v556, 0
      %v603 = vsel %vm577, %v557, 0
      %v606 = vsel %vm577, %v558, 0
      %v609 = vsel %vm577, %v559, 0
      %v612 = vsel %vm577, %v560, 0
      %v615 = vsel %vm577, %v561, 0
      %v618 = vsel %vm577, %v562, 0
      %v621 = vsel %vm577, %v563, 0
      %v624 = vsel %vm577, %v564, 0
      %626 = vmatprep.subr.bf16.mxu0 0
      %627 = vmatpush1.bf16.msra.mxu0 %v573
      %628 = vmatprep.subr.bf16.mxu0 0
      %629 = vmatpush1.bf16.msra.mxu0 %v574
      %630 = vmatprep.subr.bf16.mxu0 0
      %631 = vmatpush1.bf16.msra.mxu0 0
      %632 = vmatprep.subr.bf16.mxu0 0
      %633 = vmatpush1.bf16.msra.mxu0 0
      %634 = vmatprep.subr.bf16.mxu0 0
      %635 = vmatpush1.bf16.msra.mxu0 0
      %636 = vmatprep.subr.bf16.mxu0 0
      %637 = vmatpush1.bf16.msra.mxu0 0
      %638 = vmatprep.subr.bf16.mxu0 0
      %639 = vmatpush1.bf16.msra.mxu0 0
      %640 = vmatprep.subr.bf16.mxu0 0
      %641 = vmatpush1.bf16.msra.mxu0 0
      %642 = vmatprep.subr.bf16.mxu0 0
      %643 = vmatpush1.bf16.msra.mxu0 0
      %644 = vmatprep.subr.bf16.mxu0 0
      %645 = vmatpush1.bf16.msra.mxu0 0
      %646 = vmatprep.subr.bf16.mxu0 0
      %647 = vmatpush1.bf16.msra.mxu0 0
      %648 = vmatprep.subr.bf16.mxu0 0
      %649 = vmatpush1.bf16.msra.mxu0 0
      %650 = vmatprep.subr.bf16.mxu0 0
      %651 = vmatpush1.bf16.msra.mxu0 0
      %652 = vmatprep.subr.bf16.mxu0 0
      %653 = vmatpush1.bf16.msra.mxu0 0
      %654 = vmatprep.subr.bf16.mxu0 0
      %655 = vmatpush1.bf16.msra.mxu0 0
      %656 = vmatprep.subr.bf16.mxu0 0
      %657 = vmatpush1.bf16.msra.mxu0 0
      %658 = vmatprep.mubr.bf16.mxu0 0
      %659 = vmatmul.mubr.bf16.gmra.mrb[0].mxu0 %v579
      %v660 = vpop.f32.mrb[0].mxu0
      %v661 = vadd.f32 %v483, %v660
      %v662 = vpop.f32.mrb[0].mxu0
      %v663 = vpop.f32.mrb[0].mxu0
      %v664 = vadd.f32 %v483, %v663
      %v665 = vpop.f32.mrb[0].mxu0
      %666 = vmatprep.mubr.bf16.mxu0 0
      %667 = vmatmul.mubr.bf16.gmra.mrb[0].mxu0 %v582
      %v668 = vpop.f32.mrb[0].mxu0
      %v669 = vadd.f32 %v483, %v668
      %v670 = vpop.f32.mrb[0].mxu0
      %v671 = vpop.f32.mrb[0].mxu0
      %v672 = vadd.f32 %v483, %v671
      %v673 = vpop.f32.mrb[0].mxu0
      %674 = vmatprep.mubr.bf16.mxu0 0
      %675 = vmatmul.mubr.bf16.gmra.mrb[0].mxu0 %v585
      %v676 = vpop.f32.mrb[0].mxu0
      %v677 = vadd.f32 %v483, %v676
      %v678 = vpop.f32.mrb[0].mxu0
      %v679 = vpop.f32.mrb[0].mxu0
      %v680 = vadd.f32 %v483, %v679
      %v681 = vpop.f32.mrb[0].mxu0
      %682 = vmatprep.mubr.bf16.mxu0 0
      %683 = vmatmul.mubr.bf16.gmra.mrb[0].mxu0 %v588
      %v684 = vpop.f32.mrb[0].mxu0
      %v685 = vadd.f32 %v483, %v684
      %v686 = vpop.f32.mrb[0].mxu0
      %v687 = vpop.f32.mrb[0].mxu0
      %v688 = vadd.f32 %v483, %v687
      %v689 = vpop.f32.mrb[0].mxu0
      %690 = vmatprep.mubr.bf16.mxu0 0
      %691 = vmatmul.mubr.bf16.gmra.mrb[0].mxu0 %v591
      %v692 = vpop.f32.mrb[0].mxu0
      %v693 = vadd.f32 %v483, %v692
      %v694 = vpop.f32.mrb[0].mxu0
      %v695 = vpop.f32.mrb[0].mxu0
      %v696 = vadd.f32 %v483, %v695
      %v697 = vpop.f32.mrb[0].mxu0
      %698 = vmatprep.mubr.bf16.mxu0 0
      %699 = vmatmul.mubr.bf16.gmra.mrb[0].mxu0 %v594
      %v700 = vpop.f32.mrb[0].mxu0
      %v701 = vadd.f32 %v483, %v700
      %v702 = vpop.f32.mrb[0].mxu0
      %v703 = vpop.f32.mrb[0].mxu0
      %v704 = vadd.f32 %v483, %v703
      %v705 = vpop.f32.mrb[0].mxu0
      %706 = vmatprep.mubr.bf16.mxu0 0
      %707 = vmatmul.mubr.bf16.gmra.mrb[0].mxu0 %v597
      %v708 = vpop.f32.mrb[0].mxu0
      %v709 = vadd.f32 %v483, %v708
      %v710 = vpop.f32.mrb[0].mxu0
      %v711 = vpop.f32.mrb[0].mxu0
      %v712 = vadd.f32 %v483, %v711
      %v713 = vpop.f32.mrb[0].mxu0
      %714 = vmatprep.mubr.bf16.mxu0 0
      %715 = vmatmul.mubr.bf16.gmra.mrb[0].mxu0 %v600
      %v716 = vpop.f32.mrb[0].mxu0
      %v717 = vadd.f32 %v483, %v716
      %v718 = vpop.f32.mrb[0].mxu0
      %v719 = vpop.f32.mrb[0].mxu0
      %v720 = vadd.f32 %v483, %v719
      %v721 = vpop.f32.mrb[0].mxu0
      %722 = vmatprep.mubr.bf16.mxu0 0
      %723 = vmatmul.mubr.bf16.gmra.mrb[0].mxu0 %v603
      %v724 = vpop.f32.mrb[0].mxu0
      %v725 = vadd.f32 %v483, %v724
      %v726 = vpop.f32.mrb[0].mxu0
      %v727 = vpop.f32.mrb[0].mxu0
      %v728 = vadd.f32 %v483, %v727
      %v729 = vpop.f32.mrb[0].mxu0
      %730 = vmatprep.mubr.bf16.mxu0 0
      %731 = vmatmul.mubr.bf16.gmra.mrb[0].mxu0 %v606
      %v732 = vpop.f32.mrb[0].mxu0
      %v733 = vadd.f32 %v483, %v732
      %v734 = vpop.f32.mrb[0].mxu0
      %v735 = vpop.f32.mrb[0].mxu0
      %v736 = vadd.f32 %v483, %v735
      %v737 = vpop.f32.mrb[0].mxu0
      %738 = vmatprep.mubr.bf16.mxu0 0
      %739 = vmatmul.mubr.bf16.gmra.mrb[0].mxu0 %v609
      %v740 = vpop.f32.mrb[0].mxu0
      %v741 = vadd.f32 %v483, %v740
      %v742 = vpop.f32.mrb[0].mxu0
      %v743 = vpop.f32.mrb[0].mxu0
      %v744 = vadd.f32 %v483, %v743
      %v745 = vpop.f32.mrb[0].mxu0
      %746 = vmatprep.mubr.bf16.mxu0 0
      %747 = vmatmul.mubr.bf16.gmra.mrb[0].mxu0 %v612
      %v748 = vpop.f32.mrb[0].mxu0
      %v749 = vadd.f32 %v483, %v748
      %v750 = vpop.f32.mrb[0].mxu0
      %v751 = vpop.f32.mrb[0].mxu0
      %v752 = vadd.f32 %v483, %v751
      %v753 = vpop.f32.mrb[0].mxu0
      %754 = vmatprep.mubr.bf16.mxu0 0
      %755 = vmatmul.mubr.bf16.gmra.mrb[0].mxu0 %v615
      %v756 = vpop.f32.mrb[0].mxu0
      %v757 = vadd.f32 %v483, %v756
      %v758 = vpop.f32.mrb[0].mxu0
      %v759 = vpop.f32.mrb[0].mxu0
      %v760 = vadd.f32 %v483, %v759
      %v761 = vpop.f32.mrb[0].mxu0
      %762 = vmatprep.mubr.bf16.mxu0 0
      %763 = vmatmul.mubr.bf16.gmra.mrb[0].mxu0 %v618
      %v764 = vpop.f32.mrb[0].mxu0
      %v765 = vadd.f32 %v483, %v764
      %v766 = vpop.f32.mrb[0].mxu0
      %v767 = vpop.f32.mrb[0].mxu0
      %v768 = vadd.f32 %v483, %v767
      %v769 = vpop.f32.mrb[0].mxu0
      %770 = vmatprep.mubr.bf16.mxu0 0
      %771 = vmatmul.mubr.bf16.gmra.mrb[0].mxu0 %v621
      %v772 = vpop.f32.mrb[0].mxu0
      %v773 = vadd.f32 %v483, %v772
      %v774 = vpop.f32.mrb[0].mxu0
      %v775 = vpop.f32.mrb[0].mxu0
      %v776 = vadd.f32 %v483, %v775
      %v777 = vpop.f32.mrb[0].mxu0
      %778 = vmatprep.mubr.bf16.mxu0 0
      %779 = vmatmul.mubr.bf16.gmra.mrb[0].mxu0 %v624
      %v780 = vpop.f32.mrb[0].mxu0
      %v781 = vadd.f32 %v483, %v780
      %v782 = vpop.f32.mrb[0].mxu0
      %v783 = vpop.f32.mrb[0].mxu0
      %v784 = vadd.f32 %v483, %v783
      %v785 = vpop.f32.mrb[0].mxu0
      %786 = vdwg.mxu0
      %v787 = vxor.u32 %v661, 2147483648
      %v788 = vxor.u32 %v664, 2147483648
      %v789 = vxor.u32 %v669, 2147483648
      %v790 = vxor.u32 %v672, 2147483648
      %v791 = vxor.u32 %v677, 2147483648
      %v792 = vxor.u32 %v680, 2147483648
      %v793 = vxor.u32 %v685, 2147483648
      %v794 = vxor.u32 %v688, 2147483648
      %v795 = vxor.u32 %v693, 2147483648
      %v796 = vxor.u32 %v696, 2147483648
      %v797 = vxor.u32 %v701, 2147483648
      %v798 = vxor.u32 %v704, 2147483648
      %v799 = vxor.u32 %v709, 2147483648
      %v800 = vxor.u32 %v712, 2147483648
      %v801 = vxor.u32 %v717, 2147483648
      %v802 = vxor.u32 %v720, 2147483648
      %v803 = vxor.u32 %v725, 2147483648
      %v804 = vxor.u32 %v728, 2147483648
      %v805 = vxor.u32 %v733, 2147483648
      %v806 = vxor.u32 %v736, 2147483648
      %v807 = vxor.u32 %v741, 2147483648
      %v808 = vxor.u32 %v744, 2147483648
      %v809 = vxor.u32 %v749, 2147483648
      %v810 = vxor.u32 %v752, 2147483648
      %v811 = vxor.u32 %v757, 2147483648
      %v812 = vxor.u32 %v760, 2147483648
      %v813 = vxor.u32 %v765, 2147483648
      %v814 = vxor.u32 %v768, 2147483648
      %v815 = vxor.u32 %v773, 2147483648
      %v816 = vxor.u32 %v776, 2147483648
      %v817 = vxor.u32 %v781, 2147483648
      %v818 = vxor.u32 %v784, 2147483648
      %v819 = vmul.f32 %v787, 1.442695
      %v820 = vpow.pop %v819
      %v821 = vmul.f32 %v788, 1.442695
      %v822 = vpow.pop %v821
      %v823 = vmul.f32 %v789, 1.442695
      %v824 = vpow.pop %v823
      %v825 = vmul.f32 %v790, 1.442695
      %v826 = vpow.pop %v825
      %v827 = vmul.f32 %v791, 1.442695
      %v828 = vpow.pop %v827
      %v829 = vmul.f32 %v792, 1.442695
      %v830 = vpow.pop %v829
      %v831 = vmul.f32 %v793, 1.442695
      %v832 = vpow.pop %v831
      %v833 = vmul.f32 %v794, 1.442695
      %v834 = vpow.pop %v833
      %v835 = vmul.f32 %v795, 1.442695
      %v836 = vpow.pop %v835
      %v837 = vmul.f32 %v796, 1.442695
      %v838 = vpow.pop %v837
      %v839 = vmul.f32 %v797, 1.442695
      %v840 = vpow.pop %v839
      %v841 = vmul.f32 %v798, 1.442695
      %v842 = vpow.pop %v841
      %v843 = vmul.f32 %v799, 1.442695
      %v844 = vpow.pop %v843
      %v845 = vmul.f32 %v800, 1.442695
      %v846 = vpow.pop %v845
      %v847 = vmul.f32 %v801, 1.442695
      %v848 = vpow.pop %v847
      %v849 = vmul.f32 %v802, 1.442695
      %v850 = vpow.pop %v849
      %v851 = vmul.f32 %v803, 1.442695
      %v852 = vpow.pop %v851
      %v853 = vmul.f32 %v804, 1.442695
      %v854 = vpow.pop %v853
      %v855 = vmul.f32 %v805, 1.442695
      %v856 = vpow.pop %v855
      %v857 = vmul.f32 %v806, 1.442695
      %v858 = vpow.pop %v857
      %v859 = vmul.f32 %v807, 1.442695
      %v860 = vpow.pop %v859
      %v861 = vmul.f32 %v808, 1.442695
      %v862 = vpow.pop %v861
      %v863 = vmul.f32 %v809, 1.442695
      %v864 = vpow.pop %v863
      %v865 = vmul.f32 %v810, 1.442695
      %v866 = vpow.pop %v865
      %v867 = vmul.f32 %v811, 1.442695
      %v868 = vpow.pop %v867
      %v869 = vmul.f32 %v812, 1.442695
      %v870 = vpow.pop %v869
      %v871 = vmul.f32 %v813, 1.442695
      %v872 = vpow.pop %v871
      %v873 = vmul.f32 %v814, 1.442695
      %v874 = vpow.pop %v873
      %v875 = vmul.f32 %v815, 1.442695
      %v876 = vpow.pop %v875
      %v877 = vmul.f32 %v816, 1.442695
      %v878 = vpow.pop %v877
      %v879 = vmul.f32 %v817, 1.442695
      %v880 = vpow.pop %v879
      %v881 = vmul.f32 %v818, 1.442695
      %v882 = vpow.pop %v881
      %v883 = vadd.f32 %v820, 1.0
      %v884 = vadd.f32 %v822, 1.0
      %v885 = vadd.f32 %v824, 1.0
      %v886 = vadd.f32 %v826, 1.0
      %v887 = vadd.f32 %v828, 1.0
      %v888 = vadd.f32 %v830, 1.0
      %v889 = vadd.f32 %v832, 1.0
      %v890 = vadd.f32 %v834, 1.0
      %v891 = vadd.f32 %v836, 1.0
      %v892 = vadd.f32 %v838, 1.0
      %v893 = vadd.f32 %v840, 1.0
      %v894 = vadd.f32 %v842, 1.0
      %v895 = vadd.f32 %v844, 1.0
      %v896 = vadd.f32 %v846, 1.0
      %v897 = vadd.f32 %v848, 1.0
      %v898 = vadd.f32 %v850, 1.0
      %v899 = vadd.f32 %v852, 1.0
      %v900 = vadd.f32 %v854, 1.0
      %v901 = vadd.f32 %v856, 1.0
      %v902 = vadd.f32 %v858, 1.0
      %v903 = vadd.f32 %v860, 1.0
      %v904 = vadd.f32 %v862, 1.0
      %v905 = vadd.f32 %v864, 1.0
      %v906 = vadd.f32 %v866, 1.0
      %v907 = vadd.f32 %v868, 1.0
      %v908 = vadd.f32 %v870, 1.0
      %v909 = vadd.f32 %v872, 1.0
      %v910 = vadd.f32 %v874, 1.0
      %v911 = vadd.f32 %v876, 1.0
      %v912 = vadd.f32 %v878, 1.0
      %v913 = vadd.f32 %v880, 1.0
      %v914 = vadd.f32 %v882, 1.0
      %v915 = vrcp.pop %v883
      %v916 = vmul.f32 1.0, %v915
      %v917 = vrcp.pop %v884
      %v918 = vmul.f32 1.0, %v917
      %v919 = vrcp.pop %v885
      %v920 = vmul.f32 1.0, %v919
      %v921 = vrcp.pop %v886
      %v922 = vmul.f32 1.0, %v921
      %v923 = vrcp.pop %v887
      %v924 = vmul.f32 1.0, %v923
      %v925 = vrcp.pop %v888
      %v926 = vmul.f32 1.0, %v925
      %v927 = vrcp.pop %v889
      %v928 = vmul.f32 1.0, %v927
      %v929 = vrcp.pop %v890
      %v930 = vmul.f32 1.0, %v929
      %v931 = vrcp.pop %v891
      %v932 = vmul.f32 1.0, %v931
      %v933 = vrcp.pop %v892
      %v934 = vmul.f32 1.0, %v933
      %v935 = vrcp.pop %v893
      %v936 = vmul.f32 1.0, %v935
      %v937 = vrcp.pop %v894
      %v938 = vmul.f32 1.0, %v937
      %v939 = vrcp.pop %v895
      %v940 = vmul.f32 1.0, %v939
      %v941 = vrcp.pop %v896
      %v942 = vmul.f32 1.0, %v941
      %v943 = vrcp.pop %v897
      %v944 = vmul.f32 1.0, %v943
      %v945 = vrcp.pop %v898
      %v946 = vmul.f32 1.0, %v945
      %v947 = vrcp.pop %v899
      %v948 = vmul.f32 1.0, %v947
      %v949 = vrcp.pop %v900
      %v950 = vmul.f32 1.0, %v949
      %v951 = vrcp.pop %v901
      %v952 = vmul.f32 1.0, %v951
      %v953 = vrcp.pop %v902
      %v954 = vmul.f32 1.0, %v953
      %v955 = vrcp.pop %v903
      %v956 = vmul.f32 1.0, %v955
      %v957 = vrcp.pop %v904
      %v958 = vmul.f32 1.0, %v957
      %v959 = vrcp.pop %v905
      %v960 = vmul.f32 1.0, %v959
      %v961 = vrcp.pop %v906
      %v962 = vmul.f32 1.0, %v961
      %v963 = vrcp.pop %v907
      %v964 = vmul.f32 1.0, %v963
      %v965 = vrcp.pop %v908
      %v966 = vmul.f32 1.0, %v965
      %v967 = vrcp.pop %v909
      %v968 = vmul.f32 1.0, %v967
      %v969 = vrcp.pop %v910
      %v970 = vmul.f32 1.0, %v969
      %v971 = vrcp.pop %v911
      %v972 = vmul.f32 1.0, %v971
      %v973 = vrcp.pop %v912
      %v974 = vmul.f32 1.0, %v973
      %v975 = vrcp.pop %v913
      %v976 = vmul.f32 1.0, %v975
      %v977 = vrcp.pop %v914
      %v978 = vmul.f32 1.0, %v977
      %v979 = vmul.f32 %v661, %v916
      %v980 = vmul.f32 %v664, %v918
      %v981 = vmul.f32 %v669, %v920
      %v982 = vmul.f32 %v672, %v922
      %v983 = vmul.f32 %v677, %v924
      %v984 = vmul.f32 %v680, %v926
      %v985 = vmul.f32 %v685, %v928
      %v986 = vmul.f32 %v688, %v930
      %v987 = vmul.f32 %v693, %v932
      %v988 = vmul.f32 %v696, %v934
      %v989 = vmul.f32 %v701, %v936
      %v990 = vmul.f32 %v704, %v938
      %v991 = vmul.f32 %v709, %v940
      %v992 = vmul.f32 %v712, %v942
      %v993 = vmul.f32 %v717, %v944
      %v994 = vmul.f32 %v720, %v946
      %v995 = vmul.f32 %v725, %v948
      %v996 = vmul.f32 %v728, %v950
      %v997 = vmul.f32 %v733, %v952
      %v998 = vmul.f32 %v736, %v954
      %v999 = vmul.f32 %v741, %v956
      %v1000 = vmul.f32 %v744, %v958
      %v1001 = vmul.f32 %v749, %v960
      %v1002 = vmul.f32 %v752, %v962
      %v1003 = vmul.f32 %v757, %v964
      %v1004 = vmul.f32 %v760, %v966
      %v1005 = vmul.f32 %v765, %v968
      %v1006 = vmul.f32 %v768, %v970
      %v1007 = vmul.f32 %v773, %v972
      %v1008 = vmul.f32 %v776, %v974
      %v1009 = vmul.f32 %v781, %v976
      %v1010 = vmul.f32 %v784, %v978
      %v1011 = vld [vmem:[%s3] sm:$0x1]
      %v1012 = vld [vmem:[%s3 + $0x1] sm:$0x1]
      %v1013 = vld [vmem:[%s3 + $0x2] sm:$0x1]
      %v1014 = vld [vmem:[%s3 + $0x3] sm:$0x1]
      %v1015 = vld [vmem:[%s3 + $0x4] sm:$0x1]
      %v1016 = vld [vmem:[%s3 + $0x5] sm:$0x1]
      %v1017 = vld [vmem:[%s3 + $0x6] sm:$0x1]
      %v1018 = vld [vmem:[%s3 + $0x7] sm:$0x1]
      %v1019 = vld [vmem:[%s3 + $0x8] sm:$0x1]
      %v1020 = vld [vmem:[%s4] sm:$0x1]
      %1021 = vst [vmem:[#allocation2] sm:$0xff] 0.0
      %1022 = vst [vmem:[#allocation2 + $0x8] sm:$0xff] 0.0
      %1023 = vst [vmem:[#allocation2 + $0x10] sm:$0xff] 0.0
      %1024 = vst [vmem:[#allocation2 + $0x18] sm:$0xff] 0.0
      %s1025 = scalar_lea.vmem [#allocation2], 544
      %1026 = vst [vmem:[%s1025] sm:$0xff] 0.0
      %1027 = vst [vmem:[%s1025 + $0x8] sm:$0xff] 0.0
      %1028 = vst [vmem:[%s1025 + $0x10] sm:$0xff] 0.0
      %1029 = vst [vmem:[%s1025 + $0x18] sm:$0xff] 0.0
      %s1030 = scalar_lea.vmem [#allocation2], 32
      %1031 = vst [vmem:[%s1030 + $0x7] sm:$0x1] 0.0
      %1032 = vst [vmem:[%s1030 + $0x27] sm:$0x1] 0.0
      %1033 = vst [vmem:[%s1030 + $0x47] sm:$0x1] 0.0
      %1034 = vst [vmem:[%s1030 + $0x67] sm:$0x1] 0.0
      %1035 = vst [vmem:[%s1030 + $0x87] sm:$0x1] 0.0
      %1036 = vst [vmem:[%s1030 + $0xa7] sm:$0x1] 0.0
      %1037 = vst [vmem:[%s1030 + $0xc7] sm:$0x1] 0.0
      %1038 = vst [vmem:[%s1030 + $0xe7] sm:$0x1] 0.0
      %1039 = vst [vmem:[%s1030 + $0x107] sm:$0x1] 0.0
      %1040 = vst [vmem:[%s1030 + $0x127] sm:$0x1] 0.0
      %1041 = vst [vmem:[%s1030 + $0x147] sm:$0x1] 0.0
      %1042 = vst [vmem:[%s1030 + $0x167] sm:$0x1] 0.0
      %1043 = vst [vmem:[%s1030 + $0x187] sm:$0x1] 0.0
      %1044 = vst [vmem:[%s1030 + $0x1a7] sm:$0x1] 0.0
      %1045 = vst [vmem:[%s1030 + $0x1c7] sm:$0x1] 0.0
      %1046 = vst [vmem:[%s1030 + $0x1e7] sm:$0x1] 0.0
      %1047 = vst [vmem:[%s1030 + $0x18] sm:$0x1] 0.0
      %1048 = vst [vmem:[%s1030 + $0x38] sm:$0x1] 0.0
      %1049 = vst [vmem:[%s1030 + $0x58] sm:$0x1] 0.0
      %1050 = vst [vmem:[%s1030 + $0x78] sm:$0x1] 0.0
      %1051 = vst [vmem:[%s1030 + $0x98] sm:$0x1] 0.0
      %1052 = vst [vmem:[%s1030 + $0xb8] sm:$0x1] 0.0
      %1053 = vst [vmem:[%s1030 + $0xd8] sm:$0x1] 0.0
      %1054 = vst [vmem:[%s1030 + $0xf8] sm:$0x1] 0.0
      %1055 = vst [vmem:[%s1030 + $0x118] sm:$0x1] 0.0
      %1056 = vst [vmem:[%s1030 + $0x138] sm:$0x1] 0.0
      %1057 = vst [vmem:[%s1030 + $0x158] sm:$0x1] 0.0
      %1058 = vst [vmem:[%s1030 + $0x178] sm:$0x1] 0.0
      %1059 = vst [vmem:[%s1030 + $0x198] sm:$0x1] 0.0
      %1060 = vst [vmem:[%s1030 + $0x1b8] sm:$0x1] 0.0
      %1061 = vst [vmem:[%s1030 + $0x1d8] sm:$0x1] 0.0
      %1062 = vst [vmem:[%s1030 + $0x1f8] sm:$0x1] 0.0
      %1063 = vst [vmem:[%s1030 + $0x8] sm:$0xff] %v979
      %1064 = vst [vmem:[%s1030 + $0x10] sm:$0xff] %v980
      %1065 = vst [vmem:[%s1030 + $0x28] sm:$0xff] %v981
      %1066 = vst [vmem:[%s1030 + $0x30] sm:$0xff] %v982
      %1067 = vst [vmem:[%s1030 + $0x48] sm:$0xff] %v983
      %1068 = vst [vmem:[%s1030 + $0x50] sm:$0xff] %v984
      %1069 = vst [vmem:[%s1030 + $0x68] sm:$0xff] %v985
      %1070 = vst [vmem:[%s1030 + $0x70] sm:$0xff] %v986
      %1071 = vst [vmem:[%s1030 + $0x88] sm:$0xff] %v987
      %1072 = vst [vmem:[%s1030 + $0x90] sm:$0xff] %v988
      %1073 = vst [vmem:[%s1030 + $0xa8] sm:$0xff] %v989
      %1074 = vst [vmem:[%s1030 + $0xb0] sm:$0xff] %v990
      %1075 = vst [vmem:[%s1030 + $0xc8] sm:$0xff] %v991
      %1076 = vst [vmem:[%s1030 + $0xd0] sm:$0xff] %v992
      %1077 = vst [vmem:[%s1030 + $0xe8] sm:$0xff] %v993
      %1078 = vst [vmem:[%s1030 + $0xf0] sm:$0xff] %v994
      %1079 = vst [vmem:[%s1030 + $0x108] sm:$0xff] %v995
      %1080 = vst [vmem:[%s1030 + $0x110] sm:$0xff] %v996
      %1081 = vst [vmem:[%s1030 + $0x128] sm:$0xff] %v997
      %1082 = vst [vmem:[%s1030 + $0x130] sm:$0xff] %v998
      %1083 = vst [vmem:[%s1030 + $0x148] sm:$0xff] %v999
      %1084 = vst [vmem:[%s1030 + $0x150] sm:$0xff] %v1000
      %1085 = vst [vmem:[%s1030 + $0x168] sm:$0xff] %v1001
      %1086 = vst [vmem:[%s1030 + $0x170] sm:$0xff] %v1002
      %1087 = vst [vmem:[%s1030 + $0x188] sm:$0xff] %v1003
      %1088 = vst [vmem:[%s1030 + $0x190] sm:$0xff] %v1004
      %1089 = vst [vmem:[%s1030 + $0x1a8] sm:$0xff] %v1005
      %1090 = vst [vmem:[%s1030 + $0x1b0] sm:$0xff] %v1006
      %1091 = vst [vmem:[%s1030 + $0x1c8] sm:$0xff] %v1007
      %1092 = vst [vmem:[%s1030 + $0x1d0] sm:$0xff] %v1008
      %1093 = vst [vmem:[%s1030 + $0x1e8] sm:$0xff] %v1009
      %1094 = vst [vmem:[%s1030 + $0x1f0] sm:$0xff] %v1010
      %v1095 = vld [vmem:[#allocation2 + $0x7] sm:$0xff]
      %v1096 = vld [vmem:[#allocation2 + $0xf] sm:$0xff]
      %v1097 = vld [vmem:[#allocation2 + $0x27] sm:$0xff]
      %v1098 = vld [vmem:[#allocation2 + $0x2f] sm:$0xff]
      %v1099 = vld [vmem:[#allocation2 + $0x47] sm:$0xff]
      %v1100 = vld [vmem:[#allocation2 + $0x4f] sm:$0xff]
      %v1101 = vld [vmem:[#allocation2 + $0x67] sm:$0xff]
      %v1102 = vld [vmem:[#allocation2 + $0x6f] sm:$0xff]
      %v1103 = vld [vmem:[#allocation2 + $0x87] sm:$0xff]
      %v1104 = vld [vmem:[#allocation2 + $0x8f] sm:$0xff]
      %v1105 = vld [vmem:[#allocation2 + $0xa7] sm:$0xff]
      %v1106 = vld [vmem:[#allocation2 + $0xaf] sm:$0xff]
      %v1107 = vld [vmem:[#allocation2 + $0xc7] sm:$0xff]
      %v1108 = vld [vmem:[#allocation2 + $0xcf] sm:$0xff]
      %v1109 = vld [vmem:[#allocation2 + $0xe7] sm:$0xff]
      %v1110 = vld [vmem:[#allocation2 + $0xef] sm:$0xff]
      %v1111 = vld [vmem:[#allocation2 + $0x107] sm:$0xff]
      %v1112 = vld [vmem:[#allocation2 + $0x10f] sm:$0xff]
      %v1113 = vld [vmem:[#allocation2 + $0x127] sm:$0xff]
      %v1114 = vld [vmem:[#allocation2 + $0x12f] sm:$0xff]
      %v1115 = vld [vmem:[#allocation2 + $0x147] sm:$0xff]
      %v1116 = vld [vmem:[#allocation2 + $0x14f] sm:$0xff]
      %v1117 = vld [vmem:[#allocation2 + $0x167] sm:$0xff]
      %v1118 = vld [vmem:[#allocation2 + $0x16f] sm:$0xff]
      %v1119 = vld [vmem:[#allocation2 + $0x187] sm:$0xff]
      %v1120 = vld [vmem:[#allocation2 + $0x18f] sm:$0xff]
      %v1121 = vld [vmem:[#allocation2 + $0x1a7] sm:$0xff]
      %v1122 = vld [vmem:[#allocation2 + $0x1af] sm:$0xff]
      %v1123 = vld [vmem:[#allocation2 + $0x1c7] sm:$0xff]
      %v1124 = vld [vmem:[#allocation2 + $0x1cf] sm:$0xff]
      %v1125 = vld [vmem:[#allocation2 + $0x1e7] sm:$0xff]
      %v1126 = vld [vmem:[#allocation2 + $0x1ef] sm:$0xff]
      %v1127 = vld [vmem:[#allocation2 + $0x207] sm:$0xff]
      %v1128 = vld [vmem:[#allocation2 + $0x20f] sm:$0xff]
      %v1129 = vld [vmem:[#allocation2 + $0x227] sm:$0xff]
      %v1130 = vld [vmem:[#allocation2 + $0x22f] sm:$0xff]
      %v1132 = vlaneseq
      %v1133 = vshrl.u32 %v1132, 7
      %v1134 = vsub.s32 0, %v1133
      %v1135 = vrot.slane %v1011, %v1134
      %v1137 = vmul.f32 %v1095, %v1135
      %v1138 = vmul.f32 %v1096, %v1135
      %v1139 = vmul.f32 %v1097, %v1135
      %v1140 = vmul.f32 %v1098, %v1135
      %v1141 = vmul.f32 %v1099, %v1135
      %v1142 = vmul.f32 %v1100, %v1135
      %v1143 = vmul.f32 %v1101, %v1135
      %v1144 = vmul.f32 %v1102, %v1135
      %v1145 = vmul.f32 %v1103, %v1135
      %v1146 = vmul.f32 %v1104, %v1135
      %v1147 = vmul.f32 %v1105, %v1135
      %v1148 = vmul.f32 %v1106, %v1135
      %v1149 = vmul.f32 %v1107, %v1135
      %v1150 = vmul.f32 %v1108, %v1135
      %v1151 = vmul.f32 %v1109, %v1135
      %v1152 = vmul.f32 %v1110, %v1135
      %v1153 = vmul.f32 %v1111, %v1135
      %v1154 = vmul.f32 %v1112, %v1135
      %v1155 = vmul.f32 %v1113, %v1135
      %v1156 = vmul.f32 %v1114, %v1135
      %v1157 = vmul.f32 %v1115, %v1135
      %v1158 = vmul.f32 %v1116, %v1135
      %v1159 = vmul.f32 %v1117, %v1135
      %v1160 = vmul.f32 %v1118, %v1135
      %v1161 = vmul.f32 %v1119, %v1135
      %v1162 = vmul.f32 %v1120, %v1135
      %v1163 = vmul.f32 %v1121, %v1135
      %v1164 = vmul.f32 %v1122, %v1135
      %v1165 = vmul.f32 %v1123, %v1135
      %v1166 = vmul.f32 %v1124, %v1135
      %v1167 = vmul.f32 %v1125, %v1135
      %v1168 = vmul.f32 %v1126, %v1135
      %v1170 = vlaneseq
      %v1171 = vshrl.u32 %v1170, 7
      %v1172 = vsub.s32 0, %v1171
      %v1173 = vrot.slane %v1014, %v1172
      %v1175 = vmul.f32 %v1097, %v1173
      %v1176 = vmul.f32 %v1098, %v1173
      %v1177 = vmul.f32 %v1099, %v1173
      %v1178 = vmul.f32 %v1100, %v1173
      %v1179 = vmul.f32 %v1101, %v1173
      %v1180 = vmul.f32 %v1102, %v1173
      %v1181 = vmul.f32 %v1103, %v1173
      %v1182 = vmul.f32 %v1104, %v1173
      %v1183 = vmul.f32 %v1105, %v1173
      %v1184 = vmul.f32 %v1106, %v1173
      %v1185 = vmul.f32 %v1107, %v1173
      %v1186 = vmul.f32 %v1108, %v1173
      %v1187 = vmul.f32 %v1109, %v1173
      %v1188 = vmul.f32 %v1110, %v1173
      %v1189 = vmul.f32 %v1111, %v1173
      %v1190 = vmul.f32 %v1112, %v1173
      %v1191 = vmul.f32 %v1113, %v1173
      %v1192 = vmul.f32 %v1114, %v1173
      %v1193 = vmul.f32 %v1115, %v1173
      %v1194 = vmul.f32 %v1116, %v1173
      %v1195 = vmul.f32 %v1117, %v1173
      %v1196 = vmul.f32 %v1118, %v1173
      %v1197 = vmul.f32 %v1119, %v1173
      %v1198 = vmul.f32 %v1120, %v1173
      %v1199 = vmul.f32 %v1121, %v1173
      %v1200 = vmul.f32 %v1122, %v1173
      %v1201 = vmul.f32 %v1123, %v1173
      %v1202 = vmul.f32 %v1124, %v1173
      %v1203 = vmul.f32 %v1125, %v1173
      %v1204 = vmul.f32 %v1126, %v1173
      %v1205 = vmul.f32 %v1127, %v1173
      %v1206 = vmul.f32 %v1128, %v1173
      %v1207 = vadd.f32 %v1137, %v1175
      %v1208 = vadd.f32 %v1138, %v1176
      %v1209 = vadd.f32 %v1139, %v1177
      %v1210 = vadd.f32 %v1140, %v1178
      %v1211 = vadd.f32 %v1141, %v1179
      %v1212 = vadd.f32 %v1142, %v1180
      %v1213 = vadd.f32 %v1143, %v1181
      %v1214 = vadd.f32 %v1144, %v1182
      %v1215 = vadd.f32 %v1145, %v1183
      %v1216 = vadd.f32 %v1146, %v1184
      %v1217 = vadd.f32 %v1147, %v1185
      %v1218 = vadd.f32 %v1148, %v1186
      %v1219 = vadd.f32 %v1149, %v1187
      %v1220 = vadd.f32 %v1150, %v1188
      %v1221 = vadd.f32 %v1151, %v1189
      %v1222 = vadd.f32 %v1152, %v1190
      %v1223 = vadd.f32 %v1153, %v1191
      %v1224 = vadd.f32 %v1154, %v1192
      %v1225 = vadd.f32 %v1155, %v1193
      %v1226 = vadd.f32 %v1156, %v1194
      %v1227 = vadd.f32 %v1157, %v1195
      %v1228 = vadd.f32 %v1158, %v1196
      %v1229 = vadd.f32 %v1159, %v1197
      %v1230 = vadd.f32 %v1160, %v1198
      %v1231 = vadd.f32 %v1161, %v1199
      %v1232 = vadd.f32 %v1162, %v1200
      %v1233 = vadd.f32 %v1163, %v1201
      %v1234 = vadd.f32 %v1164, %v1202
      %v1235 = vadd.f32 %v1165, %v1203
      %v1236 = vadd.f32 %v1166, %v1204
      %v1237 = vadd.f32 %v1167, %v1205
      %v1238 = vadd.f32 %v1168, %v1206
      %v1240 = vlaneseq
      %v1241 = vshrl.u32 %v1240, 7
      %v1242 = vsub.s32 0, %v1241
      %v1243 = vrot.slane %v1017, %v1242
      %v1245 = vmul.f32 %v1099, %v1243
      %v1246 = vmul.f32 %v1100, %v1243
      %v1247 = vmul.f32 %v1101, %v1243
      %v1248 = vmul.f32 %v1102, %v1243
      %v1249 = vmul.f32 %v1103, %v1243
      %v1250 = vmul.f32 %v1104, %v1243
      %v1251 = vmul.f32 %v1105, %v1243
      %v1252 = vmul.f32 %v1106, %v1243
      %v1253 = vmul.f32 %v1107, %v1243
      %v1254 = vmul.f32 %v1108, %v1243
      %v1255 = vmul.f32 %v1109, %v1243
      %v1256 = vmul.f32 %v1110, %v1243
      %v1257 = vmul.f32 %v1111, %v1243
      %v1258 = vmul.f32 %v1112, %v1243
      %v1259 = vmul.f32 %v1113, %v1243
      %v1260 = vmul.f32 %v1114, %v1243
      %v1261 = vmul.f32 %v1115, %v1243
      %v1262 = vmul.f32 %v1116, %v1243
      %v1263 = vmul.f32 %v1117, %v1243
      %v1264 = vmul.f32 %v1118, %v1243
      %v1265 = vmul.f32 %v1119, %v1243
      %v1266 = vmul.f32 %v1120, %v1243
      %v1267 = vmul.f32 %v1121, %v1243
      %v1268 = vmul.f32 %v1122, %v1243
      %v1269 = vmul.f32 %v1123, %v1243
      %v1270 = vmul.f32 %v1124, %v1243
      %v1271 = vmul.f32 %v1125, %v1243
      %v1272 = vmul.f32 %v1126, %v1243
      %v1273 = vmul.f32 %v1127, %v1243
      %v1274 = vmul.f32 %v1128, %v1243
      %v1275 = vmul.f32 %v1129, %v1243
      %v1276 = vmul.f32 %v1130, %v1243
      %v1277 = vadd.f32 %v1207, %v1245
      %v1278 = vadd.f32 %v1208, %v1246
      %v1279 = vadd.f32 %v1209, %v1247
      %v1280 = vadd.f32 %v1210, %v1248
      %v1281 = vadd.f32 %v1211, %v1249
      %v1282 = vadd.f32 %v1212, %v1250
      %v1283 = vadd.f32 %v1213, %v1251
      %v1284 = vadd.f32 %v1214, %v1252
      %v1285 = vadd.f32 %v1215, %v1253
      %v1286 = vadd.f32 %v1216, %v1254
      %v1287 = vadd.f32 %v1217, %v1255
      %v1288 = vadd.f32 %v1218, %v1256
      %v1289 = vadd.f32 %v1219, %v1257
      %v1290 = vadd.f32 %v1220, %v1258
      %v1291 = vadd.f32 %v1221, %v1259
      %v1292 = vadd.f32 %v1222, %v1260
      %v1293 = vadd.f32 %v1223, %v1261
      %v1294 = vadd.f32 %v1224, %v1262
      %v1295 = vadd.f32 %v1225, %v1263
      %v1296 = vadd.f32 %v1226, %v1264
      %v1297 = vadd.f32 %v1227, %v1265
      %v1298 = vadd.f32 %v1228, %v1266
      %v1299 = vadd.f32 %v1229, %v1267
      %v1300 = vadd.f32 %v1230, %v1268
      %v1301 = vadd.f32 %v1231, %v1269
      %v1302 = vadd.f32 %v1232, %v1270
      %v1303 = vadd.f32 %v1233, %v1271
      %v1304 = vadd.f32 %v1234, %v1272
      %v1305 = vadd.f32 %v1235, %v1273
      %v1306 = vadd.f32 %v1236, %v1274
      %v1307 = vadd.f32 %v1237, %v1275
      %v1308 = vadd.f32 %v1238, %v1276
      %v1309 = vld [vmem:[#allocation2 + $0x8] sm:$0xff]
      %v1310 = vld [vmem:[#allocation2 + $0x10] sm:$0xff]
      %v1311 = vld [vmem:[#allocation2 + $0x28] sm:$0xff]
      %v1312 = vld [vmem:[#allocation2 + $0x30] sm:$0xff]
      %v1313 = vld [vmem:[#allocation2 + $0x48] sm:$0xff]
      %v1314 = vld [vmem:[#allocation2 + $0x50] sm:$0xff]
      %v1315 = vld [vmem:[#allocation2 + $0x68] sm:$0xff]
      %v1316 = vld [vmem:[#allocation2 + $0x70] sm:$0xff]
      %v1317 = vld [vmem:[#allocation2 + $0x88] sm:$0xff]
      %v1318 = vld [vmem:[#allocation2 + $0x90] sm:$0xff]
      %v1319 = vld [vmem:[#allocation2 + $0xa8] sm:$0xff]
      %v1320 = vld [vmem:[#allocation2 + $0xb0] sm:$0xff]
      %v1321 = vld [vmem:[#allocation2 + $0xc8] sm:$0xff]
      %v1322 = vld [vmem:[#allocation2 + $0xd0] sm:$0xff]
      %v1323 = vld [vmem:[#allocation2 + $0xe8] sm:$0xff]
      %v1324 = vld [vmem:[#allocation2 + $0xf0] sm:$0xff]
      %v1325 = vld [vmem:[#allocation2 + $0x108] sm:$0xff]
      %v1326 = vld [vmem:[#allocation2 + $0x110] sm:$0xff]
      %v1327 = vld [vmem:[#allocation2 + $0x128] sm:$0xff]
      %v1328 = vld [vmem:[#allocation2 + $0x130] sm:$0xff]
      %v1329 = vld [vmem:[#allocation2 + $0x148] sm:$0xff]
      %v1330 = vld [vmem:[#allocation2 + $0x150] sm:$0xff]
      %v1331 = vld [vmem:[#allocation2 + $0x168] sm:$0xff]
      %v1332 = vld [vmem:[#allocation2 + $0x170] sm:$0xff]
      %v1333 = vld [vmem:[#allocation2 + $0x188] sm:$0xff]
      %v1334 = vld [vmem:[#allocation2 + $0x190] sm:$0xff]
      %v1335 = vld [vmem:[#allocation2 + $0x1a8] sm:$0xff]
      %v1336 = vld [vmem:[#allocation2 + $0x1b0] sm:$0xff]
      %v1337 = vld [vmem:[#allocation2 + $0x1c8] sm:$0xff]
      %v1338 = vld [vmem:[#allocation2 + $0x1d0] sm:$0xff]
      %v1339 = vld [vmem:[#allocation2 + $0x1e8] sm:$0xff]
      %v1340 = vld [vmem:[#allocation2 + $0x1f0] sm:$0xff]
      %v1341 = vld [vmem:[#allocation2 + $0x208] sm:$0xff]
      %v1342 = vld [vmem:[#allocation2 + $0x210] sm:$0xff]
      %v1343 = vld [vmem:[#allocation2 + $0x228] sm:$0xff]
      %v1344 = vld [vmem:[#allocation2 + $0x230] sm:$0xff]
      %v1346 = vlaneseq
      %v1347 = vshrl.u32 %v1346, 7
      %v1348 = vsub.s32 0, %v1347
      %v1349 = vrot.slane %v1012, %v1348
      %v1351 = vmul.f32 %v1309, %v1349
      %v1352 = vmul.f32 %v1310, %v1349
      %v1353 = vmul.f32 %v1311, %v1349
      %v1354 = vmul.f32 %v1312, %v1349
      %v1355 = vmul.f32 %v1313, %v1349
      %v1356 = vmul.f32 %v1314, %v1349
      %v1357 = vmul.f32 %v1315, %v1349
      %v1358 = vmul.f32 %v1316, %v1349
      %v1359 = vmul.f32 %v1317, %v1349
      %v1360 = vmul.f32 %v1318, %v1349
      %v1361 = vmul.f32 %v1319, %v1349
      %v1362 = vmul.f32 %v1320, %v1349
      %v1363 = vmul.f32 %v1321, %v1349
      %v1364 = vmul.f32 %v1322, %v1349
      %v1365 = vmul.f32 %v1323, %v1349
      %v1366 = vmul.f32 %v1324, %v1349
      %v1367 = vmul.f32 %v1325, %v1349
      %v1368 = vmul.f32 %v1326, %v1349
      %v1369 = vmul.f32 %v1327, %v1349
      %v1370 = vmul.f32 %v1328, %v1349
      %v1371 = vmul.f32 %v1329, %v1349
      %v1372 = vmul.f32 %v1330, %v1349
      %v1373 = vmul.f32 %v1331, %v1349
      %v1374 = vmul.f32 %v1332, %v1349
      %v1375 = vmul.f32 %v1333, %v1349
      %v1376 = vmul.f32 %v1334, %v1349
      %v1377 = vmul.f32 %v1335, %v1349
      %v1378 = vmul.f32 %v1336, %v1349
      %v1379 = vmul.f32 %v1337, %v1349
      %v1380 = vmul.f32 %v1338, %v1349
      %v1381 = vmul.f32 %v1339, %v1349
      %v1382 = vmul.f32 %v1340, %v1349
      %v1383 = vadd.f32 %v1277, %v1351
      %v1384 = vadd.f32 %v1278, %v1352
      %v1385 = vadd.f32 %v1279, %v1353
      %v1386 = vadd.f32 %v1280, %v1354
      %v1387 = vadd.f32 %v1281, %v1355
      %v1388 = vadd.f32 %v1282, %v1356
      %v1389 = vadd.f32 %v1283, %v1357
      %v1390 = vadd.f32 %v1284, %v1358
      %v1391 = vadd.f32 %v1285, %v1359
      %v1392 = vadd.f32 %v1286, %v1360
      %v1393 = vadd.f32 %v1287, %v1361
      %v1394 = vadd.f32 %v1288, %v1362
      %v1395 = vadd.f32 %v1289, %v1363
      %v1396 = vadd.f32 %v1290, %v1364
      %v1397 = vadd.f32 %v1291, %v1365
      %v1398 = vadd.f32 %v1292, %v1366
      %v1399 = vadd.f32 %v1293, %v1367
      %v1400 = vadd.f32 %v1294, %v1368
      %v1401 = vadd.f32 %v1295, %v1369
      %v1402 = vadd.f32 %v1296, %v1370
      %v1403 = vadd.f32 %v1297, %v1371
      %v1404 = vadd.f32 %v1298, %v1372
      %v1405 = vadd.f32 %v1299, %v1373
      %v1406 = vadd.f32 %v1300, %v1374
      %v1407 = vadd.f32 %v1301, %v1375
      %v1408 = vadd.f32 %v1302, %v1376
      %v1409 = vadd.f32 %v1303, %v1377
      %v1410 = vadd.f32 %v1304, %v1378
      %v1411 = vadd.f32 %v1305, %v1379
      %v1412 = vadd.f32 %v1306, %v1380
      %v1413 = vadd.f32 %v1307, %v1381
      %v1414 = vadd.f32 %v1308, %v1382
      %v1416 = vlaneseq
      %v1417 = vshrl.u32 %v1416, 7
      %v1418 = vsub.s32 0, %v1417
      %v1419 = vrot.slane %v1015, %v1418
      %v1421 = vmul.f32 %v1311, %v1419
      %v1422 = vmul.f32 %v1312, %v1419
      %v1423 = vmul.f32 %v1313, %v1419
      %v1424 = vmul.f32 %v1314, %v1419
      %v1425 = vmul.f32 %v1315, %v1419
      %v1426 = vmul.f32 %v1316, %v1419
      %v1427 = vmul.f32 %v1317, %v1419
      %v1428 = vmul.f32 %v1318, %v1419
      %v1429 = vmul.f32 %v1319, %v1419
      %v1430 = vmul.f32 %v1320, %v1419
      %v1431 = vmul.f32 %v1321, %v1419
      %v1432 = vmul.f32 %v1322, %v1419
      %v1433 = vmul.f32 %v1323, %v1419
      %v1434 = vmul.f32 %v1324, %v1419
      %v1435 = vmul.f32 %v1325, %v1419
      %v1436 = vmul.f32 %v1326, %v1419
      %v1437 = vmul.f32 %v1327, %v1419
      %v1438 = vmul.f32 %v1328, %v1419
      %v1439 = vmul.f32 %v1329, %v1419
      %v1440 = vmul.f32 %v1330, %v1419
      %v1441 = vmul.f32 %v1331, %v1419
      %v1442 = vmul.f32 %v1332, %v1419
      %v1443 = vmul.f32 %v1333, %v1419
      %v1444 = vmul.f32 %v1334, %v1419
      %v1445 = vmul.f32 %v1335, %v1419
      %v1446 = vmul.f32 %v1336, %v1419
      %v1447 = vmul.f32 %v1337, %v1419
      %v1448 = vmul.f32 %v1338, %v1419
      %v1449 = vmul.f32 %v1339, %v1419
      %v1450 = vmul.f32 %v1340, %v1419
      %v1451 = vmul.f32 %v1341, %v1419
      %v1452 = vmul.f32 %v1342, %v1419
      %v1453 = vadd.f32 %v1383, %v1421
      %v1454 = vadd.f32 %v1384, %v1422
      %v1455 = vadd.f32 %v1385, %v1423
      %v1456 = vadd.f32 %v1386, %v1424
      %v1457 = vadd.f32 %v1387, %v1425
      %v1458 = vadd.f32 %v1388, %v1426
      %v1459 = vadd.f32 %v1389, %v1427
      %v1460 = vadd.f32 %v1390, %v1428
      %v1461 = vadd.f32 %v1391, %v1429
      %v1462 = vadd.f32 %v1392, %v1430
      %v1463 = vadd.f32 %v1393, %v1431
      %v1464 = vadd.f32 %v1394, %v1432
      %v1465 = vadd.f32 %v1395, %v1433
      %v1466 = vadd.f32 %v1396, %v1434
      %v1467 = vadd.f32 %v1397, %v1435
      %v1468 = vadd.f32 %v1398, %v1436
      %v1469 = vadd.f32 %v1399, %v1437
      %v1470 = vadd.f32 %v1400, %v1438
      %v1471 = vadd.f32 %v1401, %v1439
      %v1472 = vadd.f32 %v1402, %v1440
      %v1473 = vadd.f32 %v1403, %v1441
      %v1474 = vadd.f32 %v1404, %v1442
      %v1475 = vadd.f32 %v1405, %v1443
      %v1476 = vadd.f32 %v1406, %v1444
      %v1477 = vadd.f32 %v1407, %v1445
      %v1478 = vadd.f32 %v1408, %v1446
      %v1479 = vadd.f32 %v1409, %v1447
      %v1480 = vadd.f32 %v1410, %v1448
      %v1481 = vadd.f32 %v1411, %v1449
      %v1482 = vadd.f32 %v1412, %v1450
      %v1483 = vadd.f32 %v1413, %v1451
      %v1484 = vadd.f32 %v1414, %v1452
      %v1486 = vlaneseq
      %v1487 = vshrl.u32 %v1486, 7
      %v1488 = vsub.s32 0, %v1487
      %v1489 = vrot.slane %v1018, %v1488
      %v1491 = vmul.f32 %v1313, %v1489
      %v1492 = vmul.f32 %v1314, %v1489
      %v1493 = vmul.f32 %v1315, %v1489
      %v1494 = vmul.f32 %v1316, %v1489
      %v1495 = vmul.f32 %v1317, %v1489
      %v1496 = vmul.f32 %v1318, %v1489
      %v1497 = vmul.f32 %v1319, %v1489
      %v1498 = vmul.f32 %v1320, %v1489
      %v1499 = vmul.f32 %v1321, %v1489
      %v1500 = vmul.f32 %v1322, %v1489
      %v1501 = vmul.f32 %v1323, %v1489
      %v1502 = vmul.f32 %v1324, %v1489
      %v1503 = vmul.f32 %v1325, %v1489
      %v1504 = vmul.f32 %v1326, %v1489
      %v1505 = vmul.f32 %v1327, %v1489
      %v1506 = vmul.f32 %v1328, %v1489
      %v1507 = vmul.f32 %v1329, %v1489
      %v1508 = vmul.f32 %v1330, %v1489
      %v1509 = vmul.f32 %v1331, %v1489
      %v1510 = vmul.f32 %v1332, %v1489
      %v1511 = vmul.f32 %v1333, %v1489
      %v1512 = vmul.f32 %v1334, %v1489
      %v1513 = vmul.f32 %v1335, %v1489
      %v1514 = vmul.f32 %v1336, %v1489
      %v1515 = vmul.f32 %v1337, %v1489
      %v1516 = vmul.f32 %v1338, %v1489
      %v1517 = vmul.f32 %v1339, %v1489
      %v1518 = vmul.f32 %v1340, %v1489
      %v1519 = vmul.f32 %v1341, %v1489
      %v1520 = vmul.f32 %v1342, %v1489
      %v1521 = vmul.f32 %v1343, %v1489
      %v1522 = vmul.f32 %v1344, %v1489
      %v1523 = vadd.f32 %v1453, %v1491
      %v1524 = vadd.f32 %v1454, %v1492
      %v1525 = vadd.f32 %v1455, %v1493
      %v1526 = vadd.f32 %v1456, %v1494
      %v1527 = vadd.f32 %v1457, %v1495
      %v1528 = vadd.f32 %v1458, %v1496
      %v1529 = vadd.f32 %v1459, %v1497
      %v1530 = vadd.f32 %v1460, %v1498
      %v1531 = vadd.f32 %v1461, %v1499
      %v1532 = vadd.f32 %v1462, %v1500
      %v1533 = vadd.f32 %v1463, %v1501
      %v1534 = vadd.f32 %v1464, %v1502
      %v1535 = vadd.f32 %v1465, %v1503
      %v1536 = vadd.f32 %v1466, %v1504
      %v1537 = vadd.f32 %v1467, %v1505
      %v1538 = vadd.f32 %v1468, %v1506
      %v1539 = vadd.f32 %v1469, %v1507
      %v1540 = vadd.f32 %v1470, %v1508
      %v1541 = vadd.f32 %v1471, %v1509
      %v1542 = vadd.f32 %v1472, %v1510
      %v1543 = vadd.f32 %v1473, %v1511
      %v1544 = vadd.f32 %v1474, %v1512
      %v1545 = vadd.f32 %v1475, %v1513
      %v1546 = vadd.f32 %v1476, %v1514
      %v1547 = vadd.f32 %v1477, %v1515
      %v1548 = vadd.f32 %v1478, %v1516
      %v1549 = vadd.f32 %v1479, %v1517
      %v1550 = vadd.f32 %v1480, %v1518
      %v1551 = vadd.f32 %v1481, %v1519
      %v1552 = vadd.f32 %v1482, %v1520
      %v1553 = vadd.f32 %v1483, %v1521
      %v1554 = vadd.f32 %v1484, %v1522
      %v1555 = vld [vmem:[#allocation2 + $0x9] sm:$0xff]
      %v1556 = vld [vmem:[#allocation2 + $0x11] sm:$0xff]
      %v1557 = vld [vmem:[#allocation2 + $0x29] sm:$0xff]
      %v1558 = vld [vmem:[#allocation2 + $0x31] sm:$0xff]
      %v1559 = vld [vmem:[#allocation2 + $0x49] sm:$0xff]
      %v1560 = vld [vmem:[#allocation2 + $0x51] sm:$0xff]
      %v1561 = vld [vmem:[#allocation2 + $0x69] sm:$0xff]
      %v1562 = vld [vmem:[#allocation2 + $0x71] sm:$0xff]
      %v1563 = vld [vmem:[#allocation2 + $0x89] sm:$0xff]
      %v1564 = vld [vmem:[#allocation2 + $0x91] sm:$0xff]
      %v1565 = vld [vmem:[#allocation2 + $0xa9] sm:$0xff]
      %v1566 = vld [vmem:[#allocation2 + $0xb1] sm:$0xff]
      %v1567 = vld [vmem:[#allocation2 + $0xc9] sm:$0xff]
      %v1568 = vld [vmem:[#allocation2 + $0xd1] sm:$0xff]
      %v1569 = vld [vmem:[#allocation2 + $0xe9] sm:$0xff]
      %v1570 = vld [vmem:[#allocation2 + $0xf1] sm:$0xff]
      %v1571 = vld [vmem:[#allocation2 + $0x109] sm:$0xff]
      %v1572 = vld [vmem:[#allocation2 + $0x111] sm:$0xff]
      %v1573 = vld [vmem:[#allocation2 + $0x129] sm:$0xff]
      %v1574 = vld [vmem:[#allocation2 + $0x131] sm:$0xff]
      %v1575 = vld [vmem:[#allocation2 + $0x149] sm:$0xff]
      %v1576 = vld [vmem:[#allocation2 + $0x151] sm:$0xff]
      %v1577 = vld [vmem:[#allocation2 + $0x169] sm:$0xff]
      %v1578 = vld [vmem:[#allocation2 + $0x171] sm:$0xff]
      %v1579 = vld [vmem:[#allocation2 + $0x189] sm:$0xff]
      %v1580 = vld [vmem:[#allocation2 + $0x191] sm:$0xff]
      %v1581 = vld [vmem:[#allocation2 + $0x1a9] sm:$0xff]
      %v1582 = vld [vmem:[#allocation2 + $0x1b1] sm:$0xff]
      %v1583 = vld [vmem:[#allocation2 + $0x1c9] sm:$0xff]
      %v1584 = vld [vmem:[#allocation2 + $0x1d1] sm:$0xff]
      %v1585 = vld [vmem:[#allocation2 + $0x1e9] sm:$0xff]
      %v1586 = vld [vmem:[#allocation2 + $0x1f1] sm:$0xff]
      %v1587 = vld [vmem:[#allocation2 + $0x209] sm:$0xff]
      %v1588 = vld [vmem:[#allocation2 + $0x211] sm:$0xff]
      %v1589 = vld [vmem:[#allocation2 + $0x229] sm:$0xff]
      %v1590 = vld [vmem:[#allocation2 + $0x231] sm:$0xff]
      %v1592 = vlaneseq
      %v1593 = vshrl.u32 %v1592, 7
      %v1594 = vsub.s32 0, %v1593
      %v1595 = vrot.slane %v1013, %v1594
      %v1597 = vmul.f32 %v1555, %v1595
      %v1598 = vmul.f32 %v1556, %v1595
      %v1599 = vmul.f32 %v1557, %v1595
      %v1600 = vmul.f32 %v1558, %v1595
      %v1601 = vmul.f32 %v1559, %v1595
      %v1602 = vmul.f32 %v1560, %v1595
      %v1603 = vmul.f32 %v1561, %v1595
      %v1604 = vmul.f32 %v1562, %v1595
      %v1605 = vmul.f32 %v1563, %v1595
      %v1606 = vmul.f32 %v1564, %v1595
      %v1607 = vmul.f32 %v1565, %v1595
      %v1608 = vmul.f32 %v1566, %v1595
      %v1609 = vmul.f32 %v1567, %v1595
      %v1610 = vmul.f32 %v1568, %v1595
      %v1611 = vmul.f32 %v1569, %v1595
      %v1612 = vmul.f32 %v1570, %v1595
      %v1613 = vmul.f32 %v1571, %v1595
      %v1614 = vmul.f32 %v1572, %v1595
      %v1615 = vmul.f32 %v1573, %v1595
      %v1616 = vmul.f32 %v1574, %v1595
      %v1617 = vmul.f32 %v1575, %v1595
      %v1618 = vmul.f32 %v1576, %v1595
      %v1619 = vmul.f32 %v1577, %v1595
      %v1620 = vmul.f32 %v1578, %v1595
      %v1621 = vmul.f32 %v1579, %v1595
      %v1622 = vmul.f32 %v1580, %v1595
      %v1623 = vmul.f32 %v1581, %v1595
      %v1624 = vmul.f32 %v1582, %v1595
      %v1625 = vmul.f32 %v1583, %v1595
      %v1626 = vmul.f32 %v1584, %v1595
      %v1627 = vmul.f32 %v1585, %v1595
      %v1628 = vmul.f32 %v1586, %v1595
      %v1629 = vadd.f32 %v1523, %v1597
      %v1630 = vadd.f32 %v1524, %v1598
      %v1631 = vadd.f32 %v1525, %v1599
      %v1632 = vadd.f32 %v1526, %v1600
      %v1633 = vadd.f32 %v1527, %v1601
      %v1634 = vadd.f32 %v1528, %v1602
      %v1635 = vadd.f32 %v1529, %v1603
      %v1636 = vadd.f32 %v1530, %v1604
      %v1637 = vadd.f32 %v1531, %v1605
      %v1638 = vadd.f32 %v1532, %v1606
      %v1639 = vadd.f32 %v1533, %v1607
      %v1640 = vadd.f32 %v1534, %v1608
      %v1641 = vadd.f32 %v1535, %v1609
      %v1642 = vadd.f32 %v1536, %v1610
      %v1643 = vadd.f32 %v1537, %v1611
      %v1644 = vadd.f32 %v1538, %v1612
      %v1645 = vadd.f32 %v1539, %v1613
      %v1646 = vadd.f32 %v1540, %v1614
      %v1647 = vadd.f32 %v1541, %v1615
      %v1648 = vadd.f32 %v1542, %v1616
      %v1649 = vadd.f32 %v1543, %v1617
      %v1650 = vadd.f32 %v1544, %v1618
      %v1651 = vadd.f32 %v1545, %v1619
      %v1652 = vadd.f32 %v1546, %v1620
      %v1653 = vadd.f32 %v1547, %v1621
      %v1654 = vadd.f32 %v1548, %v1622
      %v1655 = vadd.f32 %v1549, %v1623
      %v1656 = vadd.f32 %v1550, %v1624
      %v1657 = vadd.f32 %v1551, %v1625
      %v1658 = vadd.f32 %v1552, %v1626
      %v1659 = vadd.f32 %v1553, %v1627
      %v1660 = vadd.f32 %v1554, %v1628
      %v1662 = vlaneseq
      %v1663 = vshrl.u32 %v1662, 7
      %v1664 = vsub.s32 0, %v1663
      %v1665 = vrot.slane %v1016, %v1664
      %v1667 = vmul.f32 %v1557, %v1665
      %v1668 = vmul.f32 %v1558, %v1665
      %v1669 = vmul.f32 %v1559, %v1665
      %v1670 = vmul.f32 %v1560, %v1665
      %v1671 = vmul.f32 %v1561, %v1665
      %v1672 = vmul.f32 %v1562, %v1665
      %v1673 = vmul.f32 %v1563, %v1665
      %v1674 = vmul.f32 %v1564, %v1665
      %v1675 = vmul.f32 %v1565, %v1665
      %v1676 = vmul.f32 %v1566, %v1665
      %v1677 = vmul.f32 %v1567, %v1665
      %v1678 = vmul.f32 %v1568, %v1665
      %v1679 = vmul.f32 %v1569, %v1665
      %v1680 = vmul.f32 %v1570, %v1665
      %v1681 = vmul.f32 %v1571, %v1665
      %v1682 = vmul.f32 %v1572, %v1665
      %v1683 = vmul.f32 %v1573, %v1665
      %v1684 = vmul.f32 %v1574, %v1665
      %v1685 = vmul.f32 %v1575, %v1665
      %v1686 = vmul.f32 %v1576, %v1665
      %v1687 = vmul.f32 %v1577, %v1665
      %v1688 = vmul.f32 %v1578, %v1665
      %v1689 = vmul.f32 %v1579, %v1665
      %v1690 = vmul.f32 %v1580, %v1665
      %v1691 = vmul.f32 %v1581, %v1665
      %v1692 = vmul.f32 %v1582, %v1665
      %v1693 = vmul.f32 %v1583, %v1665
      %v1694 = vmul.f32 %v1584, %v1665
      %v1695 = vmul.f32 %v1585, %v1665
      %v1696 = vmul.f32 %v1586, %v1665
      %v1697 = vmul.f32 %v1587, %v1665
      %v1698 = vmul.f32 %v1588, %v1665
      %v1699 = vadd.f32 %v1629, %v1667
      %v1700 = vadd.f32 %v1630, %v1668
      %v1701 = vadd.f32 %v1631, %v1669
      %v1702 = vadd.f32 %v1632, %v1670
      %v1703 = vadd.f32 %v1633, %v1671
      %v1704 = vadd.f32 %v1634, %v1672
      %v1705 = vadd.f32 %v1635, %v1673
      %v1706 = vadd.f32 %v1636, %v1674
      %v1707 = vadd.f32 %v1637, %v1675
      %v1708 = vadd.f32 %v1638, %v1676
      %v1709 = vadd.f32 %v1639, %v1677
      %v1710 = vadd.f32 %v1640, %v1678
      %v1711 = vadd.f32 %v1641, %v1679
      %v1712 = vadd.f32 %v1642, %v1680
      %v1713 = vadd.f32 %v1643, %v1681
      %v1714 = vadd.f32 %v1644, %v1682
      %v1715 = vadd.f32 %v1645, %v1683
      %v1716 = vadd.f32 %v1646, %v1684
      %v1717 = vadd.f32 %v1647, %v1685
      %v1718 = vadd.f32 %v1648, %v1686
      %v1719 = vadd.f32 %v1649, %v1687
      %v1720 = vadd.f32 %v1650, %v1688
      %v1721 = vadd.f32 %v1651, %v1689
      %v1722 = vadd.f32 %v1652, %v1690
      %v1723 = vadd.f32 %v1653, %v1691
      %v1724 = vadd.f32 %v1654, %v1692
      %v1725 = vadd.f32 %v1655, %v1693
      %v1726 = vadd.f32 %v1656, %v1694
      %v1727 = vadd.f32 %v1657, %v1695
      %v1728 = vadd.f32 %v1658, %v1696
      %v1729 = vadd.f32 %v1659, %v1697
      %v1730 = vadd.f32 %v1660, %v1698
      %v1732 = vlaneseq
      %v1733 = vshrl.u32 %v1732, 7
      %v1734 = vsub.s32 0, %v1733
      %v1735 = vrot.slane %v1019, %v1734
      %v1737 = vmul.f32 %v1559, %v1735
      %v1738 = vmul.f32 %v1560, %v1735
      %v1739 = vmul.f32 %v1561, %v1735
      %v1740 = vmul.f32 %v1562, %v1735
      %v1741 = vmul.f32 %v1563, %v1735
      %v1742 = vmul.f32 %v1564, %v1735
      %v1743 = vmul.f32 %v1565, %v1735
      %v1744 = vmul.f32 %v1566, %v1735
      %v1745 = vmul.f32 %v1567, %v1735
      %v1746 = vmul.f32 %v1568, %v1735
      %v1747 = vmul.f32 %v1569, %v1735
      %v1748 = vmul.f32 %v1570, %v1735
      %v1749 = vmul.f32 %v1571, %v1735
      %v1750 = vmul.f32 %v1572, %v1735
      %v1751 = vmul.f32 %v1573, %v1735
      %v1752 = vmul.f32 %v1574, %v1735
      %v1753 = vmul.f32 %v1575, %v1735
      %v1754 = vmul.f32 %v1576, %v1735
      %v1755 = vmul.f32 %v1577, %v1735
      %v1756 = vmul.f32 %v1578, %v1735
      %v1757 = vmul.f32 %v1579, %v1735
      %v1758 = vmul.f32 %v1580, %v1735
      %v1759 = vmul.f32 %v1581, %v1735
      %v1760 = vmul.f32 %v1582, %v1735
      %v1761 = vmul.f32 %v1583, %v1735
      %v1762 = vmul.f32 %v1584, %v1735
      %v1763 = vmul.f32 %v1585, %v1735
      %v1764 = vmul.f32 %v1586, %v1735
      %v1765 = vmul.f32 %v1587, %v1735
      %v1766 = vmul.f32 %v1588, %v1735
      %v1767 = vmul.f32 %v1589, %v1735
      %v1768 = vmul.f32 %v1590, %v1735
      %v1769 = vadd.f32 %v1699, %v1737
      %v1770 = vadd.f32 %v1700, %v1738
      %v1771 = vadd.f32 %v1701, %v1739
      %v1772 = vadd.f32 %v1702, %v1740
      %v1773 = vadd.f32 %v1703, %v1741
      %v1774 = vadd.f32 %v1704, %v1742
      %v1775 = vadd.f32 %v1705, %v1743
      %v1776 = vadd.f32 %v1706, %v1744
      %v1777 = vadd.f32 %v1707, %v1745
      %v1778 = vadd.f32 %v1708, %v1746
      %v1779 = vadd.f32 %v1709, %v1747
      %v1780 = vadd.f32 %v1710, %v1748
      %v1781 = vadd.f32 %v1711, %v1749
      %v1782 = vadd.f32 %v1712, %v1750
      %v1783 = vadd.f32 %v1713, %v1751
      %v1784 = vadd.f32 %v1714, %v1752
      %v1785 = vadd.f32 %v1715, %v1753
      %v1786 = vadd.f32 %v1716, %v1754
      %v1787 = vadd.f32 %v1717, %v1755
      %v1788 = vadd.f32 %v1718, %v1756
      %v1789 = vadd.f32 %v1719, %v1757
      %v1790 = vadd.f32 %v1720, %v1758
      %v1791 = vadd.f32 %v1721, %v1759
      %v1792 = vadd.f32 %v1722, %v1760
      %v1793 = vadd.f32 %v1723, %v1761
      %v1794 = vadd.f32 %v1724, %v1762
      %v1795 = vadd.f32 %v1725, %v1763
      %v1796 = vadd.f32 %v1726, %v1764
      %v1797 = vadd.f32 %v1727, %v1765
      %v1798 = vadd.f32 %v1728, %v1766
      %v1799 = vadd.f32 %v1729, %v1767
      %v1800 = vadd.f32 %v1730, %v1768
      %v1802 = vlaneseq
      %v1803 = vshrl.u32 %v1802, 7
      %v1804 = vsub.s32 0, %v1803
      %v1805 = vrot.slane %v1020, %v1804
      %v1807 = vadd.f32 %v1769, %v1805
      %v1808 = vadd.f32 %v1770, %v1805
      %v1809 = vadd.f32 %v1771, %v1805
      %v1810 = vadd.f32 %v1772, %v1805
      %v1811 = vadd.f32 %v1773, %v1805
      %v1812 = vadd.f32 %v1774, %v1805
      %v1813 = vadd.f32 %v1775, %v1805
      %v1814 = vadd.f32 %v1776, %v1805
      %v1815 = vadd.f32 %v1777, %v1805
      %v1816 = vadd.f32 %v1778, %v1805
      %v1817 = vadd.f32 %v1779, %v1805
      %v1818 = vadd.f32 %v1780, %v1805
      %v1819 = vadd.f32 %v1781, %v1805
      %v1820 = vadd.f32 %v1782, %v1805
      %v1821 = vadd.f32 %v1783, %v1805
      %v1822 = vadd.f32 %v1784, %v1805
      %v1823 = vadd.f32 %v1785, %v1805
      %v1824 = vadd.f32 %v1786, %v1805
      %v1825 = vadd.f32 %v1787, %v1805
      %v1826 = vadd.f32 %v1788, %v1805
      %v1827 = vadd.f32 %v1789, %v1805
      %v1828 = vadd.f32 %v1790, %v1805
      %v1829 = vadd.f32 %v1791, %v1805
      %v1830 = vadd.f32 %v1792, %v1805
      %v1831 = vadd.f32 %v1793, %v1805
      %v1832 = vadd.f32 %v1794, %v1805
      %v1833 = vadd.f32 %v1795, %v1805
      %v1834 = vadd.f32 %v1796, %v1805
      %v1835 = vadd.f32 %v1797, %v1805
      %v1836 = vadd.f32 %v1798, %v1805
      %v1837 = vadd.f32 %v1799, %v1805
      %v1838 = vadd.f32 %v1800, %v1805
      %v1839 = vxor.u32 %v1807, 2147483648
      %v1840 = vxor.u32 %v1808, 2147483648
      %v1841 = vxor.u32 %v1809, 2147483648
      %v1842 = vxor.u32 %v1810, 2147483648
      %v1843 = vxor.u32 %v1811, 2147483648
      %v1844 = vxor.u32 %v1812, 2147483648
      %v1845 = vxor.u32 %v1813, 2147483648
      %v1846 = vxor.u32 %v1814, 2147483648
      %v1847 = vxor.u32 %v1815, 2147483648
      %v1848 = vxor.u32 %v1816, 2147483648
      %v1849 = vxor.u32 %v1817, 2147483648
      %v1850 = vxor.u32 %v1818, 2147483648
      %v1851 = vxor.u32 %v1819, 2147483648
      %v1852 = vxor.u32 %v1820, 2147483648
      %v1853 = vxor.u32 %v1821, 2147483648
      %v1854 = vxor.u32 %v1822, 2147483648
      %v1855 = vxor.u32 %v1823, 2147483648
      %v1856 = vxor.u32 %v1824, 2147483648
      %v1857 = vxor.u32 %v1825, 2147483648
      %v1858 = vxor.u32 %v1826, 2147483648
      %v1859 = vxor.u32 %v1827, 2147483648
      %v1860 = vxor.u32 %v1828, 2147483648
      %v1861 = vxor.u32 %v1829, 2147483648
      %v1862 = vxor.u32 %v1830, 2147483648
      %v1863 = vxor.u32 %v1831, 2147483648
      %v1864 = vxor.u32 %v1832, 2147483648
      %v1865 = vxor.u32 %v1833, 2147483648
      %v1866 = vxor.u32 %v1834, 2147483648
      %v1867 = vxor.u32 %v1835, 2147483648
      %v1868 = vxor.u32 %v1836, 2147483648
      %v1869 = vxor.u32 %v1837, 2147483648
      %v1870 = vxor.u32 %v1838, 2147483648
      %v1871 = vmul.f32 %v1839, 1.442695
      %v1872 = vpow.pop %v1871
      %v1873 = vmul.f32 %v1840, 1.442695
      %v1874 = vpow.pop %v1873
      %v1875 = vmul.f32 %v1841, 1.442695
      %v1876 = vpow.pop %v1875
      %v1877 = vmul.f32 %v1842, 1.442695
      %v1878 = vpow.pop %v1877
      %v1879 = vmul.f32 %v1843, 1.442695
      %v1880 = vpow.pop %v1879
      %v1881 = vmul.f32 %v1844, 1.442695
      %v1882 = vpow.pop %v1881
      %v1883 = vmul.f32 %v1845, 1.442695
      %v1884 = vpow.pop %v1883
      %v1885 = vmul.f32 %v1846, 1.442695
      %v1886 = vpow.pop %v1885
      %v1887 = vmul.f32 %v1847, 1.442695
      %v1888 = vpow.pop %v1887
      %v1889 = vmul.f32 %v1848, 1.442695
      %v1890 = vpow.pop %v1889
      %v1891 = vmul.f32 %v1849, 1.442695
      %v1892 = vpow.pop %v1891
      %v1893 = vmul.f32 %v1850, 1.442695
      %v1894 = vpow.pop %v1893
      %v1895 = vmul.f32 %v1851, 1.442695
      %v1896 = vpow.pop %v1895
      %v1897 = vmul.f32 %v1852, 1.442695
      %v1898 = vpow.pop %v1897
      %v1899 = vmul.f32 %v1853, 1.442695
      %v1900 = vpow.pop %v1899
      %v1901 = vmul.f32 %v1854, 1.442695
      %v1902 = vpow.pop %v1901
      %v1903 = vmul.f32 %v1855, 1.442695
      %v1904 = vpow.pop %v1903
      %v1905 = vmul.f32 %v1856, 1.442695
      %v1906 = vpow.pop %v1905
      %v1907 = vmul.f32 %v1857, 1.442695
      %v1908 = vpow.pop %v1907
      %v1909 = vmul.f32 %v1858, 1.442695
      %v1910 = vpow.pop %v1909
      %v1911 = vmul.f32 %v1859, 1.442695
      %v1912 = vpow.pop %v1911
      %v1913 = vmul.f32 %v1860, 1.442695
      %v1914 = vpow.pop %v1913
      %v1915 = vmul.f32 %v1861, 1.442695
      %v1916 = vpow.pop %v1915
      %v1917 = vmul.f32 %v1862, 1.442695
      %v1918 = vpow.pop %v1917
      %v1919 = vmul.f32 %v1863, 1.442695
      %v1920 = vpow.pop %v1919
      %v1921 = vmul.f32 %v1864, 1.442695
      %v1922 = vpow.pop %v1921
      %v1923 = vmul.f32 %v1865, 1.442695
      %v1924 = vpow.pop %v1923
      %v1925 = vmul.f32 %v1866, 1.442695
      %v1926 = vpow.pop %v1925
      %v1927 = vmul.f32 %v1867, 1.442695
      %v1928 = vpow.pop %v1927
      %v1929 = vmul.f32 %v1868, 1.442695
      %v1930 = vpow.pop %v1929
      %v1931 = vmul.f32 %v1869, 1.442695
      %v1932 = vpow.pop %v1931
      %v1933 = vmul.f32 %v1870, 1.442695
      %v1934 = vpow.pop %v1933
      %v1935 = vadd.f32 %v1872, 1.0
      %v1936 = vadd.f32 %v1874, 1.0
      %v1937 = vadd.f32 %v1876, 1.0
      %v1938 = vadd.f32 %v1878, 1.0
      %v1939 = vadd.f32 %v1880, 1.0
      %v1940 = vadd.f32 %v1882, 1.0
      %v1941 = vadd.f32 %v1884, 1.0
      %v1942 = vadd.f32 %v1886, 1.0
      %v1943 = vadd.f32 %v1888, 1.0
      %v1944 = vadd.f32 %v1890, 1.0
      %v1945 = vadd.f32 %v1892, 1.0
      %v1946 = vadd.f32 %v1894, 1.0
      %v1947 = vadd.f32 %v1896, 1.0
      %v1948 = vadd.f32 %v1898, 1.0
      %v1949 = vadd.f32 %v1900, 1.0
      %v1950 = vadd.f32 %v1902, 1.0
      %v1951 = vadd.f32 %v1904, 1.0
      %v1952 = vadd.f32 %v1906, 1.0
      %v1953 = vadd.f32 %v1908, 1.0
      %v1954 = vadd.f32 %v1910, 1.0
      %v1955 = vadd.f32 %v1912, 1.0
      %v1956 = vadd.f32 %v1914, 1.0
      %v1957 = vadd.f32 %v1916, 1.0
      %v1958 = vadd.f32 %v1918, 1.0
      %v1959 = vadd.f32 %v1920, 1.0
      %v1960 = vadd.f32 %v1922, 1.0
      %v1961 = vadd.f32 %v1924, 1.0
      %v1962 = vadd.f32 %v1926, 1.0
      %v1963 = vadd.f32 %v1928, 1.0
      %v1964 = vadd.f32 %v1930, 1.0
      %v1965 = vadd.f32 %v1932, 1.0
      %v1966 = vadd.f32 %v1934, 1.0
      %v1967 = vrcp.pop %v1935
      %v1968 = vmul.f32 1.0, %v1967
      %v1969 = vrcp.pop %v1936
      %v1970 = vmul.f32 1.0, %v1969
      %v1971 = vrcp.pop %v1937
      %v1972 = vmul.f32 1.0, %v1971
      %v1973 = vrcp.pop %v1938
      %v1974 = vmul.f32 1.0, %v1973
      %v1975 = vrcp.pop %v1939
      %v1976 = vmul.f32 1.0, %v1975
      %v1977 = vrcp.pop %v1940
      %v1978 = vmul.f32 1.0, %v1977
      %v1979 = vrcp.pop %v1941
      %v1980 = vmul.f32 1.0, %v1979
      %v1981 = vrcp.pop %v1942
      %v1982 = vmul.f32 1.0, %v1981
      %v1983 = vrcp.pop %v1943
      %v1984 = vmul.f32 1.0, %v1983
      %v1985 = vrcp.pop %v1944
      %v1986 = vmul.f32 1.0, %v1985
      %v1987 = vrcp.pop %v1945
      %v1988 = vmul.f32 1.0, %v1987
      %v1989 = vrcp.pop %v1946
      %v1990 = vmul.f32 1.0, %v1989
      %v1991 = vrcp.pop %v1947
      %v1992 = vmul.f32 1.0, %v1991
      %v1993 = vrcp.pop %v1948
      %v1994 = vmul.f32 1.0, %v1993
      %v1995 = vrcp.pop %v1949
      %v1996 = vmul.f32 1.0, %v1995
      %v1997 = vrcp.pop %v1950
      %v1998 = vmul.f32 1.0, %v1997
      %v1999 = vrcp.pop %v1951
      %v2000 = vmul.f32 1.0, %v1999
      %v2001 = vrcp.pop %v1952
      %v2002 = vmul.f32 1.0, %v2001
      %v2003 = vrcp.pop %v1953
      %v2004 = vmul.f32 1.0, %v2003
      %v2005 = vrcp.pop %v1954
      %v2006 = vmul.f32 1.0, %v2005
      %v2007 = vrcp.pop %v1955
      %v2008 = vmul.f32 1.0, %v2007
      %v2009 = vrcp.pop %v1956
      %v2010 = vmul.f32 1.0, %v2009
      %v2011 = vrcp.pop %v1957
      %v2012 = vmul.f32 1.0, %v2011
      %v2013 = vrcp.pop %v1958
      %v2014 = vmul.f32 1.0, %v2013
      %v2015 = vrcp.pop %v1959
      %v2016 = vmul.f32 1.0, %v2015
      %v2017 = vrcp.pop %v1960
      %v2018 = vmul.f32 1.0, %v2017
      %v2019 = vrcp.pop %v1961
      %v2020 = vmul.f32 1.0, %v2019
      %v2021 = vrcp.pop %v1962
      %v2022 = vmul.f32 1.0, %v2021
      %v2023 = vrcp.pop %v1963
      %v2024 = vmul.f32 1.0, %v2023
      %v2025 = vrcp.pop %v1964
      %v2026 = vmul.f32 1.0, %v2025
      %v2027 = vrcp.pop %v1965
      %v2028 = vmul.f32 1.0, %v2027
      %v2029 = vrcp.pop %v1966
      %v2030 = vmul.f32 1.0, %v2029
      %v2031 = vmul.f32 %v1807, %v1968
      %v2032 = vmul.f32 %v1808, %v1970
      %v2033 = vmul.f32 %v1809, %v1972
      %v2034 = vmul.f32 %v1810, %v1974
      %v2035 = vmul.f32 %v1811, %v1976
      %v2036 = vmul.f32 %v1812, %v1978
      %v2037 = vmul.f32 %v1813, %v1980
      %v2038 = vmul.f32 %v1814, %v1982
      %v2039 = vmul.f32 %v1815, %v1984
      %v2040 = vmul.f32 %v1816, %v1986
      %v2041 = vmul.f32 %v1817, %v1988
      %v2042 = vmul.f32 %v1818, %v1990
      %v2043 = vmul.f32 %v1819, %v1992
      %v2044 = vmul.f32 %v1820, %v1994
      %v2045 = vmul.f32 %v1821, %v1996
      %v2046 = vmul.f32 %v1822, %v1998
      %v2047 = vmul.f32 %v1823, %v2000
      %v2048 = vmul.f32 %v1824, %v2002
      %v2049 = vmul.f32 %v1825, %v2004
      %v2050 = vmul.f32 %v1826, %v2006
      %v2051 = vmul.f32 %v1827, %v2008
      %v2052 = vmul.f32 %v1828, %v2010
      %v2053 = vmul.f32 %v1829, %v2012
      %v2054 = vmul.f32 %v1830, %v2014
      %v2055 = vmul.f32 %v1831, %v2016
      %v2056 = vmul.f32 %v1832, %v2018
      %v2057 = vmul.f32 %v1833, %v2020
      %v2058 = vmul.f32 %v1834, %v2022
      %v2059 = vmul.f32 %v1835, %v2024
      %v2060 = vmul.f32 %v1836, %v2026
      %v2061 = vmul.f32 %v1837, %v2028
      %v2062 = vmul.f32 %v1838, %v2030
      %v2063 = vadd.f32 %v2031, %v2032
      %v2064 = vadd.f32 %v2063, %v2033
      %v2065 = vadd.f32 %v2064, %v2034
      %v2066 = vadd.f32 %v2065, %v2035
      %v2067 = vadd.f32 %v2066, %v2036
      %v2068 = vadd.f32 %v2067, %v2037
      %v2069 = vadd.f32 %v2068, %v2038
      %v2070 = vadd.f32 %v2069, %v2039
      %v2071 = vadd.f32 %v2070, %v2040
      %v2072 = vadd.f32 %v2071, %v2041
      %v2073 = vadd.f32 %v2072, %v2042
      %v2074 = vadd.f32 %v2073, %v2043
      %v2075 = vadd.f32 %v2074, %v2044
      %v2076 = vadd.f32 %v2075, %v2045
      %v2077 = vadd.f32 %v2076, %v2046
      %v2078 = vadd.f32 %v2077, %v2047
      %v2079 = vadd.f32 %v2078, %v2048
      %v2080 = vadd.f32 %v2079, %v2049
      %v2081 = vadd.f32 %v2080, %v2050
      %v2082 = vadd.f32 %v2081, %v2051
      %v2083 = vadd.f32 %v2082, %v2052
      %v2084 = vadd.f32 %v2083, %v2053
      %v2085 = vadd.f32 %v2084, %v2054
      %v2086 = vadd.f32 %v2085, %v2055
      %v2087 = vadd.f32 %v2086, %v2056
      %v2088 = vadd.f32 %v2087, %v2057
      %v2089 = vadd.f32 %v2088, %v2058
      %v2090 = vadd.f32 %v2089, %v2059
      %v2091 = vadd.f32 %v2090, %v2060
      %v2092 = vadd.f32 %v2091, %v2061
      %v2093 = vadd.f32 %v2092, %v2062
      %v2094 = vrot.slane %v2093, 4
      %v2095 = vadd.f32 %v2093, %v2094
      %v2096 = vrot.slane %v2095, 2
      %v2097 = vadd.f32 %v2095, %v2096
      %v2098 = vrot.slane %v2097, 1
      %v2099 = vadd.f32 %v2097, %v2098
      %v2100 = vmul.f32 %v2099, 0.00390625
      %v2101 = vpack.c.bf16 %v2100, %v2100
      %v2102 = vld [vmem:[%s5] sm:$0xf]
      %v2103 = vld [vmem:[%s5 + $0x4] sm:$0xf]
      %v2104 = vld [vmem:[%s5 + $0x8] sm:$0xf]
      %v2105 = vld [vmem:[%s5 + $0xc] sm:$0xf]
      %v2106 = vld [vmem:[%s5 + $0x10] sm:$0xf]
      %v2107 = vld [vmem:[%s5 + $0x14] sm:$0xf]
      %v2108 = vld [vmem:[%s5 + $0x18] sm:$0xf]
      %v2109 = vld [vmem:[%s5 + $0x1c] sm:$0xf]
      %v2110 = vld [vmem:[%s5 + $0x20] sm:$0xf]
      %v2111 = vld [vmem:[%s5 + $0x24] sm:$0xf]
      %v2112 = vld [vmem:[%s5 + $0x28] sm:$0xf]
      %v2113 = vld [vmem:[%s5 + $0x2c] sm:$0xf]
      %v2114 = vld [vmem:[%s5 + $0x30] sm:$0xf]
      %v2115 = vld [vmem:[%s5 + $0x34] sm:$0xf]
      %v2116 = vld [vmem:[%s5 + $0x38] sm:$0xf]
      %v2117 = vld [vmem:[%s5 + $0x3c] sm:$0xf]
      %v2118 = vld [vmem:[%s6] sm:$0x1]
      %v2135 = vunpack.c.l.b16 %v2102
      %v2136 = vunpack.c.l.b16 %v2103
      %v2137 = vunpack.c.l.b16 %v2104
      %v2138 = vunpack.c.l.b16 %v2105
      %v2139 = vunpack.c.l.b16 %v2106
      %v2140 = vunpack.c.l.b16 %v2107
      %v2141 = vunpack.c.l.b16 %v2108
      %v2142 = vunpack.c.l.b16 %v2109
      %v2143 = vunpack.c.l.b16 %v2110
      %v2144 = vunpack.c.l.b16 %v2111
      %v2145 = vunpack.c.l.b16 %v2112
      %v2146 = vunpack.c.l.b16 %v2113
      %v2147 = vunpack.c.l.b16 %v2114
      %v2148 = vunpack.c.l.b16 %v2115
      %v2149 = vunpack.c.l.b16 %v2116
      %v2150 = vunpack.c.l.b16 %v2117
      %v2151 = vpack.c.b16 %v2136, %v2135
      %v2152 = vpack.c.b16 %v2138, %v2137
      %v2153 = vpack.c.b16 %v2140, %v2139
      %v2154 = vpack.c.b16 %v2142, %v2141
      %v2155 = vpack.c.b16 %v2144, %v2143
      %v2156 = vpack.c.b16 %v2146, %v2145
      %v2157 = vpack.c.b16 %v2148, %v2147
      %v2158 = vpack.c.b16 %v2150, %v2149
      %2167 = vmatprep.subr.bf16.mxu0 0
      %2168 = vmatpush1.bf16.msra.mxu0 %v2151
      %2169 = vmatprep.subr.bf16.mxu0 0
      %2170 = vmatpush1.bf16.msra.mxu0 %v2152
      %2171 = vmatprep.subr.bf16.mxu0 0
      %2172 = vmatpush1.bf16.msra.mxu0 %v2153
      %2173 = vmatprep.subr.bf16.mxu0 0
      %2174 = vmatpush1.bf16.msra.mxu0 %v2154
      %2175 = vmatprep.subr.bf16.mxu0 0
      %2176 = vmatpush1.bf16.msra.mxu0 %v2155
      %2177 = vmatprep.subr.bf16.mxu0 0
      %2178 = vmatpush1.bf16.msra.mxu0 %v2156
      %2179 = vmatprep.subr.bf16.mxu0 0
      %2180 = vmatpush1.bf16.msra.mxu0 %v2157
      %2181 = vmatprep.subr.bf16.mxu0 0
      %2182 = vmatpush1.bf16.msra.mxu0 %v2158
      %2183 = vmatprep.subr.bf16.mxu0 0
      %2184 = vmatpush1.bf16.msra.mxu0 0
      %2185 = vmatprep.subr.bf16.mxu0 0
      %2186 = vmatpush1.bf16.msra.mxu0 0
      %2187 = vmatprep.subr.bf16.mxu0 0
      %2188 = vmatpush1.bf16.msra.mxu0 0
      %2189 = vmatprep.subr.bf16.mxu0 0
      %2190 = vmatpush1.bf16.msra.mxu0 0
      %2191 = vmatprep.subr.bf16.mxu0 0
      %2192 = vmatpush1.bf16.msra.mxu0 0
      %2193 = vmatprep.subr.bf16.mxu0 0
      %2194 = vmatpush1.bf16.msra.mxu0 0
      %2195 = vmatprep.subr.bf16.mxu0 0
      %2196 = vmatpush1.bf16.msra.mxu0 0
      %2197 = vmatprep.subr.bf16.mxu0 0
      %2198 = vmatpush1.bf16.msra.mxu0 0
      %2199 = vmatprep.mubr.bf16.mxu0 0
      %2200 = vmatmul.mubr.bf16.gmra.mrb[0].mxu0 %v2101
      %v2201 = vpop.f32.mrb[0].mxu0
      %v2202 = vadd.f32 %v2118, %v2201
      %v2203 = vpop.f32.mrb[0].mxu0
      %v2204 = vpop.f32.mrb[0].mxu0
      %v2205 = vpop.f32.mrb[0].mxu0
      %2206 = vdwg.mxu0
      %v2207 = vxor.u32 %v2202, 2147483648
      %v2208 = vmul.f32 %v2207, 1.442695
      %v2209 = vpow.pop %v2208
      %v2210 = vadd.f32 %v2209, 1.0
      %v2211 = vrcp.pop %v2210
      %v2212 = vmul.f32 1.0, %v2211
      %v2213 = vmul.f32 %v2202, %v2212
      %v2214 = vpack.c.bf16 %v2213, %v2213
      %v2215 = vld [vmem:[%s7] sm:$0xf]
      %v2216 = vld [vmem:[%s7 + $0x4] sm:$0xf]
      %v2217 = vld [vmem:[%s7 + $0x8] sm:$0xf]
      %v2218 = vld [vmem:[%s7 + $0xc] sm:$0xf]
      %v2219 = vld [vmem:[%s7 + $0x10] sm:$0xf]
      %v2220 = vld [vmem:[%s7 + $0x14] sm:$0xf]
      %v2221 = vld [vmem:[%s7 + $0x18] sm:$0xf]
      %v2222 = vld [vmem:[%s7 + $0x1c] sm:$0xf]
      %v2223 = vld [vmem:[%s7 + $0x20] sm:$0xf]
      %v2224 = vld [vmem:[%s7 + $0x24] sm:$0xf]
      %v2225 = vld [vmem:[%s7 + $0x28] sm:$0xf]
      %v2226 = vld [vmem:[%s7 + $0x2c] sm:$0xf]
      %v2227 = vld [vmem:[%s7 + $0x30] sm:$0xf]
      %v2228 = vld [vmem:[%s7 + $0x34] sm:$0xf]
      %v2229 = vld [vmem:[%s7 + $0x38] sm:$0xf]
      %v2230 = vld [vmem:[%s7 + $0x3c] sm:$0xf]
      %v2231 = vld [vmem:[%s8] sm:$0x1]
      %v2248 = vunpack.c.l.b16 %v2215
      %v2249 = vunpack.c.l.b16 %v2216
      %v2250 = vunpack.c.l.b16 %v2217
      %v2251 = vunpack.c.l.b16 %v2218
      %v2252 = vunpack.c.l.b16 %v2219
      %v2253 = vunpack.c.l.b16 %v2220
      %v2254 = vunpack.c.l.b16 %v2221
      %v2255 = vunpack.c.l.b16 %v2222
      %v2256 = vunpack.c.l.b16 %v2223
      %v2257 = vunpack.c.l.b16 %v2224
      %v2258 = vunpack.c.l.b16 %v2225
      %v2259 = vunpack.c.l.b16 %v2226
      %v2260 = vunpack.c.l.b16 %v2227
      %v2261 = vunpack.c.l.b16 %v2228
      %v2262 = vunpack.c.l.b16 %v2229
      %v2263 = vunpack.c.l.b16 %v2230
      %v2264 = vpack.c.b16 %v2249, %v2248
      %v2265 = vpack.c.b16 %v2251, %v2250
      %v2266 = vpack.c.b16 %v2253, %v2252
      %v2267 = vpack.c.b16 %v2255, %v2254
      %v2268 = vpack.c.b16 %v2257, %v2256
      %v2269 = vpack.c.b16 %v2259, %v2258
      %v2270 = vpack.c.b16 %v2261, %v2260
      %v2271 = vpack.c.b16 %v2263, %v2262
      %2280 = vmatprep.subr.bf16.mxu0 0
      %2281 = vmatpush1.bf16.msra.mxu0 %v2264
      %2282 = vmatprep.subr.bf16.mxu0 0
      %2283 = vmatpush1.bf16.msra.mxu0 %v2265
      %2284 = vmatprep.subr.bf16.mxu0 0
      %2285 = vmatpush1.bf16.msra.mxu0 %v2266
      %2286 = vmatprep.subr.bf16.mxu0 0
      %2287 = vmatpush1.bf16.msra.mxu0 %v2267
      %2288 = vmatprep.subr.bf16.mxu0 0
      %2289 = vmatpush1.bf16.msra.mxu0 %v2268
      %2290 = vmatprep.subr.bf16.mxu0 0
      %2291 = vmatpush1.bf16.msra.mxu0 %v2269
      %2292 = vmatprep.subr.bf16.mxu0 0
      %2293 = vmatpush1.bf16.msra.mxu0 %v2270
      %2294 = vmatprep.subr.bf16.mxu0 0
      %2295 = vmatpush1.bf16.msra.mxu0 %v2271
      %2296 = vmatprep.subr.bf16.mxu0 0
      %2297 = vmatpush1.bf16.msra.mxu0 0
      %2298 = vmatprep.subr.bf16.mxu0 0
      %2299 = vmatpush1.bf16.msra.mxu0 0
      %2300 = vmatprep.subr.bf16.mxu0 0
      %2301 = vmatpush1.bf16.msra.mxu0 0
      %2302 = vmatprep.subr.bf16.mxu0 0
      %2303 = vmatpush1.bf16.msra.mxu0 0
      %2304 = vmatprep.subr.bf16.mxu0 0
      %2305 = vmatpush1.bf16.msra.mxu0 0
      %2306 = vmatprep.subr.bf16.mxu0 0
      %2307 = vmatpush1.bf16.msra.mxu0 0
      %2308 = vmatprep.subr.bf16.mxu0 0
      %2309 = vmatpush1.bf16.msra.mxu0 0
      %2310 = vmatprep.subr.bf16.mxu0 0
      %2311 = vmatpush1.bf16.msra.mxu0 0
      %2312 = vmatprep.mubr.bf16.mxu0 0
      %2313 = vmatmul.mubr.bf16.gmra.mrb[0].mxu0 %v2214
      %v2314 = vpop.f32.mrb[0].mxu0
      %v2315 = vadd.f32 %v2231, %v2314
      %v2316 = vpop.f32.mrb[0].mxu0
      %v2317 = vpop.f32.mrb[0].mxu0
      %v2318 = vpop.f32.mrb[0].mxu0
      %2319 = vdwg.mxu0
      %v2320 = vxor.u32 %v2315, 2147483648
      %v2321 = vmul.f32 %v2320, 1.442695
      %v2322 = vpow.pop %v2321
      %v2323 = vadd.f32 %v2322, 1.0
      %v2324 = vrcp.pop %v2323
      %v2325 = vmul.f32 1.0, %v2324
      %v2326 = vpack.c.bf16 %v2032, %v2031
      %v2327 = vpack.c.bf16 %v2034, %v2033
      %v2328 = vpack.c.bf16 %v2036, %v2035
      %v2329 = vpack.c.bf16 %v2038, %v2037
      %v2330 = vpack.c.bf16 %v2040, %v2039
      %v2331 = vpack.c.bf16 %v2042, %v2041
      %v2332 = vpack.c.bf16 %v2044, %v2043
      %v2333 = vpack.c.bf16 %v2046, %v2045
      %v2334 = vpack.c.bf16 %v2048, %v2047
      %v2335 = vpack.c.bf16 %v2050, %v2049
      %v2336 = vpack.c.bf16 %v2052, %v2051
      %v2337 = vpack.c.bf16 %v2054, %v2053
      %v2338 = vpack.c.bf16 %v2056, %v2055
      %v2339 = vpack.c.bf16 %v2058, %v2057
      %v2340 = vpack.c.bf16 %v2060, %v2059
      %v2341 = vpack.c.bf16 %v2062, %v2061
      %v2342 = vpack.c.bf16 %v2325, %v2325
      %v2344 = vpack.i.b16 %v2342, %v2342
      %v2346 = vlaneseq
      %v2347 = vshrl.u32 %v2346, 7
      %v2348 = vsub.s32 0, %v2347
      %v2349 = vrot.slane %v2344, %v2348
      %v2350 = vmul.bf16 %v2326, %v2349
      %v2351 = vmul.bf16 %v2327, %v2349
      %v2352 = vmul.bf16 %v2328, %v2349
      %v2353 = vmul.bf16 %v2329, %v2349
      %v2354 = vmul.bf16 %v2330, %v2349
      %v2355 = vmul.bf16 %v2331, %v2349
      %v2356 = vmul.bf16 %v2332, %v2349
      %v2357 = vmul.bf16 %v2333, %v2349
      %v2358 = vmul.bf16 %v2334, %v2349
      %v2359 = vmul.bf16 %v2335, %v2349
      %v2360 = vmul.bf16 %v2336, %v2349
      %v2361 = vmul.bf16 %v2337, %v2349
      %v2362 = vmul.bf16 %v2338, %v2349
      %v2363 = vmul.bf16 %v2339, %v2349
      %v2364 = vmul.bf16 %v2340, %v2349
      %v2365 = vmul.bf16 %v2341, %v2349
      %v2366 = vld [vmem:[%s9] sm:$0xf]
      %v2367 = vld [vmem:[%s9 + $0x4] sm:$0xf]
      %v2368 = vld [vmem:[%s9 + $0x8] sm:$0xf]
      %v2369 = vld [vmem:[%s9 + $0xc] sm:$0xf]
      %v2370 = vld [vmem:[%s9 + $0x10] sm:$0xf]
      %v2371 = vld [vmem:[%s9 + $0x14] sm:$0xf]
      %v2372 = vld [vmem:[%s9 + $0x18] sm:$0xf]
      %v2373 = vld [vmem:[%s9 + $0x1c] sm:$0xf]
      %v2374 = vld [vmem:[%s9 + $0x20] sm:$0xf]
      %v2375 = vld [vmem:[%s9 + $0x24] sm:$0xf]
      %v2376 = vld [vmem:[%s9 + $0x28] sm:$0xf]
      %v2377 = vld [vmem:[%s9 + $0x2c] sm:$0xf]
      %v2378 = vld [vmem:[%s9 + $0x30] sm:$0xf]
      %v2379 = vld [vmem:[%s9 + $0x34] sm:$0xf]
      %v2380 = vld [vmem:[%s9 + $0x38] sm:$0xf]
      %v2381 = vld [vmem:[%s9 + $0x3c] sm:$0xf]
      %v2382 = vld [vmem:[%s10] sm:$0x1]
      %v2384 = vlaneseq
      %v2385 = vshrl.u32 %v2384, 7
      %v2386 = vsub.s32 0, %v2385
      %v2387 = vrot.slane %v2382, %v2386
      %v2405 = vunpack.c.l.b16 %v2366
      %v2406 = vunpack.c.l.b16 %v2367
      %v2407 = vunpack.c.l.b16 %v2368
      %v2408 = vunpack.c.l.b16 %v2369
      %v2409 = vunpack.c.l.b16 %v2370
      %v2410 = vunpack.c.l.b16 %v2371
      %v2411 = vunpack.c.l.b16 %v2372
      %v2412 = vunpack.c.l.b16 %v2373
      %v2413 = vunpack.c.l.b16 %v2374
      %v2414 = vunpack.c.l.b16 %v2375
      %v2415 = vunpack.c.l.b16 %v2376
      %v2416 = vunpack.c.l.b16 %v2377
      %v2417 = vunpack.c.l.b16 %v2378
      %v2418 = vunpack.c.l.b16 %v2379
      %v2419 = vunpack.c.l.b16 %v2380
      %v2420 = vunpack.c.l.b16 %v2381
      %v2421 = vpack.c.b16 %v2406, %v2405
      %v2422 = vpack.c.b16 %v2408, %v2407
      %v2423 = vpack.c.b16 %v2410, %v2409
      %v2424 = vpack.c.b16 %v2412, %v2411
      %v2425 = vpack.c.b16 %v2414, %v2413
      %v2426 = vpack.c.b16 %v2416, %v2415
      %v2427 = vpack.c.b16 %v2418, %v2417
      %v2428 = vpack.c.b16 %v2420, %v2419
      %2437 = vmatprep.subr.bf16.mxu0 0
      %2438 = vmatpush1.bf16.msra.mxu0 %v2421
      %2439 = vmatprep.subr.bf16.mxu0 0
      %2440 = vmatpush1.bf16.msra.mxu0 %v2422
      %2441 = vmatprep.subr.bf16.mxu0 0
      %2442 = vmatpush1.bf16.msra.mxu0 %v2423
      %2443 = vmatprep.subr.bf16.mxu0 0
      %2444 = vmatpush1.bf16.msra.mxu0 %v2424
      %2445 = vmatprep.subr.bf16.mxu0 0
      %2446 = vmatpush1.bf16.msra.mxu0 %v2425
      %2447 = vmatprep.subr.bf16.mxu0 0
      %2448 = vmatpush1.bf16.msra.mxu0 %v2426
      %2449 = vmatprep.subr.bf16.mxu0 0
      %2450 = vmatpush1.bf16.msra.mxu0 %v2427
      %2451 = vmatprep.subr.bf16.mxu0 0
      %2452 = vmatpush1.bf16.msra.mxu0 %v2428
      %2453 = vmatprep.subr.bf16.mxu0 0
      %2454 = vmatpush1.bf16.msra.mxu0 0
      %2455 = vmatprep.subr.bf16.mxu0 0
      %2456 = vmatpush1.bf16.msra.mxu0 0
      %2457 = vmatprep.subr.bf16.mxu0 0
      %2458 = vmatpush1.bf16.msra.mxu0 0
      %2459 = vmatprep.subr.bf16.mxu0 0
      %2460 = vmatpush1.bf16.msra.mxu0 0
      %2461 = vmatprep.subr.bf16.mxu0 0
      %2462 = vmatpush1.bf16.msra.mxu0 0
      %2463 = vmatprep.subr.bf16.mxu0 0
      %2464 = vmatpush1.bf16.msra.mxu0 0
      %2465 = vmatprep.subr.bf16.mxu0 0
      %2466 = vmatpush1.bf16.msra.mxu0 0
      %2467 = vmatprep.subr.bf16.mxu0 0
      %2468 = vmatpush1.bf16.msra.mxu0 0
      %2469 = vmatprep.mubr.bf16.mxu0 0
      %2470 = vmatmul.mubr.bf16.gmra.mrb[0].mxu0 %v2350
      %v2471 = vpop.f32.mrb[0].mxu0
      %v2472 = vadd.f32 %v2387, %v2471
      %v2473 = vpop.f32.mrb[0].mxu0
      %v2474 = vpop.f32.mrb[0].mxu0
      %v2475 = vadd.f32 %v2387, %v2474
      %v2476 = vpop.f32.mrb[0].mxu0
      %2477 = vmatprep.mubr.bf16.mxu0 0
      %2478 = vmatmul.mubr.bf16.gmra.mrb[0].mxu0 %v2351
      %v2479 = vpop.f32.mrb[0].mxu0
      %v2480 = vadd.f32 %v2387, %v2479
      %v2481 = vpop.f32.mrb[0].mxu0
      %v2482 = vpop.f32.mrb[0].mxu0
      %v2483 = vadd.f32 %v2387, %v2482
      %v2484 = vpop.f32.mrb[0].mxu0
      %2485 = vmatprep.mubr.bf16.mxu0 0
      %2486 = vmatmul.mubr.bf16.gmra.mrb[0].mxu0 %v2352
      %v2487 = vpop.f32.mrb[0].mxu0
      %v2488 = vadd.f32 %v2387, %v2487
      %v2489 = vpop.f32.mrb[0].mxu0
      %v2490 = vpop.f32.mrb[0].mxu0
      %v2491 = vadd.f32 %v2387, %v2490
      %v2492 = vpop.f32.mrb[0].mxu0
      %2493 = vmatprep.mubr.bf16.mxu0 0
      %2494 = vmatmul.mubr.bf16.gmra.mrb[0].mxu0 %v2353
      %v2495 = vpop.f32.mrb[0].mxu0
      %v2496 = vadd.f32 %v2387, %v2495
      %v2497 = vpop.f32.mrb[0].mxu0
      %v2498 = vpop.f32.mrb[0].mxu0
      %v2499 = vadd.f32 %v2387, %v2498
      %v2500 = vpop.f32.mrb[0].mxu0
      %2501 = vmatprep.mubr.bf16.mxu0 0
      %2502 = vmatmul.mubr.bf16.gmra.mrb[0].mxu0 %v2354
      %v2503 = vpop.f32.mrb[0].mxu0
      %v2504 = vadd.f32 %v2387, %v2503
      %v2505 = vpop.f32.mrb[0].mxu0
      %v2506 = vpop.f32.mrb[0].mxu0
      %v2507 = vadd.f32 %v2387, %v2506
      %v2508 = vpop.f32.mrb[0].mxu0
      %2509 = vmatprep.mubr.bf16.mxu0 0
      %2510 = vmatmul.mubr.bf16.gmra.mrb[0].mxu0 %v2355
      %v2511 = vpop.f32.mrb[0].mxu0
      %v2512 = vadd.f32 %v2387, %v2511
      %v2513 = vpop.f32.mrb[0].mxu0
      %v2514 = vpop.f32.mrb[0].mxu0
      %v2515 = vadd.f32 %v2387, %v2514
      %v2516 = vpop.f32.mrb[0].mxu0
      %2517 = vmatprep.mubr.bf16.mxu0 0
      %2518 = vmatmul.mubr.bf16.gmra.mrb[0].mxu0 %v2356
      %v2519 = vpop.f32.mrb[0].mxu0
      %v2520 = vadd.f32 %v2387, %v2519
      %v2521 = vpop.f32.mrb[0].mxu0
      %v2522 = vpop.f32.mrb[0].mxu0
      %v2523 = vadd.f32 %v2387, %v2522
      %v2524 = vpop.f32.mrb[0].mxu0
      %2525 = vmatprep.mubr.bf16.mxu0 0
      %2526 = vmatmul.mubr.bf16.gmra.mrb[0].mxu0 %v2357
      %v2527 = vpop.f32.mrb[0].mxu0
      %v2528 = vadd.f32 %v2387, %v2527
      %v2529 = vpop.f32.mrb[0].mxu0
      %v2530 = vpop.f32.mrb[0].mxu0
      %v2531 = vadd.f32 %v2387, %v2530
      %v2532 = vpop.f32.mrb[0].mxu0
      %2533 = vmatprep.mubr.bf16.mxu0 0
      %2534 = vmatmul.mubr.bf16.gmra.mrb[0].mxu0 %v2358
      %v2535 = vpop.f32.mrb[0].mxu0
      %v2536 = vadd.f32 %v2387, %v2535
      %v2537 = vpop.f32.mrb[0].mxu0
      %v2538 = vpop.f32.mrb[0].mxu0
      %v2539 = vadd.f32 %v2387, %v2538
      %v2540 = vpop.f32.mrb[0].mxu0
      %2541 = vmatprep.mubr.bf16.mxu0 0
      %2542 = vmatmul.mubr.bf16.gmra.mrb[0].mxu0 %v2359
      %v2543 = vpop.f32.mrb[0].mxu0
      %v2544 = vadd.f32 %v2387, %v2543
      %v2545 = vpop.f32.mrb[0].mxu0
      %v2546 = vpop.f32.mrb[0].mxu0
      %v2547 = vadd.f32 %v2387, %v2546
      %v2548 = vpop.f32.mrb[0].mxu0
      %2549 = vmatprep.mubr.bf16.mxu0 0
      %2550 = vmatmul.mubr.bf16.gmra.mrb[0].mxu0 %v2360
      %v2551 = vpop.f32.mrb[0].mxu0
      %v2552 = vadd.f32 %v2387, %v2551
      %v2553 = vpop.f32.mrb[0].mxu0
      %v2554 = vpop.f32.mrb[0].mxu0
      %v2555 = vadd.f32 %v2387, %v2554
      %v2556 = vpop.f32.mrb[0].mxu0
      %2557 = vmatprep.mubr.bf16.mxu0 0
      %2558 = vmatmul.mubr.bf16.gmra.mrb[0].mxu0 %v2361
      %v2559 = vpop.f32.mrb[0].mxu0
      %v2560 = vadd.f32 %v2387, %v2559
      %v2561 = vpop.f32.mrb[0].mxu0
      %v2562 = vpop.f32.mrb[0].mxu0
      %v2563 = vadd.f32 %v2387, %v2562
      %v2564 = vpop.f32.mrb[0].mxu0
      %2565 = vmatprep.mubr.bf16.mxu0 0
      %2566 = vmatmul.mubr.bf16.gmra.mrb[0].mxu0 %v2362
      %v2567 = vpop.f32.mrb[0].mxu0
      %v2568 = vadd.f32 %v2387, %v2567
      %v2569 = vpop.f32.mrb[0].mxu0
      %v2570 = vpop.f32.mrb[0].mxu0
      %v2571 = vadd.f32 %v2387, %v2570
      %v2572 = vpop.f32.mrb[0].mxu0
      %2573 = vmatprep.mubr.bf16.mxu0 0
      %2574 = vmatmul.mubr.bf16.gmra.mrb[0].mxu0 %v2363
      %v2575 = vpop.f32.mrb[0].mxu0
      %v2576 = vadd.f32 %v2387, %v2575
      %v2577 = vpop.f32.mrb[0].mxu0
      %v2578 = vpop.f32.mrb[0].mxu0
      %v2579 = vadd.f32 %v2387, %v2578
      %v2580 = vpop.f32.mrb[0].mxu0
      %2581 = vmatprep.mubr.bf16.mxu0 0
      %2582 = vmatmul.mubr.bf16.gmra.mrb[0].mxu0 %v2364
      %v2583 = vpop.f32.mrb[0].mxu0
      %v2584 = vadd.f32 %v2387, %v2583
      %v2585 = vpop.f32.mrb[0].mxu0
      %v2586 = vpop.f32.mrb[0].mxu0
      %v2587 = vadd.f32 %v2387, %v2586
      %v2588 = vpop.f32.mrb[0].mxu0
      %2589 = vmatprep.mubr.bf16.mxu0 0
      %2590 = vmatmul.mubr.bf16.gmra.mrb[0].mxu0 %v2365
      %v2591 = vpop.f32.mrb[0].mxu0
      %v2592 = vadd.f32 %v2387, %v2591
      %v2593 = vpop.f32.mrb[0].mxu0
      %v2594 = vpop.f32.mrb[0].mxu0
      %v2595 = vadd.f32 %v2387, %v2594
      %v2596 = vpop.f32.mrb[0].mxu0
      %2597 = vdwg.mxu0
      %v2598 = vadd.f32 %v2472, %v979
      %v2599 = vadd.f32 %v2475, %v980
      %v2600 = vadd.f32 %v2480, %v981
      %v2601 = vadd.f32 %v2483, %v982
      %v2602 = vadd.f32 %v2488, %v983
      %v2603 = vadd.f32 %v2491, %v984
      %v2604 = vadd.f32 %v2496, %v985
      %v2605 = vadd.f32 %v2499, %v986
      %v2606 = vadd.f32 %v2504, %v987
      %v2607 = vadd.f32 %v2507, %v988
      %v2608 = vadd.f32 %v2512, %v989
      %v2609 = vadd.f32 %v2515, %v990
      %v2610 = vadd.f32 %v2520, %v991
      %v2611 = vadd.f32 %v2523, %v992
      %v2612 = vadd.f32 %v2528, %v993
      %v2613 = vadd.f32 %v2531, %v994
      %v2614 = vadd.f32 %v2536, %v995
      %v2615 = vadd.f32 %v2539, %v996
      %v2616 = vadd.f32 %v2544, %v997
      %v2617 = vadd.f32 %v2547, %v998
      %v2618 = vadd.f32 %v2552, %v999
      %v2619 = vadd.f32 %v2555, %v1000
      %v2620 = vadd.f32 %v2560, %v1001
      %v2621 = vadd.f32 %v2563, %v1002
      %v2622 = vadd.f32 %v2568, %v1003
      %v2623 = vadd.f32 %v2571, %v1004
      %v2624 = vadd.f32 %v2576, %v1005
      %v2625 = vadd.f32 %v2579, %v1006
      %v2626 = vadd.f32 %v2584, %v1007
      %v2627 = vadd.f32 %v2587, %v1008
      %v2628 = vadd.f32 %v2592, %v1009
      %v2629 = vadd.f32 %v2595, %v1010
      %v2630 = vpack.c.bf16 %v2599, %v2598
      %v2631 = vpack.c.bf16 %v2601, %v2600
      %v2632 = vpack.c.bf16 %v2603, %v2602
      %v2633 = vpack.c.bf16 %v2605, %v2604
      %v2634 = vpack.c.bf16 %v2607, %v2606
      %v2635 = vpack.c.bf16 %v2609, %v2608
      %v2636 = vpack.c.bf16 %v2611, %v2610
      %v2637 = vpack.c.bf16 %v2613, %v2612
      %v2638 = vpack.c.bf16 %v2615, %v2614
      %v2639 = vpack.c.bf16 %v2617, %v2616
      %v2640 = vpack.c.bf16 %v2619, %v2618
      %v2641 = vpack.c.bf16 %v2621, %v2620
      %v2642 = vpack.c.bf16 %v2623, %v2622
      %v2643 = vpack.c.bf16 %v2625, %v2624
      %v2644 = vpack.c.bf16 %v2627, %v2626
      %v2645 = vpack.c.bf16 %v2629, %v2628
      %v2646 = vld [vmem:[%s11] sm:$0xf]
      %v2647 = vld [vmem:[%s11 + $0x4] sm:$0xf]
      %v2648 = vld [vmem:[%s11 + $0x8] sm:$0xf]
      %v2649 = vld [vmem:[%s11 + $0xc] sm:$0xf]
      %v2650 = vld [vmem:[%s11 + $0x10] sm:$0xf]
      %v2651 = vld [vmem:[%s11 + $0x14] sm:$0xf]
      %v2652 = vld [vmem:[%s11 + $0x18] sm:$0xf]
      %v2653 = vld [vmem:[%s11 + $0x1c] sm:$0xf]
      %v2654 = vld [vmem:[%s11 + $0x20] sm:$0xf]
      %v2655 = vld [vmem:[%s11 + $0x24] sm:$0xf]
      %v2656 = vld [vmem:[%s11 + $0x28] sm:$0xf]
      %v2657 = vld [vmem:[%s11 + $0x2c] sm:$0xf]
      %v2658 = vld [vmem:[%s11 + $0x30] sm:$0xf]
      %v2659 = vld [vmem:[%s11 + $0x34] sm:$0xf]
      %v2660 = vld [vmem:[%s11 + $0x38] sm:$0xf]
      %v2661 = vld [vmem:[%s11 + $0x3c] sm:$0xf]
      %v2662 = vld [vmem:[%s12] sm:$0x1]
      %v2664 = vlaneseq
      %v2665 = vshrl.u32 %v2664, 7
      %v2666 = vsub.s32 0, %v2665
      %v2667 = vrot.slane %v2662, %v2666
      %v2685 = vunpack.c.l.b16 %v2646
      %v2686 = vunpack.c.l.b16 %v2647
      %v2687 = vunpack.c.l.b16 %v2648
      %v2688 = vunpack.c.l.b16 %v2649
      %v2689 = vunpack.c.l.b16 %v2650
      %v2690 = vunpack.c.l.b16 %v2651
      %v2691 = vunpack.c.l.b16 %v2652
      %v2692 = vunpack.c.l.b16 %v2653
      %v2693 = vunpack.c.l.b16 %v2654
      %v2694 = vunpack.c.l.b16 %v2655
      %v2695 = vunpack.c.l.b16 %v2656
      %v2696 = vunpack.c.l.b16 %v2657
      %v2697 = vunpack.c.l.b16 %v2658
      %v2698 = vunpack.c.l.b16 %v2659
      %v2699 = vunpack.c.l.b16 %v2660
      %v2700 = vunpack.c.l.b16 %v2661
      %v2701 = vpack.c.b16 %v2686, %v2685
      %v2702 = vpack.c.b16 %v2688, %v2687
      %v2703 = vpack.c.b16 %v2690, %v2689
      %v2704 = vpack.c.b16 %v2692, %v2691
      %v2705 = vpack.c.b16 %v2694, %v2693
      %v2706 = vpack.c.b16 %v2696, %v2695
      %v2707 = vpack.c.b16 %v2698, %v2697
      %v2708 = vpack.c.b16 %v2700, %v2699
      %2717 = vmatprep.subr.bf16.mxu0 0
      %2718 = vmatpush1.bf16.msra.mxu0 %v2701
      %2719 = vmatprep.subr.bf16.mxu0 0
      %2720 = vmatpush1.bf16.msra.mxu0 %v2702
      %2721 = vmatprep.subr.bf16.mxu0 0
      %2722 = vmatpush1.bf16.msra.mxu0 %v2703
      %2723 = vmatprep.subr.bf16.mxu0 0
      %2724 = vmatpush1.bf16.msra.mxu0 %v2704
      %2725 = vmatprep.subr.bf16.mxu0 0
      %2726 = vmatpush1.bf16.msra.mxu0 %v2705
      %2727 = vmatprep.subr.bf16.mxu0 0
      %2728 = vmatpush1.bf16.msra.mxu0 %v2706
      %2729 = vmatprep.subr.bf16.mxu0 0
      %2730 = vmatpush1.bf16.msra.mxu0 %v2707
      %2731 = vmatprep.subr.bf16.mxu0 0
      %2732 = vmatpush1.bf16.msra.mxu0 %v2708
      %2733 = vmatprep.subr.bf16.mxu0 0
      %2734 = vmatpush1.bf16.msra.mxu0 0
      %2735 = vmatprep.subr.bf16.mxu0 0
      %2736 = vmatpush1.bf16.msra.mxu0 0
      %2737 = vmatprep.subr.bf16.mxu0 0
      %2738 = vmatpush1.bf16.msra.mxu0 0
      %2739 = vmatprep.subr.bf16.mxu0 0
      %2740 = vmatpush1.bf16.msra.mxu0 0
      %2741 = vmatprep.subr.bf16.mxu0 0
      %2742 = vmatpush1.bf16.msra.mxu0 0
      %2743 = vmatprep.subr.bf16.mxu0 0
      %2744 = vmatpush1.bf16.msra.mxu0 0
      %2745 = vmatprep.subr.bf16.mxu0 0
      %2746 = vmatpush1.bf16.msra.mxu0 0
      %2747 = vmatprep.subr.bf16.mxu0 0
      %2748 = vmatpush1.bf16.msra.mxu0 0
      %2749 = vmatprep.mubr.bf16.mxu0 0
      %2750 = vmatmul.mubr.bf16.gmra.mrb[0].mxu0 %v2630
      %v2751 = vpop.f32.mrb[0].mxu0
      %v2752 = vadd.f32 %v2667, %v2751
      %v2753 = vpop.f32.mrb[0].mxu0
      %v2754 = vpop.f32.mrb[0].mxu0
      %v2755 = vadd.f32 %v2667, %v2754
      %v2756 = vpop.f32.mrb[0].mxu0
      %2757 = vmatprep.mubr.bf16.mxu0 0
      %2758 = vmatmul.mubr.bf16.gmra.mrb[0].mxu0 %v2631
      %v2759 = vpop.f32.mrb[0].mxu0
      %v2760 = vadd.f32 %v2667, %v2759
      %v2761 = vpop.f32.mrb[0].mxu0
      %v2762 = vpop.f32.mrb[0].mxu0
      %v2763 = vadd.f32 %v2667, %v2762
      %v2764 = vpop.f32.mrb[0].mxu0
      %2765 = vmatprep.mubr.bf16.mxu0 0
      %2766 = vmatmul.mubr.bf16.gmra.mrb[0].mxu0 %v2632
      %v2767 = vpop.f32.mrb[0].mxu0
      %v2768 = vadd.f32 %v2667, %v2767
      %v2769 = vpop.f32.mrb[0].mxu0
      %v2770 = vpop.f32.mrb[0].mxu0
      %v2771 = vadd.f32 %v2667, %v2770
      %v2772 = vpop.f32.mrb[0].mxu0
      %2773 = vmatprep.mubr.bf16.mxu0 0
      %2774 = vmatmul.mubr.bf16.gmra.mrb[0].mxu0 %v2633
      %v2775 = vpop.f32.mrb[0].mxu0
      %v2776 = vadd.f32 %v2667, %v2775
      %v2777 = vpop.f32.mrb[0].mxu0
      %v2778 = vpop.f32.mrb[0].mxu0
      %v2779 = vadd.f32 %v2667, %v2778
      %v2780 = vpop.f32.mrb[0].mxu0
      %2781 = vmatprep.mubr.bf16.mxu0 0
      %2782 = vmatmul.mubr.bf16.gmra.mrb[0].mxu0 %v2634
      %v2783 = vpop.f32.mrb[0].mxu0
      %v2784 = vadd.f32 %v2667, %v2783
      %v2785 = vpop.f32.mrb[0].mxu0
      %v2786 = vpop.f32.mrb[0].mxu0
      %v2787 = vadd.f32 %v2667, %v2786
      %v2788 = vpop.f32.mrb[0].mxu0
      %2789 = vmatprep.mubr.bf16.mxu0 0
      %2790 = vmatmul.mubr.bf16.gmra.mrb[0].mxu0 %v2635
      %v2791 = vpop.f32.mrb[0].mxu0
      %v2792 = vadd.f32 %v2667, %v2791
      %v2793 = vpop.f32.mrb[0].mxu0
      %v2794 = vpop.f32.mrb[0].mxu0
      %v2795 = vadd.f32 %v2667, %v2794
      %v2796 = vpop.f32.mrb[0].mxu0
      %2797 = vmatprep.mubr.bf16.mxu0 0
      %2798 = vmatmul.mubr.bf16.gmra.mrb[0].mxu0 %v2636
      %v2799 = vpop.f32.mrb[0].mxu0
      %v2800 = vadd.f32 %v2667, %v2799
      %v2801 = vpop.f32.mrb[0].mxu0
      %v2802 = vpop.f32.mrb[0].mxu0
      %v2803 = vadd.f32 %v2667, %v2802
      %v2804 = vpop.f32.mrb[0].mxu0
      %2805 = vmatprep.mubr.bf16.mxu0 0
      %2806 = vmatmul.mubr.bf16.gmra.mrb[0].mxu0 %v2637
      %v2807 = vpop.f32.mrb[0].mxu0
      %v2808 = vadd.f32 %v2667, %v2807
      %v2809 = vpop.f32.mrb[0].mxu0
      %v2810 = vpop.f32.mrb[0].mxu0
      %v2811 = vadd.f32 %v2667, %v2810
      %v2812 = vpop.f32.mrb[0].mxu0
      %2813 = vmatprep.mubr.bf16.mxu0 0
      %2814 = vmatmul.mubr.bf16.gmra.mrb[0].mxu0 %v2638
      %v2815 = vpop.f32.mrb[0].mxu0
      %v2816 = vadd.f32 %v2667, %v2815
      %v2817 = vpop.f32.mrb[0].mxu0
      %v2818 = vpop.f32.mrb[0].mxu0
      %v2819 = vadd.f32 %v2667, %v2818
      %v2820 = vpop.f32.mrb[0].mxu0
      %2821 = vmatprep.mubr.bf16.mxu0 0
      %2822 = vmatmul.mubr.bf16.gmra.mrb[0].mxu0 %v2639
      %v2823 = vpop.f32.mrb[0].mxu0
      %v2824 = vadd.f32 %v2667, %v2823
      %v2825 = vpop.f32.mrb[0].mxu0
      %v2826 = vpop.f32.mrb[0].mxu0
      %v2827 = vadd.f32 %v2667, %v2826
      %v2828 = vpop.f32.mrb[0].mxu0
      %2829 = vmatprep.mubr.bf16.mxu0 0
      %2830 = vmatmul.mubr.bf16.gmra.mrb[0].mxu0 %v2640
      %v2831 = vpop.f32.mrb[0].mxu0
      %v2832 = vadd.f32 %v2667, %v2831
      %v2833 = vpop.f32.mrb[0].mxu0
      %v2834 = vpop.f32.mrb[0].mxu0
      %v2835 = vadd.f32 %v2667, %v2834
      %v2836 = vpop.f32.mrb[0].mxu0
      %2837 = vmatprep.mubr.bf16.mxu0 0
      %2838 = vmatmul.mubr.bf16.gmra.mrb[0].mxu0 %v2641
      %v2839 = vpop.f32.mrb[0].mxu0
      %v2840 = vadd.f32 %v2667, %v2839
      %v2841 = vpop.f32.mrb[0].mxu0
      %v2842 = vpop.f32.mrb[0].mxu0
      %v2843 = vadd.f32 %v2667, %v2842
      %v2844 = vpop.f32.mrb[0].mxu0
      %2845 = vmatprep.mubr.bf16.mxu0 0
      %2846 = vmatmul.mubr.bf16.gmra.mrb[0].mxu0 %v2642
      %v2847 = vpop.f32.mrb[0].mxu0
      %v2848 = vadd.f32 %v2667, %v2847
      %v2849 = vpop.f32.mrb[0].mxu0
      %v2850 = vpop.f32.mrb[0].mxu0
      %v2851 = vadd.f32 %v2667, %v2850
      %v2852 = vpop.f32.mrb[0].mxu0
      %2853 = vmatprep.mubr.bf16.mxu0 0
      %2854 = vmatmul.mubr.bf16.gmra.mrb[0].mxu0 %v2643
      %v2855 = vpop.f32.mrb[0].mxu0
      %v2856 = vadd.f32 %v2667, %v2855
      %v2857 = vpop.f32.mrb[0].mxu0
      %v2858 = vpop.f32.mrb[0].mxu0
      %v2859 = vadd.f32 %v2667, %v2858
      %v2860 = vpop.f32.mrb[0].mxu0
      %2861 = vmatprep.mubr.bf16.mxu0 0
      %2862 = vmatmul.mubr.bf16.gmra.mrb[0].mxu0 %v2644
      %v2863 = vpop.f32.mrb[0].mxu0
      %v2864 = vadd.f32 %v2667, %v2863
      %v2865 = vpop.f32.mrb[0].mxu0
      %v2866 = vpop.f32.mrb[0].mxu0
      %v2867 = vadd.f32 %v2667, %v2866
      %v2868 = vpop.f32.mrb[0].mxu0
      %2869 = vmatprep.mubr.bf16.mxu0 0
      %2870 = vmatmul.mubr.bf16.gmra.mrb[0].mxu0 %v2645
      %v2871 = vpop.f32.mrb[0].mxu0
      %v2872 = vadd.f32 %v2667, %v2871
      %v2873 = vpop.f32.mrb[0].mxu0
      %v2874 = vpop.f32.mrb[0].mxu0
      %v2875 = vadd.f32 %v2667, %v2874
      %v2876 = vpop.f32.mrb[0].mxu0
      %2877 = vdwg.mxu0
      %v2878 = vxor.u32 %v2752, 2147483648
      %v2879 = vxor.u32 %v2755, 2147483648
      %v2880 = vxor.u32 %v2760, 2147483648
      %v2881 = vxor.u32 %v2763, 2147483648
      %v2882 = vxor.u32 %v2768, 2147483648
      %v2883 = vxor.u32 %v2771, 2147483648
      %v2884 = vxor.u32 %v2776, 2147483648
      %v2885 = vxor.u32 %v2779, 2147483648
      %v2886 = vxor.u32 %v2784, 2147483648
      %v2887 = vxor.u32 %v2787, 2147483648
      %v2888 = vxor.u32 %v2792, 2147483648
      %v2889 = vxor.u32 %v2795, 2147483648
      %v2890 = vxor.u32 %v2800, 2147483648
      %v2891 = vxor.u32 %v2803, 2147483648
      %v2892 = vxor.u32 %v2808, 2147483648
      %v2893 = vxor.u32 %v2811, 2147483648
      %v2894 = vxor.u32 %v2816, 2147483648
      %v2895 = vxor.u32 %v2819, 2147483648
      %v2896 = vxor.u32 %v2824, 2147483648
      %v2897 = vxor.u32 %v2827, 2147483648
      %v2898 = vxor.u32 %v2832, 2147483648
      %v2899 = vxor.u32 %v2835, 2147483648
      %v2900 = vxor.u32 %v2840, 2147483648
      %v2901 = vxor.u32 %v2843, 2147483648
      %v2902 = vxor.u32 %v2848, 2147483648
      %v2903 = vxor.u32 %v2851, 2147483648
      %v2904 = vxor.u32 %v2856, 2147483648
      %v2905 = vxor.u32 %v2859, 2147483648
      %v2906 = vxor.u32 %v2864, 2147483648
      %v2907 = vxor.u32 %v2867, 2147483648
      %v2908 = vxor.u32 %v2872, 2147483648
      %v2909 = vxor.u32 %v2875, 2147483648
      %v2910 = vmul.f32 %v2878, 1.442695
      %v2911 = vpow.pop %v2910
      %v2912 = vmul.f32 %v2879, 1.442695
      %v2913 = vpow.pop %v2912
      %v2914 = vmul.f32 %v2880, 1.442695
      %v2915 = vpow.pop %v2914
      %v2916 = vmul.f32 %v2881, 1.442695
      %v2917 = vpow.pop %v2916
      %v2918 = vmul.f32 %v2882, 1.442695
      %v2919 = vpow.pop %v2918
      %v2920 = vmul.f32 %v2883, 1.442695
      %v2921 = vpow.pop %v2920
      %v2922 = vmul.f32 %v2884, 1.442695
      %v2923 = vpow.pop %v2922
      %v2924 = vmul.f32 %v2885, 1.442695
      %v2925 = vpow.pop %v2924
      %v2926 = vmul.f32 %v2886, 1.442695
      %v2927 = vpow.pop %v2926
      %v2928 = vmul.f32 %v2887, 1.442695
      %v2929 = vpow.pop %v2928
      %v2930 = vmul.f32 %v2888, 1.442695
      %v2931 = vpow.pop %v2930
      %v2932 = vmul.f32 %v2889, 1.442695
      %v2933 = vpow.pop %v2932
      %v2934 = vmul.f32 %v2890, 1.442695
      %v2935 = vpow.pop %v2934
      %v2936 = vmul.f32 %v2891, 1.442695
      %v2937 = vpow.pop %v2936
      %v2938 = vmul.f32 %v2892, 1.442695
      %v2939 = vpow.pop %v2938
      %v2940 = vmul.f32 %v2893, 1.442695
      %v2941 = vpow.pop %v2940
      %v2942 = vmul.f32 %v2894, 1.442695
      %v2943 = vpow.pop %v2942
      %v2944 = vmul.f32 %v2895, 1.442695
      %v2945 = vpow.pop %v2944
      %v2946 = vmul.f32 %v2896, 1.442695
      %v2947 = vpow.pop %v2946
      %v2948 = vmul.f32 %v2897, 1.442695
      %v2949 = vpow.pop %v2948
      %v2950 = vmul.f32 %v2898, 1.442695
      %v2951 = vpow.pop %v2950
      %v2952 = vmul.f32 %v2899, 1.442695
      %v2953 = vpow.pop %v2952
      %v2954 = vmul.f32 %v2900, 1.442695
      %v2955 = vpow.pop %v2954
      %v2956 = vmul.f32 %v2901, 1.442695
      %v2957 = vpow.pop %v2956
      %v2958 = vmul.f32 %v2902, 1.442695
      %v2959 = vpow.pop %v2958
      %v2960 = vmul.f32 %v2903, 1.442695
      %v2961 = vpow.pop %v2960
      %v2962 = vmul.f32 %v2904, 1.442695
      %v2963 = vpow.pop %v2962
      %v2964 = vmul.f32 %v2905, 1.442695
      %v2965 = vpow.pop %v2964
      %v2966 = vmul.f32 %v2906, 1.442695
      %v2967 = vpow.pop %v2966
      %v2968 = vmul.f32 %v2907, 1.442695
      %v2969 = vpow.pop %v2968
      %v2970 = vmul.f32 %v2908, 1.442695
      %v2971 = vpow.pop %v2970
      %v2972 = vmul.f32 %v2909, 1.442695
      %v2973 = vpow.pop %v2972
      %v2974 = vadd.f32 %v2911, 1.0
      %v2975 = vadd.f32 %v2913, 1.0
      %v2976 = vadd.f32 %v2915, 1.0
      %v2977 = vadd.f32 %v2917, 1.0
      %v2978 = vadd.f32 %v2919, 1.0
      %v2979 = vadd.f32 %v2921, 1.0
      %v2980 = vadd.f32 %v2923, 1.0
      %v2981 = vadd.f32 %v2925, 1.0
      %v2982 = vadd.f32 %v2927, 1.0
      %v2983 = vadd.f32 %v2929, 1.0
      %v2984 = vadd.f32 %v2931, 1.0
      %v2985 = vadd.f32 %v2933, 1.0
      %v2986 = vadd.f32 %v2935, 1.0
      %v2987 = vadd.f32 %v2937, 1.0
      %v2988 = vadd.f32 %v2939, 1.0
      %v2989 = vadd.f32 %v2941, 1.0
      %v2990 = vadd.f32 %v2943, 1.0
      %v2991 = vadd.f32 %v2945, 1.0
      %v2992 = vadd.f32 %v2947, 1.0
      %v2993 = vadd.f32 %v2949, 1.0
      %v2994 = vadd.f32 %v2951, 1.0
      %v2995 = vadd.f32 %v2953, 1.0
      %v2996 = vadd.f32 %v2955, 1.0
      %v2997 = vadd.f32 %v2957, 1.0
      %v2998 = vadd.f32 %v2959, 1.0
      %v2999 = vadd.f32 %v2961, 1.0
      %v3000 = vadd.f32 %v2963, 1.0
      %v3001 = vadd.f32 %v2965, 1.0
      %v3002 = vadd.f32 %v2967, 1.0
      %v3003 = vadd.f32 %v2969, 1.0
      %v3004 = vadd.f32 %v2971, 1.0
      %v3005 = vadd.f32 %v2973, 1.0
      %v3006 = vrcp.pop %v2974
      %v3007 = vmul.f32 1.0, %v3006
      %v3008 = vrcp.pop %v2975
      %v3009 = vmul.f32 1.0, %v3008
      %v3010 = vrcp.pop %v2976
      %v3011 = vmul.f32 1.0, %v3010
      %v3012 = vrcp.pop %v2977
      %v3013 = vmul.f32 1.0, %v3012
      %v3014 = vrcp.pop %v2978
      %v3015 = vmul.f32 1.0, %v3014
      %v3016 = vrcp.pop %v2979
      %v3017 = vmul.f32 1.0, %v3016
      %v3018 = vrcp.pop %v2980
      %v3019 = vmul.f32 1.0, %v3018
      %v3020 = vrcp.pop %v2981
      %v3021 = vmul.f32 1.0, %v3020
      %v3022 = vrcp.pop %v2982
      %v3023 = vmul.f32 1.0, %v3022
      %v3024 = vrcp.pop %v2983
      %v3025 = vmul.f32 1.0, %v3024
      %v3026 = vrcp.pop %v2984
      %v3027 = vmul.f32 1.0, %v3026
      %v3028 = vrcp.pop %v2985
      %v3029 = vmul.f32 1.0, %v3028
      %v3030 = vrcp.pop %v2986
      %v3031 = vmul.f32 1.0, %v3030
      %v3032 = vrcp.pop %v2987
      %v3033 = vmul.f32 1.0, %v3032
      %v3034 = vrcp.pop %v2988
      %v3035 = vmul.f32 1.0, %v3034
      %v3036 = vrcp.pop %v2989
      %v3037 = vmul.f32 1.0, %v3036
      %v3038 = vrcp.pop %v2990
      %v3039 = vmul.f32 1.0, %v3038
      %v3040 = vrcp.pop %v2991
      %v3041 = vmul.f32 1.0, %v3040
      %v3042 = vrcp.pop %v2992
      %v3043 = vmul.f32 1.0, %v3042
      %v3044 = vrcp.pop %v2993
      %v3045 = vmul.f32 1.0, %v3044
      %v3046 = vrcp.pop %v2994
      %v3047 = vmul.f32 1.0, %v3046
      %v3048 = vrcp.pop %v2995
      %v3049 = vmul.f32 1.0, %v3048
      %v3050 = vrcp.pop %v2996
      %v3051 = vmul.f32 1.0, %v3050
      %v3052 = vrcp.pop %v2997
      %v3053 = vmul.f32 1.0, %v3052
      %v3054 = vrcp.pop %v2998
      %v3055 = vmul.f32 1.0, %v3054
      %v3056 = vrcp.pop %v2999
      %v3057 = vmul.f32 1.0, %v3056
      %v3058 = vrcp.pop %v3000
      %v3059 = vmul.f32 1.0, %v3058
      %v3060 = vrcp.pop %v3001
      %v3061 = vmul.f32 1.0, %v3060
      %v3062 = vrcp.pop %v3002
      %v3063 = vmul.f32 1.0, %v3062
      %v3064 = vrcp.pop %v3003
      %v3065 = vmul.f32 1.0, %v3064
      %v3066 = vrcp.pop %v3004
      %v3067 = vmul.f32 1.0, %v3066
      %v3068 = vrcp.pop %v3005
      %v3069 = vmul.f32 1.0, %v3068
      %v3070 = vmul.f32 %v2752, %v3007
      %v3071 = vmul.f32 %v2755, %v3009
      %v3072 = vmul.f32 %v2760, %v3011
      %v3073 = vmul.f32 %v2763, %v3013
      %v3074 = vmul.f32 %v2768, %v3015
      %v3075 = vmul.f32 %v2771, %v3017
      %v3076 = vmul.f32 %v2776, %v3019
      %v3077 = vmul.f32 %v2779, %v3021
      %v3078 = vmul.f32 %v2784, %v3023
      %v3079 = vmul.f32 %v2787, %v3025
      %v3080 = vmul.f32 %v2792, %v3027
      %v3081 = vmul.f32 %v2795, %v3029
      %v3082 = vmul.f32 %v2800, %v3031
      %v3083 = vmul.f32 %v2803, %v3033
      %v3084 = vmul.f32 %v2808, %v3035
      %v3085 = vmul.f32 %v2811, %v3037
      %v3086 = vmul.f32 %v2816, %v3039
      %v3087 = vmul.f32 %v2819, %v3041
      %v3088 = vmul.f32 %v2824, %v3043
      %v3089 = vmul.f32 %v2827, %v3045
      %v3090 = vmul.f32 %v2832, %v3047
      %v3091 = vmul.f32 %v2835, %v3049
      %v3092 = vmul.f32 %v2840, %v3051
      %v3093 = vmul.f32 %v2843, %v3053
      %v3094 = vmul.f32 %v2848, %v3055
      %v3095 = vmul.f32 %v2851, %v3057
      %v3096 = vmul.f32 %v2856, %v3059
      %v3097 = vmul.f32 %v2859, %v3061
      %v3098 = vmul.f32 %v2864, %v3063
      %v3099 = vmul.f32 %v2867, %v3065
      %v3100 = vmul.f32 %v2872, %v3067
      %v3101 = vmul.f32 %v2875, %v3069
      %v3102 = vpack.c.bf16 %v3071, %v3070
      %v3103 = vpack.c.bf16 %v3073, %v3072
      %v3104 = vpack.c.bf16 %v3075, %v3074
      %v3105 = vpack.c.bf16 %v3077, %v3076
      %v3106 = vpack.c.bf16 %v3079, %v3078
      %v3107 = vpack.c.bf16 %v3081, %v3080
      %v3108 = vpack.c.bf16 %v3083, %v3082
      %v3109 = vpack.c.bf16 %v3085, %v3084
      %v3110 = vpack.c.bf16 %v3087, %v3086
      %v3111 = vpack.c.bf16 %v3089, %v3088
      %v3112 = vpack.c.bf16 %v3091, %v3090
      %v3113 = vpack.c.bf16 %v3093, %v3092
      %v3114 = vpack.c.bf16 %v3095, %v3094
      %v3115 = vpack.c.bf16 %v3097, %v3096
      %v3116 = vpack.c.bf16 %v3099, %v3098
      %v3117 = vpack.c.bf16 %v3101, %v3100
      %v3134 = vunpack.c.l.b16 %v3102
      %v3135 = vunpack.c.h.b16 %v3102
      %v3136 = vunpack.c.l.b16 %v3103
      %v3137 = vunpack.c.h.b16 %v3103
      %v3138 = vunpack.c.l.b16 %v3104
      %v3139 = vunpack.c.h.b16 %v3104
      %v3140 = vunpack.c.l.b16 %v3105
      %v3141 = vunpack.c.h.b16 %v3105
      %v3142 = vunpack.c.l.b16 %v3106
      %v3143 = vunpack.c.h.b16 %v3106
      %v3144 = vunpack.c.l.b16 %v3107
      %v3145 = vunpack.c.h.b16 %v3107
      %v3146 = vunpack.c.l.b16 %v3108
      %v3147 = vunpack.c.h.b16 %v3108
      %v3148 = vunpack.c.l.b16 %v3109
      %v3149 = vunpack.c.h.b16 %v3109
      %v3150 = vunpack.c.l.b16 %v3110
      %v3151 = vunpack.c.h.b16 %v3110
      %v3152 = vunpack.c.l.b16 %v3111
      %v3153 = vunpack.c.h.b16 %v3111
      %v3154 = vunpack.c.l.b16 %v3112
      %v3155 = vunpack.c.h.b16 %v3112
      %v3156 = vunpack.c.l.b16 %v3113
      %v3157 = vunpack.c.h.b16 %v3113
      %v3158 = vunpack.c.l.b16 %v3114
      %v3159 = vunpack.c.h.b16 %v3114
      %v3160 = vunpack.c.l.b16 %v3115
      %v3161 = vunpack.c.h.b16 %v3115
      %v3162 = vunpack.c.l.b16 %v3116
      %v3163 = vunpack.c.h.b16 %v3116
      %v3164 = vunpack.c.l.b16 %v3117
      %v3165 = vunpack.c.h.b16 %v3117
      %v3166 = vpack.c.b16 %v3134, %v3134
      %v3167 = vpack.c.b16 %v3135, %v3135
      %v3168 = vpack.c.b16 %v3136, %v3136
      %v3169 = vpack.c.b16 %v3137, %v3137
      %v3170 = vpack.c.b16 %v3138, %v3138
      %v3171 = vpack.c.b16 %v3139, %v3139
      %v3172 = vpack.c.b16 %v3140, %v3140
      %v3173 = vpack.c.b16 %v3141, %v3141
      %v3174 = vpack.c.b16 %v3142, %v3142
      %v3175 = vpack.c.b16 %v3143, %v3143
      %v3176 = vpack.c.b16 %v3144, %v3144
      %v3177 = vpack.c.b16 %v3145, %v3145
      %v3178 = vpack.c.b16 %v3146, %v3146
      %v3179 = vpack.c.b16 %v3147, %v3147
      %v3180 = vpack.c.b16 %v3148, %v3148
      %v3181 = vpack.c.b16 %v3149, %v3149
      %v3182 = vpack.c.b16 %v3150, %v3150
      %v3183 = vpack.c.b16 %v3151, %v3151
      %v3184 = vpack.c.b16 %v3152, %v3152
      %v3185 = vpack.c.b16 %v3153, %v3153
      %v3186 = vpack.c.b16 %v3154, %v3154
      %v3187 = vpack.c.b16 %v3155, %v3155
      %v3188 = vpack.c.b16 %v3156, %v3156
      %v3189 = vpack.c.b16 %v3157, %v3157
      %v3190 = vpack.c.b16 %v3158, %v3158
      %v3191 = vpack.c.b16 %v3159, %v3159
      %v3192 = vpack.c.b16 %v3160, %v3160
      %v3193 = vpack.c.b16 %v3161, %v3161
      %v3194 = vpack.c.b16 %v3162, %v3162
      %v3195 = vpack.c.b16 %v3163, %v3163
      %v3196 = vpack.c.b16 %v3164, %v3164
      %v3197 = vpack.c.b16 %v3165, %v3165
      %3230 = vst [vmem:[%s440] sm:$0xf] %v3166
      %3231 = vst [vmem:[%s440 + $0x4] sm:$0xf] %v3167
      %3232 = vst [vmem:[%s440 + $0x8] sm:$0xf] %v3168
      %3233 = vst [vmem:[%s440 + $0xc] sm:$0xf] %v3169
      %3234 = vst [vmem:[%s440 + $0x10] sm:$0xf] %v3170
      %3235 = vst [vmem:[%s440 + $0x14] sm:$0xf] %v3171
      %3236 = vst [vmem:[%s440 + $0x18] sm:$0xf] %v3172
      %3237 = vst [vmem:[%s440 + $0x1c] sm:$0xf] %v3173
      %3238 = vst [vmem:[%s440 + $0x20] sm:$0xf] %v3174
      %3239 = vst [vmem:[%s440 + $0x24] sm:$0xf] %v3175
      %3240 = vst [vmem:[%s440 + $0x28] sm:$0xf] %v3176
      %3241 = vst [vmem:[%s440 + $0x2c] sm:$0xf] %v3177
      %3242 = vst [vmem:[%s440 + $0x30] sm:$0xf] %v3178
      %3243 = vst [vmem:[%s440 + $0x34] sm:$0xf] %v3179
      %3244 = vst [vmem:[%s440 + $0x38] sm:$0xf] %v3180
      %3245 = vst [vmem:[%s440 + $0x3c] sm:$0xf] %v3181
      %3246 = vst [vmem:[%s440 + $0x40] sm:$0xf] %v3182
      %3247 = vst [vmem:[%s440 + $0x44] sm:$0xf] %v3183
      %3248 = vst [vmem:[%s440 + $0x48] sm:$0xf] %v3184
      %3249 = vst [vmem:[%s440 + $0x4c] sm:$0xf] %v3185
      %3250 = vst [vmem:[%s440 + $0x50] sm:$0xf] %v3186
      %3251 = vst [vmem:[%s440 + $0x54] sm:$0xf] %v3187
      %3252 = vst [vmem:[%s440 + $0x58] sm:$0xf] %v3188
      %3253 = vst [vmem:[%s440 + $0x5c] sm:$0xf] %v3189
      %3254 = vst [vmem:[%s440 + $0x60] sm:$0xf] %v3190
      %3255 = vst [vmem:[%s440 + $0x64] sm:$0xf] %v3191
      %3256 = vst [vmem:[%s440 + $0x68] sm:$0xf] %v3192
      %3257 = vst [vmem:[%s440 + $0x6c] sm:$0xf] %v3193
      %3258 = vst [vmem:[%s440 + $0x70] sm:$0xf] %v3194
      %3259 = vst [vmem:[%s440 + $0x74] sm:$0xf] %v3195
      %3260 = vst [vmem:[%s440 + $0x78] sm:$0xf] %v3196
      %3261 = vst [vmem:[%s440 + $0x7c] sm:$0xf] %v3197
      %p3262 = scmp.lt.s32.totalorder %s24, 1
      %s3263 = scalar_select %p3262, %s24, 1
      %s3264 = smul.addr %s3263, 32
      %s3265 = smul.addr %s3264, 4
      %s3266 = scalar_lea.vmem %s13, %s3265
      // Predicated region
      $region73: #{efficientnet_forward.2} parent=71 // pred_check
        %p3267 = pneg %p320
      $region74: #{efficientnet_forward.2} parent=71 // pred_check_branch
        %3269 = sbr.rel (%p3267) target = $region76
      $region75: #{efficientnet_forward.2} parent=71 // pred_region
        _
      $region76: #{efficientnet_forward.2} parent=71 // pred_fallthru
        _
    $region72: #{efficientnet_forward.2} parent=5 // pred_fallthru
      _
    %p3270 = scmp.le.s32.totalorder 2, %s19
    // Predicated region
    $region77: #{efficientnet_forward.2} parent=5 // pred_check
      %p3271 = pneg %p3270
    $region78: #{efficientnet_forward.2} parent=5 // pred_check_branch
      %3273 = sbr.rel (%p3271) target = $region80
    $region79: #{efficientnet_forward.2} parent=5 // pred_region
      %s3274 = ssub.s32 %s19, 2
      // Predicated region
      $region81: #{efficientnet_forward.2} parent=79 // pred_check
        %p3275 = pneg %p326
      $region82: #{efficientnet_forward.2} parent=79 // pred_check_branch
        %3277 = sbr.rel (%p3275) target = $region84
      $region83: #{efficientnet_forward.2} parent=79 // pred_region
        %p3278 = scmp.lt.s32.totalorder %s25, 1
        %s3279 = scalar_select %p3278, %s25, 1
        %s3280 = smul.addr %s3279, 32
        %s3281 = smul.addr %s3280, 4
        %s3282 = scalar_lea.vmem %s13, %s3281
      $region84: #{efficientnet_forward.2} parent=79 // pred_fallthru
        _
    $region80: #{efficientnet_forward.2} parent=5 // pred_fallthru
      _
  $region6: #{efficientnet_forward.2} parent=0 // loop_footer
    %s23 = sadd.s32 1, %s19
  $region7: #{efficientnet_forward.2} parent=0 // loop_footer_branch
    %18 = sbr.rel target = $region3
  $region8: #{efficientnet_forward.2} parent=0 // loop_exit
    _

// kernel: efficientnet_forward.3
$region0: #{efficientnet_forward.3}
  #allocation0 [shape = 'u32[]', space=smem, size = 0x4, offset = 0x4, fixed_abs, tag = 'smem constant byte address 0x4 - core index']
  #allocation1 [shape = 'u32[144,128]{1,0:T(1,128)}', space=vmem, size = 0x12000, scoped, tag = 'internal scratch']
  #allocation2 [shape = 'f32[10,24,128]{2,1,0:T(8,128)}', space=vmem, size = 0x1e000, scoped, tag = 'scratch operand']
  %s0 = inlined_call_operand.vmem [shape: bf16[2,36,16,128], index: 0, kind: input, shape index: {}]
  %s1 = inlined_call_operand.vmem [shape: f32[9,1,128], index: 1, kind: input, shape index: {}]
  %s2 = inlined_call_operand.vmem [shape: f32[1,128], index: 2, kind: input, shape index: {}]
  %s3 = inlined_call_operand.vmem [shape: bf16[128,128], index: 3, kind: input, shape index: {}]
  %s4 = inlined_call_operand.vmem [shape: f32[1,128], index: 4, kind: input, shape index: {}]
  %s5 = inlined_call_operand.vmem [shape: bf16[128,128], index: 5, kind: input, shape index: {}]
  %s6 = inlined_call_operand.vmem [shape: f32[1,128], index: 6, kind: input, shape index: {}]
  %s7 = inlined_call_operand.vmem [shape: bf16[128,128], index: 7, kind: input, shape index: {}]
  %s8 = inlined_call_operand.vmem [shape: f32[1,128], index: 8, kind: input, shape index: {}]
  %s9 = inlined_call_operand.vmem [shape: bf16[128,128], index: 9, kind: input, shape index: {}]
  %s10 = inlined_call_operand.vmem [shape: f32[1,128], index: 10, kind: input, shape index: {}]
  %s11 = inlined_call_operand.vmem [shape: f32[9,1,128], index: 11, kind: input, shape index: {}]
  %s12 = inlined_call_operand.vmem [shape: f32[1,128], index: 12, kind: input, shape index: {}]
  %s13 = inlined_call_operand.vmem [shape: bf16[128,128], index: 13, kind: input, shape index: {}]
  %s14 = inlined_call_operand.vmem [shape: f32[1,128], index: 14, kind: input, shape index: {}]
  %s15 = inlined_call_operand.vmem [shape: bf16[128,128], index: 15, kind: input, shape index: {}]
  %s16 = inlined_call_operand.vmem [shape: f32[1,128], index: 16, kind: input, shape index: {}]
  %s17 = inlined_call_operand.vmem [shape: bf16[128,128], index: 17, kind: input, shape index: {}]
  %s18 = inlined_call_operand.vmem [shape: f32[1,128], index: 18, kind: input, shape index: {}]
  %s19 = inlined_call_operand.vmem [shape: bf16[128,128], index: 19, kind: input, shape index: {}]
  %s20 = inlined_call_operand.vmem [shape: f32[1,128], index: 20, kind: input, shape index: {}]
  %s21 = inlined_call_operand.vmem [shape: bf16[128,128], index: 21, kind: input, shape index: {}]
  %s22 = inlined_call_operand.vmem [shape: f32[1,128], index: 22, kind: input, shape index: {}]
  %s23 = inlined_call_operand.hbm [shape: f32[2,1,128], index: 23, kind: output, shape index: {}]
  %s24 = sld [smem:[#allocation0]]
  $region125: #{efficientnet_forward.3} parent=0
    _
  %s26 = ssub.s32 1, %s24
  %s27 = scalar_select 0, %s26, %s24
  $region1: #{efficientnet_forward.3} parent=0
    #allocation3 [shape = 'u8[1024]{0}', space=vmem, size = 0x400, scoped, tag = 'output window, operand 0']
    #allocation4 [shape = 's32[2]{0}', space=sflag, size = 0x8, scoped, tag = 'scoped memory for efficientnet_forward.3']
    %28 = vsyncpa [#allocation4], 0
    %s29 = scalar_lea.sflag [#allocation4], 1
    %30 = vsyncpa %s29, 0
    loop: start=0, step=1, limit=4
    $region2: #{efficientnet_forward.3} parent=1 // loop_pre_header
      _
    $region3: #{efficientnet_forward.3} parent=1 // loop_header
      %s32 = sphi 0, %s36
      %p33 = scmp.ge.s32.totalorder %s32, 4
      %s42 = sphi 0, %s44
      %s45 = sphi 0, %s42
      %s46 = sphi 0, %s45
      %s62 = sphi 0, %s46
      %s66 = sphi 0, %s66
      %s68 = sphi 0, %s66
      %s69 = sphi 0, %s68
      %s83 = sphi 0, %s69
      %s87 = sphi 0, %s87
      %s89 = sphi 0, %s87
      %s90 = sphi 0, %s89
      %s104 = sphi 0, %s90
      %s108 = sphi 0, %s108
      %s110 = sphi 0, %s108
      %s111 = sphi 0, %s110
      %s125 = sphi 0, %s111
      %s129 = sphi 0, %s129
      %s131 = sphi 0, %s129
      %s132 = sphi 0, %s131
      %s146 = sphi 0, %s132
      %s150 = sphi 0, %s150
      %s152 = sphi 0, %s150
      %s153 = sphi 0, %s152
      %s167 = sphi 0, %s153
      %s171 = sphi 0, %s171
      %s173 = sphi 0, %s171
      %s174 = sphi 0, %s173
      %s188 = sphi 0, %s174
      %s192 = sphi 0, %s192
      %s194 = sphi 0, %s192
      %s195 = sphi 0, %s194
      %s209 = sphi 0, %s195
      %s213 = sphi 0, %s213
      %s215 = sphi 0, %s213
      %s216 = sphi 0, %s215
      %s230 = sphi 0, %s216
      %s234 = sphi 0, %s234
      %s236 = sphi 0, %s234
      %s237 = sphi 0, %s236
      %s251 = sphi 0, %s237
      %s255 = sphi 0, %s255
      %s257 = sphi 0, %s255
      %s258 = sphi 0, %s257
      %s272 = sphi 0, %s258
      %s276 = sphi 0, %s276
      %s278 = sphi 0, %s276
      %s279 = sphi 0, %s278
      %s293 = sphi 0, %s279
      %s297 = sphi 0, %s297
      %s299 = sphi 0, %s297
      %s300 = sphi 0, %s299
      %s314 = sphi 0, %s300
      %s318 = sphi 0, %s318
      %s320 = sphi 0, %s318
      %s321 = sphi 0, %s320
      %s335 = sphi 0, %s321
      %s339 = sphi 0, %s339
      %s341 = sphi 0, %s339
      %s342 = sphi 0, %s341
      %s356 = sphi 0, %s342
      %s360 = sphi 0, %s360
      %s362 = sphi 0, %s360
      %s363 = sphi 0, %s362
      %s377 = sphi 0, %s363
      %s381 = sphi 0, %s381
      %s383 = sphi 0, %s381
      %s384 = sphi 0, %s383
      %s398 = sphi 0, %s384
      %s402 = sphi 0, %s402
      %s404 = sphi 0, %s402
      %s405 = sphi 0, %s404
      %s419 = sphi 0, %s405
      %s423 = sphi 0, %s423
      %s425 = sphi 0, %s423
      %s426 = sphi 0, %s425
      %s440 = sphi 0, %s426
      %s444 = sphi 0, %s444
      %s446 = sphi 0, %s444
      %s447 = sphi 0, %s446
      %s461 = sphi 0, %s447
      %s465 = sphi 0, %s465
      %s467 = sphi 0, %s465
      %s468 = sphi 0, %s467
      %s482 = sphi 0, %s468
      %s486 = sphi 0, %s486
      %s488 = sphi 0, %s486
      %s489 = sphi 0, %s488
      %s503 = sphi 0, %s489
      %s507 = sphi 0, %s507
      %s509 = sphi 0, %s507
      %s510 = sphi 0, %s509
      %s524 = sphi 0, %s510
      %s530 = sphi 0, %s532
      %s533 = sphi 0, %s530
      %s534 = sphi 0, %s533
      %s550 = sphi 0, %s534
    $region4: #{efficientnet_forward.3} parent=1 // loop_header_branch
      %35 = sbr.rel (%p33) target = $region8
    $region5: #{efficientnet_forward.3} parent=1 // loop_body
      %s37 = ssub.s32 %s32, 1
      %s38 = ssub.s32 %s32, 2
      %s39 = sadd.s32 %s32, 1
      %s40 = ssub.s32 %s32, %s39
      %p41 = scmp.eq.s32.totalorder %s40, 0
      %s43 = sadd.s32 %s42, 1
      %s44 = scalar_select %p41, %s42, %s43
      %p47 = pneg %p41
      %p48 = scmp.eq.s32.totalorder %s32, 1
      %p49 = por %p47, %p48
      %p50 = scmp.ne.s32.totalorder %s42, %s45
      %p51 = scmp.eq.s32.totalorder %s32, 0
      %p52 = por %p50, %p51
      %p53 = scmp.ne.s32.totalorder %s42, %s45
      %p54 = scmp.eq.s32.totalorder %s37, 1
      %p55 = por %p53, %p54
      %p56 = scmp.ne.s32.totalorder %s45, %s46
      %p57 = scmp.eq.s32.totalorder %s37, 0
      %p58 = por %p56, %p57
      %p59 = scmp.ne.s32.totalorder %s45, %s46
      %p60 = scmp.eq.s32.totalorder %s38, 1
      %p61 = por %p59, %p60
      %p63 = scmp.ne.s32.totalorder %s46, %s62
      %p64 = scmp.eq.s32.totalorder %s38, 0
      %p65 = por %p63, %p64
      %s67 = sadd.s32 %s66, 1
      %p70 = scmp.eq.s32.totalorder %s32, 1
      %p71 = scmp.ne.s32.totalorder %s66, %s68
      %p72 = scmp.eq.s32.totalorder %s32, 0
      %p73 = por %p71, %p72
      %p74 = scmp.ne.s32.totalorder %s66, %s68
      %p75 = scmp.eq.s32.totalorder %s37, 1
      %p76 = por %p74, %p75
      %p77 = scmp.ne.s32.totalorder %s68, %s69
      %p78 = scmp.eq.s32.totalorder %s37, 0
      %p79 = por %p77, %p78
      %p80 = scmp.ne.s32.totalorder %s68, %s69
      %p81 = scmp.eq.s32.totalorder %s38, 1
      %p82 = por %p80, %p81
      %p84 = scmp.ne.s32.totalorder %s69, %s83
      %p85 = scmp.eq.s32.totalorder %s38, 0
      %p86 = por %p84, %p85
      %s88 = sadd.s32 %s87, 1
      %p91 = scmp.eq.s32.totalorder %s32, 1
      %p92 = scmp.ne.s32.totalorder %s87, %s89
      %p93 = scmp.eq.s32.totalorder %s32, 0
      %p94 = por %p92, %p93
      %p95 = scmp.ne.s32.totalorder %s87, %s89
      %p96 = scmp.eq.s32.totalorder %s37, 1
      %p97 = por %p95, %p96
      %p98 = scmp.ne.s32.totalorder %s89, %s90
      %p99 = scmp.eq.s32.totalorder %s37, 0
      %p100 = por %p98, %p99
      %p101 = scmp.ne.s32.totalorder %s89, %s90
      %p102 = scmp.eq.s32.totalorder %s38, 1
      %p103 = por %p101, %p102
      %p105 = scmp.ne.s32.totalorder %s90, %s104
      %p106 = scmp.eq.s32.totalorder %s38, 0
      %p107 = por %p105, %p106
      %s109 = sadd.s32 %s108, 1
      %p112 = scmp.eq.s32.totalorder %s32, 1
      %p113 = scmp.ne.s32.totalorder %s108, %s110
      %p114 = scmp.eq.s32.totalorder %s32, 0
      %p115 = por %p113, %p114
      %p116 = scmp.ne.s32.totalorder %s108, %s110
      %p117 = scmp.eq.s32.totalorder %s37, 1
      %p118 = por %p116, %p117
      %p119 = scmp.ne.s32.totalorder %s110, %s111
      %p120 = scmp.eq.s32.totalorder %s37, 0
      %p121 = por %p119, %p120
      %p122 = scmp.ne.s32.totalorder %s110, %s111
      %p123 = scmp.eq.s32.totalorder %s38, 1
      %p124 = por %p122, %p123
      %p126 = scmp.ne.s32.totalorder %s111, %s125
      %p127 = scmp.eq.s32.totalorder %s38, 0
      %p128 = por %p126, %p127
      %s130 = sadd.s32 %s129, 1
      %p133 = scmp.eq.s32.totalorder %s32, 1
      %p134 = scmp.ne.s32.totalorder %s129, %s131
      %p135 = scmp.eq.s32.totalorder %s32, 0
      %p136 = por %p134, %p135
      %p137 = scmp.ne.s32.totalorder %s129, %s131
      %p138 = scmp.eq.s32.totalorder %s37, 1
      %p139 = por %p137, %p138
      %p140 = scmp.ne.s32.totalorder %s131, %s132
      %p141 = scmp.eq.s32.totalorder %s37, 0
      %p142 = por %p140, %p141
      %p143 = scmp.ne.s32.totalorder %s131, %s132
      %p144 = scmp.eq.s32.totalorder %s38, 1
      %p145 = por %p143, %p144
      %p147 = scmp.ne.s32.totalorder %s132, %s146
      %p148 = scmp.eq.s32.totalorder %s38, 0
      %p149 = por %p147, %p148
      %s151 = sadd.s32 %s150, 1
      %p154 = scmp.eq.s32.totalorder %s32, 1
      %p155 = scmp.ne.s32.totalorder %s150, %s152
      %p156 = scmp.eq.s32.totalorder %s32, 0
      %p157 = por %p155, %p156
      %p158 = scmp.ne.s32.totalorder %s150, %s152
      %p159 = scmp.eq.s32.totalorder %s37, 1
      %p160 = por %p158, %p159
      %p161 = scmp.ne.s32.totalorder %s152, %s153
      %p162 = scmp.eq.s32.totalorder %s37, 0
      %p163 = por %p161, %p162
      %p164 = scmp.ne.s32.totalorder %s152, %s153
      %p165 = scmp.eq.s32.totalorder %s38, 1
      %p166 = por %p164, %p165
      %p168 = scmp.ne.s32.totalorder %s153, %s167
      %p169 = scmp.eq.s32.totalorder %s38, 0
      %p170 = por %p168, %p169
      %s172 = sadd.s32 %s171, 1
      %p175 = scmp.eq.s32.totalorder %s32, 1
      %p176 = scmp.ne.s32.totalorder %s171, %s173
      %p177 = scmp.eq.s32.totalorder %s32, 0
      %p178 = por %p176, %p177
      %p179 = scmp.ne.s32.totalorder %s171, %s173
      %p180 = scmp.eq.s32.totalorder %s37, 1
      %p181 = por %p179, %p180
      %p182 = scmp.ne.s32.totalorder %s173, %s174
      %p183 = scmp.eq.s32.totalorder %s37, 0
      %p184 = por %p182, %p183
      %p185 = scmp.ne.s32.totalorder %s173, %s174
      %p186 = scmp.eq.s32.totalorder %s38, 1
      %p187 = por %p185, %p186
      %p189 = scmp.ne.s32.totalorder %s174, %s188
      %p190 = scmp.eq.s32.totalorder %s38, 0
      %p191 = por %p189, %p190
      %s193 = sadd.s32 %s192, 1
      %p196 = scmp.eq.s32.totalorder %s32, 1
      %p197 = scmp.ne.s32.totalorder %s192, %s194
      %p198 = scmp.eq.s32.totalorder %s32, 0
      %p199 = por %p197, %p198
      %p200 = scmp.ne.s32.totalorder %s192, %s194
      %p201 = scmp.eq.s32.totalorder %s37, 1
      %p202 = por %p200, %p201
      %p203 = scmp.ne.s32.totalorder %s194, %s195
      %p204 = scmp.eq.s32.totalorder %s37, 0
      %p205 = por %p203, %p204
      %p206 = scmp.ne.s32.totalorder %s194, %s195
      %p207 = scmp.eq.s32.totalorder %s38, 1
      %p208 = por %p206, %p207
      %p210 = scmp.ne.s32.totalorder %s195, %s209
      %p211 = scmp.eq.s32.totalorder %s38, 0
      %p212 = por %p210, %p211
      %s214 = sadd.s32 %s213, 1
      %p217 = scmp.eq.s32.totalorder %s32, 1
      %p218 = scmp.ne.s32.totalorder %s213, %s215
      %p219 = scmp.eq.s32.totalorder %s32, 0
      %p220 = por %p218, %p219
      %p221 = scmp.ne.s32.totalorder %s213, %s215
      %p222 = scmp.eq.s32.totalorder %s37, 1
      %p223 = por %p221, %p222
      %p224 = scmp.ne.s32.totalorder %s215, %s216
      %p225 = scmp.eq.s32.totalorder %s37, 0
      %p226 = por %p224, %p225
      %p227 = scmp.ne.s32.totalorder %s215, %s216
      %p228 = scmp.eq.s32.totalorder %s38, 1
      %p229 = por %p227, %p228
      %p231 = scmp.ne.s32.totalorder %s216, %s230
      %p232 = scmp.eq.s32.totalorder %s38, 0
      %p233 = por %p231, %p232
      %s235 = sadd.s32 %s234, 1
      %p238 = scmp.eq.s32.totalorder %s32, 1
      %p239 = scmp.ne.s32.totalorder %s234, %s236
      %p240 = scmp.eq.s32.totalorder %s32, 0
      %p241 = por %p239, %p240
      %p242 = scmp.ne.s32.totalorder %s234, %s236
      %p243 = scmp.eq.s32.totalorder %s37, 1
      %p244 = por %p242, %p243
      %p245 = scmp.ne.s32.totalorder %s236, %s237
      %p246 = scmp.eq.s32.totalorder %s37, 0
      %p247 = por %p245, %p246
      %p248 = scmp.ne.s32.totalorder %s236, %s237
      %p249 = scmp.eq.s32.totalorder %s38, 1
      %p250 = por %p248, %p249
      %p252 = scmp.ne.s32.totalorder %s237, %s251
      %p253 = scmp.eq.s32.totalorder %s38, 0
      %p254 = por %p252, %p253
      %s256 = sadd.s32 %s255, 1
      %p259 = scmp.eq.s32.totalorder %s32, 1
      %p260 = scmp.ne.s32.totalorder %s255, %s257
      %p261 = scmp.eq.s32.totalorder %s32, 0
      %p262 = por %p260, %p261
      %p263 = scmp.ne.s32.totalorder %s255, %s257
      %p264 = scmp.eq.s32.totalorder %s37, 1
      %p265 = por %p263, %p264
      %p266 = scmp.ne.s32.totalorder %s257, %s258
      %p267 = scmp.eq.s32.totalorder %s37, 0
      %p268 = por %p266, %p267
      %p269 = scmp.ne.s32.totalorder %s257, %s258
      %p270 = scmp.eq.s32.totalorder %s38, 1
      %p271 = por %p269, %p270
      %p273 = scmp.ne.s32.totalorder %s258, %s272
      %p274 = scmp.eq.s32.totalorder %s38, 0
      %p275 = por %p273, %p274
      %s277 = sadd.s32 %s276, 1
      %p280 = scmp.eq.s32.totalorder %s32, 1
      %p281 = scmp.ne.s32.totalorder %s276, %s278
      %p282 = scmp.eq.s32.totalorder %s32, 0
      %p283 = por %p281, %p282
      %p284 = scmp.ne.s32.totalorder %s276, %s278
      %p285 = scmp.eq.s32.totalorder %s37, 1
      %p286 = por %p284, %p285
      %p287 = scmp.ne.s32.totalorder %s278, %s279
      %p288 = scmp.eq.s32.totalorder %s37, 0
      %p289 = por %p287, %p288
      %p290 = scmp.ne.s32.totalorder %s278, %s279
      %p291 = scmp.eq.s32.totalorder %s38, 1
      %p292 = por %p290, %p291
      %p294 = scmp.ne.s32.totalorder %s279, %s293
      %p295 = scmp.eq.s32.totalorder %s38, 0
      %p296 = por %p294, %p295
      %s298 = sadd.s32 %s297, 1
      %p301 = scmp.eq.s32.totalorder %s32, 1
      %p302 = scmp.ne.s32.totalorder %s297, %s299
      %p303 = scmp.eq.s32.totalorder %s32, 0
      %p304 = por %p302, %p303
      %p305 = scmp.ne.s32.totalorder %s297, %s299
      %p306 = scmp.eq.s32.totalorder %s37, 1
      %p307 = por %p305, %p306
      %p308 = scmp.ne.s32.totalorder %s299, %s300
      %p309 = scmp.eq.s32.totalorder %s37, 0
      %p310 = por %p308, %p309
      %p311 = scmp.ne.s32.totalorder %s299, %s300
      %p312 = scmp.eq.s32.totalorder %s38, 1
      %p313 = por %p311, %p312
      %p315 = scmp.ne.s32.totalorder %s300, %s314
      %p316 = scmp.eq.s32.totalorder %s38, 0
      %p317 = por %p315, %p316
      %s319 = sadd.s32 %s318, 1
      %p322 = scmp.eq.s32.totalorder %s32, 1
      %p323 = scmp.ne.s32.totalorder %s318, %s320
      %p324 = scmp.eq.s32.totalorder %s32, 0
      %p325 = por %p323, %p324
      %p326 = scmp.ne.s32.totalorder %s318, %s320
      %p327 = scmp.eq.s32.totalorder %s37, 1
      %p328 = por %p326, %p327
      %p329 = scmp.ne.s32.totalorder %s320, %s321
      %p330 = scmp.eq.s32.totalorder %s37, 0
      %p331 = por %p329, %p330
      %p332 = scmp.ne.s32.totalorder %s320, %s321
      %p333 = scmp.eq.s32.totalorder %s38, 1
      %p334 = por %p332, %p333
      %p336 = scmp.ne.s32.totalorder %s321, %s335
      %p337 = scmp.eq.s32.totalorder %s38, 0
      %p338 = por %p336, %p337
      %s340 = sadd.s32 %s339, 1
      %p343 = scmp.eq.s32.totalorder %s32, 1
      %p344 = scmp.ne.s32.totalorder %s339, %s341
      %p345 = scmp.eq.s32.totalorder %s32, 0
      %p346 = por %p344, %p345
      %p347 = scmp.ne.s32.totalorder %s339, %s341
      %p348 = scmp.eq.s32.totalorder %s37, 1
      %p349 = por %p347, %p348
      %p350 = scmp.ne.s32.totalorder %s341, %s342
      %p351 = scmp.eq.s32.totalorder %s37, 0
      %p352 = por %p350, %p351
      %p353 = scmp.ne.s32.totalorder %s341, %s342
      %p354 = scmp.eq.s32.totalorder %s38, 1
      %p355 = por %p353, %p354
      %p357 = scmp.ne.s32.totalorder %s342, %s356
      %p358 = scmp.eq.s32.totalorder %s38, 0
      %p359 = por %p357, %p358
      %s361 = sadd.s32 %s360, 1
      %p364 = scmp.eq.s32.totalorder %s32, 1
      %p365 = scmp.ne.s32.totalorder %s360, %s362
      %p366 = scmp.eq.s32.totalorder %s32, 0
      %p367 = por %p365, %p366
      %p368 = scmp.ne.s32.totalorder %s360, %s362
      %p369 = scmp.eq.s32.totalorder %s37, 1
      %p370 = por %p368, %p369
      %p371 = scmp.ne.s32.totalorder %s362, %s363
      %p372 = scmp.eq.s32.totalorder %s37, 0
      %p373 = por %p371, %p372
      %p374 = scmp.ne.s32.totalorder %s362, %s363
      %p375 = scmp.eq.s32.totalorder %s38, 1
      %p376 = por %p374, %p375
      %p378 = scmp.ne.s32.totalorder %s363, %s377
      %p379 = scmp.eq.s32.totalorder %s38, 0
      %p380 = por %p378, %p379
      %s382 = sadd.s32 %s381, 1
      %p385 = scmp.eq.s32.totalorder %s32, 1
      %p386 = scmp.ne.s32.totalorder %s381, %s383
      %p387 = scmp.eq.s32.totalorder %s32, 0
      %p388 = por %p386, %p387
      %p389 = scmp.ne.s32.totalorder %s381, %s383
      %p390 = scmp.eq.s32.totalorder %s37, 1
      %p391 = por %p389, %p390
      %p392 = scmp.ne.s32.totalorder %s383, %s384
      %p393 = scmp.eq.s32.totalorder %s37, 0
      %p394 = por %p392, %p393
      %p395 = scmp.ne.s32.totalorder %s383, %s384
      %p396 = scmp.eq.s32.totalorder %s38, 1
      %p397 = por %p395, %p396
      %p399 = scmp.ne.s32.totalorder %s384, %s398
      %p400 = scmp.eq.s32.totalorder %s38, 0
      %p401 = por %p399, %p400
      %s403 = sadd.s32 %s402, 1
      %p406 = scmp.eq.s32.totalorder %s32, 1
      %p407 = scmp.ne.s32.totalorder %s402, %s404
      %p408 = scmp.eq.s32.totalorder %s32, 0
      %p409 = por %p407, %p408
      %p410 = scmp.ne.s32.totalorder %s402, %s404
      %p411 = scmp.eq.s32.totalorder %s37, 1
      %p412 = por %p410, %p411
      %p413 = scmp.ne.s32.totalorder %s404, %s405
      %p414 = scmp.eq.s32.totalorder %s37, 0
      %p415 = por %p413, %p414
      %p416 = scmp.ne.s32.totalorder %s404, %s405
      %p417 = scmp.eq.s32.totalorder %s38, 1
      %p418 = por %p416, %p417
      %p420 = scmp.ne.s32.totalorder %s405, %s419
      %p421 = scmp.eq.s32.totalorder %s38, 0
      %p422 = por %p420, %p421
      %s424 = sadd.s32 %s423, 1
      %p427 = scmp.eq.s32.totalorder %s32, 1
      %p428 = scmp.ne.s32.totalorder %s423, %s425
      %p429 = scmp.eq.s32.totalorder %s32, 0
      %p430 = por %p428, %p429
      %p431 = scmp.ne.s32.totalorder %s423, %s425
      %p432 = scmp.eq.s32.totalorder %s37, 1
      %p433 = por %p431, %p432
      %p434 = scmp.ne.s32.totalorder %s425, %s426
      %p435 = scmp.eq.s32.totalorder %s37, 0
      %p436 = por %p434, %p435
      %p437 = scmp.ne.s32.totalorder %s425, %s426
      %p438 = scmp.eq.s32.totalorder %s38, 1
      %p439 = por %p437, %p438
      %p441 = scmp.ne.s32.totalorder %s426, %s440
      %p442 = scmp.eq.s32.totalorder %s38, 0
      %p443 = por %p441, %p442
      %s445 = sadd.s32 %s444, 1
      %p448 = scmp.eq.s32.totalorder %s32, 1
      %p449 = scmp.ne.s32.totalorder %s444, %s446
      %p450 = scmp.eq.s32.totalorder %s32, 0
      %p451 = por %p449, %p450
      %p452 = scmp.ne.s32.totalorder %s444, %s446
      %p453 = scmp.eq.s32.totalorder %s37, 1
      %p454 = por %p452, %p453
      %p455 = scmp.ne.s32.totalorder %s446, %s447
      %p456 = scmp.eq.s32.totalorder %s37, 0
      %p457 = por %p455, %p456
      %p458 = scmp.ne.s32.totalorder %s446, %s447
      %p459 = scmp.eq.s32.totalorder %s38, 1
      %p460 = por %p458, %p459
      %p462 = scmp.ne.s32.totalorder %s447, %s461
      %p463 = scmp.eq.s32.totalorder %s38, 0
      %p464 = por %p462, %p463
      %s466 = sadd.s32 %s465, 1
      %p469 = scmp.eq.s32.totalorder %s32, 1
      %p470 = scmp.ne.s32.totalorder %s465, %s467
      %p471 = scmp.eq.s32.totalorder %s32, 0
      %p472 = por %p470, %p471
      %p473 = scmp.ne.s32.totalorder %s465, %s467
      %p474 = scmp.eq.s32.totalorder %s37, 1
      %p475 = por %p473, %p474
      %p476 = scmp.ne.s32.totalorder %s467, %s468
      %p477 = scmp.eq.s32.totalorder %s37, 0
      %p478 = por %p476, %p477
      %p479 = scmp.ne.s32.totalorder %s467, %s468
      %p480 = scmp.eq.s32.totalorder %s38, 1
      %p481 = por %p479, %p480
      %p483 = scmp.ne.s32.totalorder %s468, %s482
      %p484 = scmp.eq.s32.totalorder %s38, 0
      %p485 = por %p483, %p484
      %s487 = sadd.s32 %s486, 1
      %p490 = scmp.eq.s32.totalorder %s32, 1
      %p491 = scmp.ne.s32.totalorder %s486, %s488
      %p492 = scmp.eq.s32.totalorder %s32, 0
      %p493 = por %p491, %p492
      %p494 = scmp.ne.s32.totalorder %s486, %s488
      %p495 = scmp.eq.s32.totalorder %s37, 1
      %p496 = por %p494, %p495
      %p497 = scmp.ne.s32.totalorder %s488, %s489
      %p498 = scmp.eq.s32.totalorder %s37, 0
      %p499 = por %p497, %p498
      %p500 = scmp.ne.s32.totalorder %s488, %s489
      %p501 = scmp.eq.s32.totalorder %s38, 1
      %p502 = por %p500, %p501
      %p504 = scmp.ne.s32.totalorder %s489, %s503
      %p505 = scmp.eq.s32.totalorder %s38, 0
      %p506 = por %p504, %p505
      %s508 = sadd.s32 %s507, 1
      %p511 = scmp.eq.s32.totalorder %s32, 1
      %p512 = scmp.ne.s32.totalorder %s507, %s509
      %p513 = scmp.eq.s32.totalorder %s32, 0
      %p514 = por %p512, %p513
      %p515 = scmp.ne.s32.totalorder %s507, %s509
      %p516 = scmp.eq.s32.totalorder %s37, 1
      %p517 = por %p515, %p516
      %p518 = scmp.ne.s32.totalorder %s509, %s510
      %p519 = scmp.eq.s32.totalorder %s37, 0
      %p520 = por %p518, %p519
      %p521 = scmp.ne.s32.totalorder %s509, %s510
      %p522 = scmp.eq.s32.totalorder %s38, 1
      %p523 = por %p521, %p522
      %p525 = scmp.ne.s32.totalorder %s510, %s524
      %p526 = scmp.eq.s32.totalorder %s38, 0
      %p527 = por %p525, %p526
      %s528 = ssub.s32 %s32, %s39
      %p529 = scmp.eq.s32.totalorder %s528, 0
      %s531 = sadd.s32 %s530, 1
      %s532 = scalar_select %p529, %s530, %s531
      %p535 = pneg %p529
      %p536 = scmp.eq.s32.totalorder %s32, 1
      %p537 = por %p535, %p536
      %p538 = scmp.ne.s32.totalorder %s530, %s533
      %p539 = scmp.eq.s32.totalorder %s32, 0
      %p540 = por %p538, %p539
      %p541 = scmp.ne.s32.totalorder %s530, %s533
      %p542 = scmp.eq.s32.totalorder %s37, 1
      %p543 = por %p541, %p542
      %p544 = scmp.ne.s32.totalorder %s533, %s534
      %p545 = scmp.eq.s32.totalorder %s37, 0
      %p546 = por %p544, %p545
      %p547 = scmp.ne.s32.totalorder %s533, %s534
      %p548 = scmp.eq.s32.totalorder %s38, 1
      %p549 = por %p547, %p548
      %p551 = scmp.ne.s32.totalorder %s534, %s550
      %p552 = scmp.eq.s32.totalorder %s38, 0
      %p553 = por %p551, %p552
      %p554 = scmp.le.s32.totalorder 1, %s32
      %p555 = scmp.lt.s32.totalorder %s32, 3
      %p556 = pnand %p554, %p555
      %p557 = pneg %p556
      // Predicated region
      $region9: #{efficientnet_forward.3} parent=5 // pred_check
        _
      $region10: #{efficientnet_forward.3} parent=5 // pred_check_branch
        %559 = sbr.rel (%p556) target = $region12
      $region11: #{efficientnet_forward.3} parent=5 // pred_region
        %s560 = ssub.s32 %s32, 1
        // Predicated region
        $region13: #{efficientnet_forward.3} parent=11 // pred_check
          %p561 = pneg %p79
        $region14: #{efficientnet_forward.3} parent=11 // pred_check_branch
          %563 = sbr.rel (%p561) target = $region16
        $region15: #{efficientnet_forward.3} parent=11 // pred_region
          _
        $region16: #{efficientnet_forward.3} parent=11 // pred_fallthru
          _
        // Predicated region
        $region17: #{efficientnet_forward.3} parent=11 // pred_check
          %p564 = pneg %p100
        $region18: #{efficientnet_forward.3} parent=11 // pred_check_branch
          %566 = sbr.rel (%p564) target = $region20
        $region19: #{efficientnet_forward.3} parent=11 // pred_region
          _
        $region20: #{efficientnet_forward.3} parent=11 // pred_fallthru
          _
        // Predicated region
        $region21: #{efficientnet_forward.3} parent=11 // pred_check
          %p567 = pneg %p121
        $region22: #{efficientnet_forward.3} parent=11 // pred_check_branch
          %569 = sbr.rel (%p567) target = $region24
        $region23: #{efficientnet_forward.3} parent=11 // pred_region
          _
        $region24: #{efficientnet_forward.3} parent=11 // pred_fallthru
          _
        // Predicated region
        $region25: #{efficientnet_forward.3} parent=11 // pred_check
          %p570 = pneg %p142
        $region26: #{efficientnet_forward.3} parent=11 // pred_check_branch
          %572 = sbr.rel (%p570) target = $region28
        $region27: #{efficientnet_forward.3} parent=11 // pred_region
          _
        $region28: #{efficientnet_forward.3} parent=11 // pred_fallthru
          _
        // Predicated region
        $region29: #{efficientnet_forward.3} parent=11 // pred_check
          %p573 = pneg %p163
        $region30: #{efficientnet_forward.3} parent=11 // pred_check_branch
          %575 = sbr.rel (%p573) target = $region32
        $region31: #{efficientnet_forward.3} parent=11 // pred_region
          _
        $region32: #{efficientnet_forward.3} parent=11 // pred_fallthru
          _
        // Predicated region
        $region33: #{efficientnet_forward.3} parent=11 // pred_check
          %p576 = pneg %p184
        $region34: #{efficientnet_forward.3} parent=11 // pred_check_branch
          %578 = sbr.rel (%p576) target = $region36
        $region35: #{efficientnet_forward.3} parent=11 // pred_region
          _
        $region36: #{efficientnet_forward.3} parent=11 // pred_fallthru
          _
        // Predicated region
        $region37: #{efficientnet_forward.3} parent=11 // pred_check
          %p579 = pneg %p205
        $region38: #{efficientnet_forward.3} parent=11 // pred_check_branch
          %581 = sbr.rel (%p579) target = $region40
        $region39: #{efficientnet_forward.3} parent=11 // pred_region
          _
        $region40: #{efficientnet_forward.3} parent=11 // pred_fallthru
          _
        // Predicated region
        $region41: #{efficientnet_forward.3} parent=11 // pred_check
          %p582 = pneg %p226
        $region42: #{efficientnet_forward.3} parent=11 // pred_check_branch
          %584 = sbr.rel (%p582) target = $region44
        $region43: #{efficientnet_forward.3} parent=11 // pred_region
          _
        $region44: #{efficientnet_forward.3} parent=11 // pred_fallthru
          _
        // Predicated region
        $region45: #{efficientnet_forward.3} parent=11 // pred_check
          %p585 = pneg %p247
        $region46: #{efficientnet_forward.3} parent=11 // pred_check_branch
          %587 = sbr.rel (%p585) target = $region48
        $region47: #{efficientnet_forward.3} parent=11 // pred_region
          _
        $region48: #{efficientnet_forward.3} parent=11 // pred_fallthru
          _
        // Predicated region
        $region49: #{efficientnet_forward.3} parent=11 // pred_check
          %p588 = pneg %p268
        $region50: #{efficientnet_forward.3} parent=11 // pred_check_branch
          %590 = sbr.rel (%p588) target = $region52
        $region51: #{efficientnet_forward.3} parent=11 // pred_region
          _
        $region52: #{efficientnet_forward.3} parent=11 // pred_fallthru
          _
        // Predicated region
        $region53: #{efficientnet_forward.3} parent=11 // pred_check
          %p591 = pneg %p289
        $region54: #{efficientnet_forward.3} parent=11 // pred_check_branch
          %593 = sbr.rel (%p591) target = $region56
        $region55: #{efficientnet_forward.3} parent=11 // pred_region
          _
        $region56: #{efficientnet_forward.3} parent=11 // pred_fallthru
          _
        // Predicated region
        $region57: #{efficientnet_forward.3} parent=11 // pred_check
          %p594 = pneg %p310
        $region58: #{efficientnet_forward.3} parent=11 // pred_check_branch
          %596 = sbr.rel (%p594) target = $region60
        $region59: #{efficientnet_forward.3} parent=11 // pred_region
          _
        $region60: #{efficientnet_forward.3} parent=11 // pred_fallthru
          _
        // Predicated region
        $region61: #{efficientnet_forward.3} parent=11 // pred_check
          %p597 = pneg %p331
        $region62: #{efficientnet_forward.3} parent=11 // pred_check_branch
          %599 = sbr.rel (%p597) target = $region64
        $region63: #{efficientnet_forward.3} parent=11 // pred_region
          _
        $region64: #{efficientnet_forward.3} parent=11 // pred_fallthru
          _
        // Predicated region
        $region65: #{efficientnet_forward.3} parent=11 // pred_check
          %p600 = pneg %p352
        $region66: #{efficientnet_forward.3} parent=11 // pred_check_branch
          %602 = sbr.rel (%p600) target = $region68
        $region67: #{efficientnet_forward.3} parent=11 // pred_region
          _
        $region68: #{efficientnet_forward.3} parent=11 // pred_fallthru
          _
        // Predicated region
        $region69: #{efficientnet_forward.3} parent=11 // pred_check
          %p603 = pneg %p373
        $region70: #{efficientnet_forward.3} parent=11 // pred_check_branch
          %605 = sbr.rel (%p603) target = $region72
        $region71: #{efficientnet_forward.3} parent=11 // pred_region
          _
        $region72: #{efficientnet_forward.3} parent=11 // pred_fallthru
          _
        // Predicated region
        $region73: #{efficientnet_forward.3} parent=11 // pred_check
          %p606 = pneg %p394
        $region74: #{efficientnet_forward.3} parent=11 // pred_check_branch
          %608 = sbr.rel (%p606) target = $region76
        $region75: #{efficientnet_forward.3} parent=11 // pred_region
          _
        $region76: #{efficientnet_forward.3} parent=11 // pred_fallthru
          _
        // Predicated region
        $region77: #{efficientnet_forward.3} parent=11 // pred_check
          %p609 = pneg %p415
        $region78: #{efficientnet_forward.3} parent=11 // pred_check_branch
          %611 = sbr.rel (%p609) target = $region80
        $region79: #{efficientnet_forward.3} parent=11 // pred_region
          _
        $region80: #{efficientnet_forward.3} parent=11 // pred_fallthru
          _
        // Predicated region
        $region81: #{efficientnet_forward.3} parent=11 // pred_check
          %p612 = pneg %p436
        $region82: #{efficientnet_forward.3} parent=11 // pred_check_branch
          %614 = sbr.rel (%p612) target = $region84
        $region83: #{efficientnet_forward.3} parent=11 // pred_region
          _
        $region84: #{efficientnet_forward.3} parent=11 // pred_fallthru
          _
        // Predicated region
        $region85: #{efficientnet_forward.3} parent=11 // pred_check
          %p615 = pneg %p457
        $region86: #{efficientnet_forward.3} parent=11 // pred_check_branch
          %617 = sbr.rel (%p615) target = $region88
        $region87: #{efficientnet_forward.3} parent=11 // pred_region
          _
        $region88: #{efficientnet_forward.3} parent=11 // pred_fallthru
          _
        // Predicated region
        $region89: #{efficientnet_forward.3} parent=11 // pred_check
          %p618 = pneg %p478
        $region90: #{efficientnet_forward.3} parent=11 // pred_check_branch
          %620 = sbr.rel (%p618) target = $region92
        $region91: #{efficientnet_forward.3} parent=11 // pred_region
          _
        $region92: #{efficientnet_forward.3} parent=11 // pred_fallthru
          _
        // Predicated region
        $region93: #{efficientnet_forward.3} parent=11 // pred_check
          %p621 = pneg %p499
        $region94: #{efficientnet_forward.3} parent=11 // pred_check_branch
          %623 = sbr.rel (%p621) target = $region96
        $region95: #{efficientnet_forward.3} parent=11 // pred_region
          _
        $region96: #{efficientnet_forward.3} parent=11 // pred_fallthru
          _
        // Predicated region
        $region97: #{efficientnet_forward.3} parent=11 // pred_check
          %p624 = pneg %p520
        $region98: #{efficientnet_forward.3} parent=11 // pred_check_branch
          %626 = sbr.rel (%p624) target = $region100
        $region99: #{efficientnet_forward.3} parent=11 // pred_region
          _
        $region100: #{efficientnet_forward.3} parent=11 // pred_fallthru
          _
      $region12: #{efficientnet_forward.3} parent=5 // pred_fallthru
        _
      %p627 = scmp.lt.s32.totalorder %s32, 2
      // Predicated region
      $region101: #{efficientnet_forward.3} parent=5 // pred_check
        %p628 = pneg %p627
      $region102: #{efficientnet_forward.3} parent=5 // pred_check_branch
        %630 = sbr.rel (%p628) target = $region104
      $region103: #{efficientnet_forward.3} parent=5 // pred_region
        // Predicated region
        $region105: #{efficientnet_forward.3} parent=103 // pred_check
          %p631 = pneg %p52
        $region106: #{efficientnet_forward.3} parent=103 // pred_check_branch
          %633 = sbr.rel (%p631) target = $region108
        $region107: #{efficientnet_forward.3} parent=103 // pred_region
          %p634 = scmp.lt.s32.totalorder %s32, 1
          %s635 = scalar_select %p634, %s32, 1
          %s636 = smul.addr %s635, 72
          %s637 = smul.addr %s636, 4
          %s638 = scalar_lea.vmem %s0, %s637
        $region108: #{efficientnet_forward.3} parent=103 // pred_fallthru
          _
      $region104: #{efficientnet_forward.3} parent=5 // pred_fallthru
        _
      %p639 = scmp.le.s32.totalorder 1, %s32
      %p640 = scmp.lt.s32.totalorder %s32, 3
      %p641 = pnand %p639, %p640
      %p642 = pneg %p641
      // Predicated region
      $region109: #{efficientnet_forward.3} parent=5 // pred_check
        _
      $region110: #{efficientnet_forward.3} parent=5 // pred_check_branch
        %644 = sbr.rel (%p641) target = $region112
      $region111: #{efficientnet_forward.3} parent=5 // pred_region
        %s645 = ssub.s32 %s32, 1
        %p646 = scmp.lt.s32.totalorder %s37, 1
        %s647 = scalar_select %p646, %s37, 1
        %s648 = smul.addr %s647, 72
        %s649 = smul.addr %s648, 4
        %s650 = scalar_lea.vmem %s0, %s649
        %p651 = pneg %p58
        %p652 = pneg %p55
        %p653 = pneg %p79
        %p654 = pneg %p76
        %p655 = pneg %p100
        %p656 = pneg %p97
        %p657 = pneg %p121
        %p658 = pneg %p118
        %p659 = pneg %p142
        %p660 = pneg %p139
        %p661 = pneg %p163
        %p662 = pneg %p160
        %p663 = pneg %p184
        %p664 = pneg %p181
        %p665 = pneg %p205
        %p666 = pneg %p202
        %p667 = pneg %p226
        %p668 = pneg %p223
        %p669 = pneg %p247
        %p670 = pneg %p244
        %p671 = pneg %p268
        %p672 = pneg %p265
        %p673 = pneg %p289
        %p674 = pneg %p286
        %p675 = pneg %p310
        %p676 = pneg %p307
        %p677 = pneg %p331
        %p678 = pneg %p328
        %p679 = pneg %p352
        %p680 = pneg %p349
        %p681 = pneg %p373
        %p682 = pneg %p370
        %p683 = pneg %p394
        %p684 = pneg %p391
        %p685 = pneg %p415
        %p686 = pneg %p412
        %p687 = pneg %p436
        %p688 = pneg %p433
        %p689 = pneg %p457
        %p690 = pneg %p454
        %p691 = pneg %p478
        %p692 = pneg %p475
        %p693 = pneg %p499
        %p694 = pneg %p496
        %p695 = pneg %p520
        %p696 = pneg %p517
        %p697 = pneg %p546
        %p698 = pneg %p543
        %s699 = sand.u32 %s533, 1
        %s700 = scalar_lea.sflag [#allocation4], %s699
        %s701 = sand.u32 %s533, 1
        %s702 = scalar_lea.vmem [#allocation3], %s701
        %p703 = scmp.lt.s32.totalorder %s37, 1
        %s704 = scalar_select %p703, %s37, 1
        %s705 = smul.addr %s704, 72
        %s706 = smul.addr %s705, 4
        %s707 = scalar_lea.vmem %s0, %s706
        %v709 = vld [vmem:[%s1] sm:$0x1]
        %v710 = vld [vmem:[%s1 + $0x1] sm:$0x1]
        %v711 = vld [vmem:[%s1 + $0x2] sm:$0x1]
        %v712 = vld [vmem:[%s1 + $0x3] sm:$0x1]
        %v713 = vld [vmem:[%s1 + $0x4] sm:$0x1]
        %v714 = vld [vmem:[%s1 + $0x5] sm:$0x1]
        %v715 = vld [vmem:[%s1 + $0x6] sm:$0x1]
        %v716 = vld [vmem:[%s1 + $0x7] sm:$0x1]
        %v717 = vld [vmem:[%s1 + $0x8] sm:$0x1]
        %v718 = vld [vmem:[%s707] sm:$0xf]
        %v719 = vld [vmem:[%s707 + $0x8] sm:$0xf]
        %v720 = vld [vmem:[%s707 + $0x10] sm:$0xf]
        %v721 = vld [vmem:[%s707 + $0x18] sm:$0xf]
        %v722 = vld [vmem:[%s707 + $0x20] sm:$0xf]
        %v723 = vld [vmem:[%s707 + $0x28] sm:$0xf]
        %v724 = vld [vmem:[%s707 + $0x30] sm:$0xf]
        %v725 = vld [vmem:[%s707 + $0x38] sm:$0xf]
        %v726 = vunpack.c.l.bf16 %v718
        %v727 = vunpack.c.l.bf16 %v719
        %v728 = vunpack.c.l.bf16 %v720
        %v729 = vunpack.c.l.bf16 %v721
        %v730 = vunpack.c.l.bf16 %v722
        %v731 = vunpack.c.l.bf16 %v723
        %v732 = vunpack.c.l.bf16 %v724
        %v733 = vunpack.c.l.bf16 %v725
        %v735 = vlaneseq
        %v736 = vshrl.u32 %v735, 7
        %v737 = vsub.s32 0, %v736
        %v738 = vrot.slane %v709, %v737
        %v740 = vmul.f32 %v726, %v738
        %v741 = vmul.f32 %v727, %v738
        %v742 = vmul.f32 %v728, %v738
        %v743 = vmul.f32 %v729, %v738
        %v744 = vmul.f32 %v730, %v738
        %v745 = vmul.f32 %v731, %v738
        %v746 = vmul.f32 %v732, %v738
        %v747 = vmul.f32 %v733, %v738
        %s748 = scalar_lea.vmem %s707, 72
        %v749 = vld [vmem:[%s748] sm:$0xf]
        %v750 = vld [vmem:[%s748 + $0x8] sm:$0xf]
        %v751 = vld [vmem:[%s748 + $0x10] sm:$0xf]
        %v752 = vld [vmem:[%s748 + $0x18] sm:$0xf]
        %v753 = vld [vmem:[%s748 + $0x20] sm:$0xf]
        %v754 = vld [vmem:[%s748 + $0x28] sm:$0xf]
        %v755 = vld [vmem:[%s748 + $0x30] sm:$0xf]
        %v756 = vld [vmem:[%s748 + $0x38] sm:$0xf]
        %v757 = vunpack.c.l.bf16 %v749
        %v758 = vunpack.c.l.bf16 %v750
        %v759 = vunpack.c.l.bf16 %v751
        %v760 = vunpack.c.l.bf16 %v752
        %v761 = vunpack.c.l.bf16 %v753
        %v762 = vunpack.c.l.bf16 %v754
        %v763 = vunpack.c.l.bf16 %v755
        %v764 = vunpack.c.l.bf16 %v756
        %v766 = vlaneseq
        %v767 = vshrl.u32 %v766, 7
        %v768 = vsub.s32 0, %v767
        %v769 = vrot.slane %v710, %v768
        %v771 = vmul.f32 %v757, %v769
        %v772 = vmul.f32 %v758, %v769
        %v773 = vmul.f32 %v759, %v769
        %v774 = vmul.f32 %v760, %v769
        %v775 = vmul.f32 %v761, %v769
        %v776 = vmul.f32 %v762, %v769
        %v777 = vmul.f32 %v763, %v769
        %v778 = vmul.f32 %v764, %v769
        %v779 = vadd.f32 %v740, %v771
        %v780 = vadd.f32 %v741, %v772
        %v781 = vadd.f32 %v742, %v773
        %v782 = vadd.f32 %v743, %v774
        %v783 = vadd.f32 %v744, %v775
        %v784 = vadd.f32 %v745, %v776
        %v785 = vadd.f32 %v746, %v777
        %v786 = vadd.f32 %v747, %v778
        %v787 = vld [vmem:[%s707 + $0x4] sm:$0x1]
        %v788 = vld [vmem:[%s707 + $0xc] sm:$0x1]
        %v789 = vld [vmem:[%s707 + $0x14] sm:$0x1]
        %v790 = vld [vmem:[%s707 + $0x1c] sm:$0x1]
        %v791 = vld [vmem:[%s707 + $0x24] sm:$0x1]
        %v792 = vld [vmem:[%s707 + $0x2c] sm:$0x1]
        %v793 = vld [vmem:[%s707 + $0x34] sm:$0x1]
        %v794 = vld [vmem:[%s707 + $0x3c] sm:$0x1]
        %v795 = vunpack.c.l.bf16 %v787
        %v796 = vunpack.c.l.bf16 %v788
        %v797 = vunpack.c.l.bf16 %v789
        %v798 = vunpack.c.l.bf16 %v790
        %v799 = vunpack.c.l.bf16 %v791
        %v800 = vunpack.c.l.bf16 %v792
        %v801 = vunpack.c.l.bf16 %v793
        %v802 = vunpack.c.l.bf16 %v794
        %v804 = vlaneseq
        %v805 = vshrl.u32 %v804, 7
        %v806 = vsub.s32 0, %v805
        %v807 = vrot.slane %v711, %v806
        %v809 = vmul.f32 %v726, %v807
        %v810 = vmul.f32 %v795, %v807
        %v811 = vmul.f32 %v727, %v807
        %v812 = vmul.f32 %v796, %v807
        %v813 = vmul.f32 %v728, %v807
        %v814 = vmul.f32 %v797, %v807
        %v815 = vmul.f32 %v729, %v807
        %v816 = vmul.f32 %v798, %v807
        %v817 = vmul.f32 %v730, %v807
        %v818 = vmul.f32 %v799, %v807
        %v819 = vmul.f32 %v731, %v807
        %v820 = vmul.f32 %v800, %v807
        %v821 = vmul.f32 %v732, %v807
        %v822 = vmul.f32 %v801, %v807
        %v823 = vmul.f32 %v733, %v807
        %v824 = vmul.f32 %v802, %v807
        %vm841 = vcmask 1046528
        %v842 = vrot.slane %v809, 1
        %v843 = vrot.slane %v810, 1
        %v844 = vsel %vm841, %v842, %v843
        %v845 = vrot.slane %v811, 1
        %v846 = vrot.slane %v812, 1
        %v847 = vsel %vm841, %v845, %v846
        %v848 = vrot.slane %v813, 1
        %v849 = vrot.slane %v814, 1
        %v850 = vsel %vm841, %v848, %v849
        %v851 = vrot.slane %v815, 1
        %v852 = vrot.slane %v816, 1
        %v853 = vsel %vm841, %v851, %v852
        %v854 = vrot.slane %v817, 1
        %v855 = vrot.slane %v818, 1
        %v856 = vsel %vm841, %v854, %v855
        %v857 = vrot.slane %v819, 1
        %v858 = vrot.slane %v820, 1
        %v859 = vsel %vm841, %v857, %v858
        %v860 = vrot.slane %v821, 1
        %v861 = vrot.slane %v822, 1
        %v862 = vsel %vm841, %v860, %v861
        %v863 = vrot.slane %v823, 1
        %v864 = vrot.slane %v824, 1
        %v865 = vsel %vm841, %v863, %v864
        %v874 = vadd.f32 %v779, %v844
        %v875 = vadd.f32 %v780, %v847
        %v876 = vadd.f32 %v781, %v850
        %v877 = vadd.f32 %v782, %v853
        %v878 = vadd.f32 %v783, %v856
        %v879 = vadd.f32 %v784, %v859
        %v880 = vadd.f32 %v785, %v862
        %v881 = vadd.f32 %v786, %v865
        %s882 = scalar_lea.vmem %s707, 144
        %v883 = vld [vmem:[%s882] sm:$0xf]
        %v884 = vld [vmem:[%s882 + $0x8] sm:$0xf]
        %v885 = vld [vmem:[%s882 + $0x10] sm:$0xf]
        %v886 = vld [vmem:[%s882 + $0x18] sm:$0xf]
        %v887 = vld [vmem:[%s882 + $0x20] sm:$0xf]
        %v888 = vld [vmem:[%s882 + $0x28] sm:$0xf]
        %v889 = vld [vmem:[%s882 + $0x30] sm:$0xf]
        %v890 = vld [vmem:[%s882 + $0x38] sm:$0xf]
        %v891 = vunpack.c.l.bf16 %v883
        %v892 = vunpack.c.l.bf16 %v884
        %v893 = vunpack.c.l.bf16 %v885
        %v894 = vunpack.c.l.bf16 %v886
        %v895 = vunpack.c.l.bf16 %v887
        %v896 = vunpack.c.l.bf16 %v888
        %v897 = vunpack.c.l.bf16 %v889
        %v898 = vunpack.c.l.bf16 %v890
        %v900 = vlaneseq
        %v901 = vshrl.u32 %v900, 7
        %v902 = vsub.s32 0, %v901
        %v903 = vrot.slane %v712, %v902
        %v905 = vmul.f32 %v891, %v903
        %v906 = vmul.f32 %v892, %v903
        %v907 = vmul.f32 %v893, %v903
        %v908 = vmul.f32 %v894, %v903
        %v909 = vmul.f32 %v895, %v903
        %v910 = vmul.f32 %v896, %v903
        %v911 = vmul.f32 %v897, %v903
        %v912 = vmul.f32 %v898, %v903
        %v913 = vadd.f32 %v874, %v905
        %v914 = vadd.f32 %v875, %v906
        %v915 = vadd.f32 %v876, %v907
        %v916 = vadd.f32 %v877, %v908
        %v917 = vadd.f32 %v878, %v909
        %v918 = vadd.f32 %v879, %v910
        %v919 = vadd.f32 %v880, %v911
        %v920 = vadd.f32 %v881, %v912
        %s921 = scalar_lea.vmem %s707, 216
        %v922 = vld [vmem:[%s921] sm:$0xf]
        %v923 = vld [vmem:[%s921 + $0x8] sm:$0xf]
        %v924 = vld [vmem:[%s921 + $0x10] sm:$0xf]
        %v925 = vld [vmem:[%s921 + $0x18] sm:$0xf]
        %v926 = vld [vmem:[%s921 + $0x20] sm:$0xf]
        %v927 = vld [vmem:[%s921 + $0x28] sm:$0xf]
        %v928 = vld [vmem:[%s921 + $0x30] sm:$0xf]
        %v929 = vld [vmem:[%s921 + $0x38] sm:$0xf]
        %v930 = vunpack.c.l.bf16 %v922
        %v931 = vunpack.c.l.bf16 %v923
        %v932 = vunpack.c.l.bf16 %v924
        %v933 = vunpack.c.l.bf16 %v925
        %v934 = vunpack.c.l.bf16 %v926
        %v935 = vunpack.c.l.bf16 %v927
        %v936 = vunpack.c.l.bf16 %v928
        %v937 = vunpack.c.l.bf16 %v929
        %v939 = vlaneseq
        %v940 = vshrl.u32 %v939, 7
        %v941 = vsub.s32 0, %v940
        %v942 = vrot.slane %v713, %v941
        %v944 = vmul.f32 %v930, %v942
        %v945 = vmul.f32 %v931, %v942
        %v946 = vmul.f32 %v932, %v942
        %v947 = vmul.f32 %v933, %v942
        %v948 = vmul.f32 %v934, %v942
        %v949 = vmul.f32 %v935, %v942
        %v950 = vmul.f32 %v936, %v942
        %v951 = vmul.f32 %v937, %v942
        %v952 = vadd.f32 %v913, %v944
        %v953 = vadd.f32 %v914, %v945
        %v954 = vadd.f32 %v915, %v946
        %v955 = vadd.f32 %v916, %v947
        %v956 = vadd.f32 %v917, %v948
        %v957 = vadd.f32 %v918, %v949
        %v958 = vadd.f32 %v919, %v950
        %v959 = vadd.f32 %v920, %v951
        %v960 = vld [vmem:[%s882 + $0x4] sm:$0x1]
        %v961 = vld [vmem:[%s882 + $0xc] sm:$0x1]
        %v962 = vld [vmem:[%s882 + $0x14] sm:$0x1]
        %v963 = vld [vmem:[%s882 + $0x1c] sm:$0x1]
        %v964 = vld [vmem:[%s882 + $0x24] sm:$0x1]
        %v965 = vld [vmem:[%s882 + $0x2c] sm:$0x1]
        %v966 = vld [vmem:[%s882 + $0x34] sm:$0x1]
        %v967 = vld [vmem:[%s882 + $0x3c] sm:$0x1]
        %v968 = vunpack.c.l.bf16 %v960
        %v969 = vunpack.c.l.bf16 %v961
        %v970 = vunpack.c.l.bf16 %v962
        %v971 = vunpack.c.l.bf16 %v963
        %v972 = vunpack.c.l.bf16 %v964
        %v973 = vunpack.c.l.bf16 %v965
        %v974 = vunpack.c.l.bf16 %v966
        %v975 = vunpack.c.l.bf16 %v967
        %v977 = vlaneseq
        %v978 = vshrl.u32 %v977, 7
        %v979 = vsub.s32 0, %v978
        %v980 = vrot.slane %v714, %v979
        %v982 = vmul.f32 %v891, %v980
        %v983 = vmul.f32 %v968, %v980
        %v984 = vmul.f32 %v892, %v980
        %v985 = vmul.f32 %v969, %v980
        %v986 = vmul.f32 %v893, %v980
        %v987 = vmul.f32 %v970, %v980
        %v988 = vmul.f32 %v894, %v980
        %v989 = vmul.f32 %v971, %v980
        %v990 = vmul.f32 %v895, %v980
        %v991 = vmul.f32 %v972, %v980
        %v992 = vmul.f32 %v896, %v980
        %v993 = vmul.f32 %v973, %v980
        %v994 = vmul.f32 %v897, %v980
        %v995 = vmul.f32 %v974, %v980
        %v996 = vmul.f32 %v898, %v980
        %v997 = vmul.f32 %v975, %v980
        %v1014 = vrot.slane %v982, 1
        %v1015 = vrot.slane %v983, 1
        %v1016 = vsel %vm841, %v1014, %v1015
        %v1017 = vrot.slane %v984, 1
        %v1018 = vrot.slane %v985, 1
        %v1019 = vsel %vm841, %v1017, %v1018
        %v1020 = vrot.slane %v986, 1
        %v1021 = vrot.slane %v987, 1
        %v1022 = vsel %vm841, %v1020, %v1021
        %v1023 = vrot.slane %v988, 1
        %v1024 = vrot.slane %v989, 1
        %v1025 = vsel %vm841, %v1023, %v1024
        %v1026 = vrot.slane %v990, 1
        %v1027 = vrot.slane %v991, 1
        %v1028 = vsel %vm841, %v1026, %v1027
        %v1029 = vrot.slane %v992, 1
        %v1030 = vrot.slane %v993, 1
        %v1031 = vsel %vm841, %v1029, %v1030
        %v1032 = vrot.slane %v994, 1
        %v1033 = vrot.slane %v995, 1
        %v1034 = vsel %vm841, %v1032, %v1033
        %v1035 = vrot.slane %v996, 1
        %v1036 = vrot.slane %v997, 1
        %v1037 = vsel %vm841, %v1035, %v1036
        %v1046 = vadd.f32 %v952, %v1016
        %v1047 = vadd.f32 %v953, %v1019
        %v1048 = vadd.f32 %v954, %v1022
        %v1049 = vadd.f32 %v955, %v1025
        %v1050 = vadd.f32 %v956, %v1028
        %v1051 = vadd.f32 %v957, %v1031
        %v1052 = vadd.f32 %v958, %v1034
        %v1053 = vadd.f32 %v959, %v1037
        %s1054 = scalar_lea.vmem %s707, 8
        %v1055 = vld [vmem:[%s1054] sm:$0xf]
        %v1056 = vld [vmem:[%s1054 + $0x8] sm:$0xf]
        %v1057 = vld [vmem:[%s1054 + $0x10] sm:$0xf]
        %v1058 = vld [vmem:[%s1054 + $0x18] sm:$0xf]
        %v1059 = vld [vmem:[%s1054 + $0x20] sm:$0xf]
        %v1060 = vld [vmem:[%s1054 + $0x28] sm:$0xf]
        %v1061 = vld [vmem:[%s1054 + $0x30] sm:$0xf]
        %v1062 = vld [vmem:[%s1054 + $0x38] sm:$0xf]
        %v1063 = vunpack.c.l.bf16 %v1055
        %v1064 = vunpack.c.l.bf16 %v1056
        %v1065 = vunpack.c.l.bf16 %v1057
        %v1066 = vunpack.c.l.bf16 %v1058
        %v1067 = vunpack.c.l.bf16 %v1059
        %v1068 = vunpack.c.l.bf16 %v1060
        %v1069 = vunpack.c.l.bf16 %v1061
        %v1070 = vunpack.c.l.bf16 %v1062
        %v1072 = vlaneseq
        %v1073 = vshrl.u32 %v1072, 7
        %v1074 = vsub.s32 0, %v1073
        %v1075 = vrot.slane %v715, %v1074
        %v1077 = vmul.f32 %v1063, %v1075
        %v1078 = vmul.f32 %v1064, %v1075
        %v1079 = vmul.f32 %v1065, %v1075
        %v1080 = vmul.f32 %v1066, %v1075
        %v1081 = vmul.f32 %v1067, %v1075
        %v1082 = vmul.f32 %v1068, %v1075
        %v1083 = vmul.f32 %v1069, %v1075
        %v1084 = vmul.f32 %v1070, %v1075
        %v1085 = vadd.f32 %v1046, %v1077
        %v1086 = vadd.f32 %v1047, %v1078
        %v1087 = vadd.f32 %v1048, %v1079
        %v1088 = vadd.f32 %v1049, %v1080
        %v1089 = vadd.f32 %v1050, %v1081
        %v1090 = vadd.f32 %v1051, %v1082
        %v1091 = vadd.f32 %v1052, %v1083
        %v1092 = vadd.f32 %v1053, %v1084
        %s1093 = scalar_lea.vmem %s707, 80
        %v1094 = vld [vmem:[%s1093] sm:$0xf]
        %v1095 = vld [vmem:[%s1093 + $0x8] sm:$0xf]
        %v1096 = vld [vmem:[%s1093 + $0x10] sm:$0xf]
        %v1097 = vld [vmem:[%s1093 + $0x18] sm:$0xf]
        %v1098 = vld [vmem:[%s1093 + $0x20] sm:$0xf]
        %v1099 = vld [vmem:[%s1093 + $0x28] sm:$0xf]
        %v1100 = vld [vmem:[%s1093 + $0x30] sm:$0xf]
        %v1101 = vld [vmem:[%s1093 + $0x38] sm:$0xf]
        %v1102 = vunpack.c.l.bf16 %v1094
        %v1103 = vunpack.c.l.bf16 %v1095
        %v1104 = vunpack.c.l.bf16 %v1096
        %v1105 = vunpack.c.l.bf16 %v1097
        %v1106 = vunpack.c.l.bf16 %v1098
        %v1107 = vunpack.c.l.bf16 %v1099
        %v1108 = vunpack.c.l.bf16 %v1100
        %v1109 = vunpack.c.l.bf16 %v1101
        %v1111 = vlaneseq
        %v1112 = vshrl.u32 %v1111, 7
        %v1113 = vsub.s32 0, %v1112
        %v1114 = vrot.slane %v716, %v1113
        %v1116 = vmul.f32 %v1102, %v1114
        %v1117 = vmul.f32 %v1103, %v1114
        %v1118 = vmul.f32 %v1104, %v1114
        %v1119 = vmul.f32 %v1105, %v1114
        %v1120 = vmul.f32 %v1106, %v1114
        %v1121 = vmul.f32 %v1107, %v1114
        %v1122 = vmul.f32 %v1108, %v1114
        %v1123 = vmul.f32 %v1109, %v1114
        %v1124 = vadd.f32 %v1085, %v1116
        %v1125 = vadd.f32 %v1086, %v1117
        %v1126 = vadd.f32 %v1087, %v1118
        %v1127 = vadd.f32 %v1088, %v1119
        %v1128 = vadd.f32 %v1089, %v1120
        %v1129 = vadd.f32 %v1090, %v1121
        %v1130 = vadd.f32 %v1091, %v1122
        %v1131 = vadd.f32 %v1092, %v1123
        %v1132 = vld [vmem:[%s1054 + $0x4] sm:$0x1]
        %v1133 = vld [vmem:[%s1054 + $0xc] sm:$0x1]
        %v1134 = vld [vmem:[%s1054 + $0x14] sm:$0x1]
        %v1135 = vld [vmem:[%s1054 + $0x1c] sm:$0x1]
        %v1136 = vld [vmem:[%s1054 + $0x24] sm:$0x1]
        %v1137 = vld [vmem:[%s1054 + $0x2c] sm:$0x1]
        %v1138 = vld [vmem:[%s1054 + $0x34] sm:$0x1]
        %v1139 = vld [vmem:[%s1054 + $0x3c] sm:$0x1]
        %v1140 = vunpack.c.l.bf16 %v1132
        %v1141 = vunpack.c.l.bf16 %v1133
        %v1142 = vunpack.c.l.bf16 %v1134
        %v1143 = vunpack.c.l.bf16 %v1135
        %v1144 = vunpack.c.l.bf16 %v1136
        %v1145 = vunpack.c.l.bf16 %v1137
        %v1146 = vunpack.c.l.bf16 %v1138
        %v1147 = vunpack.c.l.bf16 %v1139
        %v1149 = vlaneseq
        %v1150 = vshrl.u32 %v1149, 7
        %v1151 = vsub.s32 0, %v1150
        %v1152 = vrot.slane %v717, %v1151
        %v1154 = vmul.f32 %v1063, %v1152
        %v1155 = vmul.f32 %v1140, %v1152
        %v1156 = vmul.f32 %v1064, %v1152
        %v1157 = vmul.f32 %v1141, %v1152
        %v1158 = vmul.f32 %v1065, %v1152
        %v1159 = vmul.f32 %v1142, %v1152
        %v1160 = vmul.f32 %v1066, %v1152
        %v1161 = vmul.f32 %v1143, %v1152
        %v1162 = vmul.f32 %v1067, %v1152
        %v1163 = vmul.f32 %v1144, %v1152
        %v1164 = vmul.f32 %v1068, %v1152
        %v1165 = vmul.f32 %v1145, %v1152
        %v1166 = vmul.f32 %v1069, %v1152
        %v1167 = vmul.f32 %v1146, %v1152
        %v1168 = vmul.f32 %v1070, %v1152
        %v1169 = vmul.f32 %v1147, %v1152
        %v1186 = vrot.slane %v1154, 1
        %v1187 = vrot.slane %v1155, 1
        %v1188 = vsel %vm841, %v1186, %v1187
        %v1189 = vrot.slane %v1156, 1
        %v1190 = vrot.slane %v1157, 1
        %v1191 = vsel %vm841, %v1189, %v1190
        %v1192 = vrot.slane %v1158, 1
        %v1193 = vrot.slane %v1159, 1
        %v1194 = vsel %vm841, %v1192, %v1193
        %v1195 = vrot.slane %v1160, 1
        %v1196 = vrot.slane %v1161, 1
        %v1197 = vsel %vm841, %v1195, %v1196
        %v1198 = vrot.slane %v1162, 1
        %v1199 = vrot.slane %v1163, 1
        %v1200 = vsel %vm841, %v1198, %v1199
        %v1201 = vrot.slane %v1164, 1
        %v1202 = vrot.slane %v1165, 1
        %v1203 = vsel %vm841, %v1201, %v1202
        %v1204 = vrot.slane %v1166, 1
        %v1205 = vrot.slane %v1167, 1
        %v1206 = vsel %vm841, %v1204, %v1205
        %v1207 = vrot.slane %v1168, 1
        %v1208 = vrot.slane %v1169, 1
        %v1209 = vsel %vm841, %v1207, %v1208
        %v1218 = vadd.f32 %v1124, %v1188
        %v1219 = vadd.f32 %v1125, %v1191
        %v1220 = vadd.f32 %v1126, %v1194
        %v1221 = vadd.f32 %v1127, %v1197
        %v1222 = vadd.f32 %v1128, %v1200
        %v1223 = vadd.f32 %v1129, %v1203
        %v1224 = vadd.f32 %v1130, %v1206
        %v1225 = vadd.f32 %v1131, %v1209
        %v1226 = vld [vmem:[%s2] sm:$0x1]
        %v1228 = vlaneseq
        %v1229 = vshrl.u32 %v1228, 7
        %v1230 = vsub.s32 0, %v1229
        %v1231 = vrot.slane %v1226, %v1230
        %v1233 = vadd.f32 %v1218, %v1231
        %v1234 = vadd.f32 %v1219, %v1231
        %v1235 = vadd.f32 %v1220, %v1231
        %v1236 = vadd.f32 %v1221, %v1231
        %v1237 = vadd.f32 %v1222, %v1231
        %v1238 = vadd.f32 %v1223, %v1231
        %v1239 = vadd.f32 %v1224, %v1231
        %v1240 = vadd.f32 %v1225, %v1231
        %v1241 = vxor.u32 %v1233, 2147483648
        %v1242 = vxor.u32 %v1234, 2147483648
        %v1243 = vxor.u32 %v1235, 2147483648
        %v1244 = vxor.u32 %v1236, 2147483648
        %v1245 = vxor.u32 %v1237, 2147483648
        %v1246 = vxor.u32 %v1238, 2147483648
        %v1247 = vxor.u32 %v1239, 2147483648
        %v1248 = vxor.u32 %v1240, 2147483648
        %v1249 = vmul.f32 %v1241, 1.442695
        %v1250 = vpow.pop %v1249
        %v1251 = vmul.f32 %v1242, 1.442695
        %v1252 = vpow.pop %v1251
        %v1253 = vmul.f32 %v1243, 1.442695
        %v1254 = vpow.pop %v1253
        %v1255 = vmul.f32 %v1244, 1.442695
        %v1256 = vpow.pop %v1255
        %v1257 = vmul.f32 %v1245, 1.442695
        %v1258 = vpow.pop %v1257
        %v1259 = vmul.f32 %v1246, 1.442695
        %v1260 = vpow.pop %v1259
        %v1261 = vmul.f32 %v1247, 1.442695
        %v1262 = vpow.pop %v1261
        %v1263 = vmul.f32 %v1248, 1.442695
        %v1264 = vpow.pop %v1263
        %v1265 = vadd.f32 %v1250, 1.0
        %v1266 = vadd.f32 %v1252, 1.0
        %v1267 = vadd.f32 %v1254, 1.0
        %v1268 = vadd.f32 %v1256, 1.0
        %v1269 = vadd.f32 %v1258, 1.0
        %v1270 = vadd.f32 %v1260, 1.0
        %v1271 = vadd.f32 %v1262, 1.0
        %v1272 = vadd.f32 %v1264, 1.0
        %v1273 = vrcp.pop %v1265
        %v1274 = vmul.f32 1.0, %v1273
        %v1275 = vrcp.pop %v1266
        %v1276 = vmul.f32 1.0, %v1275
        %v1277 = vrcp.pop %v1267
        %v1278 = vmul.f32 1.0, %v1277
        %v1279 = vrcp.pop %v1268
        %v1280 = vmul.f32 1.0, %v1279
        %v1281 = vrcp.pop %v1269
        %v1282 = vmul.f32 1.0, %v1281
        %v1283 = vrcp.pop %v1270
        %v1284 = vmul.f32 1.0, %v1283
        %v1285 = vrcp.pop %v1271
        %v1286 = vmul.f32 1.0, %v1285
        %v1287 = vrcp.pop %v1272
        %v1288 = vmul.f32 1.0, %v1287
        %v1289 = vmul.f32 %v1233, %v1274
        %v1290 = vmul.f32 %v1234, %v1276
        %v1291 = vmul.f32 %v1235, %v1278
        %v1292 = vmul.f32 %v1236, %v1280
        %v1293 = vmul.f32 %v1237, %v1282
        %v1294 = vmul.f32 %v1238, %v1284
        %v1295 = vmul.f32 %v1239, %v1286
        %v1296 = vmul.f32 %v1240, %v1288
        %v1297 = vadd.f32 %v1289, %v1290
        %v1298 = vadd.f32 %v1297, %v1291
        %v1299 = vadd.f32 %v1298, %v1292
        %v1300 = vadd.f32 %v1299, %v1293
        %v1301 = vadd.f32 %v1300, %v1294
        %v1302 = vadd.f32 %v1301, %v1295
        %v1303 = vadd.f32 %v1302, %v1296
        %v1304 = vrot.slane %v1303, 4
        %v1305 = vadd.f32 %v1303, %v1304
        %v1306 = vrot.slane %v1305, 2
        %v1307 = vadd.f32 %v1305, %v1306
        %v1308 = vrot.slane %v1307, 1
        %v1309 = vadd.f32 %v1307, %v1308
        %v1310 = vmul.f32 %v1309, 0.015625
        %v1311 = vpack.c.bf16 %v1310, %v1310
        %v1312 = vld [vmem:[%s3] sm:$0xf]
        %v1313 = vld [vmem:[%s3 + $0x4] sm:$0xf]
        %v1314 = vld [vmem:[%s3 + $0x8] sm:$0xf]
        %v1315 = vld [vmem:[%s3 + $0xc] sm:$0xf]
        %v1316 = vld [vmem:[%s3 + $0x10] sm:$0xf]
        %v1317 = vld [vmem:[%s3 + $0x14] sm:$0xf]
        %v1318 = vld [vmem:[%s3 + $0x18] sm:$0xf]
        %v1319 = vld [vmem:[%s3 + $0x1c] sm:$0xf]
        %v1320 = vld [vmem:[%s3 + $0x20] sm:$0xf]
        %v1321 = vld [vmem:[%s3 + $0x24] sm:$0xf]
        %v1322 = vld [vmem:[%s3 + $0x28] sm:$0xf]
        %v1323 = vld [vmem:[%s3 + $0x2c] sm:$0xf]
        %v1324 = vld [vmem:[%s3 + $0x30] sm:$0xf]
        %v1325 = vld [vmem:[%s3 + $0x34] sm:$0xf]
        %v1326 = vld [vmem:[%s3 + $0x38] sm:$0xf]
        %v1327 = vld [vmem:[%s3 + $0x3c] sm:$0xf]
        %v1328 = vld [vmem:[%s4] sm:$0x1]
        %v1345 = vunpack.c.l.b16 %v1312
        %v1346 = vunpack.c.l.b16 %v1313
        %v1347 = vunpack.c.l.b16 %v1314
        %v1348 = vunpack.c.l.b16 %v1315
        %v1349 = vunpack.c.l.b16 %v1316
        %v1350 = vunpack.c.l.b16 %v1317
        %v1351 = vunpack.c.l.b16 %v1318
        %v1352 = vunpack.c.l.b16 %v1319
        %v1353 = vunpack.c.l.b16 %v1320
        %v1354 = vunpack.c.l.b16 %v1321
        %v1355 = vunpack.c.l.b16 %v1322
        %v1356 = vunpack.c.l.b16 %v1323
        %v1357 = vunpack.c.l.b16 %v1324
        %v1358 = vunpack.c.l.b16 %v1325
        %v1359 = vunpack.c.l.b16 %v1326
        %v1360 = vunpack.c.l.b16 %v1327
        %v1361 = vpack.c.b16 %v1346, %v1345
        %v1362 = vpack.c.b16 %v1348, %v1347
        %v1363 = vpack.c.b16 %v1350, %v1349
        %v1364 = vpack.c.b16 %v1352, %v1351
        %v1365 = vpack.c.b16 %v1354, %v1353
        %v1366 = vpack.c.b16 %v1356, %v1355
        %v1367 = vpack.c.b16 %v1358, %v1357
        %v1368 = vpack.c.b16 %v1360, %v1359
        %1377 = vmatprep.subr.bf16.mxu0 0
        %1378 = vmatpush1.bf16.msra.mxu0 %v1361
        %1379 = vmatprep.subr.bf16.mxu0 0
        %1380 = vmatpush1.bf16.msra.mxu0 %v1362
        %1381 = vmatprep.subr.bf16.mxu0 0
        %1382 = vmatpush1.bf16.msra.mxu0 %v1363
        %1383 = vmatprep.subr.bf16.mxu0 0
        %1384 = vmatpush1.bf16.msra.mxu0 %v1364
        %1385 = vmatprep.subr.bf16.mxu0 0
        %1386 = vmatpush1.bf16.msra.mxu0 %v1365
        %1387 = vmatprep.subr.bf16.mxu0 0
        %1388 = vmatpush1.bf16.msra.mxu0 %v1366
        %1389 = vmatprep.subr.bf16.mxu0 0
        %1390 = vmatpush1.bf16.msra.mxu0 %v1367
        %1391 = vmatprep.subr.bf16.mxu0 0
        %1392 = vmatpush1.bf16.msra.mxu0 %v1368
        %1393 = vmatprep.subr.bf16.mxu0 0
        %1394 = vmatpush1.bf16.msra.mxu0 0
        %1395 = vmatprep.subr.bf16.mxu0 0
        %1396 = vmatpush1.bf16.msra.mxu0 0
        %1397 = vmatprep.subr.bf16.mxu0 0
        %1398 = vmatpush1.bf16.msra.mxu0 0
        %1399 = vmatprep.subr.bf16.mxu0 0
        %1400 = vmatpush1.bf16.msra.mxu0 0
        %1401 = vmatprep.subr.bf16.mxu0 0
        %1402 = vmatpush1.bf16.msra.mxu0 0
        %1403 = vmatprep.subr.bf16.mxu0 0
        %1404 = vmatpush1.bf16.msra.mxu0 0
        %1405 = vmatprep.subr.bf16.mxu0 0
        %1406 = vmatpush1.bf16.msra.mxu0 0
        %1407 = vmatprep.subr.bf16.mxu0 0
        %1408 = vmatpush1.bf16.msra.mxu0 0
        %1409 = vmatprep.mubr.bf16.mxu0 0
        %1410 = vmatmul.mubr.bf16.gmra.mrb[0].mxu0 %v1311
        %v1411 = vpop.f32.mrb[0].mxu0
        %v1412 = vadd.f32 %v1328, %v1411
        %v1413 = vpop.f32.mrb[0].mxu0
        %v1414 = vpop.f32.mrb[0].mxu0
        %v1415 = vpop.f32.mrb[0].mxu0
        %1416 = vdwg.mxu0
        %v1417 = vxor.u32 %v1412, 2147483648
        %v1418 = vmul.f32 %v1417, 1.442695
        %v1419 = vpow.pop %v1418
        %v1420 = vadd.f32 %v1419, 1.0
        %v1421 = vrcp.pop %v1420
        %v1422 = vmul.f32 1.0, %v1421
        %v1423 = vmul.f32 %v1412, %v1422
        %v1424 = vpack.c.bf16 %v1423, %v1423
        %v1425 = vld [vmem:[%s5] sm:$0xf]
        %v1426 = vld [vmem:[%s5 + $0x4] sm:$0xf]
        %v1427 = vld [vmem:[%s5 + $0x8] sm:$0xf]
        %v1428 = vld [vmem:[%s5 + $0xc] sm:$0xf]
        %v1429 = vld [vmem:[%s5 + $0x10] sm:$0xf]
        %v1430 = vld [vmem:[%s5 + $0x14] sm:$0xf]
        %v1431 = vld [vmem:[%s5 + $0x18] sm:$0xf]
        %v1432 = vld [vmem:[%s5 + $0x1c] sm:$0xf]
        %v1433 = vld [vmem:[%s5 + $0x20] sm:$0xf]
        %v1434 = vld [vmem:[%s5 + $0x24] sm:$0xf]
        %v1435 = vld [vmem:[%s5 + $0x28] sm:$0xf]
        %v1436 = vld [vmem:[%s5 + $0x2c] sm:$0xf]
        %v1437 = vld [vmem:[%s5 + $0x30] sm:$0xf]
        %v1438 = vld [vmem:[%s5 + $0x34] sm:$0xf]
        %v1439 = vld [vmem:[%s5 + $0x38] sm:$0xf]
        %v1440 = vld [vmem:[%s5 + $0x3c] sm:$0xf]
        %v1441 = vld [vmem:[%s6] sm:$0x1]
        %v1458 = vunpack.c.l.b16 %v1425
        %v1459 = vunpack.c.l.b16 %v1426
        %v1460 = vunpack.c.l.b16 %v1427
        %v1461 = vunpack.c.l.b16 %v1428
        %v1462 = vunpack.c.l.b16 %v1429
        %v1463 = vunpack.c.l.b16 %v1430
        %v1464 = vunpack.c.l.b16 %v1431
        %v1465 = vunpack.c.l.b16 %v1432
        %v1466 = vunpack.c.l.b16 %v1433
        %v1467 = vunpack.c.l.b16 %v1434
        %v1468 = vunpack.c.l.b16 %v1435
        %v1469 = vunpack.c.l.b16 %v1436
        %v1470 = vunpack.c.l.b16 %v1437
        %v1471 = vunpack.c.l.b16 %v1438
        %v1472 = vunpack.c.l.b16 %v1439
        %v1473 = vunpack.c.l.b16 %v1440
        %v1474 = vpack.c.b16 %v1459, %v1458
        %v1475 = vpack.c.b16 %v1461, %v1460
        %v1476 = vpack.c.b16 %v1463, %v1462
        %v1477 = vpack.c.b16 %v1465, %v1464
        %v1478 = vpack.c.b16 %v1467, %v1466
        %v1479 = vpack.c.b16 %v1469, %v1468
        %v1480 = vpack.c.b16 %v1471, %v1470
        %v1481 = vpack.c.b16 %v1473, %v1472
        %1490 = vmatprep.subr.bf16.mxu0 0
        %1491 = vmatpush1.bf16.msra.mxu0 %v1474
        %1492 = vmatprep.subr.bf16.mxu0 0
        %1493 = vmatpush1.bf16.msra.mxu0 %v1475
        %1494 = vmatprep.subr.bf16.mxu0 0
        %1495 = vmatpush1.bf16.msra.mxu0 %v1476
        %1496 = vmatprep.subr.bf16.mxu0 0
        %1497 = vmatpush1.bf16.msra.mxu0 %v1477
        %1498 = vmatprep.subr.bf16.mxu0 0
        %1499 = vmatpush1.bf16.msra.mxu0 %v1478
        %1500 = vmatprep.subr.bf16.mxu0 0
        %1501 = vmatpush1.bf16.msra.mxu0 %v1479
        %1502 = vmatprep.subr.bf16.mxu0 0
        %1503 = vmatpush1.bf16.msra.mxu0 %v1480
        %1504 = vmatprep.subr.bf16.mxu0 0
        %1505 = vmatpush1.bf16.msra.mxu0 %v1481
        %1506 = vmatprep.subr.bf16.mxu0 0
        %1507 = vmatpush1.bf16.msra.mxu0 0
        %1508 = vmatprep.subr.bf16.mxu0 0
        %1509 = vmatpush1.bf16.msra.mxu0 0
        %1510 = vmatprep.subr.bf16.mxu0 0
        %1511 = vmatpush1.bf16.msra.mxu0 0
        %1512 = vmatprep.subr.bf16.mxu0 0
        %1513 = vmatpush1.bf16.msra.mxu0 0
        %1514 = vmatprep.subr.bf16.mxu0 0
        %1515 = vmatpush1.bf16.msra.mxu0 0
        %1516 = vmatprep.subr.bf16.mxu0 0
        %1517 = vmatpush1.bf16.msra.mxu0 0
        %1518 = vmatprep.subr.bf16.mxu0 0
        %1519 = vmatpush1.bf16.msra.mxu0 0
        %1520 = vmatprep.subr.bf16.mxu0 0
        %1521 = vmatpush1.bf16.msra.mxu0 0
        %1522 = vmatprep.mubr.bf16.mxu0 0
        %1523 = vmatmul.mubr.bf16.gmra.mrb[0].mxu0 %v1424
        %v1524 = vpop.f32.mrb[0].mxu0
        %v1525 = vadd.f32 %v1441, %v1524
        %v1526 = vpop.f32.mrb[0].mxu0
        %v1527 = vpop.f32.mrb[0].mxu0
        %v1528 = vpop.f32.mrb[0].mxu0
        %1529 = vdwg.mxu0
        %v1530 = vxor.u32 %v1525, 2147483648
        %v1531 = vmul.f32 %v1530, 1.442695
        %v1532 = vpow.pop %v1531
        %v1533 = vadd.f32 %v1532, 1.0
        %v1534 = vrcp.pop %v1533
        %v1535 = vmul.f32 1.0, %v1534
        %v1536 = vpack.c.bf16 %v1290, %v1289
        %v1537 = vpack.c.bf16 %v1292, %v1291
        %v1538 = vpack.c.bf16 %v1294, %v1293
        %v1539 = vpack.c.bf16 %v1296, %v1295
        %v1540 = vpack.c.bf16 %v1535, %v1535
        %v1542 = vpack.i.b16 %v1540, %v1540
        %v1544 = vlaneseq
        %v1545 = vshrl.u32 %v1544, 7
        %v1546 = vsub.s32 0, %v1545
        %v1547 = vrot.slane %v1542, %v1546
        %v1548 = vmul.bf16 %v1536, %v1547
        %v1549 = vmul.bf16 %v1537, %v1547
        %v1550 = vmul.bf16 %v1538, %v1547
        %v1551 = vmul.bf16 %v1539, %v1547
        %v1552 = vld [vmem:[%s7] sm:$0xf]
        %v1553 = vld [vmem:[%s7 + $0x4] sm:$0xf]
        %v1554 = vld [vmem:[%s7 + $0x8] sm:$0xf]
        %v1555 = vld [vmem:[%s7 + $0xc] sm:$0xf]
        %v1556 = vld [vmem:[%s7 + $0x10] sm:$0xf]
        %v1557 = vld [vmem:[%s7 + $0x14] sm:$0xf]
        %v1558 = vld [vmem:[%s7 + $0x18] sm:$0xf]
        %v1559 = vld [vmem:[%s7 + $0x1c] sm:$0xf]
        %v1560 = vld [vmem:[%s7 + $0x20] sm:$0xf]
        %v1561 = vld [vmem:[%s7 + $0x24] sm:$0xf]
        %v1562 = vld [vmem:[%s7 + $0x28] sm:$0xf]
        %v1563 = vld [vmem:[%s7 + $0x2c] sm:$0xf]
        %v1564 = vld [vmem:[%s7 + $0x30] sm:$0xf]
        %v1565 = vld [vmem:[%s7 + $0x34] sm:$0xf]
        %v1566 = vld [vmem:[%s7 + $0x38] sm:$0xf]
        %v1567 = vld [vmem:[%s7 + $0x3c] sm:$0xf]
        %v1568 = vld [vmem:[%s8] sm:$0x1]
        %v1570 = vlaneseq
        %v1571 = vshrl.u32 %v1570, 7
        %v1572 = vsub.s32 0, %v1571
        %v1573 = vrot.slane %v1568, %v1572
        %v1591 = vunpack.c.l.b16 %v1552
        %v1592 = vunpack.c.l.b16 %v1553
        %v1593 = vunpack.c.l.b16 %v1554
        %v1594 = vunpack.c.l.b16 %v1555
        %v1595 = vunpack.c.l.b16 %v1556
        %v1596 = vunpack.c.l.b16 %v1557
        %v1597 = vunpack.c.l.b16 %v1558
        %v1598 = vunpack.c.l.b16 %v1559
        %v1599 = vunpack.c.l.b16 %v1560
        %v1600 = vunpack.c.l.b16 %v1561
        %v1601 = vunpack.c.l.b16 %v1562
        %v1602 = vunpack.c.l.b16 %v1563
        %v1603 = vunpack.c.l.b16 %v1564
        %v1604 = vunpack.c.l.b16 %v1565
        %v1605 = vunpack.c.l.b16 %v1566
        %v1606 = vunpack.c.l.b16 %v1567
        %v1607 = vpack.c.b16 %v1592, %v1591
        %v1608 = vpack.c.b16 %v1594, %v1593
        %v1609 = vpack.c.b16 %v1596, %v1595
        %v1610 = vpack.c.b16 %v1598, %v1597
        %v1611 = vpack.c.b16 %v1600, %v1599
        %v1612 = vpack.c.b16 %v1602, %v1601
        %v1613 = vpack.c.b16 %v1604, %v1603
        %v1614 = vpack.c.b16 %v1606, %v1605
        %1623 = vmatprep.subr.bf16.mxu0 0
        %1624 = vmatpush1.bf16.msra.mxu0 %v1607
        %1625 = vmatprep.subr.bf16.mxu0 0
        %1626 = vmatpush1.bf16.msra.mxu0 %v1608
        %1627 = vmatprep.subr.bf16.mxu0 0
        %1628 = vmatpush1.bf16.msra.mxu0 %v1609
        %1629 = vmatprep.subr.bf16.mxu0 0
        %1630 = vmatpush1.bf16.msra.mxu0 %v1610
        %1631 = vmatprep.subr.bf16.mxu0 0
        %1632 = vmatpush1.bf16.msra.mxu0 %v1611
        %1633 = vmatprep.subr.bf16.mxu0 0
        %1634 = vmatpush1.bf16.msra.mxu0 %v1612
        %1635 = vmatprep.subr.bf16.mxu0 0
        %1636 = vmatpush1.bf16.msra.mxu0 %v1613
        %1637 = vmatprep.subr.bf16.mxu0 0
        %1638 = vmatpush1.bf16.msra.mxu0 %v1614
        %1639 = vmatprep.subr.bf16.mxu0 0
        %1640 = vmatpush1.bf16.msra.mxu0 0
        %1641 = vmatprep.subr.bf16.mxu0 0
        %1642 = vmatpush1.bf16.msra.mxu0 0
        %1643 = vmatprep.subr.bf16.mxu0 0
        %1644 = vmatpush1.bf16.msra.mxu0 0
        %1645 = vmatprep.subr.bf16.mxu0 0
        %1646 = vmatpush1.bf16.msra.mxu0 0
        %1647 = vmatprep.subr.bf16.mxu0 0
        %1648 = vmatpush1.bf16.msra.mxu0 0
        %1649 = vmatprep.subr.bf16.mxu0 0
        %1650 = vmatpush1.bf16.msra.mxu0 0
        %1651 = vmatprep.subr.bf16.mxu0 0
        %1652 = vmatpush1.bf16.msra.mxu0 0
        %1653 = vmatprep.subr.bf16.mxu0 0
        %1654 = vmatpush1.bf16.msra.mxu0 0
        %1655 = vmatprep.mubr.bf16.mxu0 0
        %1656 = vmatmul.mubr.bf16.gmra.mrb[0].mxu0 %v1548
        %v1657 = vpop.f32.mrb[0].mxu0
        %v1658 = vadd.f32 %v1573, %v1657
        %v1659 = vpop.f32.mrb[0].mxu0
        %v1660 = vpop.f32.mrb[0].mxu0
        %v1661 = vadd.f32 %v1573, %v1660
        %v1662 = vpop.f32.mrb[0].mxu0
        %1663 = vmatprep.mubr.bf16.mxu0 0
        %1664 = vmatmul.mubr.bf16.gmra.mrb[0].mxu0 %v1549
        %v1665 = vpop.f32.mrb[0].mxu0
        %v1666 = vadd.f32 %v1573, %v1665
        %v1667 = vpop.f32.mrb[0].mxu0
        %v1668 = vpop.f32.mrb[0].mxu0
        %v1669 = vadd.f32 %v1573, %v1668
        %v1670 = vpop.f32.mrb[0].mxu0
        %1671 = vmatprep.mubr.bf16.mxu0 0
        %1672 = vmatmul.mubr.bf16.gmra.mrb[0].mxu0 %v1550
        %v1673 = vpop.f32.mrb[0].mxu0
        %v1674 = vadd.f32 %v1573, %v1673
        %v1675 = vpop.f32.mrb[0].mxu0
        %v1676 = vpop.f32.mrb[0].mxu0
        %v1677 = vadd.f32 %v1573, %v1676
        %v1678 = vpop.f32.mrb[0].mxu0
        %1679 = vmatprep.mubr.bf16.mxu0 0
        %1680 = vmatmul.mubr.bf16.gmra.mrb[0].mxu0 %v1551
        %v1681 = vpop.f32.mrb[0].mxu0
        %v1682 = vadd.f32 %v1573, %v1681
        %v1683 = vpop.f32.mrb[0].mxu0
        %v1684 = vpop.f32.mrb[0].mxu0
        %v1685 = vadd.f32 %v1573, %v1684
        %v1686 = vpop.f32.mrb[0].mxu0
        %1687 = vdwg.mxu0
        %v1688 = vpack.c.bf16 %v1661, %v1658
        %v1689 = vpack.c.bf16 %v1669, %v1666
        %v1690 = vpack.c.bf16 %v1677, %v1674
        %v1691 = vpack.c.bf16 %v1685, %v1682
        %v1692 = vld [vmem:[%s9] sm:$0xf]
        %v1693 = vld [vmem:[%s9 + $0x4] sm:$0xf]
        %v1694 = vld [vmem:[%s9 + $0x8] sm:$0xf]
        %v1695 = vld [vmem:[%s9 + $0xc] sm:$0xf]
        %v1696 = vld [vmem:[%s9 + $0x10] sm:$0xf]
        %v1697 = vld [vmem:[%s9 + $0x14] sm:$0xf]
        %v1698 = vld [vmem:[%s9 + $0x18] sm:$0xf]
        %v1699 = vld [vmem:[%s9 + $0x1c] sm:$0xf]
        %v1700 = vld [vmem:[%s9 + $0x20] sm:$0xf]
        %v1701 = vld [vmem:[%s9 + $0x24] sm:$0xf]
        %v1702 = vld [vmem:[%s9 + $0x28] sm:$0xf]
        %v1703 = vld [vmem:[%s9 + $0x2c] sm:$0xf]
        %v1704 = vld [vmem:[%s9 + $0x30] sm:$0xf]
        %v1705 = vld [vmem:[%s9 + $0x34] sm:$0xf]
        %v1706 = vld [vmem:[%s9 + $0x38] sm:$0xf]
        %v1707 = vld [vmem:[%s9 + $0x3c] sm:$0xf]
        %v1708 = vld [vmem:[%s10] sm:$0x1]
        %v1710 = vlaneseq
        %v1711 = vshrl.u32 %v1710, 7
        %v1712 = vsub.s32 0, %v1711
        %v1713 = vrot.slane %v1708, %v1712
        %v1731 = vunpack.c.l.b16 %v1692
        %v1732 = vunpack.c.l.b16 %v1693
        %v1733 = vunpack.c.l.b16 %v1694
        %v1734 = vunpack.c.l.b16 %v1695
        %v1735 = vunpack.c.l.b16 %v1696
        %v1736 = vunpack.c.l.b16 %v1697
        %v1737 = vunpack.c.l.b16 %v1698
        %v1738 = vunpack.c.l.b16 %v1699
        %v1739 = vunpack.c.l.b16 %v1700
        %v1740 = vunpack.c.l.b16 %v1701
        %v1741 = vunpack.c.l.b16 %v1702
        %v1742 = vunpack.c.l.b16 %v1703
        %v1743 = vunpack.c.l.b16 %v1704
        %v1744 = vunpack.c.l.b16 %v1705
        %v1745 = vunpack.c.l.b16 %v1706
        %v1746 = vunpack.c.l.b16 %v1707
        %v1747 = vpack.c.b16 %v1732, %v1731
        %v1748 = vpack.c.b16 %v1734, %v1733
        %v1749 = vpack.c.b16 %v1736, %v1735
        %v1750 = vpack.c.b16 %v1738, %v1737
        %v1751 = vpack.c.b16 %v1740, %v1739
        %v1752 = vpack.c.b16 %v1742, %v1741
        %v1753 = vpack.c.b16 %v1744, %v1743
        %v1754 = vpack.c.b16 %v1746, %v1745
        %1763 = vmatprep.subr.bf16.mxu0 0
        %1764 = vmatpush1.bf16.msra.mxu0 %v1747
        %1765 = vmatprep.subr.bf16.mxu0 0
        %1766 = vmatpush1.bf16.msra.mxu0 %v1748
        %1767 = vmatprep.subr.bf16.mxu0 0
        %1768 = vmatpush1.bf16.msra.mxu0 %v1749
        %1769 = vmatprep.subr.bf16.mxu0 0
        %1770 = vmatpush1.bf16.msra.mxu0 %v1750
        %1771 = vmatprep.subr.bf16.mxu0 0
        %1772 = vmatpush1.bf16.msra.mxu0 %v1751
        %1773 = vmatprep.subr.bf16.mxu0 0
        %1774 = vmatpush1.bf16.msra.mxu0 %v1752
        %1775 = vmatprep.subr.bf16.mxu0 0
        %1776 = vmatpush1.bf16.msra.mxu0 %v1753
        %1777 = vmatprep.subr.bf16.mxu0 0
        %1778 = vmatpush1.bf16.msra.mxu0 %v1754
        %1779 = vmatprep.subr.bf16.mxu0 0
        %1780 = vmatpush1.bf16.msra.mxu0 0
        %1781 = vmatprep.subr.bf16.mxu0 0
        %1782 = vmatpush1.bf16.msra.mxu0 0
        %1783 = vmatprep.subr.bf16.mxu0 0
        %1784 = vmatpush1.bf16.msra.mxu0 0
        %1785 = vmatprep.subr.bf16.mxu0 0
        %1786 = vmatpush1.bf16.msra.mxu0 0
        %1787 = vmatprep.subr.bf16.mxu0 0
        %1788 = vmatpush1.bf16.msra.mxu0 0
        %1789 = vmatprep.subr.bf16.mxu0 0
        %1790 = vmatpush1.bf16.msra.mxu0 0
        %1791 = vmatprep.subr.bf16.mxu0 0
        %1792 = vmatpush1.bf16.msra.mxu0 0
        %1793 = vmatprep.subr.bf16.mxu0 0
        %1794 = vmatpush1.bf16.msra.mxu0 0
        %1795 = vmatprep.mubr.bf16.mxu0 0
        %1796 = vmatmul.mubr.bf16.gmra.mrb[0].mxu0 %v1688
        %v1797 = vpop.f32.mrb[0].mxu0
        %v1798 = vadd.f32 %v1713, %v1797
        %v1799 = vpop.f32.mrb[0].mxu0
        %v1800 = vpop.f32.mrb[0].mxu0
        %v1801 = vadd.f32 %v1713, %v1800
        %v1802 = vpop.f32.mrb[0].mxu0
        %1803 = vmatprep.mubr.bf16.mxu0 0
        %1804 = vmatmul.mubr.bf16.gmra.mrb[0].mxu0 %v1689
        %v1805 = vpop.f32.mrb[0].mxu0
        %v1806 = vadd.f32 %v1713, %v1805
        %v1807 = vpop.f32.mrb[0].mxu0
        %v1808 = vpop.f32.mrb[0].mxu0
        %v1809 = vadd.f32 %v1713, %v1808
        %v1810 = vpop.f32.mrb[0].mxu0
        %1811 = vmatprep.mubr.bf16.mxu0 0
        %1812 = vmatmul.mubr.bf16.gmra.mrb[0].mxu0 %v1690
        %v1813 = vpop.f32.mrb[0].mxu0
        %v1814 = vadd.f32 %v1713, %v1813
        %v1815 = vpop.f32.mrb[0].mxu0
        %v1816 = vpop.f32.mrb[0].mxu0
        %v1817 = vadd.f32 %v1713, %v1816
        %v1818 = vpop.f32.mrb[0].mxu0
        %1819 = vmatprep.mubr.bf16.mxu0 0
        %1820 = vmatmul.mubr.bf16.gmra.mrb[0].mxu0 %v1691
        %v1821 = vpop.f32.mrb[0].mxu0
        %v1822 = vadd.f32 %v1713, %v1821
        %v1823 = vpop.f32.mrb[0].mxu0
        %v1824 = vpop.f32.mrb[0].mxu0
        %v1825 = vadd.f32 %v1713, %v1824
        %v1826 = vpop.f32.mrb[0].mxu0
        %1827 = vdwg.mxu0
        %v1828 = vxor.u32 %v1798, 2147483648
        %v1829 = vxor.u32 %v1801, 2147483648
        %v1830 = vxor.u32 %v1806, 2147483648
        %v1831 = vxor.u32 %v1809, 2147483648
        %v1832 = vxor.u32 %v1814, 2147483648
        %v1833 = vxor.u32 %v1817, 2147483648
        %v1834 = vxor.u32 %v1822, 2147483648
        %v1835 = vxor.u32 %v1825, 2147483648
        %v1836 = vmul.f32 %v1828, 1.442695
        %v1837 = vpow.pop %v1836
        %v1838 = vmul.f32 %v1829, 1.442695
        %v1839 = vpow.pop %v1838
        %v1840 = vmul.f32 %v1830, 1.442695
        %v1841 = vpow.pop %v1840
        %v1842 = vmul.f32 %v1831, 1.442695
        %v1843 = vpow.pop %v1842
        %v1844 = vmul.f32 %v1832, 1.442695
        %v1845 = vpow.pop %v1844
        %v1846 = vmul.f32 %v1833, 1.442695
        %v1847 = vpow.pop %v1846
        %v1848 = vmul.f32 %v1834, 1.442695
        %v1849 = vpow.pop %v1848
        %v1850 = vmul.f32 %v1835, 1.442695
        %v1851 = vpow.pop %v1850
        %v1852 = vadd.f32 %v1837, 1.0
        %v1853 = vadd.f32 %v1839, 1.0
        %v1854 = vadd.f32 %v1841, 1.0
        %v1855 = vadd.f32 %v1843, 1.0
        %v1856 = vadd.f32 %v1845, 1.0
        %v1857 = vadd.f32 %v1847, 1.0
        %v1858 = vadd.f32 %v1849, 1.0
        %v1859 = vadd.f32 %v1851, 1.0
        %v1860 = vrcp.pop %v1852
        %v1861 = vmul.f32 1.0, %v1860
        %v1862 = vrcp.pop %v1853
        %v1863 = vmul.f32 1.0, %v1862
        %v1864 = vrcp.pop %v1854
        %v1865 = vmul.f32 1.0, %v1864
        %v1866 = vrcp.pop %v1855
        %v1867 = vmul.f32 1.0, %v1866
        %v1868 = vrcp.pop %v1856
        %v1869 = vmul.f32 1.0, %v1868
        %v1870 = vrcp.pop %v1857
        %v1871 = vmul.f32 1.0, %v1870
        %v1872 = vrcp.pop %v1858
        %v1873 = vmul.f32 1.0, %v1872
        %v1874 = vrcp.pop %v1859
        %v1875 = vmul.f32 1.0, %v1874
        %v1876 = vmul.f32 %v1798, %v1861
        %v1877 = vmul.f32 %v1801, %v1863
        %v1878 = vmul.f32 %v1806, %v1865
        %v1879 = vmul.f32 %v1809, %v1867
        %v1880 = vmul.f32 %v1814, %v1869
        %v1881 = vmul.f32 %v1817, %v1871
        %v1882 = vmul.f32 %v1822, %v1873
        %v1883 = vmul.f32 %v1825, %v1875
        %v1884 = vld [vmem:[%s11] sm:$0x1]
        %v1885 = vld [vmem:[%s11 + $0x1] sm:$0x1]
        %v1886 = vld [vmem:[%s11 + $0x2] sm:$0x1]
        %v1887 = vld [vmem:[%s11 + $0x3] sm:$0x1]
        %v1888 = vld [vmem:[%s11 + $0x4] sm:$0x1]
        %v1889 = vld [vmem:[%s11 + $0x5] sm:$0x1]
        %v1890 = vld [vmem:[%s11 + $0x6] sm:$0x1]
        %v1891 = vld [vmem:[%s11 + $0x7] sm:$0x1]
        %v1892 = vld [vmem:[%s11 + $0x8] sm:$0x1]
        %v1893 = vld [vmem:[%s12] sm:$0x1]
        %1894 = vst [vmem:[#allocation2] sm:$0xff] 0.0
        %1895 = vst [vmem:[#allocation2 + $0x8] sm:$0xff] 0.0
        %1896 = vst [vmem:[#allocation2 + $0x10] sm:$0xff] 0.0
        %s1897 = scalar_lea.vmem [#allocation2], 216
        %1898 = vst [vmem:[%s1897] sm:$0xff] 0.0
        %1899 = vst [vmem:[%s1897 + $0x8] sm:$0xff] 0.0
        %1900 = vst [vmem:[%s1897 + $0x10] sm:$0xff] 0.0
        %s1901 = scalar_lea.vmem [#allocation2], 24
        %1902 = vst [vmem:[%s1901 + $0x7] sm:$0x1] 0.0
        %1903 = vst [vmem:[%s1901 + $0x1f] sm:$0x1] 0.0
        %1904 = vst [vmem:[%s1901 + $0x37] sm:$0x1] 0.0
        %1905 = vst [vmem:[%s1901 + $0x4f] sm:$0x1] 0.0
        %1906 = vst [vmem:[%s1901 + $0x67] sm:$0x1] 0.0
        %1907 = vst [vmem:[%s1901 + $0x7f] sm:$0x1] 0.0
        %1908 = vst [vmem:[%s1901 + $0x97] sm:$0x1] 0.0
        %1909 = vst [vmem:[%s1901 + $0xaf] sm:$0x1] 0.0
        %1910 = vst [vmem:[%s1901 + $0x10] sm:$0x1] 0.0
        %1911 = vst [vmem:[%s1901 + $0x28] sm:$0x1] 0.0
        %1912 = vst [vmem:[%s1901 + $0x40] sm:$0x1] 0.0
        %1913 = vst [vmem:[%s1901 + $0x58] sm:$0x1] 0.0
        %1914 = vst [vmem:[%s1901 + $0x70] sm:$0x1] 0.0
        %1915 = vst [vmem:[%s1901 + $0x88] sm:$0x1] 0.0
        %1916 = vst [vmem:[%s1901 + $0xa0] sm:$0x1] 0.0
        %1917 = vst [vmem:[%s1901 + $0xb8] sm:$0x1] 0.0
        %1918 = vst [vmem:[%s1901 + $0x8] sm:$0xff] %v1876
        %1919 = vst [vmem:[%s1901 + $0x20] sm:$0xff] %v1877
        %1920 = vst [vmem:[%s1901 + $0x38] sm:$0xff] %v1878
        %1921 = vst [vmem:[%s1901 + $0x50] sm:$0xff] %v1879
        %1922 = vst [vmem:[%s1901 + $0x68] sm:$0xff] %v1880
        %1923 = vst [vmem:[%s1901 + $0x80] sm:$0xff] %v1881
        %1924 = vst [vmem:[%s1901 + $0x98] sm:$0xff] %v1882
        %1925 = vst [vmem:[%s1901 + $0xb0] sm:$0xff] %v1883
        %v1926 = vld [vmem:[#allocation2 + $0x7] sm:$0xff]
        %v1927 = vld [vmem:[#allocation2 + $0x1f] sm:$0xff]
        %v1928 = vld [vmem:[#allocation2 + $0x37] sm:$0xff]
        %v1929 = vld [vmem:[#allocation2 + $0x4f] sm:$0xff]
        %v1930 = vld [vmem:[#allocation2 + $0x67] sm:$0xff]
        %v1931 = vld [vmem:[#allocation2 + $0x7f] sm:$0xff]
        %v1932 = vld [vmem:[#allocation2 + $0x97] sm:$0xff]
        %v1933 = vld [vmem:[#allocation2 + $0xaf] sm:$0xff]
        %v1934 = vld [vmem:[#allocation2 + $0xc7] sm:$0xff]
        %v1935 = vld [vmem:[#allocation2 + $0xdf] sm:$0xff]
        %v1937 = vlaneseq
        %v1938 = vshrl.u32 %v1937, 7
        %v1939 = vsub.s32 0, %v1938
        %v1940 = vrot.slane %v1884, %v1939
        %v1942 = vmul.f32 %v1926, %v1940
        %v1943 = vmul.f32 %v1927, %v1940
        %v1944 = vmul.f32 %v1928, %v1940
        %v1945 = vmul.f32 %v1929, %v1940
        %v1946 = vmul.f32 %v1930, %v1940
        %v1947 = vmul.f32 %v1931, %v1940
        %v1948 = vmul.f32 %v1932, %v1940
        %v1949 = vmul.f32 %v1933, %v1940
        %v1951 = vlaneseq
        %v1952 = vshrl.u32 %v1951, 7
        %v1953 = vsub.s32 0, %v1952
        %v1954 = vrot.slane %v1887, %v1953
        %v1956 = vmul.f32 %v1927, %v1954
        %v1957 = vmul.f32 %v1928, %v1954
        %v1958 = vmul.f32 %v1929, %v1954
        %v1959 = vmul.f32 %v1930, %v1954
        %v1960 = vmul.f32 %v1931, %v1954
        %v1961 = vmul.f32 %v1932, %v1954
        %v1962 = vmul.f32 %v1933, %v1954
        %v1963 = vmul.f32 %v1934, %v1954
        %v1964 = vadd.f32 %v1942, %v1956
        %v1965 = vadd.f32 %v1943, %v1957
        %v1966 = vadd.f32 %v1944, %v1958
        %v1967 = vadd.f32 %v1945, %v1959
        %v1968 = vadd.f32 %v1946, %v1960
        %v1969 = vadd.f32 %v1947, %v1961
        %v1970 = vadd.f32 %v1948, %v1962
        %v1971 = vadd.f32 %v1949, %v1963
        %v1973 = vlaneseq
        %v1974 = vshrl.u32 %v1973, 7
        %v1975 = vsub.s32 0, %v1974
        %v1976 = vrot.slane %v1890, %v1975
        %v1978 = vmul.f32 %v1928, %v1976
        %v1979 = vmul.f32 %v1929, %v1976
        %v1980 = vmul.f32 %v1930, %v1976
        %v1981 = vmul.f32 %v1931, %v1976
        %v1982 = vmul.f32 %v1932, %v1976
        %v1983 = vmul.f32 %v1933, %v1976
        %v1984 = vmul.f32 %v1934, %v1976
        %v1985 = vmul.f32 %v1935, %v1976
        %v1986 = vadd.f32 %v1964, %v1978
        %v1987 = vadd.f32 %v1965, %v1979
        %v1988 = vadd.f32 %v1966, %v1980
        %v1989 = vadd.f32 %v1967, %v1981
        %v1990 = vadd.f32 %v1968, %v1982
        %v1991 = vadd.f32 %v1969, %v1983
        %v1992 = vadd.f32 %v1970, %v1984
        %v1993 = vadd.f32 %v1971, %v1985
        %v1994 = vld [vmem:[#allocation2 + $0x8] sm:$0xff]
        %v1995 = vld [vmem:[#allocation2 + $0x20] sm:$0xff]
        %v1996 = vld [vmem:[#allocation2 + $0x38] sm:$0xff]
        %v1997 = vld [vmem:[#allocation2 + $0x50] sm:$0xff]
        %v1998 = vld [vmem:[#allocation2 + $0x68] sm:$0xff]
        %v1999 = vld [vmem:[#allocation2 + $0x80] sm:$0xff]
        %v2000 = vld [vmem:[#allocation2 + $0x98] sm:$0xff]
        %v2001 = vld [vmem:[#allocation2 + $0xb0] sm:$0xff]
        %v2002 = vld [vmem:[#allocation2 + $0xc8] sm:$0xff]
        %v2003 = vld [vmem:[#allocation2 + $0xe0] sm:$0xff]
        %v2005 = vlaneseq
        %v2006 = vshrl.u32 %v2005, 7
        %v2007 = vsub.s32 0, %v2006
        %v2008 = vrot.slane %v1885, %v2007
        %v2010 = vmul.f32 %v1994, %v2008
        %v2011 = vmul.f32 %v1995, %v2008
        %v2012 = vmul.f32 %v1996, %v2008
        %v2013 = vmul.f32 %v1997, %v2008
        %v2014 = vmul.f32 %v1998, %v2008
        %v2015 = vmul.f32 %v1999, %v2008
        %v2016 = vmul.f32 %v2000, %v2008
        %v2017 = vmul.f32 %v2001, %v2008
        %v2018 = vadd.f32 %v1986, %v2010
        %v2019 = vadd.f32 %v1987, %v2011
        %v2020 = vadd.f32 %v1988, %v2012
        %v2021 = vadd.f32 %v1989, %v2013
        %v2022 = vadd.f32 %v1990, %v2014
        %v2023 = vadd.f32 %v1991, %v2015
        %v2024 = vadd.f32 %v1992, %v2016
        %v2025 = vadd.f32 %v1993, %v2017
        %v2027 = vlaneseq
        %v2028 = vshrl.u32 %v2027, 7
        %v2029 = vsub.s32 0, %v2028
        %v2030 = vrot.slane %v1888, %v2029
        %v2032 = vmul.f32 %v1995, %v2030
        %v2033 = vmul.f32 %v1996, %v2030
        %v2034 = vmul.f32 %v1997, %v2030
        %v2035 = vmul.f32 %v1998, %v2030
        %v2036 = vmul.f32 %v1999, %v2030
        %v2037 = vmul.f32 %v2000, %v2030
        %v2038 = vmul.f32 %v2001, %v2030
        %v2039 = vmul.f32 %v2002, %v2030
        %v2040 = vadd.f32 %v2018, %v2032
        %v2041 = vadd.f32 %v2019, %v2033
        %v2042 = vadd.f32 %v2020, %v2034
        %v2043 = vadd.f32 %v2021, %v2035
        %v2044 = vadd.f32 %v2022, %v2036
        %v2045 = vadd.f32 %v2023, %v2037
        %v2046 = vadd.f32 %v2024, %v2038
        %v2047 = vadd.f32 %v2025, %v2039
        %v2049 = vlaneseq
        %v2050 = vshrl.u32 %v2049, 7
        %v2051 = vsub.s32 0, %v2050
        %v2052 = vrot.slane %v1891, %v2051
        %v2054 = vmul.f32 %v1996, %v2052
        %v2055 = vmul.f32 %v1997, %v2052
        %v2056 = vmul.f32 %v1998, %v2052
        %v2057 = vmul.f32 %v1999, %v2052
        %v2058 = vmul.f32 %v2000, %v2052
        %v2059 = vmul.f32 %v2001, %v2052
        %v2060 = vmul.f32 %v2002, %v2052
        %v2061 = vmul.f32 %v2003, %v2052
        %v2062 = vadd.f32 %v2040, %v2054
        %v2063 = vadd.f32 %v2041, %v2055
        %v2064 = vadd.f32 %v2042, %v2056
        %v2065 = vadd.f32 %v2043, %v2057
        %v2066 = vadd.f32 %v2044, %v2058
        %v2067 = vadd.f32 %v2045, %v2059
        %v2068 = vadd.f32 %v2046, %v2060
        %v2069 = vadd.f32 %v2047, %v2061
        %v2070 = vld [vmem:[#allocation2 + $0x9] sm:$0xff]
        %v2071 = vld [vmem:[#allocation2 + $0x21] sm:$0xff]
        %v2072 = vld [vmem:[#allocation2 + $0x39] sm:$0xff]
        %v2073 = vld [vmem:[#allocation2 + $0x51] sm:$0xff]
        %v2074 = vld [vmem:[#allocation2 + $0x69] sm:$0xff]
        %v2075 = vld [vmem:[#allocation2 + $0x81] sm:$0xff]
        %v2076 = vld [vmem:[#allocation2 + $0x99] sm:$0xff]
        %v2077 = vld [vmem:[#allocation2 + $0xb1] sm:$0xff]
        %v2078 = vld [vmem:[#allocation2 + $0xc9] sm:$0xff]
        %v2079 = vld [vmem:[#allocation2 + $0xe1] sm:$0xff]
        %v2081 = vlaneseq
        %v2082 = vshrl.u32 %v2081, 7
        %v2083 = vsub.s32 0, %v2082
        %v2084 = vrot.slane %v1886, %v2083
        %v2086 = vmul.f32 %v2070, %v2084
        %v2087 = vmul.f32 %v2071, %v2084
        %v2088 = vmul.f32 %v2072, %v2084
        %v2089 = vmul.f32 %v2073, %v2084
        %v2090 = vmul.f32 %v2074, %v2084
        %v2091 = vmul.f32 %v2075, %v2084
        %v2092 = vmul.f32 %v2076, %v2084
        %v2093 = vmul.f32 %v2077, %v2084
        %v2094 = vadd.f32 %v2062, %v2086
        %v2095 = vadd.f32 %v2063, %v2087
        %v2096 = vadd.f32 %v2064, %v2088
        %v2097 = vadd.f32 %v2065, %v2089
        %v2098 = vadd.f32 %v2066, %v2090
        %v2099 = vadd.f32 %v2067, %v2091
        %v2100 = vadd.f32 %v2068, %v2092
        %v2101 = vadd.f32 %v2069, %v2093
        %v2103 = vlaneseq
        %v2104 = vshrl.u32 %v2103, 7
        %v2105 = vsub.s32 0, %v2104
        %v2106 = vrot.slane %v1889, %v2105
        %v2108 = vmul.f32 %v2071, %v2106
        %v2109 = vmul.f32 %v2072, %v2106
        %v2110 = vmul.f32 %v2073, %v2106
        %v2111 = vmul.f32 %v2074, %v2106
        %v2112 = vmul.f32 %v2075, %v2106
        %v2113 = vmul.f32 %v2076, %v2106
        %v2114 = vmul.f32 %v2077, %v2106
        %v2115 = vmul.f32 %v2078, %v2106
        %v2116 = vadd.f32 %v2094, %v2108
        %v2117 = vadd.f32 %v2095, %v2109
        %v2118 = vadd.f32 %v2096, %v2110
        %v2119 = vadd.f32 %v2097, %v2111
        %v2120 = vadd.f32 %v2098, %v2112
        %v2121 = vadd.f32 %v2099, %v2113
        %v2122 = vadd.f32 %v2100, %v2114
        %v2123 = vadd.f32 %v2101, %v2115
        %v2125 = vlaneseq
        %v2126 = vshrl.u32 %v2125, 7
        %v2127 = vsub.s32 0, %v2126
        %v2128 = vrot.slane %v1892, %v2127
        %v2130 = vmul.f32 %v2072, %v2128
        %v2131 = vmul.f32 %v2073, %v2128
        %v2132 = vmul.f32 %v2074, %v2128
        %v2133 = vmul.f32 %v2075, %v2128
        %v2134 = vmul.f32 %v2076, %v2128
        %v2135 = vmul.f32 %v2077, %v2128
        %v2136 = vmul.f32 %v2078, %v2128
        %v2137 = vmul.f32 %v2079, %v2128
        %v2138 = vadd.f32 %v2116, %v2130
        %v2139 = vadd.f32 %v2117, %v2131
        %v2140 = vadd.f32 %v2118, %v2132
        %v2141 = vadd.f32 %v2119, %v2133
        %v2142 = vadd.f32 %v2120, %v2134
        %v2143 = vadd.f32 %v2121, %v2135
        %v2144 = vadd.f32 %v2122, %v2136
        %v2145 = vadd.f32 %v2123, %v2137
        %v2147 = vlaneseq
        %v2148 = vshrl.u32 %v2147, 7
        %v2149 = vsub.s32 0, %v2148
        %v2150 = vrot.slane %v1893, %v2149
        %v2152 = vadd.f32 %v2138, %v2150
        %v2153 = vadd.f32 %v2139, %v2150
        %v2154 = vadd.f32 %v2140, %v2150
        %v2155 = vadd.f32 %v2141, %v2150
        %v2156 = vadd.f32 %v2142, %v2150
        %v2157 = vadd.f32 %v2143, %v2150
        %v2158 = vadd.f32 %v2144, %v2150
        %v2159 = vadd.f32 %v2145, %v2150
        %v2160 = vxor.u32 %v2152, 2147483648
        %v2161 = vxor.u32 %v2153, 2147483648
        %v2162 = vxor.u32 %v2154, 2147483648
        %v2163 = vxor.u32 %v2155, 2147483648
        %v2164 = vxor.u32 %v2156, 2147483648
        %v2165 = vxor.u32 %v2157, 2147483648
        %v2166 = vxor.u32 %v2158, 2147483648
        %v2167 = vxor.u32 %v2159, 2147483648
        %v2168 = vmul.f32 %v2160, 1.442695
        %v2169 = vpow.pop %v2168
        %v2170 = vmul.f32 %v2161, 1.442695
        %v2171 = vpow.pop %v2170
        %v2172 = vmul.f32 %v2162, 1.442695
        %v2173 = vpow.pop %v2172
        %v2174 = vmul.f32 %v2163, 1.442695
        %v2175 = vpow.pop %v2174
        %v2176 = vmul.f32 %v2164, 1.442695
        %v2177 = vpow.pop %v2176
        %v2178 = vmul.f32 %v2165, 1.442695
        %v2179 = vpow.pop %v2178
        %v2180 = vmul.f32 %v2166, 1.442695
        %v2181 = vpow.pop %v2180
        %v2182 = vmul.f32 %v2167, 1.442695
        %v2183 = vpow.pop %v2182
        %v2184 = vadd.f32 %v2169, 1.0
        %v2185 = vadd.f32 %v2171, 1.0
        %v2186 = vadd.f32 %v2173, 1.0
        %v2187 = vadd.f32 %v2175, 1.0
        %v2188 = vadd.f32 %v2177, 1.0
        %v2189 = vadd.f32 %v2179, 1.0
        %v2190 = vadd.f32 %v2181, 1.0
        %v2191 = vadd.f32 %v2183, 1.0
        %v2192 = vrcp.pop %v2184
        %v2193 = vmul.f32 1.0, %v2192
        %v2194 = vrcp.pop %v2185
        %v2195 = vmul.f32 1.0, %v2194
        %v2196 = vrcp.pop %v2186
        %v2197 = vmul.f32 1.0, %v2196
        %v2198 = vrcp.pop %v2187
        %v2199 = vmul.f32 1.0, %v2198
        %v2200 = vrcp.pop %v2188
        %v2201 = vmul.f32 1.0, %v2200
        %v2202 = vrcp.pop %v2189
        %v2203 = vmul.f32 1.0, %v2202
        %v2204 = vrcp.pop %v2190
        %v2205 = vmul.f32 1.0, %v2204
        %v2206 = vrcp.pop %v2191
        %v2207 = vmul.f32 1.0, %v2206
        %v2208 = vmul.f32 %v2152, %v2193
        %v2209 = vmul.f32 %v2153, %v2195
        %v2210 = vmul.f32 %v2154, %v2197
        %v2211 = vmul.f32 %v2155, %v2199
        %v2212 = vmul.f32 %v2156, %v2201
        %v2213 = vmul.f32 %v2157, %v2203
        %v2214 = vmul.f32 %v2158, %v2205
        %v2215 = vmul.f32 %v2159, %v2207
        %v2216 = vadd.f32 %v2208, %v2209
        %v2217 = vadd.f32 %v2216, %v2210
        %v2218 = vadd.f32 %v2217, %v2211
        %v2219 = vadd.f32 %v2218, %v2212
        %v2220 = vadd.f32 %v2219, %v2213
        %v2221 = vadd.f32 %v2220, %v2214
        %v2222 = vadd.f32 %v2221, %v2215
        %v2223 = vrot.slane %v2222, 4
        %v2224 = vadd.f32 %v2222, %v2223
        %v2225 = vrot.slane %v2224, 2
        %v2226 = vadd.f32 %v2224, %v2225
        %v2227 = vrot.slane %v2226, 1
        %v2228 = vadd.f32 %v2226, %v2227
        %v2229 = vmul.f32 %v2228, 0.015625
        %v2230 = vpack.c.bf16 %v2229, %v2229
        %v2231 = vld [vmem:[%s13] sm:$0xf]
        %v2232 = vld [vmem:[%s13 + $0x4] sm:$0xf]
        %v2233 = vld [vmem:[%s13 + $0x8] sm:$0xf]
        %v2234 = vld [vmem:[%s13 + $0xc] sm:$0xf]
        %v2235 = vld [vmem:[%s13 + $0x10] sm:$0xf]
        %v2236 = vld [vmem:[%s13 + $0x14] sm:$0xf]
        %v2237 = vld [vmem:[%s13 + $0x18] sm:$0xf]
        %v2238 = vld [vmem:[%s13 + $0x1c] sm:$0xf]
        %v2239 = vld [vmem:[%s13 + $0x20] sm:$0xf]
        %v2240 = vld [vmem:[%s13 + $0x24] sm:$0xf]
        %v2241 = vld [vmem:[%s13 + $0x28] sm:$0xf]
        %v2242 = vld [vmem:[%s13 + $0x2c] sm:$0xf]
        %v2243 = vld [vmem:[%s13 + $0x30] sm:$0xf]
        %v2244 = vld [vmem:[%s13 + $0x34] sm:$0xf]
        %v2245 = vld [vmem:[%s13 + $0x38] sm:$0xf]
        %v2246 = vld [vmem:[%s13 + $0x3c] sm:$0xf]
        %v2247 = vld [vmem:[%s14] sm:$0x1]
        %v2264 = vunpack.c.l.b16 %v2231
        %v2265 = vunpack.c.l.b16 %v2232
        %v2266 = vunpack.c.l.b16 %v2233
        %v2267 = vunpack.c.l.b16 %v2234
        %v2268 = vunpack.c.l.b16 %v2235
        %v2269 = vunpack.c.l.b16 %v2236
        %v2270 = vunpack.c.l.b16 %v2237
        %v2271 = vunpack.c.l.b16 %v2238
        %v2272 = vunpack.c.l.b16 %v2239
        %v2273 = vunpack.c.l.b16 %v2240
        %v2274 = vunpack.c.l.b16 %v2241
        %v2275 = vunpack.c.l.b16 %v2242
        %v2276 = vunpack.c.l.b16 %v2243
        %v2277 = vunpack.c.l.b16 %v2244
        %v2278 = vunpack.c.l.b16 %v2245
        %v2279 = vunpack.c.l.b16 %v2246
        %v2280 = vpack.c.b16 %v2265, %v2264
        %v2281 = vpack.c.b16 %v2267, %v2266
        %v2282 = vpack.c.b16 %v2269, %v2268
        %v2283 = vpack.c.b16 %v2271, %v2270
        %v2284 = vpack.c.b16 %v2273, %v2272
        %v2285 = vpack.c.b16 %v2275, %v2274
        %v2286 = vpack.c.b16 %v2277, %v2276
        %v2287 = vpack.c.b16 %v2279, %v2278
        %2296 = vmatprep.subr.bf16.mxu0 0
        %2297 = vmatpush1.bf16.msra.mxu0 %v2280
        %2298 = vmatprep.subr.bf16.mxu0 0
        %2299 = vmatpush1.bf16.msra.mxu0 %v2281
        %2300 = vmatprep.subr.bf16.mxu0 0
        %2301 = vmatpush1.bf16.msra.mxu0 %v2282
        %2302 = vmatprep.subr.bf16.mxu0 0
        %2303 = vmatpush1.bf16.msra.mxu0 %v2283
        %2304 = vmatprep.subr.bf16.mxu0 0
        %2305 = vmatpush1.bf16.msra.mxu0 %v2284
        %2306 = vmatprep.subr.bf16.mxu0 0
        %2307 = vmatpush1.bf16.msra.mxu0 %v2285
        %2308 = vmatprep.subr.bf16.mxu0 0
        %2309 = vmatpush1.bf16.msra.mxu0 %v2286
        %2310 = vmatprep.subr.bf16.mxu0 0
        %2311 = vmatpush1.bf16.msra.mxu0 %v2287
        %2312 = vmatprep.subr.bf16.mxu0 0
        %2313 = vmatpush1.bf16.msra.mxu0 0
        %2314 = vmatprep.subr.bf16.mxu0 0
        %2315 = vmatpush1.bf16.msra.mxu0 0
        %2316 = vmatprep.subr.bf16.mxu0 0
        %2317 = vmatpush1.bf16.msra.mxu0 0
        %2318 = vmatprep.subr.bf16.mxu0 0
        %2319 = vmatpush1.bf16.msra.mxu0 0
        %2320 = vmatprep.subr.bf16.mxu0 0
        %2321 = vmatpush1.bf16.msra.mxu0 0
        %2322 = vmatprep.subr.bf16.mxu0 0
        %2323 = vmatpush1.bf16.msra.mxu0 0
        %2324 = vmatprep.subr.bf16.mxu0 0
        %2325 = vmatpush1.bf16.msra.mxu0 0
        %2326 = vmatprep.subr.bf16.mxu0 0
        %2327 = vmatpush1.bf16.msra.mxu0 0
        %2328 = vmatprep.mubr.bf16.mxu0 0
        %2329 = vmatmul.mubr.bf16.gmra.mrb[0].mxu0 %v2230
        %v2330 = vpop.f32.mrb[0].mxu0
        %v2331 = vadd.f32 %v2247, %v2330
        %v2332 = vpop.f32.mrb[0].mxu0
        %v2333 = vpop.f32.mrb[0].mxu0
        %v2334 = vpop.f32.mrb[0].mxu0
        %2335 = vdwg.mxu0
        %v2336 = vxor.u32 %v2331, 2147483648
        %v2337 = vmul.f32 %v2336, 1.442695
        %v2338 = vpow.pop %v2337
        %v2339 = vadd.f32 %v2338, 1.0
        %v2340 = vrcp.pop %v2339
        %v2341 = vmul.f32 1.0, %v2340
        %v2342 = vmul.f32 %v2331, %v2341
        %v2343 = vpack.c.bf16 %v2342, %v2342
        %v2344 = vld [vmem:[%s15] sm:$0xf]
        %v2345 = vld [vmem:[%s15 + $0x4] sm:$0xf]
        %v2346 = vld [vmem:[%s15 + $0x8] sm:$0xf]
        %v2347 = vld [vmem:[%s15 + $0xc] sm:$0xf]
        %v2348 = vld [vmem:[%s15 + $0x10] sm:$0xf]
        %v2349 = vld [vmem:[%s15 + $0x14] sm:$0xf]
        %v2350 = vld [vmem:[%s15 + $0x18] sm:$0xf]
        %v2351 = vld [vmem:[%s15 + $0x1c] sm:$0xf]
        %v2352 = vld [vmem:[%s15 + $0x20] sm:$0xf]
        %v2353 = vld [vmem:[%s15 + $0x24] sm:$0xf]
        %v2354 = vld [vmem:[%s15 + $0x28] sm:$0xf]
        %v2355 = vld [vmem:[%s15 + $0x2c] sm:$0xf]
        %v2356 = vld [vmem:[%s15 + $0x30] sm:$0xf]
        %v2357 = vld [vmem:[%s15 + $0x34] sm:$0xf]
        %v2358 = vld [vmem:[%s15 + $0x38] sm:$0xf]
        %v2359 = vld [vmem:[%s15 + $0x3c] sm:$0xf]
        %v2360 = vld [vmem:[%s16] sm:$0x1]
        %v2377 = vunpack.c.l.b16 %v2344
        %v2378 = vunpack.c.l.b16 %v2345
        %v2379 = vunpack.c.l.b16 %v2346
        %v2380 = vunpack.c.l.b16 %v2347
        %v2381 = vunpack.c.l.b16 %v2348
        %v2382 = vunpack.c.l.b16 %v2349
        %v2383 = vunpack.c.l.b16 %v2350
        %v2384 = vunpack.c.l.b16 %v2351
        %v2385 = vunpack.c.l.b16 %v2352
        %v2386 = vunpack.c.l.b16 %v2353
        %v2387 = vunpack.c.l.b16 %v2354
        %v2388 = vunpack.c.l.b16 %v2355
        %v2389 = vunpack.c.l.b16 %v2356
        %v2390 = vunpack.c.l.b16 %v2357
        %v2391 = vunpack.c.l.b16 %v2358
        %v2392 = vunpack.c.l.b16 %v2359
        %v2393 = vpack.c.b16 %v2378, %v2377
        %v2394 = vpack.c.b16 %v2380, %v2379
        %v2395 = vpack.c.b16 %v2382, %v2381
        %v2396 = vpack.c.b16 %v2384, %v2383
        %v2397 = vpack.c.b16 %v2386, %v2385
        %v2398 = vpack.c.b16 %v2388, %v2387
        %v2399 = vpack.c.b16 %v2390, %v2389
        %v2400 = vpack.c.b16 %v2392, %v2391
        %2409 = vmatprep.subr.bf16.mxu0 0
        %2410 = vmatpush1.bf16.msra.mxu0 %v2393
        %2411 = vmatprep.subr.bf16.mxu0 0
        %2412 = vmatpush1.bf16.msra.mxu0 %v2394
        %2413 = vmatprep.subr.bf16.mxu0 0
        %2414 = vmatpush1.bf16.msra.mxu0 %v2395
        %2415 = vmatprep.subr.bf16.mxu0 0
        %2416 = vmatpush1.bf16.msra.mxu0 %v2396
        %2417 = vmatprep.subr.bf16.mxu0 0
        %2418 = vmatpush1.bf16.msra.mxu0 %v2397
        %2419 = vmatprep.subr.bf16.mxu0 0
        %2420 = vmatpush1.bf16.msra.mxu0 %v2398
        %2421 = vmatprep.subr.bf16.mxu0 0
        %2422 = vmatpush1.bf16.msra.mxu0 %v2399
        %2423 = vmatprep.subr.bf16.mxu0 0
        %2424 = vmatpush1.bf16.msra.mxu0 %v2400
        %2425 = vmatprep.subr.bf16.mxu0 0
        %2426 = vmatpush1.bf16.msra.mxu0 0
        %2427 = vmatprep.subr.bf16.mxu0 0
        %2428 = vmatpush1.bf16.msra.mxu0 0
        %2429 = vmatprep.subr.bf16.mxu0 0
        %2430 = vmatpush1.bf16.msra.mxu0 0
        %2431 = vmatprep.subr.bf16.mxu0 0
        %2432 = vmatpush1.bf16.msra.mxu0 0
        %2433 = vmatprep.subr.bf16.mxu0 0
        %2434 = vmatpush1.bf16.msra.mxu0 0
        %2435 = vmatprep.subr.bf16.mxu0 0
        %2436 = vmatpush1.bf16.msra.mxu0 0
        %2437 = vmatprep.subr.bf16.mxu0 0
        %2438 = vmatpush1.bf16.msra.mxu0 0
        %2439 = vmatprep.subr.bf16.mxu0 0
        %2440 = vmatpush1.bf16.msra.mxu0 0
        %2441 = vmatprep.mubr.bf16.mxu0 0
        %2442 = vmatmul.mubr.bf16.gmra.mrb[0].mxu0 %v2343
        %v2443 = vpop.f32.mrb[0].mxu0
        %v2444 = vadd.f32 %v2360, %v2443
        %v2445 = vpop.f32.mrb[0].mxu0
        %v2446 = vpop.f32.mrb[0].mxu0
        %v2447 = vpop.f32.mrb[0].mxu0
        %2448 = vdwg.mxu0
        %v2449 = vxor.u32 %v2444, 2147483648
        %v2450 = vmul.f32 %v2449, 1.442695
        %v2451 = vpow.pop %v2450
        %v2452 = vadd.f32 %v2451, 1.0
        %v2453 = vrcp.pop %v2452
        %v2454 = vmul.f32 1.0, %v2453
        %v2455 = vpack.c.bf16 %v2209, %v2208
        %v2456 = vpack.c.bf16 %v2211, %v2210
        %v2457 = vpack.c.bf16 %v2213, %v2212
        %v2458 = vpack.c.bf16 %v2215, %v2214
        %v2459 = vpack.c.bf16 %v2454, %v2454
        %v2461 = vpack.i.b16 %v2459, %v2459
        %v2463 = vlaneseq
        %v2464 = vshrl.u32 %v2463, 7
        %v2465 = vsub.s32 0, %v2464
        %v2466 = vrot.slane %v2461, %v2465
        %v2467 = vmul.bf16 %v2455, %v2466
        %v2468 = vmul.bf16 %v2456, %v2466
        %v2469 = vmul.bf16 %v2457, %v2466
        %v2470 = vmul.bf16 %v2458, %v2466
        %v2471 = vld [vmem:[%s17] sm:$0xf]
        %v2472 = vld [vmem:[%s17 + $0x4] sm:$0xf]
        %v2473 = vld [vmem:[%s17 + $0x8] sm:$0xf]
        %v2474 = vld [vmem:[%s17 + $0xc] sm:$0xf]
        %v2475 = vld [vmem:[%s17 + $0x10] sm:$0xf]
        %v2476 = vld [vmem:[%s17 + $0x14] sm:$0xf]
        %v2477 = vld [vmem:[%s17 + $0x18] sm:$0xf]
        %v2478 = vld [vmem:[%s17 + $0x1c] sm:$0xf]
        %v2479 = vld [vmem:[%s17 + $0x20] sm:$0xf]
        %v2480 = vld [vmem:[%s17 + $0x24] sm:$0xf]
        %v2481 = vld [vmem:[%s17 + $0x28] sm:$0xf]
        %v2482 = vld [vmem:[%s17 + $0x2c] sm:$0xf]
        %v2483 = vld [vmem:[%s17 + $0x30] sm:$0xf]
        %v2484 = vld [vmem:[%s17 + $0x34] sm:$0xf]
        %v2485 = vld [vmem:[%s17 + $0x38] sm:$0xf]
        %v2486 = vld [vmem:[%s17 + $0x3c] sm:$0xf]
        %v2487 = vld [vmem:[%s18] sm:$0x1]
        %v2489 = vlaneseq
        %v2490 = vshrl.u32 %v2489, 7
        %v2491 = vsub.s32 0, %v2490
        %v2492 = vrot.slane %v2487, %v2491
        %v2510 = vunpack.c.l.b16 %v2471
        %v2511 = vunpack.c.l.b16 %v2472
        %v2512 = vunpack.c.l.b16 %v2473
        %v2513 = vunpack.c.l.b16 %v2474
        %v2514 = vunpack.c.l.b16 %v2475
        %v2515 = vunpack.c.l.b16 %v2476
        %v2516 = vunpack.c.l.b16 %v2477
        %v2517 = vunpack.c.l.b16 %v2478
        %v2518 = vunpack.c.l.b16 %v2479
        %v2519 = vunpack.c.l.b16 %v2480
        %v2520 = vunpack.c.l.b16 %v2481
        %v2521 = vunpack.c.l.b16 %v2482
        %v2522 = vunpack.c.l.b16 %v2483
        %v2523 = vunpack.c.l.b16 %v2484
        %v2524 = vunpack.c.l.b16 %v2485
        %v2525 = vunpack.c.l.b16 %v2486
        %v2526 = vpack.c.b16 %v2511, %v2510
        %v2527 = vpack.c.b16 %v2513, %v2512
        %v2528 = vpack.c.b16 %v2515, %v2514
        %v2529 = vpack.c.b16 %v2517, %v2516
        %v2530 = vpack.c.b16 %v2519, %v2518
        %v2531 = vpack.c.b16 %v2521, %v2520
        %v2532 = vpack.c.b16 %v2523, %v2522
        %v2533 = vpack.c.b16 %v2525, %v2524
        %2542 = vmatprep.subr.bf16.mxu0 0
        %2543 = vmatpush1.bf16.msra.mxu0 %v2526
        %2544 = vmatprep.subr.bf16.mxu0 0
        %2545 = vmatpush1.bf16.msra.mxu0 %v2527
        %2546 = vmatprep.subr.bf16.mxu0 0
        %2547 = vmatpush1.bf16.msra.mxu0 %v2528
        %2548 = vmatprep.subr.bf16.mxu0 0
        %2549 = vmatpush1.bf16.msra.mxu0 %v2529
        %2550 = vmatprep.subr.bf16.mxu0 0
        %2551 = vmatpush1.bf16.msra.mxu0 %v2530
        %2552 = vmatprep.subr.bf16.mxu0 0
        %2553 = vmatpush1.bf16.msra.mxu0 %v2531
        %2554 = vmatprep.subr.bf16.mxu0 0
        %2555 = vmatpush1.bf16.msra.mxu0 %v2532
        %2556 = vmatprep.subr.bf16.mxu0 0
        %2557 = vmatpush1.bf16.msra.mxu0 %v2533
        %2558 = vmatprep.subr.bf16.mxu0 0
        %2559 = vmatpush1.bf16.msra.mxu0 0
        %2560 = vmatprep.subr.bf16.mxu0 0
        %2561 = vmatpush1.bf16.msra.mxu0 0
        %2562 = vmatprep.subr.bf16.mxu0 0
        %2563 = vmatpush1.bf16.msra.mxu0 0
        %2564 = vmatprep.subr.bf16.mxu0 0
        %2565 = vmatpush1.bf16.msra.mxu0 0
        %2566 = vmatprep.subr.bf16.mxu0 0
        %2567 = vmatpush1.bf16.msra.mxu0 0
        %2568 = vmatprep.subr.bf16.mxu0 0
        %2569 = vmatpush1.bf16.msra.mxu0 0
        %2570 = vmatprep.subr.bf16.mxu0 0
        %2571 = vmatpush1.bf16.msra.mxu0 0
        %2572 = vmatprep.subr.bf16.mxu0 0
        %2573 = vmatpush1.bf16.msra.mxu0 0
        %2574 = vmatprep.mubr.bf16.mxu0 0
        %2575 = vmatmul.mubr.bf16.gmra.mrb[0].mxu0 %v2467
        %v2576 = vpop.f32.mrb[0].mxu0
        %v2577 = vadd.f32 %v2492, %v2576
        %v2578 = vpop.f32.mrb[0].mxu0
        %v2579 = vpop.f32.mrb[0].mxu0
        %v2580 = vadd.f32 %v2492, %v2579
        %v2581 = vpop.f32.mrb[0].mxu0
        %2582 = vmatprep.mubr.bf16.mxu0 0
        %2583 = vmatmul.mubr.bf16.gmra.mrb[0].mxu0 %v2468
        %v2584 = vpop.f32.mrb[0].mxu0
        %v2585 = vadd.f32 %v2492, %v2584
        %v2586 = vpop.f32.mrb[0].mxu0
        %v2587 = vpop.f32.mrb[0].mxu0
        %v2588 = vadd.f32 %v2492, %v2587
        %v2589 = vpop.f32.mrb[0].mxu0
        %2590 = vmatprep.mubr.bf16.mxu0 0
        %2591 = vmatmul.mubr.bf16.gmra.mrb[0].mxu0 %v2469
        %v2592 = vpop.f32.mrb[0].mxu0
        %v2593 = vadd.f32 %v2492, %v2592
        %v2594 = vpop.f32.mrb[0].mxu0
        %v2595 = vpop.f32.mrb[0].mxu0
        %v2596 = vadd.f32 %v2492, %v2595
        %v2597 = vpop.f32.mrb[0].mxu0
        %2598 = vmatprep.mubr.bf16.mxu0 0
        %2599 = vmatmul.mubr.bf16.gmra.mrb[0].mxu0 %v2470
        %v2600 = vpop.f32.mrb[0].mxu0
        %v2601 = vadd.f32 %v2492, %v2600
        %v2602 = vpop.f32.mrb[0].mxu0
        %v2603 = vpop.f32.mrb[0].mxu0
        %v2604 = vadd.f32 %v2492, %v2603
        %v2605 = vpop.f32.mrb[0].mxu0
        %2606 = vdwg.mxu0
        %v2607 = vadd.f32 %v2577, %v1658
        %v2608 = vadd.f32 %v2580, %v1661
        %v2609 = vadd.f32 %v2585, %v1666
        %v2610 = vadd.f32 %v2588, %v1669
        %v2611 = vadd.f32 %v2593, %v1674
        %v2612 = vadd.f32 %v2596, %v1677
        %v2613 = vadd.f32 %v2601, %v1682
        %v2614 = vadd.f32 %v2604, %v1685
        %v2615 = vpack.c.bf16 %v2608, %v2607
        %v2616 = vpack.c.bf16 %v2610, %v2609
        %v2617 = vpack.c.bf16 %v2612, %v2611
        %v2618 = vpack.c.bf16 %v2614, %v2613
        %v2619 = vld [vmem:[%s19] sm:$0xf]
        %v2620 = vld [vmem:[%s19 + $0x4] sm:$0xf]
        %v2621 = vld [vmem:[%s19 + $0x8] sm:$0xf]
        %v2622 = vld [vmem:[%s19 + $0xc] sm:$0xf]
        %v2623 = vld [vmem:[%s19 + $0x10] sm:$0xf]
        %v2624 = vld [vmem:[%s19 + $0x14] sm:$0xf]
        %v2625 = vld [vmem:[%s19 + $0x18] sm:$0xf]
        %v2626 = vld [vmem:[%s19 + $0x1c] sm:$0xf]
        %v2627 = vld [vmem:[%s19 + $0x20] sm:$0xf]
        %v2628 = vld [vmem:[%s19 + $0x24] sm:$0xf]
        %v2629 = vld [vmem:[%s19 + $0x28] sm:$0xf]
        %v2630 = vld [vmem:[%s19 + $0x2c] sm:$0xf]
        %v2631 = vld [vmem:[%s19 + $0x30] sm:$0xf]
        %v2632 = vld [vmem:[%s19 + $0x34] sm:$0xf]
        %v2633 = vld [vmem:[%s19 + $0x38] sm:$0xf]
        %v2634 = vld [vmem:[%s19 + $0x3c] sm:$0xf]
        %v2635 = vld [vmem:[%s20] sm:$0x1]
        %v2637 = vlaneseq
        %v2638 = vshrl.u32 %v2637, 7
        %v2639 = vsub.s32 0, %v2638
        %v2640 = vrot.slane %v2635, %v2639
        %v2658 = vunpack.c.l.b16 %v2619
        %v2659 = vunpack.c.l.b16 %v2620
        %v2660 = vunpack.c.l.b16 %v2621
        %v2661 = vunpack.c.l.b16 %v2622
        %v2662 = vunpack.c.l.b16 %v2623
        %v2663 = vunpack.c.l.b16 %v2624
        %v2664 = vunpack.c.l.b16 %v2625
        %v2665 = vunpack.c.l.b16 %v2626
        %v2666 = vunpack.c.l.b16 %v2627
        %v2667 = vunpack.c.l.b16 %v2628
        %v2668 = vunpack.c.l.b16 %v2629
        %v2669 = vunpack.c.l.b16 %v2630
        %v2670 = vunpack.c.l.b16 %v2631
        %v2671 = vunpack.c.l.b16 %v2632
        %v2672 = vunpack.c.l.b16 %v2633
        %v2673 = vunpack.c.l.b16 %v2634
        %v2674 = vpack.c.b16 %v2659, %v2658
        %v2675 = vpack.c.b16 %v2661, %v2660
        %v2676 = vpack.c.b16 %v2663, %v2662
        %v2677 = vpack.c.b16 %v2665, %v2664
        %v2678 = vpack.c.b16 %v2667, %v2666
        %v2679 = vpack.c.b16 %v2669, %v2668
        %v2680 = vpack.c.b16 %v2671, %v2670
        %v2681 = vpack.c.b16 %v2673, %v2672
        %2690 = vmatprep.subr.bf16.mxu0 0
        %2691 = vmatpush1.bf16.msra.mxu0 %v2674
        %2692 = vmatprep.subr.bf16.mxu0 0
        %2693 = vmatpush1.bf16.msra.mxu0 %v2675
        %2694 = vmatprep.subr.bf16.mxu0 0
        %2695 = vmatpush1.bf16.msra.mxu0 %v2676
        %2696 = vmatprep.subr.bf16.mxu0 0
        %2697 = vmatpush1.bf16.msra.mxu0 %v2677
        %2698 = vmatprep.subr.bf16.mxu0 0
        %2699 = vmatpush1.bf16.msra.mxu0 %v2678
        %2700 = vmatprep.subr.bf16.mxu0 0
        %2701 = vmatpush1.bf16.msra.mxu0 %v2679
        %2702 = vmatprep.subr.bf16.mxu0 0
        %2703 = vmatpush1.bf16.msra.mxu0 %v2680
        %2704 = vmatprep.subr.bf16.mxu0 0
        %2705 = vmatpush1.bf16.msra.mxu0 %v2681
        %2706 = vmatprep.subr.bf16.mxu0 0
        %2707 = vmatpush1.bf16.msra.mxu0 0
        %2708 = vmatprep.subr.bf16.mxu0 0
        %2709 = vmatpush1.bf16.msra.mxu0 0
        %2710 = vmatprep.subr.bf16.mxu0 0
        %2711 = vmatpush1.bf16.msra.mxu0 0
        %2712 = vmatprep.subr.bf16.mxu0 0
        %2713 = vmatpush1.bf16.msra.mxu0 0
        %2714 = vmatprep.subr.bf16.mxu0 0
        %2715 = vmatpush1.bf16.msra.mxu0 0
        %2716 = vmatprep.subr.bf16.mxu0 0
        %2717 = vmatpush1.bf16.msra.mxu0 0
        %2718 = vmatprep.subr.bf16.mxu0 0
        %2719 = vmatpush1.bf16.msra.mxu0 0
        %2720 = vmatprep.subr.bf16.mxu0 0
        %2721 = vmatpush1.bf16.msra.mxu0 0
        %2722 = vmatprep.mubr.bf16.mxu0 0
        %2723 = vmatmul.mubr.bf16.gmra.mrb[0].mxu0 %v2615
        %v2724 = vpop.f32.mrb[0].mxu0
        %v2725 = vadd.f32 %v2640, %v2724
        %v2726 = vpop.f32.mrb[0].mxu0
        %v2727 = vpop.f32.mrb[0].mxu0
        %v2728 = vadd.f32 %v2640, %v2727
        %v2729 = vpop.f32.mrb[0].mxu0
        %2730 = vmatprep.mubr.bf16.mxu0 0
        %2731 = vmatmul.mubr.bf16.gmra.mrb[0].mxu0 %v2616
        %v2732 = vpop.f32.mrb[0].mxu0
        %v2733 = vadd.f32 %v2640, %v2732
        %v2734 = vpop.f32.mrb[0].mxu0
        %v2735 = vpop.f32.mrb[0].mxu0
        %v2736 = vadd.f32 %v2640, %v2735
        %v2737 = vpop.f32.mrb[0].mxu0
        %2738 = vmatprep.mubr.bf16.mxu0 0
        %2739 = vmatmul.mubr.bf16.gmra.mrb[0].mxu0 %v2617
        %v2740 = vpop.f32.mrb[0].mxu0
        %v2741 = vadd.f32 %v2640, %v2740
        %v2742 = vpop.f32.mrb[0].mxu0
        %v2743 = vpop.f32.mrb[0].mxu0
        %v2744 = vadd.f32 %v2640, %v2743
        %v2745 = vpop.f32.mrb[0].mxu0
        %2746 = vmatprep.mubr.bf16.mxu0 0
        %2747 = vmatmul.mubr.bf16.gmra.mrb[0].mxu0 %v2618
        %v2748 = vpop.f32.mrb[0].mxu0
        %v2749 = vadd.f32 %v2640, %v2748
        %v2750 = vpop.f32.mrb[0].mxu0
        %v2751 = vpop.f32.mrb[0].mxu0
        %v2752 = vadd.f32 %v2640, %v2751
        %v2753 = vpop.f32.mrb[0].mxu0
        %2754 = vdwg.mxu0
        %v2755 = vxor.u32 %v2725, 2147483648
        %v2756 = vxor.u32 %v2728, 2147483648
        %v2757 = vxor.u32 %v2733, 2147483648
        %v2758 = vxor.u32 %v2736, 2147483648
        %v2759 = vxor.u32 %v2741, 2147483648
        %v2760 = vxor.u32 %v2744, 2147483648
        %v2761 = vxor.u32 %v2749, 2147483648
        %v2762 = vxor.u32 %v2752, 2147483648
        %v2763 = vmul.f32 %v2755, 1.442695
        %v2764 = vpow.pop %v2763
        %v2765 = vmul.f32 %v2756, 1.442695
        %v2766 = vpow.pop %v2765
        %v2767 = vmul.f32 %v2757, 1.442695
        %v2768 = vpow.pop %v2767
        %v2769 = vmul.f32 %v2758, 1.442695
        %v2770 = vpow.pop %v2769
        %v2771 = vmul.f32 %v2759, 1.442695
        %v2772 = vpow.pop %v2771
        %v2773 = vmul.f32 %v2760, 1.442695
        %v2774 = vpow.pop %v2773
        %v2775 = vmul.f32 %v2761, 1.442695
        %v2776 = vpow.pop %v2775
        %v2777 = vmul.f32 %v2762, 1.442695
        %v2778 = vpow.pop %v2777
        %v2779 = vadd.f32 %v2764, 1.0
        %v2780 = vadd.f32 %v2766, 1.0
        %v2781 = vadd.f32 %v2768, 1.0
        %v2782 = vadd.f32 %v2770, 1.0
        %v2783 = vadd.f32 %v2772, 1.0
        %v2784 = vadd.f32 %v2774, 1.0
        %v2785 = vadd.f32 %v2776, 1.0
        %v2786 = vadd.f32 %v2778, 1.0
        %v2787 = vrcp.pop %v2779
        %v2788 = vmul.f32 1.0, %v2787
        %v2789 = vrcp.pop %v2780
        %v2790 = vmul.f32 1.0, %v2789
        %v2791 = vrcp.pop %v2781
        %v2792 = vmul.f32 1.0, %v2791
        %v2793 = vrcp.pop %v2782
        %v2794 = vmul.f32 1.0, %v2793
        %v2795 = vrcp.pop %v2783
        %v2796 = vmul.f32 1.0, %v2795
        %v2797 = vrcp.pop %v2784
        %v2798 = vmul.f32 1.0, %v2797
        %v2799 = vrcp.pop %v2785
        %v2800 = vmul.f32 1.0, %v2799
        %v2801 = vrcp.pop %v2786
        %v2802 = vmul.f32 1.0, %v2801
        %v2803 = vmul.f32 %v2725, %v2788
        %v2804 = vmul.f32 %v2728, %v2790
        %v2805 = vmul.f32 %v2733, %v2792
        %v2806 = vmul.f32 %v2736, %v2794
        %v2807 = vmul.f32 %v2741, %v2796
        %v2808 = vmul.f32 %v2744, %v2798
        %v2809 = vmul.f32 %v2749, %v2800
        %v2810 = vmul.f32 %v2752, %v2802
        %v2811 = vadd.f32 %v2803, %v2804
        %v2812 = vadd.f32 %v2811, %v2805
        %v2813 = vadd.f32 %v2812, %v2806
        %v2814 = vadd.f32 %v2813, %v2807
        %v2815 = vadd.f32 %v2814, %v2808
        %v2816 = vadd.f32 %v2815, %v2809
        %v2817 = vadd.f32 %v2816, %v2810
        %v2818 = vrot.slane %v2817, 4
        %v2819 = vadd.f32 %v2817, %v2818
        %v2820 = vrot.slane %v2819, 2
        %v2821 = vadd.f32 %v2819, %v2820
        %v2822 = vrot.slane %v2821, 1
        %v2823 = vadd.f32 %v2821, %v2822
        %v2824 = vmul.f32 %v2823, 0.015625
        %v2825 = vpack.c.bf16 %v2824, %v2824
        %v2826 = vld [vmem:[%s21] sm:$0xf]
        %v2827 = vld [vmem:[%s21 + $0x4] sm:$0xf]
        %v2828 = vld [vmem:[%s21 + $0x8] sm:$0xf]
        %v2829 = vld [vmem:[%s21 + $0xc] sm:$0xf]
        %v2830 = vld [vmem:[%s21 + $0x10] sm:$0xf]
        %v2831 = vld [vmem:[%s21 + $0x14] sm:$0xf]
        %v2832 = vld [vmem:[%s21 + $0x18] sm:$0xf]
        %v2833 = vld [vmem:[%s21 + $0x1c] sm:$0xf]
        %v2834 = vld [vmem:[%s21 + $0x20] sm:$0xf]
        %v2835 = vld [vmem:[%s21 + $0x24] sm:$0xf]
        %v2836 = vld [vmem:[%s21 + $0x28] sm:$0xf]
        %v2837 = vld [vmem:[%s21 + $0x2c] sm:$0xf]
        %v2838 = vld [vmem:[%s21 + $0x30] sm:$0xf]
        %v2839 = vld [vmem:[%s21 + $0x34] sm:$0xf]
        %v2840 = vld [vmem:[%s21 + $0x38] sm:$0xf]
        %v2841 = vld [vmem:[%s21 + $0x3c] sm:$0xf]
        %v2842 = vld [vmem:[%s22] sm:$0x1]
        %v2859 = vunpack.c.l.b16 %v2826
        %v2860 = vunpack.c.l.b16 %v2827
        %v2861 = vunpack.c.l.b16 %v2828
        %v2862 = vunpack.c.l.b16 %v2829
        %v2863 = vunpack.c.l.b16 %v2830
        %v2864 = vunpack.c.l.b16 %v2831
        %v2865 = vunpack.c.l.b16 %v2832
        %v2866 = vunpack.c.l.b16 %v2833
        %v2867 = vunpack.c.l.b16 %v2834
        %v2868 = vunpack.c.l.b16 %v2835
        %v2869 = vunpack.c.l.b16 %v2836
        %v2870 = vunpack.c.l.b16 %v2837
        %v2871 = vunpack.c.l.b16 %v2838
        %v2872 = vunpack.c.l.b16 %v2839
        %v2873 = vunpack.c.l.b16 %v2840
        %v2874 = vunpack.c.l.b16 %v2841
        %v2875 = vpack.c.b16 %v2860, %v2859
        %v2876 = vpack.c.b16 %v2862, %v2861
        %v2877 = vpack.c.b16 %v2864, %v2863
        %v2878 = vpack.c.b16 %v2866, %v2865
        %v2879 = vpack.c.b16 %v2868, %v2867
        %v2880 = vpack.c.b16 %v2870, %v2869
        %v2881 = vpack.c.b16 %v2872, %v2871
        %v2882 = vpack.c.b16 %v2874, %v2873
        %2891 = vmatprep.subr.bf16.mxu0 0
        %2892 = vmatpush1.bf16.msra.mxu0 %v2875
        %2893 = vmatprep.subr.bf16.mxu0 0
        %2894 = vmatpush1.bf16.msra.mxu0 %v2876
        %2895 = vmatprep.subr.bf16.mxu0 0
        %2896 = vmatpush1.bf16.msra.mxu0 %v2877
        %2897 = vmatprep.subr.bf16.mxu0 0
        %2898 = vmatpush1.bf16.msra.mxu0 %v2878
        %2899 = vmatprep.subr.bf16.mxu0 0
        %2900 = vmatpush1.bf16.msra.mxu0 %v2879
        %2901 = vmatprep.subr.bf16.mxu0 0
        %2902 = vmatpush1.bf16.msra.mxu0 %v2880
        %2903 = vmatprep.subr.bf16.mxu0 0
        %2904 = vmatpush1.bf16.msra.mxu0 %v2881
        %2905 = vmatprep.subr.bf16.mxu0 0
        %2906 = vmatpush1.bf16.msra.mxu0 %v2882
        %2907 = vmatprep.subr.bf16.mxu0 0
        %2908 = vmatpush1.bf16.msra.mxu0 0
        %2909 = vmatprep.subr.bf16.mxu0 0
        %2910 = vmatpush1.bf16.msra.mxu0 0
        %2911 = vmatprep.subr.bf16.mxu0 0
        %2912 = vmatpush1.bf16.msra.mxu0 0
        %2913 = vmatprep.subr.bf16.mxu0 0
        %2914 = vmatpush1.bf16.msra.mxu0 0
        %2915 = vmatprep.subr.bf16.mxu0 0
        %2916 = vmatpush1.bf16.msra.mxu0 0
        %2917 = vmatprep.subr.bf16.mxu0 0
        %2918 = vmatpush1.bf16.msra.mxu0 0
        %2919 = vmatprep.subr.bf16.mxu0 0
        %2920 = vmatpush1.bf16.msra.mxu0 0
        %2921 = vmatprep.subr.bf16.mxu0 0
        %2922 = vmatpush1.bf16.msra.mxu0 0
        %2923 = vmatprep.mubr.bf16.mxu0 0
        %2924 = vmatmul.mubr.bf16.gmra.mrb[0].mxu0 %v2825
        %v2925 = vpop.f32.mrb[0].mxu0
        %v2926 = vadd.f32 %v2842, %v2925
        %v2927 = vpop.f32.mrb[0].mxu0
        %v2928 = vpop.f32.mrb[0].mxu0
        %v2929 = vpop.f32.mrb[0].mxu0
        %2930 = vdwg.mxu0
        %2931 = vst [vmem:[%s702] sm:$0x1] %v2926
        %s2932 = sand.u32 %s533, 1
        %s2933 = scalar_lea.sflag [#allocation4], %s2932
        %s2934 = sand.u32 %s533, 1
        %s2935 = scalar_lea.vmem [#allocation3], %s2934
        // Predicated region
        $region113: #{efficientnet_forward.3} parent=111 // pred_check
          %p2936 = pneg %p543
        $region114: #{efficientnet_forward.3} parent=111 // pred_check_branch
          %2938 = sbr.rel (%p2936) target = $region116
        $region115: #{efficientnet_forward.3} parent=111 // pred_region
          %s2940 = ssub.s32 16, 16
          %2941 = vsyncadd %s2933, %s2940
          %s2942 = smul.addr %s37, 16
          %s2943 = scalar_lea.hbm %s23, %s2942
          %s2945 = sshll.u32 %s2935, 4
          %s2946 = int_to_ptr.vmem [resolvable:$true] %s2945
          %2948 = dma.vmem_to_hbm [thread:$0]  %s2946, 16, %s2943, %s2933
        $region116: #{efficientnet_forward.3} parent=111 // pred_fallthru
          _
      $region112: #{efficientnet_forward.3} parent=5 // pred_fallthru
        _
      %p2949 = scmp.le.s32.totalorder 2, %s32
      // Predicated region
      $region117: #{efficientnet_forward.3} parent=5 // pred_check
        %p2950 = pneg %p2949
      $region118: #{efficientnet_forward.3} parent=5 // pred_check_branch
        %2952 = sbr.rel (%p2950) target = $region120
      $region119: #{efficientnet_forward.3} parent=5 // pred_region
        %s2953 = ssub.s32 %s32, 2
        // Predicated region
        $region121: #{efficientnet_forward.3} parent=119 // pred_check
          %p2954 = pneg %p549
        $region122: #{efficientnet_forward.3} parent=119 // pred_check_branch
          %2956 = sbr.rel (%p2954) target = $region124
        $region123: #{efficientnet_forward.3} parent=119 // pred_region
          %s2957 = sand.u32 %s534, 1
          %s2958 = scalar_lea.sflag [#allocation4], %s2957
          %s2959 = sand.u32 %s534, 1
          %s2960 = scalar_lea.vmem [#allocation3], %s2959
          %2961 = dma.done %s2958, 16
        $region124: #{efficientnet_forward.3} parent=119 // pred_fallthru
          _
      $region120: #{efficientnet_forward.3} parent=5 // pred_fallthru
        _
    $region6: #{efficientnet_forward.3} parent=1 // loop_footer
      %s36 = sadd.s32 1, %s32
    $region7: #{efficientnet_forward.3} parent=1 // loop_footer_branch
      %31 = sbr.rel target = $region3
    $region8: #{efficientnet_forward.3} parent=1 // loop_exit
      _
    %2962 = vsyncpa [#allocation4], 1
    %s2963 = scalar_lea.sflag [#allocation4], 1
    %2964 = vsyncpa %s2963, 1

</llo_original>
